<compile_context>
chip_gen: v5e
topology: v5e:2x2
jax: 0.10.0
libtpu: 0.0.40
codegen_flags: <defaults>
</compile_context>

<pallas_src>
import jax
import jax.numpy as jnp
from jax.experimental import pallas as pl
from jax.experimental.pallas import tpu as pltpu


# ----------------------------- Pallas kernel ---------------------------------

def _pos2d_kernel(col_ref, row_ref, o_ref):
    """Build the (2*D, H*W) channels-first position-embedding slab.

    col_ref: (w, D)  col_embed.weight[:w]   (x_emb)
    row_ref: (h, D)  row_embed.weight[:h]   (y_emb)
    o_ref  : (2*D, h*w) channels-first output, spatial flattened (lane-dense)
    """
    w, d = col_ref.shape
    h = row_ref.shape[0]

    # Small transposes only (D x 16 each), channel-major from the start.
    col_t = col_ref[...].T                                  # (D, w)
    row_t = row_ref[...].T                                  # (D, h)

    # token t = i*w + j ; top[c, t] = x_emb[j, c] ; bot[c, t] = y_emb[i, c]
    top = jnp.broadcast_to(col_t[:, None, :], (d, h, w)).reshape(d, h * w)
    bot = jnp.broadcast_to(row_t[:, :, None], (d, h, w)).reshape(d, h * w)

    o_ref[0:d, :] = top.astype(o_ref.dtype)                 # x-half  (D, h*w)
    o_ref[d:2 * d, :] = bot.astype(o_ref.dtype)             # y-half  (D, h*w)


# ----------------------------- wrapper ---------------------------------------

@jax.jit
def position_embedding_2d_learned(x, col_weight, row_weight):
    """Forward of PositionEmbedding2DLearned.

    x           : (B, C, H, W)  -- only the shape is used (data never read)
    col_weight  : (50, D)       col_embed.weight
    row_weight  : (50, D)       row_embed.weight
    returns     : (B, 2*D, H, W) in the weights' dtype
    """
    b = x.shape[0]
    h, w = x.shape[-2], x.shape[-1]
    d = col_weight.shape[1]
    out_dtype = col_weight.dtype

    slab = pl.pallas_call(
        _pos2d_kernel,
        out_shape=jax.ShapeDtypeStruct((2 * d, h * w), out_dtype),
        in_specs=[
            pl.BlockSpec(memory_space=pltpu.MemorySpace.VMEM),
            pl.BlockSpec(memory_space=pltpu.MemorySpace.VMEM),
        ],
        out_specs=pl.BlockSpec(memory_space=pltpu.MemorySpace.VMEM),
    )(col_weight[:w], row_weight[:h])        # only the used rows are DMA'd

    # Free contiguous reshape, then broadcast over batch (batch-independent data).
    pos = slab.reshape(2 * d, h, w)
    return jnp.broadcast_to(pos[None], (b, 2 * d, h, w))


# ----------------------------- main -------------------------------------------

if __name__ == "__main__":
    num_pos_feats = 128                      # module default
    batch, chans, height, width = 2, 4, 16, 16

    key = jax.random.PRNGKey(0)
    k_col, k_row, k_x = jax.random.split(key, 3)

    # nn.init.uniform_ -> U[0, 1)
    col_w = jax.random.uniform(k_col, (50, num_pos_feats), jnp.float32)
    row_w = jax.random.uniform(k_row, (50, num_pos_feats), jnp.float32)
    x = jax.random.normal(k_x, (batch, chans, height, width), jnp.float32)

    pos = position_embedding_2d_learned(x, col_w, row_w)
    pos = jax.block_until_ready(pos)
    assert pos.shape == (batch, 2 * num_pos_feats, height, width)
    assert pos.dtype == col_w.dtype

    # Pure-JAX reference (mirrors the torch code path exactly).
    x_emb = col_w[:width]                    # (W, D)
    y_emb = row_w[:height]                   # (H, D)
    ref_hw = jnp.concatenate(
        [jnp.broadcast_to(x_emb[None, :, :], (height, width, num_pos_feats)),
         jnp.broadcast_to(y_emb[:, None, :], (height, width, num_pos_feats))],
        axis=-1).transpose(2, 0, 1)          # (2D, H, W)
    ref = jnp.broadcast_to(ref_hw[None], (batch, 2 * num_pos_feats, height, width))

    assert bool(jnp.all(jnp.isfinite(pos)))
    assert jnp.array_equal(pos, ref), "Pallas output != reference"
    print("KERNEL_OK")
</pallas_src>

<mosaic_0001>
module attributes {stable_mosaic.version = 11 : i64} {
  func.func @_pos2d_kernel(%arg0: memref<16x128xf32, #tpu.memory_space<vmem>>, %arg1: memref<16x128xf32, #tpu.memory_space<vmem>>, %arg2: memref<256x256xf32, #tpu.memory_space<vmem>>) attributes {dimension_semantics = [], scalar_prefetch = 0 : i64, scratch_operands = 0 : i64, tpu.core_type = #tpu.core_type<tc>} {
    %c0 = arith.constant 0 : index
    %c0_0 = arith.constant 0 : index
    %0 = vector.load %arg0[%c0, %c0_0] : memref<16x128xf32, #tpu.memory_space<vmem>>, vector<16x128xf32>
    %1 = tpu.transpose %0, [1, 0] : vector<16x128xf32> -> vector<128x16xf32>
    %c0_1 = arith.constant 0 : index
    %c0_2 = arith.constant 0 : index
    %2 = vector.load %arg1[%c0_1, %c0_2] : memref<16x128xf32, #tpu.memory_space<vmem>>, vector<16x128xf32>
    %3 = tpu.transpose %2, [1, 0] : vector<16x128xf32> -> vector<128x16xf32>
    %4 = vector.shape_cast %1 : vector<128x16xf32> to vector<128x1x16xf32>
    %5 = vector.shape_cast %4 : vector<128x1x16xf32> to vector<128x1x16xf32>
    %6 = vector.broadcast %5 : vector<128x1x16xf32> to vector<128x16x16xf32>
    %7 = vector.shape_cast %6 : vector<128x16x16xf32> to vector<128x256xf32>
    %8 = vector.shape_cast %3 : vector<128x16xf32> to vector<128x16x1xf32>
    %9 = vector.shape_cast %8 : vector<128x16x1xf32> to vector<128x16x1xf32>
    %10 = vector.broadcast %9 : vector<128x16x1xf32> to vector<128x16x16xf32>
    %11 = vector.shape_cast %10 : vector<128x16x16xf32> to vector<128x256xf32>
    %c0_3 = arith.constant 0 : index
    %c0_4 = arith.constant 0 : index
    %12 = vector.load %arg2[%c0_3, %c0_4] : memref<256x256xf32, #tpu.memory_space<vmem>>, vector<128x256xf32>
    tpu.vector_store %arg2[%c0_3, %c0_4], %7 {strides = array<i32>} : memref<256x256xf32, #tpu.memory_space<vmem>>, vector<128x256xf32>,
    %c128 = arith.constant 128 : index
    %c0_5 = arith.constant 0 : index
    %13 = vector.load %arg2[%c128, %c0_5] : memref<256x256xf32, #tpu.memory_space<vmem>>, vector<128x256xf32>
    tpu.vector_store %arg2[%c128, %c0_5], %11 {strides = array<i32>} : memref<256x256xf32, #tpu.memory_space<vmem>>, vector<128x256xf32>,
    return
  }
}

</mosaic_0001>

<llo_original>
// kernel: position_embedding_2d_learned.1
$region0: #{position_embedding_2d_learned.1}
  #allocation0 [shape = 'u32[]', space=smem, size = 0x4, offset = 0x4, fixed_abs, tag = 'smem constant byte address 0x4 - core index']
  #allocation1 [shape = 'u32[72,128]{1,0:T(1,128)}', space=vmem, size = 0x9000, scoped, tag = 'internal scratch']
  %s0 = inlined_call_operand.vmem [shape: f32[16,128], index: 0, kind: input, shape index: {}]
  %s1 = inlined_call_operand.vmem [shape: f32[16,128], index: 1, kind: input, shape index: {}]
  %s2 = inlined_call_operand.vmem [shape: f32[256,256], index: 2, kind: output, shape index: {}]
  %s3 = sld [smem:[#allocation0]]
  $region18: #{position_embedding_2d_learned.1} parent=0
    _
  %s5 = ssub.s32 1, %s3
  %s6 = scalar_select 0, %s5, %s3
  // Predicated region
  $region2: #{position_embedding_2d_learned.1} parent=0 // pred_check
    _
  $region3: #{position_embedding_2d_learned.1} parent=0 // pred_check_branch
    %8 = sbr.rel (0) target = $region5
  $region4: #{position_embedding_2d_learned.1} parent=0 // pred_region
    _
  $region5: #{position_embedding_2d_learned.1} parent=0 // pred_fallthru
    _
  // Predicated region
  $region6: #{position_embedding_2d_learned.1} parent=0 // pred_check
    _
  $region7: #{position_embedding_2d_learned.1} parent=0 // pred_check_branch
    %10 = sbr.rel (0) target = $region9
  $region8: #{position_embedding_2d_learned.1} parent=0 // pred_region
    _
  $region9: #{position_embedding_2d_learned.1} parent=0 // pred_fallthru
    _
  %v11 = vld [vmem:[%s0] sm:$0xff]
  %v12 = vld [vmem:[%s0 + $0x8] sm:$0xff]
  %13 = vxpose.xlu0.b32.start [1/16] %v11, 128
  %14 = vxpose.xlu0.b32.cont [2/16] %v12, 128
  %15 = vxpose.xlu0.b32.cont [3/16] 0.0, 128
  %16 = vxpose.xlu0.b32.cont [4/16] 0.0, 128
  %17 = vxpose.xlu0.b32.cont [5/16] 0.0, 128
  %18 = vxpose.xlu0.b32.cont [6/16] 0.0, 128
  %19 = vxpose.xlu0.b32.cont [7/16] 0.0, 128
  %20 = vxpose.xlu0.b32.cont [8/16] 0.0, 128
  %21 = vxpose.xlu0.b32.cont [9/16] 0.0, 128
  %22 = vxpose.xlu0.b32.cont [10/16] 0.0, 128
  %23 = vxpose.xlu0.b32.cont [11/16] 0.0, 128
  %24 = vxpose.xlu0.b32.cont [12/16] 0.0, 128
  %25 = vxpose.xlu0.b32.cont [13/16] 0.0, 128
  %26 = vxpose.xlu0.b32.cont [14/16] 0.0, 128
  %27 = vxpose.xlu0.b32.cont [15/16] 0.0, 128
  %28 = vxpose.xlu0.b32.end [16/16] 0.0, 128
  %v29 = vpop.trf.xlu0
  %v30 = vpop.trf.xlu0
  %v31 = vpop.trf.xlu0
  %v32 = vpop.trf.xlu0
  %v33 = vpop.trf.xlu0
  %v34 = vpop.trf.xlu0
  %v35 = vpop.trf.xlu0
  %v36 = vpop.trf.xlu0
  %v37 = vpop.trf.xlu0
  %v38 = vpop.trf.xlu0
  %v39 = vpop.trf.xlu0
  %v40 = vpop.trf.xlu0
  %v41 = vpop.trf.xlu0
  %v42 = vpop.trf.xlu0
  %v43 = vpop.trf.xlu0
  %v44 = vpop.trf.xlu0
  %v45 = vld [vmem:[%s1] sm:$0xff]
  %v46 = vld [vmem:[%s1 + $0x8] sm:$0xff]
  %47 = vxpose.xlu0.b32.start [1/16] %v45, 128
  %48 = vxpose.xlu0.b32.cont [2/16] %v46, 128
  %49 = vxpose.xlu0.b32.cont [3/16] 0.0, 128
  %50 = vxpose.xlu0.b32.cont [4/16] 0.0, 128
  %51 = vxpose.xlu0.b32.cont [5/16] 0.0, 128
  %52 = vxpose.xlu0.b32.cont [6/16] 0.0, 128
  %53 = vxpose.xlu0.b32.cont [7/16] 0.0, 128
  %54 = vxpose.xlu0.b32.cont [8/16] 0.0, 128
  %55 = vxpose.xlu0.b32.cont [9/16] 0.0, 128
  %56 = vxpose.xlu0.b32.cont [10/16] 0.0, 128
  %57 = vxpose.xlu0.b32.cont [11/16] 0.0, 128
  %58 = vxpose.xlu0.b32.cont [12/16] 0.0, 128
  %59 = vxpose.xlu0.b32.cont [13/16] 0.0, 128
  %60 = vxpose.xlu0.b32.cont [14/16] 0.0, 128
  %61 = vxpose.xlu0.b32.cont [15/16] 0.0, 128
  %62 = vxpose.xlu0.b32.end [16/16] 0.0, 128
  %v63 = vpop.trf.xlu0
  %v64 = vpop.trf.xlu0
  %v65 = vpop.trf.xlu0
  %v66 = vpop.trf.xlu0
  %v67 = vpop.trf.xlu0
  %v68 = vpop.trf.xlu0
  %v69 = vpop.trf.xlu0
  %v70 = vpop.trf.xlu0
  %v71 = vpop.trf.xlu0
  %v72 = vpop.trf.xlu0
  %v73 = vpop.trf.xlu0
  %v74 = vpop.trf.xlu0
  %v75 = vpop.trf.xlu0
  %v76 = vpop.trf.xlu0
  %v77 = vpop.trf.xlu0
  %v78 = vpop.trf.xlu0
  %v95 = vrot.slane %v29, 1
  %v96 = vrot.slane %v29, 2
  %v97 = vrot.slane %v29, 3
  %v98 = vrot.slane %v29, 4
  %v99 = vrot.slane %v29, 5
  %v100 = vrot.slane %v29, 6
  %v101 = vrot.slane %v29, 7
  %v102 = vrot.slane %v30, 1
  %v103 = vrot.slane %v30, 2
  %v104 = vrot.slane %v30, 3
  %v105 = vrot.slane %v30, 4
  %v106 = vrot.slane %v30, 5
  %v107 = vrot.slane %v30, 6
  %v108 = vrot.slane %v30, 7
  %v109 = vrot.slane %v31, 1
  %v110 = vrot.slane %v31, 2
  %v111 = vrot.slane %v31, 3
  %v112 = vrot.slane %v31, 4
  %v113 = vrot.slane %v31, 5
  %v114 = vrot.slane %v31, 6
  %v115 = vrot.slane %v31, 7
  %v116 = vrot.slane %v32, 1
  %v117 = vrot.slane %v32, 2
  %v118 = vrot.slane %v32, 3
  %v119 = vrot.slane %v32, 4
  %v120 = vrot.slane %v32, 5
  %v121 = vrot.slane %v32, 6
  %v122 = vrot.slane %v32, 7
  %v123 = vrot.slane %v33, 1
  %v124 = vrot.slane %v33, 2
  %v125 = vrot.slane %v33, 3
  %v126 = vrot.slane %v33, 4
  %v127 = vrot.slane %v33, 5
  %v128 = vrot.slane %v33, 6
  %v129 = vrot.slane %v33, 7
  %v130 = vrot.slane %v34, 1
  %v131 = vrot.slane %v34, 2
  %v132 = vrot.slane %v34, 3
  %v133 = vrot.slane %v34, 4
  %v134 = vrot.slane %v34, 5
  %v135 = vrot.slane %v34, 6
  %v136 = vrot.slane %v34, 7
  %v137 = vrot.slane %v35, 1
  %v138 = vrot.slane %v35, 2
  %v139 = vrot.slane %v35, 3
  %v140 = vrot.slane %v35, 4
  %v141 = vrot.slane %v35, 5
  %v142 = vrot.slane %v35, 6
  %v143 = vrot.slane %v35, 7
  %v144 = vrot.slane %v36, 1
  %v145 = vrot.slane %v36, 2
  %v146 = vrot.slane %v36, 3
  %v147 = vrot.slane %v36, 4
  %v148 = vrot.slane %v36, 5
  %v149 = vrot.slane %v36, 6
  %v150 = vrot.slane %v36, 7
  %v151 = vrot.slane %v37, 1
  %v152 = vrot.slane %v37, 2
  %v153 = vrot.slane %v37, 3
  %v154 = vrot.slane %v37, 4
  %v155 = vrot.slane %v37, 5
  %v156 = vrot.slane %v37, 6
  %v157 = vrot.slane %v37, 7
  %v158 = vrot.slane %v38, 1
  %v159 = vrot.slane %v38, 2
  %v160 = vrot.slane %v38, 3
  %v161 = vrot.slane %v38, 4
  %v162 = vrot.slane %v38, 5
  %v163 = vrot.slane %v38, 6
  %v164 = vrot.slane %v38, 7
  %v165 = vrot.slane %v39, 1
  %v166 = vrot.slane %v39, 2
  %v167 = vrot.slane %v39, 3
  %v168 = vrot.slane %v39, 4
  %v169 = vrot.slane %v39, 5
  %v170 = vrot.slane %v39, 6
  %v171 = vrot.slane %v39, 7
  %v172 = vrot.slane %v40, 1
  %v173 = vrot.slane %v40, 2
  %v174 = vrot.slane %v40, 3
  %v175 = vrot.slane %v40, 4
  %v176 = vrot.slane %v40, 5
  %v177 = vrot.slane %v40, 6
  %v178 = vrot.slane %v40, 7
  %v179 = vrot.slane %v41, 1
  %v180 = vrot.slane %v41, 2
  %v181 = vrot.slane %v41, 3
  %v182 = vrot.slane %v41, 4
  %v183 = vrot.slane %v41, 5
  %v184 = vrot.slane %v41, 6
  %v185 = vrot.slane %v41, 7
  %v186 = vrot.slane %v42, 1
  %v187 = vrot.slane %v42, 2
  %v188 = vrot.slane %v42, 3
  %v189 = vrot.slane %v42, 4
  %v190 = vrot.slane %v42, 5
  %v191 = vrot.slane %v42, 6
  %v192 = vrot.slane %v42, 7
  %v193 = vrot.slane %v43, 1
  %v194 = vrot.slane %v43, 2
  %v195 = vrot.slane %v43, 3
  %v196 = vrot.slane %v43, 4
  %v197 = vrot.slane %v43, 5
  %v198 = vrot.slane %v43, 6
  %v199 = vrot.slane %v43, 7
  %v200 = vrot.slane %v44, 1
  %v201 = vrot.slane %v44, 2
  %v202 = vrot.slane %v44, 3
  %v203 = vrot.slane %v44, 4
  %v204 = vrot.slane %v44, 5
  %v205 = vrot.slane %v44, 6
  %v206 = vrot.slane %v44, 7
  %v207 = vperm.slane %v29, 0
  %v208 = vperm.slane %v95, 0
  %v209 = vperm.slane %v96, 0
  %v210 = vperm.slane %v97, 0
  %v211 = vperm.slane %v98, 0
  %v212 = vperm.slane %v99, 0
  %v213 = vperm.slane %v100, 0
  %v214 = vperm.slane %v101, 0
  %v215 = vperm.slane %v30, 0
  %v216 = vperm.slane %v102, 0
  %v217 = vperm.slane %v103, 0
  %v218 = vperm.slane %v104, 0
  %v219 = vperm.slane %v105, 0
  %v220 = vperm.slane %v106, 0
  %v221 = vperm.slane %v107, 0
  %v222 = vperm.slane %v108, 0
  %v223 = vperm.slane %v31, 0
  %v224 = vperm.slane %v109, 0
  %v225 = vperm.slane %v110, 0
  %v226 = vperm.slane %v111, 0
  %v227 = vperm.slane %v112, 0
  %v228 = vperm.slane %v113, 0
  %v229 = vperm.slane %v114, 0
  %v230 = vperm.slane %v115, 0
  %v231 = vperm.slane %v32, 0
  %v232 = vperm.slane %v116, 0
  %v233 = vperm.slane %v117, 0
  %v234 = vperm.slane %v118, 0
  %v235 = vperm.slane %v119, 0
  %v236 = vperm.slane %v120, 0
  %v237 = vperm.slane %v121, 0
  %v238 = vperm.slane %v122, 0
  %v239 = vperm.slane %v33, 0
  %v240 = vperm.slane %v123, 0
  %v241 = vperm.slane %v124, 0
  %v242 = vperm.slane %v125, 0
  %v243 = vperm.slane %v126, 0
  %v244 = vperm.slane %v127, 0
  %v245 = vperm.slane %v128, 0
  %v246 = vperm.slane %v129, 0
  %v247 = vperm.slane %v34, 0
  %v248 = vperm.slane %v130, 0
  %v249 = vperm.slane %v131, 0
  %v250 = vperm.slane %v132, 0
  %v251 = vperm.slane %v133, 0
  %v252 = vperm.slane %v134, 0
  %v253 = vperm.slane %v135, 0
  %v254 = vperm.slane %v136, 0
  %v255 = vperm.slane %v35, 0
  %v256 = vperm.slane %v137, 0
  %v257 = vperm.slane %v138, 0
  %v258 = vperm.slane %v139, 0
  %v259 = vperm.slane %v140, 0
  %v260 = vperm.slane %v141, 0
  %v261 = vperm.slane %v142, 0
  %v262 = vperm.slane %v143, 0
  %v263 = vperm.slane %v36, 0
  %v264 = vperm.slane %v144, 0
  %v265 = vperm.slane %v145, 0
  %v266 = vperm.slane %v146, 0
  %v267 = vperm.slane %v147, 0
  %v268 = vperm.slane %v148, 0
  %v269 = vperm.slane %v149, 0
  %v270 = vperm.slane %v150, 0
  %v271 = vperm.slane %v37, 0
  %v272 = vperm.slane %v151, 0
  %v273 = vperm.slane %v152, 0
  %v274 = vperm.slane %v153, 0
  %v275 = vperm.slane %v154, 0
  %v276 = vperm.slane %v155, 0
  %v277 = vperm.slane %v156, 0
  %v278 = vperm.slane %v157, 0
  %v279 = vperm.slane %v38, 0
  %v280 = vperm.slane %v158, 0
  %v281 = vperm.slane %v159, 0
  %v282 = vperm.slane %v160, 0
  %v283 = vperm.slane %v161, 0
  %v284 = vperm.slane %v162, 0
  %v285 = vperm.slane %v163, 0
  %v286 = vperm.slane %v164, 0
  %v287 = vperm.slane %v39, 0
  %v288 = vperm.slane %v165, 0
  %v289 = vperm.slane %v166, 0
  %v290 = vperm.slane %v167, 0
  %v291 = vperm.slane %v168, 0
  %v292 = vperm.slane %v169, 0
  %v293 = vperm.slane %v170, 0
  %v294 = vperm.slane %v171, 0
  %v295 = vperm.slane %v40, 0
  %v296 = vperm.slane %v172, 0
  %v297 = vperm.slane %v173, 0
  %v298 = vperm.slane %v174, 0
  %v299 = vperm.slane %v175, 0
  %v300 = vperm.slane %v176, 0
  %v301 = vperm.slane %v177, 0
  %v302 = vperm.slane %v178, 0
  %v303 = vperm.slane %v41, 0
  %v304 = vperm.slane %v179, 0
  %v305 = vperm.slane %v180, 0
  %v306 = vperm.slane %v181, 0
  %v307 = vperm.slane %v182, 0
  %v308 = vperm.slane %v183, 0
  %v309 = vperm.slane %v184, 0
  %v310 = vperm.slane %v185, 0
  %v311 = vperm.slane %v42, 0
  %v312 = vperm.slane %v186, 0
  %v313 = vperm.slane %v187, 0
  %v314 = vperm.slane %v188, 0
  %v315 = vperm.slane %v189, 0
  %v316 = vperm.slane %v190, 0
  %v317 = vperm.slane %v191, 0
  %v318 = vperm.slane %v192, 0
  %v319 = vperm.slane %v43, 0
  %v320 = vperm.slane %v193, 0
  %v321 = vperm.slane %v194, 0
  %v322 = vperm.slane %v195, 0
  %v323 = vperm.slane %v196, 0
  %v324 = vperm.slane %v197, 0
  %v325 = vperm.slane %v198, 0
  %v326 = vperm.slane %v199, 0
  %v327 = vperm.slane %v44, 0
  %v328 = vperm.slane %v200, 0
  %v329 = vperm.slane %v201, 0
  %v330 = vperm.slane %v202, 0
  %v331 = vperm.slane %v203, 0
  %v332 = vperm.slane %v204, 0
  %v333 = vperm.slane %v205, 0
  %v334 = vperm.slane %v206, 0
  %v463 = vrot.slane %v209, 4
  %vm464 = vcmask 1047556
  %v465 = vsel %vm464, %v463, %v207
  %v466 = vrot.slane %v207, 4
  %v467 = vsel %vm464, %v209, %v466
  %v469 = vunpack.c.l.s4 1983009808
  %v470 = vunpack.c.0.s8 %v469
  %v471 = vperm.slane %v465, %v470
  %v473 = vunpack.c.l.s4 1983009808
  %v474 = vunpack.c.0.s8 %v473
  %v475 = vperm.slane %v467, %v474
  %v476 = vrot.slane %v210, 4
  %v477 = vsel %vm464, %v476, %v208
  %v478 = vrot.slane %v208, 4
  %v479 = vsel %vm464, %v210, %v478
  %v481 = vunpack.c.l.s4 1983009808
  %v482 = vunpack.c.0.s8 %v481
  %v483 = vperm.slane %v477, %v482
  %v485 = vunpack.c.l.s4 1983009808
  %v486 = vunpack.c.0.s8 %v485
  %v487 = vperm.slane %v479, %v486
  %v488 = vrot.slane %v213, 4
  %v489 = vsel %vm464, %v488, %v211
  %v490 = vrot.slane %v211, 4
  %v491 = vsel %vm464, %v213, %v490
  %v493 = vunpack.c.l.s4 1983009808
  %v494 = vunpack.c.0.s8 %v493
  %v495 = vperm.slane %v489, %v494
  %v497 = vunpack.c.l.s4 1983009808
  %v498 = vunpack.c.0.s8 %v497
  %v499 = vperm.slane %v491, %v498
  %v500 = vrot.slane %v214, 4
  %v501 = vsel %vm464, %v500, %v212
  %v502 = vrot.slane %v212, 4
  %v503 = vsel %vm464, %v214, %v502
  %v505 = vunpack.c.l.s4 1983009808
  %v506 = vunpack.c.0.s8 %v505
  %v507 = vperm.slane %v501, %v506
  %v509 = vunpack.c.l.s4 1983009808
  %v510 = vunpack.c.0.s8 %v509
  %v511 = vperm.slane %v503, %v510
  %v512 = vrot.slane %v483, 4
  %v513 = vsel %vm464, %v512, %v471
  %v514 = vrot.slane %v471, 4
  %v515 = vsel %vm464, %v483, %v514
  %v517 = vunpack.c.l.s4 1934713408
  %v518 = vunpack.c.0.s8 %v517
  %v519 = vperm.slane %v513, %v518
  %v521 = vunpack.c.l.s4 1934713408
  %v522 = vunpack.c.0.s8 %v521
  %v523 = vperm.slane %v515, %v522
  %v524 = vrot.slane %v487, 4
  %v525 = vsel %vm464, %v524, %v475
  %v526 = vrot.slane %v475, 4
  %v527 = vsel %vm464, %v487, %v526
  %v529 = vunpack.c.l.s4 1934713408
  %v530 = vunpack.c.0.s8 %v529
  %v531 = vperm.slane %v525, %v530
  %v533 = vunpack.c.l.s4 1934713408
  %v534 = vunpack.c.0.s8 %v533
  %v535 = vperm.slane %v527, %v534
  %v536 = vrot.slane %v507, 4
  %v537 = vsel %vm464, %v536, %v495
  %v538 = vrot.slane %v495, 4
  %v539 = vsel %vm464, %v507, %v538
  %v541 = vunpack.c.l.s4 1934713408
  %v542 = vunpack.c.0.s8 %v541
  %v543 = vperm.slane %v537, %v542
  %v545 = vunpack.c.l.s4 1934713408
  %v546 = vunpack.c.0.s8 %v545
  %v547 = vperm.slane %v539, %v546
  %v548 = vrot.slane %v511, 4
  %v549 = vsel %vm464, %v548, %v499
  %v550 = vrot.slane %v499, 4
  %v551 = vsel %vm464, %v511, %v550
  %v553 = vunpack.c.l.s4 1934713408
  %v554 = vunpack.c.0.s8 %v553
  %v555 = vperm.slane %v549, %v554
  %v557 = vunpack.c.l.s4 1934713408
  %v558 = vunpack.c.0.s8 %v557
  %v559 = vperm.slane %v551, %v558
  %v560 = vrot.slane %v543, 4
  %v561 = vsel %vm464, %v560, %v519
  %v562 = vrot.slane %v519, 4
  %v563 = vsel %vm464, %v543, %v562
  %v564 = vrot.slane %v547, 4
  %v565 = vsel %vm464, %v564, %v523
  %v566 = vrot.slane %v523, 4
  %v567 = vsel %vm464, %v547, %v566
  %v568 = vrot.slane %v555, 4
  %v569 = vsel %vm464, %v568, %v531
  %v570 = vrot.slane %v531, 4
  %v571 = vsel %vm464, %v555, %v570
  %v572 = vrot.slane %v559, 4
  %v573 = vsel %vm464, %v572, %v535
  %v574 = vrot.slane %v535, 4
  %v575 = vsel %vm464, %v559, %v574
  %v576 = vrot.slane %v217, 4
  %v577 = vsel %vm464, %v576, %v215
  %v578 = vrot.slane %v215, 4
  %v579 = vsel %vm464, %v217, %v578
  %v581 = vunpack.c.l.s4 1983009808
  %v582 = vunpack.c.0.s8 %v581
  %v583 = vperm.slane %v577, %v582
  %v585 = vunpack.c.l.s4 1983009808
  %v586 = vunpack.c.0.s8 %v585
  %v587 = vperm.slane %v579, %v586
  %v588 = vrot.slane %v218, 4
  %v589 = vsel %vm464, %v588, %v216
  %v590 = vrot.slane %v216, 4
  %v591 = vsel %vm464, %v218, %v590
  %v593 = vunpack.c.l.s4 1983009808
  %v594 = vunpack.c.0.s8 %v593
  %v595 = vperm.slane %v589, %v594
  %v597 = vunpack.c.l.s4 1983009808
  %v598 = vunpack.c.0.s8 %v597
  %v599 = vperm.slane %v591, %v598
  %v600 = vrot.slane %v221, 4
  %v601 = vsel %vm464, %v600, %v219
  %v602 = vrot.slane %v219, 4
  %v603 = vsel %vm464, %v221, %v602
  %v605 = vunpack.c.l.s4 1983009808
  %v606 = vunpack.c.0.s8 %v605
  %v607 = vperm.slane %v601, %v606
  %v609 = vunpack.c.l.s4 1983009808
  %v610 = vunpack.c.0.s8 %v609
  %v611 = vperm.slane %v603, %v610
  %v612 = vrot.slane %v222, 4
  %v613 = vsel %vm464, %v612, %v220
  %v614 = vrot.slane %v220, 4
  %v615 = vsel %vm464, %v222, %v614
  %v617 = vunpack.c.l.s4 1983009808
  %v618 = vunpack.c.0.s8 %v617
  %v619 = vperm.slane %v613, %v618
  %v621 = vunpack.c.l.s4 1983009808
  %v622 = vunpack.c.0.s8 %v621
  %v623 = vperm.slane %v615, %v622
  %v624 = vrot.slane %v595, 4
  %v625 = vsel %vm464, %v624, %v583
  %v626 = vrot.slane %v583, 4
  %v627 = vsel %vm464, %v595, %v626
  %v629 = vunpack.c.l.s4 1934713408
  %v630 = vunpack.c.0.s8 %v629
  %v631 = vperm.slane %v625, %v630
  %v633 = vunpack.c.l.s4 1934713408
  %v634 = vunpack.c.0.s8 %v633
  %v635 = vperm.slane %v627, %v634
  %v636 = vrot.slane %v599, 4
  %v637 = vsel %vm464, %v636, %v587
  %v638 = vrot.slane %v587, 4
  %v639 = vsel %vm464, %v599, %v638
  %v641 = vunpack.c.l.s4 1934713408
  %v642 = vunpack.c.0.s8 %v641
  %v643 = vperm.slane %v637, %v642
  %v645 = vunpack.c.l.s4 1934713408
  %v646 = vunpack.c.0.s8 %v645
  %v647 = vperm.slane %v639, %v646
  %v648 = vrot.slane %v619, 4
  %v649 = vsel %vm464, %v648, %v607
  %v650 = vrot.slane %v607, 4
  %v651 = vsel %vm464, %v619, %v650
  %v653 = vunpack.c.l.s4 1934713408
  %v654 = vunpack.c.0.s8 %v653
  %v655 = vperm.slane %v649, %v654
  %v657 = vunpack.c.l.s4 1934713408
  %v658 = vunpack.c.0.s8 %v657
  %v659 = vperm.slane %v651, %v658
  %v660 = vrot.slane %v623, 4
  %v661 = vsel %vm464, %v660, %v611
  %v662 = vrot.slane %v611, 4
  %v663 = vsel %vm464, %v623, %v662
  %v665 = vunpack.c.l.s4 1934713408
  %v666 = vunpack.c.0.s8 %v665
  %v667 = vperm.slane %v661, %v666
  %v669 = vunpack.c.l.s4 1934713408
  %v670 = vunpack.c.0.s8 %v669
  %v671 = vperm.slane %v663, %v670
  %v672 = vrot.slane %v655, 4
  %v673 = vsel %vm464, %v672, %v631
  %v674 = vrot.slane %v631, 4
  %v675 = vsel %vm464, %v655, %v674
  %v676 = vrot.slane %v659, 4
  %v677 = vsel %vm464, %v676, %v635
  %v678 = vrot.slane %v635, 4
  %v679 = vsel %vm464, %v659, %v678
  %v680 = vrot.slane %v667, 4
  %v681 = vsel %vm464, %v680, %v643
  %v682 = vrot.slane %v643, 4
  %v683 = vsel %vm464, %v667, %v682
  %v684 = vrot.slane %v671, 4
  %v685 = vsel %vm464, %v684, %v647
  %v686 = vrot.slane %v647, 4
  %v687 = vsel %vm464, %v671, %v686
  %v688 = vrot.slane %v225, 4
  %v689 = vsel %vm464, %v688, %v223
  %v690 = vrot.slane %v223, 4
  %v691 = vsel %vm464, %v225, %v690
  %v693 = vunpack.c.l.s4 1983009808
  %v694 = vunpack.c.0.s8 %v693
  %v695 = vperm.slane %v689, %v694
  %v697 = vunpack.c.l.s4 1983009808
  %v698 = vunpack.c.0.s8 %v697
  %v699 = vperm.slane %v691, %v698
  %v700 = vrot.slane %v226, 4
  %v701 = vsel %vm464, %v700, %v224
  %v702 = vrot.slane %v224, 4
  %v703 = vsel %vm464, %v226, %v702
  %v705 = vunpack.c.l.s4 1983009808
  %v706 = vunpack.c.0.s8 %v705
  %v707 = vperm.slane %v701, %v706
  %v709 = vunpack.c.l.s4 1983009808
  %v710 = vunpack.c.0.s8 %v709
  %v711 = vperm.slane %v703, %v710
  %v712 = vrot.slane %v229, 4
  %v713 = vsel %vm464, %v712, %v227
  %v714 = vrot.slane %v227, 4
  %v715 = vsel %vm464, %v229, %v714
  %v717 = vunpack.c.l.s4 1983009808
  %v718 = vunpack.c.0.s8 %v717
  %v719 = vperm.slane %v713, %v718
  %v721 = vunpack.c.l.s4 1983009808
  %v722 = vunpack.c.0.s8 %v721
  %v723 = vperm.slane %v715, %v722
  %v724 = vrot.slane %v230, 4
  %v725 = vsel %vm464, %v724, %v228
  %v726 = vrot.slane %v228, 4
  %v727 = vsel %vm464, %v230, %v726
  %v729 = vunpack.c.l.s4 1983009808
  %v730 = vunpack.c.0.s8 %v729
  %v731 = vperm.slane %v725, %v730
  %v733 = vunpack.c.l.s4 1983009808
  %v734 = vunpack.c.0.s8 %v733
  %v735 = vperm.slane %v727, %v734
  %v736 = vrot.slane %v707, 4
  %v737 = vsel %vm464, %v736, %v695
  %v738 = vrot.slane %v695, 4
  %v739 = vsel %vm464, %v707, %v738
  %v741 = vunpack.c.l.s4 1934713408
  %v742 = vunpack.c.0.s8 %v741
  %v743 = vperm.slane %v737, %v742
  %v745 = vunpack.c.l.s4 1934713408
  %v746 = vunpack.c.0.s8 %v745
  %v747 = vperm.slane %v739, %v746
  %v748 = vrot.slane %v711, 4
  %v749 = vsel %vm464, %v748, %v699
  %v750 = vrot.slane %v699, 4
  %v751 = vsel %vm464, %v711, %v750
  %v753 = vunpack.c.l.s4 1934713408
  %v754 = vunpack.c.0.s8 %v753
  %v755 = vperm.slane %v749, %v754
  %v757 = vunpack.c.l.s4 1934713408
  %v758 = vunpack.c.0.s8 %v757
  %v759 = vperm.slane %v751, %v758
  %v760 = vrot.slane %v731, 4
  %v761 = vsel %vm464, %v760, %v719
  %v762 = vrot.slane %v719, 4
  %v763 = vsel %vm464, %v731, %v762
  %v765 = vunpack.c.l.s4 1934713408
  %v766 = vunpack.c.0.s8 %v765
  %v767 = vperm.slane %v761, %v766
  %v769 = vunpack.c.l.s4 1934713408
  %v770 = vunpack.c.0.s8 %v769
  %v771 = vperm.slane %v763, %v770
  %v772 = vrot.slane %v735, 4
  %v773 = vsel %vm464, %v772, %v723
  %v774 = vrot.slane %v723, 4
  %v775 = vsel %vm464, %v735, %v774
  %v777 = vunpack.c.l.s4 1934713408
  %v778 = vunpack.c.0.s8 %v777
  %v779 = vperm.slane %v773, %v778
  %v781 = vunpack.c.l.s4 1934713408
  %v782 = vunpack.c.0.s8 %v781
  %v783 = vperm.slane %v775, %v782
  %v784 = vrot.slane %v767, 4
  %v785 = vsel %vm464, %v784, %v743
  %v786 = vrot.slane %v743, 4
  %v787 = vsel %vm464, %v767, %v786
  %v788 = vrot.slane %v771, 4
  %v789 = vsel %vm464, %v788, %v747
  %v790 = vrot.slane %v747, 4
  %v791 = vsel %vm464, %v771, %v790
  %v792 = vrot.slane %v779, 4
  %v793 = vsel %vm464, %v792, %v755
  %v794 = vrot.slane %v755, 4
  %v795 = vsel %vm464, %v779, %v794
  %v796 = vrot.slane %v783, 4
  %v797 = vsel %vm464, %v796, %v759
  %v798 = vrot.slane %v759, 4
  %v799 = vsel %vm464, %v783, %v798
  %v800 = vrot.slane %v233, 4
  %v801 = vsel %vm464, %v800, %v231
  %v802 = vrot.slane %v231, 4
  %v803 = vsel %vm464, %v233, %v802
  %v805 = vunpack.c.l.s4 1983009808
  %v806 = vunpack.c.0.s8 %v805
  %v807 = vperm.slane %v801, %v806
  %v809 = vunpack.c.l.s4 1983009808
  %v810 = vunpack.c.0.s8 %v809
  %v811 = vperm.slane %v803, %v810
  %v812 = vrot.slane %v234, 4
  %v813 = vsel %vm464, %v812, %v232
  %v814 = vrot.slane %v232, 4
  %v815 = vsel %vm464, %v234, %v814
  %v817 = vunpack.c.l.s4 1983009808
  %v818 = vunpack.c.0.s8 %v817
  %v819 = vperm.slane %v813, %v818
  %v821 = vunpack.c.l.s4 1983009808
  %v822 = vunpack.c.0.s8 %v821
  %v823 = vperm.slane %v815, %v822
  %v824 = vrot.slane %v237, 4
  %v825 = vsel %vm464, %v824, %v235
  %v826 = vrot.slane %v235, 4
  %v827 = vsel %vm464, %v237, %v826
  %v829 = vunpack.c.l.s4 1983009808
  %v830 = vunpack.c.0.s8 %v829
  %v831 = vperm.slane %v825, %v830
  %v833 = vunpack.c.l.s4 1983009808
  %v834 = vunpack.c.0.s8 %v833
  %v835 = vperm.slane %v827, %v834
  %v836 = vrot.slane %v238, 4
  %v837 = vsel %vm464, %v836, %v236
  %v838 = vrot.slane %v236, 4
  %v839 = vsel %vm464, %v238, %v838
  %v841 = vunpack.c.l.s4 1983009808
  %v842 = vunpack.c.0.s8 %v841
  %v843 = vperm.slane %v837, %v842
  %v845 = vunpack.c.l.s4 1983009808
  %v846 = vunpack.c.0.s8 %v845
  %v847 = vperm.slane %v839, %v846
  %v848 = vrot.slane %v819, 4
  %v849 = vsel %vm464, %v848, %v807
  %v850 = vrot.slane %v807, 4
  %v851 = vsel %vm464, %v819, %v850
  %v853 = vunpack.c.l.s4 1934713408
  %v854 = vunpack.c.0.s8 %v853
  %v855 = vperm.slane %v849, %v854
  %v857 = vunpack.c.l.s4 1934713408
  %v858 = vunpack.c.0.s8 %v857
  %v859 = vperm.slane %v851, %v858
  %v860 = vrot.slane %v823, 4
  %v861 = vsel %vm464, %v860, %v811
  %v862 = vrot.slane %v811, 4
  %v863 = vsel %vm464, %v823, %v862
  %v865 = vunpack.c.l.s4 1934713408
  %v866 = vunpack.c.0.s8 %v865
  %v867 = vperm.slane %v861, %v866
  %v869 = vunpack.c.l.s4 1934713408
  %v870 = vunpack.c.0.s8 %v869
  %v871 = vperm.slane %v863, %v870
  %v872 = vrot.slane %v843, 4
  %v873 = vsel %vm464, %v872, %v831
  %v874 = vrot.slane %v831, 4
  %v875 = vsel %vm464, %v843, %v874
  %v877 = vunpack.c.l.s4 1934713408
  %v878 = vunpack.c.0.s8 %v877
  %v879 = vperm.slane %v873, %v878
  %v881 = vunpack.c.l.s4 1934713408
  %v882 = vunpack.c.0.s8 %v881
  %v883 = vperm.slane %v875, %v882
  %v884 = vrot.slane %v847, 4
  %v885 = vsel %vm464, %v884, %v835
  %v886 = vrot.slane %v835, 4
  %v887 = vsel %vm464, %v847, %v886
  %v889 = vunpack.c.l.s4 1934713408
  %v890 = vunpack.c.0.s8 %v889
  %v891 = vperm.slane %v885, %v890
  %v893 = vunpack.c.l.s4 1934713408
  %v894 = vunpack.c.0.s8 %v893
  %v895 = vperm.slane %v887, %v894
  %v896 = vrot.slane %v879, 4
  %v897 = vsel %vm464, %v896, %v855
  %v898 = vrot.slane %v855, 4
  %v899 = vsel %vm464, %v879, %v898
  %v900 = vrot.slane %v883, 4
  %v901 = vsel %vm464, %v900, %v859
  %v902 = vrot.slane %v859, 4
  %v903 = vsel %vm464, %v883, %v902
  %v904 = vrot.slane %v891, 4
  %v905 = vsel %vm464, %v904, %v867
  %v906 = vrot.slane %v867, 4
  %v907 = vsel %vm464, %v891, %v906
  %v908 = vrot.slane %v895, 4
  %v909 = vsel %vm464, %v908, %v871
  %v910 = vrot.slane %v871, 4
  %v911 = vsel %vm464, %v895, %v910
  %v912 = vrot.slane %v241, 4
  %v913 = vsel %vm464, %v912, %v239
  %v914 = vrot.slane %v239, 4
  %v915 = vsel %vm464, %v241, %v914
  %v917 = vunpack.c.l.s4 1983009808
  %v918 = vunpack.c.0.s8 %v917
  %v919 = vperm.slane %v913, %v918
  %v921 = vunpack.c.l.s4 1983009808
  %v922 = vunpack.c.0.s8 %v921
  %v923 = vperm.slane %v915, %v922
  %v924 = vrot.slane %v242, 4
  %v925 = vsel %vm464, %v924, %v240
  %v926 = vrot.slane %v240, 4
  %v927 = vsel %vm464, %v242, %v926
  %v929 = vunpack.c.l.s4 1983009808
  %v930 = vunpack.c.0.s8 %v929
  %v931 = vperm.slane %v925, %v930
  %v933 = vunpack.c.l.s4 1983009808
  %v934 = vunpack.c.0.s8 %v933
  %v935 = vperm.slane %v927, %v934
  %v936 = vrot.slane %v245, 4
  %v937 = vsel %vm464, %v936, %v243
  %v938 = vrot.slane %v243, 4
  %v939 = vsel %vm464, %v245, %v938
  %v941 = vunpack.c.l.s4 1983009808
  %v942 = vunpack.c.0.s8 %v941
  %v943 = vperm.slane %v937, %v942
  %v945 = vunpack.c.l.s4 1983009808
  %v946 = vunpack.c.0.s8 %v945
  %v947 = vperm.slane %v939, %v946
  %v948 = vrot.slane %v246, 4
  %v949 = vsel %vm464, %v948, %v244
  %v950 = vrot.slane %v244, 4
  %v951 = vsel %vm464, %v246, %v950
  %v953 = vunpack.c.l.s4 1983009808
  %v954 = vunpack.c.0.s8 %v953
  %v955 = vperm.slane %v949, %v954
  %v957 = vunpack.c.l.s4 1983009808
  %v958 = vunpack.c.0.s8 %v957
  %v959 = vperm.slane %v951, %v958
  %v960 = vrot.slane %v931, 4
  %v961 = vsel %vm464, %v960, %v919
  %v962 = vrot.slane %v919, 4
  %v963 = vsel %vm464, %v931, %v962
  %v965 = vunpack.c.l.s4 1934713408
  %v966 = vunpack.c.0.s8 %v965
  %v967 = vperm.slane %v961, %v966
  %v969 = vunpack.c.l.s4 1934713408
  %v970 = vunpack.c.0.s8 %v969
  %v971 = vperm.slane %v963, %v970
  %v972 = vrot.slane %v935, 4
  %v973 = vsel %vm464, %v972, %v923
  %v974 = vrot.slane %v923, 4
  %v975 = vsel %vm464, %v935, %v974
  %v977 = vunpack.c.l.s4 1934713408
  %v978 = vunpack.c.0.s8 %v977
  %v979 = vperm.slane %v973, %v978
  %v981 = vunpack.c.l.s4 1934713408
  %v982 = vunpack.c.0.s8 %v981
  %v983 = vperm.slane %v975, %v982
  %v984 = vrot.slane %v955, 4
  %v985 = vsel %vm464, %v984, %v943
  %v986 = vrot.slane %v943, 4
  %v987 = vsel %vm464, %v955, %v986
  %v989 = vunpack.c.l.s4 1934713408
  %v990 = vunpack.c.0.s8 %v989
  %v991 = vperm.slane %v985, %v990
  %v993 = vunpack.c.l.s4 1934713408
  %v994 = vunpack.c.0.s8 %v993
  %v995 = vperm.slane %v987, %v994
  %v996 = vrot.slane %v959, 4
  %v997 = vsel %vm464, %v996, %v947
  %v998 = vrot.slane %v947, 4
  %v999 = vsel %vm464, %v959, %v998
  %v1001 = vunpack.c.l.s4 1934713408
  %v1002 = vunpack.c.0.s8 %v1001
  %v1003 = vperm.slane %v997, %v1002
  %v1005 = vunpack.c.l.s4 1934713408
  %v1006 = vunpack.c.0.s8 %v1005
  %v1007 = vperm.slane %v999, %v1006
  %v1008 = vrot.slane %v991, 4
  %v1009 = vsel %vm464, %v1008, %v967
  %v1010 = vrot.slane %v967, 4
  %v1011 = vsel %vm464, %v991, %v1010
  %v1012 = vrot.slane %v995, 4
  %v1013 = vsel %vm464, %v1012, %v971
  %v1014 = vrot.slane %v971, 4
  %v1015 = vsel %vm464, %v995, %v1014
  %v1016 = vrot.slane %v1003, 4
  %v1017 = vsel %vm464, %v1016, %v979
  %v1018 = vrot.slane %v979, 4
  %v1019 = vsel %vm464, %v1003, %v1018
  %v1020 = vrot.slane %v1007, 4
  %v1021 = vsel %vm464, %v1020, %v983
  %v1022 = vrot.slane %v983, 4
  %v1023 = vsel %vm464, %v1007, %v1022
  %v1024 = vrot.slane %v249, 4
  %v1025 = vsel %vm464, %v1024, %v247
  %v1026 = vrot.slane %v247, 4
  %v1027 = vsel %vm464, %v249, %v1026
  %v1029 = vunpack.c.l.s4 1983009808
  %v1030 = vunpack.c.0.s8 %v1029
  %v1031 = vperm.slane %v1025, %v1030
  %v1033 = vunpack.c.l.s4 1983009808
  %v1034 = vunpack.c.0.s8 %v1033
  %v1035 = vperm.slane %v1027, %v1034
  %v1036 = vrot.slane %v250, 4
  %v1037 = vsel %vm464, %v1036, %v248
  %v1038 = vrot.slane %v248, 4
  %v1039 = vsel %vm464, %v250, %v1038
  %v1041 = vunpack.c.l.s4 1983009808
  %v1042 = vunpack.c.0.s8 %v1041
  %v1043 = vperm.slane %v1037, %v1042
  %v1045 = vunpack.c.l.s4 1983009808
  %v1046 = vunpack.c.0.s8 %v1045
  %v1047 = vperm.slane %v1039, %v1046
  %v1048 = vrot.slane %v253, 4
  %v1049 = vsel %vm464, %v1048, %v251
  %v1050 = vrot.slane %v251, 4
  %v1051 = vsel %vm464, %v253, %v1050
  %v1053 = vunpack.c.l.s4 1983009808
  %v1054 = vunpack.c.0.s8 %v1053
  %v1055 = vperm.slane %v1049, %v1054
  %v1057 = vunpack.c.l.s4 1983009808
  %v1058 = vunpack.c.0.s8 %v1057
  %v1059 = vperm.slane %v1051, %v1058
  %v1060 = vrot.slane %v254, 4
  %v1061 = vsel %vm464, %v1060, %v252
  %v1062 = vrot.slane %v252, 4
  %v1063 = vsel %vm464, %v254, %v1062
  %v1065 = vunpack.c.l.s4 1983009808
  %v1066 = vunpack.c.0.s8 %v1065
  %v1067 = vperm.slane %v1061, %v1066
  %v1069 = vunpack.c.l.s4 1983009808
  %v1070 = vunpack.c.0.s8 %v1069
  %v1071 = vperm.slane %v1063, %v1070
  %v1072 = vrot.slane %v1043, 4
  %v1073 = vsel %vm464, %v1072, %v1031
  %v1074 = vrot.slane %v1031, 4
  %v1075 = vsel %vm464, %v1043, %v1074
  %v1077 = vunpack.c.l.s4 1934713408
  %v1078 = vunpack.c.0.s8 %v1077
  %v1079 = vperm.slane %v1073, %v1078
  %v1081 = vunpack.c.l.s4 1934713408
  %v1082 = vunpack.c.0.s8 %v1081
  %v1083 = vperm.slane %v1075, %v1082
  %v1084 = vrot.slane %v1047, 4
  %v1085 = vsel %vm464, %v1084, %v1035
  %v1086 = vrot.slane %v1035, 4
  %v1087 = vsel %vm464, %v1047, %v1086
  %v1089 = vunpack.c.l.s4 1934713408
  %v1090 = vunpack.c.0.s8 %v1089
  %v1091 = vperm.slane %v1085, %v1090
  %v1093 = vunpack.c.l.s4 1934713408
  %v1094 = vunpack.c.0.s8 %v1093
  %v1095 = vperm.slane %v1087, %v1094
  %v1096 = vrot.slane %v1067, 4
  %v1097 = vsel %vm464, %v1096, %v1055
  %v1098 = vrot.slane %v1055, 4
  %v1099 = vsel %vm464, %v1067, %v1098
  %v1101 = vunpack.c.l.s4 1934713408
  %v1102 = vunpack.c.0.s8 %v1101
  %v1103 = vperm.slane %v1097, %v1102
  %v1105 = vunpack.c.l.s4 1934713408
  %v1106 = vunpack.c.0.s8 %v1105
  %v1107 = vperm.slane %v1099, %v1106
  %v1108 = vrot.slane %v1071, 4
  %v1109 = vsel %vm464, %v1108, %v1059
  %v1110 = vrot.slane %v1059, 4
  %v1111 = vsel %vm464, %v1071, %v1110
  %v1113 = vunpack.c.l.s4 1934713408
  %v1114 = vunpack.c.0.s8 %v1113
  %v1115 = vperm.slane %v1109, %v1114
  %v1117 = vunpack.c.l.s4 1934713408
  %v1118 = vunpack.c.0.s8 %v1117
  %v1119 = vperm.slane %v1111, %v1118
  %v1120 = vrot.slane %v1103, 4
  %v1121 = vsel %vm464, %v1120, %v1079
  %v1122 = vrot.slane %v1079, 4
  %v1123 = vsel %vm464, %v1103, %v1122
  %v1124 = vrot.slane %v1107, 4
  %v1125 = vsel %vm464, %v1124, %v1083
  %v1126 = vrot.slane %v1083, 4
  %v1127 = vsel %vm464, %v1107, %v1126
  %v1128 = vrot.slane %v1115, 4
  %v1129 = vsel %vm464, %v1128, %v1091
  %v1130 = vrot.slane %v1091, 4
  %v1131 = vsel %vm464, %v1115, %v1130
  %v1132 = vrot.slane %v1119, 4
  %v1133 = vsel %vm464, %v1132, %v1095
  %v1134 = vrot.slane %v1095, 4
  %v1135 = vsel %vm464, %v1119, %v1134
  %v1136 = vrot.slane %v257, 4
  %v1137 = vsel %vm464, %v1136, %v255
  %v1138 = vrot.slane %v255, 4
  %v1139 = vsel %vm464, %v257, %v1138
  %v1141 = vunpack.c.l.s4 1983009808
  %v1142 = vunpack.c.0.s8 %v1141
  %v1143 = vperm.slane %v1137, %v1142
  %v1145 = vunpack.c.l.s4 1983009808
  %v1146 = vunpack.c.0.s8 %v1145
  %v1147 = vperm.slane %v1139, %v1146
  %v1148 = vrot.slane %v258, 4
  %v1149 = vsel %vm464, %v1148, %v256
  %v1150 = vrot.slane %v256, 4
  %v1151 = vsel %vm464, %v258, %v1150
  %v1153 = vunpack.c.l.s4 1983009808
  %v1154 = vunpack.c.0.s8 %v1153
  %v1155 = vperm.slane %v1149, %v1154
  %v1157 = vunpack.c.l.s4 1983009808
  %v1158 = vunpack.c.0.s8 %v1157
  %v1159 = vperm.slane %v1151, %v1158
  %v1160 = vrot.slane %v261, 4
  %v1161 = vsel %vm464, %v1160, %v259
  %v1162 = vrot.slane %v259, 4
  %v1163 = vsel %vm464, %v261, %v1162
  %v1165 = vunpack.c.l.s4 1983009808
  %v1166 = vunpack.c.0.s8 %v1165
  %v1167 = vperm.slane %v1161, %v1166
  %v1169 = vunpack.c.l.s4 1983009808
  %v1170 = vunpack.c.0.s8 %v1169
  %v1171 = vperm.slane %v1163, %v1170
  %v1172 = vrot.slane %v262, 4
  %v1173 = vsel %vm464, %v1172, %v260
  %v1174 = vrot.slane %v260, 4
  %v1175 = vsel %vm464, %v262, %v1174
  %v1177 = vunpack.c.l.s4 1983009808
  %v1178 = vunpack.c.0.s8 %v1177
  %v1179 = vperm.slane %v1173, %v1178
  %v1181 = vunpack.c.l.s4 1983009808
  %v1182 = vunpack.c.0.s8 %v1181
  %v1183 = vperm.slane %v1175, %v1182
  %v1184 = vrot.slane %v1155, 4
  %v1185 = vsel %vm464, %v1184, %v1143
  %v1186 = vrot.slane %v1143, 4
  %v1187 = vsel %vm464, %v1155, %v1186
  %v1189 = vunpack.c.l.s4 1934713408
  %v1190 = vunpack.c.0.s8 %v1189
  %v1191 = vperm.slane %v1185, %v1190
  %v1193 = vunpack.c.l.s4 1934713408
  %v1194 = vunpack.c.0.s8 %v1193
  %v1195 = vperm.slane %v1187, %v1194
  %v1196 = vrot.slane %v1159, 4
  %v1197 = vsel %vm464, %v1196, %v1147
  %v1198 = vrot.slane %v1147, 4
  %v1199 = vsel %vm464, %v1159, %v1198
  %v1201 = vunpack.c.l.s4 1934713408
  %v1202 = vunpack.c.0.s8 %v1201
  %v1203 = vperm.slane %v1197, %v1202
  %v1205 = vunpack.c.l.s4 1934713408
  %v1206 = vunpack.c.0.s8 %v1205
  %v1207 = vperm.slane %v1199, %v1206
  %v1208 = vrot.slane %v1179, 4
  %v1209 = vsel %vm464, %v1208, %v1167
  %v1210 = vrot.slane %v1167, 4
  %v1211 = vsel %vm464, %v1179, %v1210
  %v1213 = vunpack.c.l.s4 1934713408
  %v1214 = vunpack.c.0.s8 %v1213
  %v1215 = vperm.slane %v1209, %v1214
  %v1217 = vunpack.c.l.s4 1934713408
  %v1218 = vunpack.c.0.s8 %v1217
  %v1219 = vperm.slane %v1211, %v1218
  %v1220 = vrot.slane %v1183, 4
  %v1221 = vsel %vm464, %v1220, %v1171
  %v1222 = vrot.slane %v1171, 4
  %v1223 = vsel %vm464, %v1183, %v1222
  %v1225 = vunpack.c.l.s4 1934713408
  %v1226 = vunpack.c.0.s8 %v1225
  %v1227 = vperm.slane %v1221, %v1226
  %v1229 = vunpack.c.l.s4 1934713408
  %v1230 = vunpack.c.0.s8 %v1229
  %v1231 = vperm.slane %v1223, %v1230
  %v1232 = vrot.slane %v1215, 4
  %v1233 = vsel %vm464, %v1232, %v1191
  %v1234 = vrot.slane %v1191, 4
  %v1235 = vsel %vm464, %v1215, %v1234
  %v1236 = vrot.slane %v1219, 4
  %v1237 = vsel %vm464, %v1236, %v1195
  %v1238 = vrot.slane %v1195, 4
  %v1239 = vsel %vm464, %v1219, %v1238
  %v1240 = vrot.slane %v1227, 4
  %v1241 = vsel %vm464, %v1240, %v1203
  %v1242 = vrot.slane %v1203, 4
  %v1243 = vsel %vm464, %v1227, %v1242
  %v1244 = vrot.slane %v1231, 4
  %v1245 = vsel %vm464, %v1244, %v1207
  %v1246 = vrot.slane %v1207, 4
  %v1247 = vsel %vm464, %v1231, %v1246
  %v1248 = vrot.slane %v265, 4
  %v1249 = vsel %vm464, %v1248, %v263
  %v1250 = vrot.slane %v263, 4
  %v1251 = vsel %vm464, %v265, %v1250
  %v1253 = vunpack.c.l.s4 1983009808
  %v1254 = vunpack.c.0.s8 %v1253
  %v1255 = vperm.slane %v1249, %v1254
  %v1257 = vunpack.c.l.s4 1983009808
  %v1258 = vunpack.c.0.s8 %v1257
  %v1259 = vperm.slane %v1251, %v1258
  %v1260 = vrot.slane %v266, 4
  %v1261 = vsel %vm464, %v1260, %v264
  %v1262 = vrot.slane %v264, 4
  %v1263 = vsel %vm464, %v266, %v1262
  %v1265 = vunpack.c.l.s4 1983009808
  %v1266 = vunpack.c.0.s8 %v1265
  %v1267 = vperm.slane %v1261, %v1266
  %v1269 = vunpack.c.l.s4 1983009808
  %v1270 = vunpack.c.0.s8 %v1269
  %v1271 = vperm.slane %v1263, %v1270
  %v1272 = vrot.slane %v269, 4
  %v1273 = vsel %vm464, %v1272, %v267
  %v1274 = vrot.slane %v267, 4
  %v1275 = vsel %vm464, %v269, %v1274
  %v1277 = vunpack.c.l.s4 1983009808
  %v1278 = vunpack.c.0.s8 %v1277
  %v1279 = vperm.slane %v1273, %v1278
  %v1281 = vunpack.c.l.s4 1983009808
  %v1282 = vunpack.c.0.s8 %v1281
  %v1283 = vperm.slane %v1275, %v1282
  %v1284 = vrot.slane %v270, 4
  %v1285 = vsel %vm464, %v1284, %v268
  %v1286 = vrot.slane %v268, 4
  %v1287 = vsel %vm464, %v270, %v1286
  %v1289 = vunpack.c.l.s4 1983009808
  %v1290 = vunpack.c.0.s8 %v1289
  %v1291 = vperm.slane %v1285, %v1290
  %v1293 = vunpack.c.l.s4 1983009808
  %v1294 = vunpack.c.0.s8 %v1293
  %v1295 = vperm.slane %v1287, %v1294
  %v1296 = vrot.slane %v1267, 4
  %v1297 = vsel %vm464, %v1296, %v1255
  %v1298 = vrot.slane %v1255, 4
  %v1299 = vsel %vm464, %v1267, %v1298
  %v1301 = vunpack.c.l.s4 1934713408
  %v1302 = vunpack.c.0.s8 %v1301
  %v1303 = vperm.slane %v1297, %v1302
  %v1305 = vunpack.c.l.s4 1934713408
  %v1306 = vunpack.c.0.s8 %v1305
  %v1307 = vperm.slane %v1299, %v1306
  %v1308 = vrot.slane %v1271, 4
  %v1309 = vsel %vm464, %v1308, %v1259
  %v1310 = vrot.slane %v1259, 4
  %v1311 = vsel %vm464, %v1271, %v1310
  %v1313 = vunpack.c.l.s4 1934713408
  %v1314 = vunpack.c.0.s8 %v1313
  %v1315 = vperm.slane %v1309, %v1314
  %v1317 = vunpack.c.l.s4 1934713408
  %v1318 = vunpack.c.0.s8 %v1317
  %v1319 = vperm.slane %v1311, %v1318
  %v1320 = vrot.slane %v1291, 4
  %v1321 = vsel %vm464, %v1320, %v1279
  %v1322 = vrot.slane %v1279, 4
  %v1323 = vsel %vm464, %v1291, %v1322
  %v1325 = vunpack.c.l.s4 1934713408
  %v1326 = vunpack.c.0.s8 %v1325
  %v1327 = vperm.slane %v1321, %v1326
  %v1329 = vunpack.c.l.s4 1934713408
  %v1330 = vunpack.c.0.s8 %v1329
  %v1331 = vperm.slane %v1323, %v1330
  %v1332 = vrot.slane %v1295, 4
  %v1333 = vsel %vm464, %v1332, %v1283
  %v1334 = vrot.slane %v1283, 4
  %v1335 = vsel %vm464, %v1295, %v1334
  %v1337 = vunpack.c.l.s4 1934713408
  %v1338 = vunpack.c.0.s8 %v1337
  %v1339 = vperm.slane %v1333, %v1338
  %v1341 = vunpack.c.l.s4 1934713408
  %v1342 = vunpack.c.0.s8 %v1341
  %v1343 = vperm.slane %v1335, %v1342
  %v1344 = vrot.slane %v1327, 4
  %v1345 = vsel %vm464, %v1344, %v1303
  %v1346 = vrot.slane %v1303, 4
  %v1347 = vsel %vm464, %v1327, %v1346
  %v1348 = vrot.slane %v1331, 4
  %v1349 = vsel %vm464, %v1348, %v1307
  %v1350 = vrot.slane %v1307, 4
  %v1351 = vsel %vm464, %v1331, %v1350
  %v1352 = vrot.slane %v1339, 4
  %v1353 = vsel %vm464, %v1352, %v1315
  %v1354 = vrot.slane %v1315, 4
  %v1355 = vsel %vm464, %v1339, %v1354
  %v1356 = vrot.slane %v1343, 4
  %v1357 = vsel %vm464, %v1356, %v1319
  %v1358 = vrot.slane %v1319, 4
  %v1359 = vsel %vm464, %v1343, %v1358
  %v1360 = vrot.slane %v273, 4
  %v1361 = vsel %vm464, %v1360, %v271
  %v1362 = vrot.slane %v271, 4
  %v1363 = vsel %vm464, %v273, %v1362
  %v1365 = vunpack.c.l.s4 1983009808
  %v1366 = vunpack.c.0.s8 %v1365
  %v1367 = vperm.slane %v1361, %v1366
  %v1369 = vunpack.c.l.s4 1983009808
  %v1370 = vunpack.c.0.s8 %v1369
  %v1371 = vperm.slane %v1363, %v1370
  %v1372 = vrot.slane %v274, 4
  %v1373 = vsel %vm464, %v1372, %v272
  %v1374 = vrot.slane %v272, 4
  %v1375 = vsel %vm464, %v274, %v1374
  %v1377 = vunpack.c.l.s4 1983009808
  %v1378 = vunpack.c.0.s8 %v1377
  %v1379 = vperm.slane %v1373, %v1378
  %v1381 = vunpack.c.l.s4 1983009808
  %v1382 = vunpack.c.0.s8 %v1381
  %v1383 = vperm.slane %v1375, %v1382
  %v1384 = vrot.slane %v277, 4
  %v1385 = vsel %vm464, %v1384, %v275
  %v1386 = vrot.slane %v275, 4
  %v1387 = vsel %vm464, %v277, %v1386
  %v1389 = vunpack.c.l.s4 1983009808
  %v1390 = vunpack.c.0.s8 %v1389
  %v1391 = vperm.slane %v1385, %v1390
  %v1393 = vunpack.c.l.s4 1983009808
  %v1394 = vunpack.c.0.s8 %v1393
  %v1395 = vperm.slane %v1387, %v1394
  %v1396 = vrot.slane %v278, 4
  %v1397 = vsel %vm464, %v1396, %v276
  %v1398 = vrot.slane %v276, 4
  %v1399 = vsel %vm464, %v278, %v1398
  %v1401 = vunpack.c.l.s4 1983009808
  %v1402 = vunpack.c.0.s8 %v1401
  %v1403 = vperm.slane %v1397, %v1402
  %v1405 = vunpack.c.l.s4 1983009808
  %v1406 = vunpack.c.0.s8 %v1405
  %v1407 = vperm.slane %v1399, %v1406
  %v1408 = vrot.slane %v1379, 4
  %v1409 = vsel %vm464, %v1408, %v1367
  %v1410 = vrot.slane %v1367, 4
  %v1411 = vsel %vm464, %v1379, %v1410
  %v1413 = vunpack.c.l.s4 1934713408
  %v1414 = vunpack.c.0.s8 %v1413
  %v1415 = vperm.slane %v1409, %v1414
  %v1417 = vunpack.c.l.s4 1934713408
  %v1418 = vunpack.c.0.s8 %v1417
  %v1419 = vperm.slane %v1411, %v1418
  %v1420 = vrot.slane %v1383, 4
  %v1421 = vsel %vm464, %v1420, %v1371
  %v1422 = vrot.slane %v1371, 4
  %v1423 = vsel %vm464, %v1383, %v1422
  %v1425 = vunpack.c.l.s4 1934713408
  %v1426 = vunpack.c.0.s8 %v1425
  %v1427 = vperm.slane %v1421, %v1426
  %v1429 = vunpack.c.l.s4 1934713408
  %v1430 = vunpack.c.0.s8 %v1429
  %v1431 = vperm.slane %v1423, %v1430
  %v1432 = vrot.slane %v1403, 4
  %v1433 = vsel %vm464, %v1432, %v1391
  %v1434 = vrot.slane %v1391, 4
  %v1435 = vsel %vm464, %v1403, %v1434
  %v1437 = vunpack.c.l.s4 1934713408
  %v1438 = vunpack.c.0.s8 %v1437
  %v1439 = vperm.slane %v1433, %v1438
  %v1441 = vunpack.c.l.s4 1934713408
  %v1442 = vunpack.c.0.s8 %v1441
  %v1443 = vperm.slane %v1435, %v1442
  %v1444 = vrot.slane %v1407, 4
  %v1445 = vsel %vm464, %v1444, %v1395
  %v1446 = vrot.slane %v1395, 4
  %v1447 = vsel %vm464, %v1407, %v1446
  %v1449 = vunpack.c.l.s4 1934713408
  %v1450 = vunpack.c.0.s8 %v1449
  %v1451 = vperm.slane %v1445, %v1450
  %v1453 = vunpack.c.l.s4 1934713408
  %v1454 = vunpack.c.0.s8 %v1453
  %v1455 = vperm.slane %v1447, %v1454
  %v1456 = vrot.slane %v1439, 4
  %v1457 = vsel %vm464, %v1456, %v1415
  %v1458 = vrot.slane %v1415, 4
  %v1459 = vsel %vm464, %v1439, %v1458
  %v1460 = vrot.slane %v1443, 4
  %v1461 = vsel %vm464, %v1460, %v1419
  %v1462 = vrot.slane %v1419, 4
  %v1463 = vsel %vm464, %v1443, %v1462
  %v1464 = vrot.slane %v1451, 4
  %v1465 = vsel %vm464, %v1464, %v1427
  %v1466 = vrot.slane %v1427, 4
  %v1467 = vsel %vm464, %v1451, %v1466
  %v1468 = vrot.slane %v1455, 4
  %v1469 = vsel %vm464, %v1468, %v1431
  %v1470 = vrot.slane %v1431, 4
  %v1471 = vsel %vm464, %v1455, %v1470
  %v1472 = vrot.slane %v281, 4
  %v1473 = vsel %vm464, %v1472, %v279
  %v1474 = vrot.slane %v279, 4
  %v1475 = vsel %vm464, %v281, %v1474
  %v1477 = vunpack.c.l.s4 1983009808
  %v1478 = vunpack.c.0.s8 %v1477
  %v1479 = vperm.slane %v1473, %v1478
  %v1481 = vunpack.c.l.s4 1983009808
  %v1482 = vunpack.c.0.s8 %v1481
  %v1483 = vperm.slane %v1475, %v1482
  %v1484 = vrot.slane %v282, 4
  %v1485 = vsel %vm464, %v1484, %v280
  %v1486 = vrot.slane %v280, 4
  %v1487 = vsel %vm464, %v282, %v1486
  %v1489 = vunpack.c.l.s4 1983009808
  %v1490 = vunpack.c.0.s8 %v1489
  %v1491 = vperm.slane %v1485, %v1490
  %v1493 = vunpack.c.l.s4 1983009808
  %v1494 = vunpack.c.0.s8 %v1493
  %v1495 = vperm.slane %v1487, %v1494
  %v1496 = vrot.slane %v285, 4
  %v1497 = vsel %vm464, %v1496, %v283
  %v1498 = vrot.slane %v283, 4
  %v1499 = vsel %vm464, %v285, %v1498
  %v1501 = vunpack.c.l.s4 1983009808
  %v1502 = vunpack.c.0.s8 %v1501
  %v1503 = vperm.slane %v1497, %v1502
  %v1505 = vunpack.c.l.s4 1983009808
  %v1506 = vunpack.c.0.s8 %v1505
  %v1507 = vperm.slane %v1499, %v1506
  %v1508 = vrot.slane %v286, 4
  %v1509 = vsel %vm464, %v1508, %v284
  %v1510 = vrot.slane %v284, 4
  %v1511 = vsel %vm464, %v286, %v1510
  %v1513 = vunpack.c.l.s4 1983009808
  %v1514 = vunpack.c.0.s8 %v1513
  %v1515 = vperm.slane %v1509, %v1514
  %v1517 = vunpack.c.l.s4 1983009808
  %v1518 = vunpack.c.0.s8 %v1517
  %v1519 = vperm.slane %v1511, %v1518
  %v1520 = vrot.slane %v1491, 4
  %v1521 = vsel %vm464, %v1520, %v1479
  %v1522 = vrot.slane %v1479, 4
  %v1523 = vsel %vm464, %v1491, %v1522
  %v1525 = vunpack.c.l.s4 1934713408
  %v1526 = vunpack.c.0.s8 %v1525
  %v1527 = vperm.slane %v1521, %v1526
  %v1529 = vunpack.c.l.s4 1934713408
  %v1530 = vunpack.c.0.s8 %v1529
  %v1531 = vperm.slane %v1523, %v1530
  %v1532 = vrot.slane %v1495, 4
  %v1533 = vsel %vm464, %v1532, %v1483
  %v1534 = vrot.slane %v1483, 4
  %v1535 = vsel %vm464, %v1495, %v1534
  %v1537 = vunpack.c.l.s4 1934713408
  %v1538 = vunpack.c.0.s8 %v1537
  %v1539 = vperm.slane %v1533, %v1538
  %v1541 = vunpack.c.l.s4 1934713408
  %v1542 = vunpack.c.0.s8 %v1541
  %v1543 = vperm.slane %v1535, %v1542
  %v1544 = vrot.slane %v1515, 4
  %v1545 = vsel %vm464, %v1544, %v1503
  %v1546 = vrot.slane %v1503, 4
  %v1547 = vsel %vm464, %v1515, %v1546
  %v1549 = vunpack.c.l.s4 1934713408
  %v1550 = vunpack.c.0.s8 %v1549
  %v1551 = vperm.slane %v1545, %v1550
  %v1553 = vunpack.c.l.s4 1934713408
  %v1554 = vunpack.c.0.s8 %v1553
  %v1555 = vperm.slane %v1547, %v1554
  %v1556 = vrot.slane %v1519, 4
  %v1557 = vsel %vm464, %v1556, %v1507
  %v1558 = vrot.slane %v1507, 4
  %v1559 = vsel %vm464, %v1519, %v1558
  %v1561 = vunpack.c.l.s4 1934713408
  %v1562 = vunpack.c.0.s8 %v1561
  %v1563 = vperm.slane %v1557, %v1562
  %v1565 = vunpack.c.l.s4 1934713408
  %v1566 = vunpack.c.0.s8 %v1565
  %v1567 = vperm.slane %v1559, %v1566
  %v1568 = vrot.slane %v1551, 4
  %v1569 = vsel %vm464, %v1568, %v1527
  %v1570 = vrot.slane %v1527, 4
  %v1571 = vsel %vm464, %v1551, %v1570
  %v1572 = vrot.slane %v1555, 4
  %v1573 = vsel %vm464, %v1572, %v1531
  %v1574 = vrot.slane %v1531, 4
  %v1575 = vsel %vm464, %v1555, %v1574
  %v1576 = vrot.slane %v1563, 4
  %v1577 = vsel %vm464, %v1576, %v1539
  %v1578 = vrot.slane %v1539, 4
  %v1579 = vsel %vm464, %v1563, %v1578
  %v1580 = vrot.slane %v1567, 4
  %v1581 = vsel %vm464, %v1580, %v1543
  %v1582 = vrot.slane %v1543, 4
  %v1583 = vsel %vm464, %v1567, %v1582
  %v1584 = vrot.slane %v289, 4
  %v1585 = vsel %vm464, %v1584, %v287
  %v1586 = vrot.slane %v287, 4
  %v1587 = vsel %vm464, %v289, %v1586
  %v1589 = vunpack.c.l.s4 1983009808
  %v1590 = vunpack.c.0.s8 %v1589
  %v1591 = vperm.slane %v1585, %v1590
  %v1593 = vunpack.c.l.s4 1983009808
  %v1594 = vunpack.c.0.s8 %v1593
  %v1595 = vperm.slane %v1587, %v1594
  %v1596 = vrot.slane %v290, 4
  %v1597 = vsel %vm464, %v1596, %v288
  %v1598 = vrot.slane %v288, 4
  %v1599 = vsel %vm464, %v290, %v1598
  %v1601 = vunpack.c.l.s4 1983009808
  %v1602 = vunpack.c.0.s8 %v1601
  %v1603 = vperm.slane %v1597, %v1602
  %v1605 = vunpack.c.l.s4 1983009808
  %v1606 = vunpack.c.0.s8 %v1605
  %v1607 = vperm.slane %v1599, %v1606
  %v1608 = vrot.slane %v293, 4
  %v1609 = vsel %vm464, %v1608, %v291
  %v1610 = vrot.slane %v291, 4
  %v1611 = vsel %vm464, %v293, %v1610
  %v1613 = vunpack.c.l.s4 1983009808
  %v1614 = vunpack.c.0.s8 %v1613
  %v1615 = vperm.slane %v1609, %v1614
  %v1617 = vunpack.c.l.s4 1983009808
  %v1618 = vunpack.c.0.s8 %v1617
  %v1619 = vperm.slane %v1611, %v1618
  %v1620 = vrot.slane %v294, 4
  %v1621 = vsel %vm464, %v1620, %v292
  %v1622 = vrot.slane %v292, 4
  %v1623 = vsel %vm464, %v294, %v1622
  %v1625 = vunpack.c.l.s4 1983009808
  %v1626 = vunpack.c.0.s8 %v1625
  %v1627 = vperm.slane %v1621, %v1626
  %v1629 = vunpack.c.l.s4 1983009808
  %v1630 = vunpack.c.0.s8 %v1629
  %v1631 = vperm.slane %v1623, %v1630
  %v1632 = vrot.slane %v1603, 4
  %v1633 = vsel %vm464, %v1632, %v1591
  %v1634 = vrot.slane %v1591, 4
  %v1635 = vsel %vm464, %v1603, %v1634
  %v1637 = vunpack.c.l.s4 1934713408
  %v1638 = vunpack.c.0.s8 %v1637
  %v1639 = vperm.slane %v1633, %v1638
  %v1641 = vunpack.c.l.s4 1934713408
  %v1642 = vunpack.c.0.s8 %v1641
  %v1643 = vperm.slane %v1635, %v1642
  %v1644 = vrot.slane %v1607, 4
  %v1645 = vsel %vm464, %v1644, %v1595
  %v1646 = vrot.slane %v1595, 4
  %v1647 = vsel %vm464, %v1607, %v1646
  %v1649 = vunpack.c.l.s4 1934713408
  %v1650 = vunpack.c.0.s8 %v1649
  %v1651 = vperm.slane %v1645, %v1650
  %v1653 = vunpack.c.l.s4 1934713408
  %v1654 = vunpack.c.0.s8 %v1653
  %v1655 = vperm.slane %v1647, %v1654
  %v1656 = vrot.slane %v1627, 4
  %v1657 = vsel %vm464, %v1656, %v1615
  %v1658 = vrot.slane %v1615, 4
  %v1659 = vsel %vm464, %v1627, %v1658
  %v1661 = vunpack.c.l.s4 1934713408
  %v1662 = vunpack.c.0.s8 %v1661
  %v1663 = vperm.slane %v1657, %v1662
  %v1665 = vunpack.c.l.s4 1934713408
  %v1666 = vunpack.c.0.s8 %v1665
  %v1667 = vperm.slane %v1659, %v1666
  %v1668 = vrot.slane %v1631, 4
  %v1669 = vsel %vm464, %v1668, %v1619
  %v1670 = vrot.slane %v1619, 4
  %v1671 = vsel %vm464, %v1631, %v1670
  %v1673 = vunpack.c.l.s4 1934713408
  %v1674 = vunpack.c.0.s8 %v1673
  %v1675 = vperm.slane %v1669, %v1674
  %v1677 = vunpack.c.l.s4 1934713408
  %v1678 = vunpack.c.0.s8 %v1677
  %v1679 = vperm.slane %v1671, %v1678
  %v1680 = vrot.slane %v1663, 4
  %v1681 = vsel %vm464, %v1680, %v1639
  %v1682 = vrot.slane %v1639, 4
  %v1683 = vsel %vm464, %v1663, %v1682
  %v1684 = vrot.slane %v1667, 4
  %v1685 = vsel %vm464, %v1684, %v1643
  %v1686 = vrot.slane %v1643, 4
  %v1687 = vsel %vm464, %v1667, %v1686
  %v1688 = vrot.slane %v1675, 4
  %v1689 = vsel %vm464, %v1688, %v1651
  %v1690 = vrot.slane %v1651, 4
  %v1691 = vsel %vm464, %v1675, %v1690
  %v1692 = vrot.slane %v1679, 4
  %v1693 = vsel %vm464, %v1692, %v1655
  %v1694 = vrot.slane %v1655, 4
  %v1695 = vsel %vm464, %v1679, %v1694
  %v1696 = vrot.slane %v297, 4
  %v1697 = vsel %vm464, %v1696, %v295
  %v1698 = vrot.slane %v295, 4
  %v1699 = vsel %vm464, %v297, %v1698
  %v1701 = vunpack.c.l.s4 1983009808
  %v1702 = vunpack.c.0.s8 %v1701
  %v1703 = vperm.slane %v1697, %v1702
  %v1705 = vunpack.c.l.s4 1983009808
  %v1706 = vunpack.c.0.s8 %v1705
  %v1707 = vperm.slane %v1699, %v1706
  %v1708 = vrot.slane %v298, 4
  %v1709 = vsel %vm464, %v1708, %v296
  %v1710 = vrot.slane %v296, 4
  %v1711 = vsel %vm464, %v298, %v1710
  %v1713 = vunpack.c.l.s4 1983009808
  %v1714 = vunpack.c.0.s8 %v1713
  %v1715 = vperm.slane %v1709, %v1714
  %v1717 = vunpack.c.l.s4 1983009808
  %v1718 = vunpack.c.0.s8 %v1717
  %v1719 = vperm.slane %v1711, %v1718
  %v1720 = vrot.slane %v301, 4
  %v1721 = vsel %vm464, %v1720, %v299
  %v1722 = vrot.slane %v299, 4
  %v1723 = vsel %vm464, %v301, %v1722
  %v1725 = vunpack.c.l.s4 1983009808
  %v1726 = vunpack.c.0.s8 %v1725
  %v1727 = vperm.slane %v1721, %v1726
  %v1729 = vunpack.c.l.s4 1983009808
  %v1730 = vunpack.c.0.s8 %v1729
  %v1731 = vperm.slane %v1723, %v1730
  %v1732 = vrot.slane %v302, 4
  %v1733 = vsel %vm464, %v1732, %v300
  %v1734 = vrot.slane %v300, 4
  %v1735 = vsel %vm464, %v302, %v1734
  %v1737 = vunpack.c.l.s4 1983009808
  %v1738 = vunpack.c.0.s8 %v1737
  %v1739 = vperm.slane %v1733, %v1738
  %v1741 = vunpack.c.l.s4 1983009808
  %v1742 = vunpack.c.0.s8 %v1741
  %v1743 = vperm.slane %v1735, %v1742
  %v1744 = vrot.slane %v1715, 4
  %v1745 = vsel %vm464, %v1744, %v1703
  %v1746 = vrot.slane %v1703, 4
  %v1747 = vsel %vm464, %v1715, %v1746
  %v1749 = vunpack.c.l.s4 1934713408
  %v1750 = vunpack.c.0.s8 %v1749
  %v1751 = vperm.slane %v1745, %v1750
  %v1753 = vunpack.c.l.s4 1934713408
  %v1754 = vunpack.c.0.s8 %v1753
  %v1755 = vperm.slane %v1747, %v1754
  %v1756 = vrot.slane %v1719, 4
  %v1757 = vsel %vm464, %v1756, %v1707
  %v1758 = vrot.slane %v1707, 4
  %v1759 = vsel %vm464, %v1719, %v1758
  %v1761 = vunpack.c.l.s4 1934713408
  %v1762 = vunpack.c.0.s8 %v1761
  %v1763 = vperm.slane %v1757, %v1762
  %v1765 = vunpack.c.l.s4 1934713408
  %v1766 = vunpack.c.0.s8 %v1765
  %v1767 = vperm.slane %v1759, %v1766
  %v1768 = vrot.slane %v1739, 4
  %v1769 = vsel %vm464, %v1768, %v1727
  %v1770 = vrot.slane %v1727, 4
  %v1771 = vsel %vm464, %v1739, %v1770
  %v1773 = vunpack.c.l.s4 1934713408
  %v1774 = vunpack.c.0.s8 %v1773
  %v1775 = vperm.slane %v1769, %v1774
  %v1777 = vunpack.c.l.s4 1934713408
  %v1778 = vunpack.c.0.s8 %v1777
  %v1779 = vperm.slane %v1771, %v1778
  %v1780 = vrot.slane %v1743, 4
  %v1781 = vsel %vm464, %v1780, %v1731
  %v1782 = vrot.slane %v1731, 4
  %v1783 = vsel %vm464, %v1743, %v1782
  %v1785 = vunpack.c.l.s4 1934713408
  %v1786 = vunpack.c.0.s8 %v1785
  %v1787 = vperm.slane %v1781, %v1786
  %v1789 = vunpack.c.l.s4 1934713408
  %v1790 = vunpack.c.0.s8 %v1789
  %v1791 = vperm.slane %v1783, %v1790
  %v1792 = vrot.slane %v1775, 4
  %v1793 = vsel %vm464, %v1792, %v1751
  %v1794 = vrot.slane %v1751, 4
  %v1795 = vsel %vm464, %v1775, %v1794
  %v1796 = vrot.slane %v1779, 4
  %v1797 = vsel %vm464, %v1796, %v1755
  %v1798 = vrot.slane %v1755, 4
  %v1799 = vsel %vm464, %v1779, %v1798
  %v1800 = vrot.slane %v1787, 4
  %v1801 = vsel %vm464, %v1800, %v1763
  %v1802 = vrot.slane %v1763, 4
  %v1803 = vsel %vm464, %v1787, %v1802
  %v1804 = vrot.slane %v1791, 4
  %v1805 = vsel %vm464, %v1804, %v1767
  %v1806 = vrot.slane %v1767, 4
  %v1807 = vsel %vm464, %v1791, %v1806
  %v1808 = vrot.slane %v305, 4
  %v1809 = vsel %vm464, %v1808, %v303
  %v1810 = vrot.slane %v303, 4
  %v1811 = vsel %vm464, %v305, %v1810
  %v1813 = vunpack.c.l.s4 1983009808
  %v1814 = vunpack.c.0.s8 %v1813
  %v1815 = vperm.slane %v1809, %v1814
  %v1817 = vunpack.c.l.s4 1983009808
  %v1818 = vunpack.c.0.s8 %v1817
  %v1819 = vperm.slane %v1811, %v1818
  %v1820 = vrot.slane %v306, 4
  %v1821 = vsel %vm464, %v1820, %v304
  %v1822 = vrot.slane %v304, 4
  %v1823 = vsel %vm464, %v306, %v1822
  %v1825 = vunpack.c.l.s4 1983009808
  %v1826 = vunpack.c.0.s8 %v1825
  %v1827 = vperm.slane %v1821, %v1826
  %v1829 = vunpack.c.l.s4 1983009808
  %v1830 = vunpack.c.0.s8 %v1829
  %v1831 = vperm.slane %v1823, %v1830
  %v1832 = vrot.slane %v309, 4
  %v1833 = vsel %vm464, %v1832, %v307
  %v1834 = vrot.slane %v307, 4
  %v1835 = vsel %vm464, %v309, %v1834
  %v1837 = vunpack.c.l.s4 1983009808
  %v1838 = vunpack.c.0.s8 %v1837
  %v1839 = vperm.slane %v1833, %v1838
  %v1841 = vunpack.c.l.s4 1983009808
  %v1842 = vunpack.c.0.s8 %v1841
  %v1843 = vperm.slane %v1835, %v1842
  %v1844 = vrot.slane %v310, 4
  %v1845 = vsel %vm464, %v1844, %v308
  %v1846 = vrot.slane %v308, 4
  %v1847 = vsel %vm464, %v310, %v1846
  %v1849 = vunpack.c.l.s4 1983009808
  %v1850 = vunpack.c.0.s8 %v1849
  %v1851 = vperm.slane %v1845, %v1850
  %v1853 = vunpack.c.l.s4 1983009808
  %v1854 = vunpack.c.0.s8 %v1853
  %v1855 = vperm.slane %v1847, %v1854
  %v1856 = vrot.slane %v1827, 4
  %v1857 = vsel %vm464, %v1856, %v1815
  %v1858 = vrot.slane %v1815, 4
  %v1859 = vsel %vm464, %v1827, %v1858
  %v1861 = vunpack.c.l.s4 1934713408
  %v1862 = vunpack.c.0.s8 %v1861
  %v1863 = vperm.slane %v1857, %v1862
  %v1865 = vunpack.c.l.s4 1934713408
  %v1866 = vunpack.c.0.s8 %v1865
  %v1867 = vperm.slane %v1859, %v1866
  %v1868 = vrot.slane %v1831, 4
  %v1869 = vsel %vm464, %v1868, %v1819
  %v1870 = vrot.slane %v1819, 4
  %v1871 = vsel %vm464, %v1831, %v1870
  %v1873 = vunpack.c.l.s4 1934713408
  %v1874 = vunpack.c.0.s8 %v1873
  %v1875 = vperm.slane %v1869, %v1874
  %v1877 = vunpack.c.l.s4 1934713408
  %v1878 = vunpack.c.0.s8 %v1877
  %v1879 = vperm.slane %v1871, %v1878
  %v1880 = vrot.slane %v1851, 4
  %v1881 = vsel %vm464, %v1880, %v1839
  %v1882 = vrot.slane %v1839, 4
  %v1883 = vsel %vm464, %v1851, %v1882
  %v1885 = vunpack.c.l.s4 1934713408
  %v1886 = vunpack.c.0.s8 %v1885
  %v1887 = vperm.slane %v1881, %v1886
  %v1889 = vunpack.c.l.s4 1934713408
  %v1890 = vunpack.c.0.s8 %v1889
  %v1891 = vperm.slane %v1883, %v1890
  %v1892 = vrot.slane %v1855, 4
  %v1893 = vsel %vm464, %v1892, %v1843
  %v1894 = vrot.slane %v1843, 4
  %v1895 = vsel %vm464, %v1855, %v1894
  %v1897 = vunpack.c.l.s4 1934713408
  %v1898 = vunpack.c.0.s8 %v1897
  %v1899 = vperm.slane %v1893, %v1898
  %v1901 = vunpack.c.l.s4 1934713408
  %v1902 = vunpack.c.0.s8 %v1901
  %v1903 = vperm.slane %v1895, %v1902
  %v1904 = vrot.slane %v1887, 4
  %v1905 = vsel %vm464, %v1904, %v1863
  %v1906 = vrot.slane %v1863, 4
  %v1907 = vsel %vm464, %v1887, %v1906
  %v1908 = vrot.slane %v1891, 4
  %v1909 = vsel %vm464, %v1908, %v1867
  %v1910 = vrot.slane %v1867, 4
  %v1911 = vsel %vm464, %v1891, %v1910
  %v1912 = vrot.slane %v1899, 4
  %v1913 = vsel %vm464, %v1912, %v1875
  %v1914 = vrot.slane %v1875, 4
  %v1915 = vsel %vm464, %v1899, %v1914
  %v1916 = vrot.slane %v1903, 4
  %v1917 = vsel %vm464, %v1916, %v1879
  %v1918 = vrot.slane %v1879, 4
  %v1919 = vsel %vm464, %v1903, %v1918
  %v1920 = vrot.slane %v313, 4
  %v1921 = vsel %vm464, %v1920, %v311
  %v1922 = vrot.slane %v311, 4
  %v1923 = vsel %vm464, %v313, %v1922
  %v1925 = vunpack.c.l.s4 1983009808
  %v1926 = vunpack.c.0.s8 %v1925
  %v1927 = vperm.slane %v1921, %v1926
  %v1929 = vunpack.c.l.s4 1983009808
  %v1930 = vunpack.c.0.s8 %v1929
  %v1931 = vperm.slane %v1923, %v1930
  %v1932 = vrot.slane %v314, 4
  %v1933 = vsel %vm464, %v1932, %v312
  %v1934 = vrot.slane %v312, 4
  %v1935 = vsel %vm464, %v314, %v1934
  %v1937 = vunpack.c.l.s4 1983009808
  %v1938 = vunpack.c.0.s8 %v1937
  %v1939 = vperm.slane %v1933, %v1938
  %v1941 = vunpack.c.l.s4 1983009808
  %v1942 = vunpack.c.0.s8 %v1941
  %v1943 = vperm.slane %v1935, %v1942
  %v1944 = vrot.slane %v317, 4
  %v1945 = vsel %vm464, %v1944, %v315
  %v1946 = vrot.slane %v315, 4
  %v1947 = vsel %vm464, %v317, %v1946
  %v1949 = vunpack.c.l.s4 1983009808
  %v1950 = vunpack.c.0.s8 %v1949
  %v1951 = vperm.slane %v1945, %v1950
  %v1953 = vunpack.c.l.s4 1983009808
  %v1954 = vunpack.c.0.s8 %v1953
  %v1955 = vperm.slane %v1947, %v1954
  %v1956 = vrot.slane %v318, 4
  %v1957 = vsel %vm464, %v1956, %v316
  %v1958 = vrot.slane %v316, 4
  %v1959 = vsel %vm464, %v318, %v1958
  %v1961 = vunpack.c.l.s4 1983009808
  %v1962 = vunpack.c.0.s8 %v1961
  %v1963 = vperm.slane %v1957, %v1962
  %v1965 = vunpack.c.l.s4 1983009808
  %v1966 = vunpack.c.0.s8 %v1965
  %v1967 = vperm.slane %v1959, %v1966
  %v1968 = vrot.slane %v1939, 4
  %v1969 = vsel %vm464, %v1968, %v1927
  %v1970 = vrot.slane %v1927, 4
  %v1971 = vsel %vm464, %v1939, %v1970
  %v1973 = vunpack.c.l.s4 1934713408
  %v1974 = vunpack.c.0.s8 %v1973
  %v1975 = vperm.slane %v1969, %v1974
  %v1977 = vunpack.c.l.s4 1934713408
  %v1978 = vunpack.c.0.s8 %v1977
  %v1979 = vperm.slane %v1971, %v1978
  %v1980 = vrot.slane %v1943, 4
  %v1981 = vsel %vm464, %v1980, %v1931
  %v1982 = vrot.slane %v1931, 4
  %v1983 = vsel %vm464, %v1943, %v1982
  %v1985 = vunpack.c.l.s4 1934713408
  %v1986 = vunpack.c.0.s8 %v1985
  %v1987 = vperm.slane %v1981, %v1986
  %v1989 = vunpack.c.l.s4 1934713408
  %v1990 = vunpack.c.0.s8 %v1989
  %v1991 = vperm.slane %v1983, %v1990
  %v1992 = vrot.slane %v1963, 4
  %v1993 = vsel %vm464, %v1992, %v1951
  %v1994 = vrot.slane %v1951, 4
  %v1995 = vsel %vm464, %v1963, %v1994
  %v1997 = vunpack.c.l.s4 1934713408
  %v1998 = vunpack.c.0.s8 %v1997
  %v1999 = vperm.slane %v1993, %v1998
  %v2001 = vunpack.c.l.s4 1934713408
  %v2002 = vunpack.c.0.s8 %v2001
  %v2003 = vperm.slane %v1995, %v2002
  %v2004 = vrot.slane %v1967, 4
  %v2005 = vsel %vm464, %v2004, %v1955
  %v2006 = vrot.slane %v1955, 4
  %v2007 = vsel %vm464, %v1967, %v2006
  %v2009 = vunpack.c.l.s4 1934713408
  %v2010 = vunpack.c.0.s8 %v2009
  %v2011 = vperm.slane %v2005, %v2010
  %v2013 = vunpack.c.l.s4 1934713408
  %v2014 = vunpack.c.0.s8 %v2013
  %v2015 = vperm.slane %v2007, %v2014
  %v2016 = vrot.slane %v1999, 4
  %v2017 = vsel %vm464, %v2016, %v1975
  %v2018 = vrot.slane %v1975, 4
  %v2019 = vsel %vm464, %v1999, %v2018
  %v2020 = vrot.slane %v2003, 4
  %v2021 = vsel %vm464, %v2020, %v1979
  %v2022 = vrot.slane %v1979, 4
  %v2023 = vsel %vm464, %v2003, %v2022
  %v2024 = vrot.slane %v2011, 4
  %v2025 = vsel %vm464, %v2024, %v1987
  %v2026 = vrot.slane %v1987, 4
  %v2027 = vsel %vm464, %v2011, %v2026
  %v2028 = vrot.slane %v2015, 4
  %v2029 = vsel %vm464, %v2028, %v1991
  %v2030 = vrot.slane %v1991, 4
  %v2031 = vsel %vm464, %v2015, %v2030
  %v2032 = vrot.slane %v321, 4
  %v2033 = vsel %vm464, %v2032, %v319
  %v2034 = vrot.slane %v319, 4
  %v2035 = vsel %vm464, %v321, %v2034
  %v2037 = vunpack.c.l.s4 1983009808
  %v2038 = vunpack.c.0.s8 %v2037
  %v2039 = vperm.slane %v2033, %v2038
  %v2041 = vunpack.c.l.s4 1983009808
  %v2042 = vunpack.c.0.s8 %v2041
  %v2043 = vperm.slane %v2035, %v2042
  %v2044 = vrot.slane %v322, 4
  %v2045 = vsel %vm464, %v2044, %v320
  %v2046 = vrot.slane %v320, 4
  %v2047 = vsel %vm464, %v322, %v2046
  %v2049 = vunpack.c.l.s4 1983009808
  %v2050 = vunpack.c.0.s8 %v2049
  %v2051 = vperm.slane %v2045, %v2050
  %v2053 = vunpack.c.l.s4 1983009808
  %v2054 = vunpack.c.0.s8 %v2053
  %v2055 = vperm.slane %v2047, %v2054
  %v2056 = vrot.slane %v325, 4
  %v2057 = vsel %vm464, %v2056, %v323
  %v2058 = vrot.slane %v323, 4
  %v2059 = vsel %vm464, %v325, %v2058
  %v2061 = vunpack.c.l.s4 1983009808
  %v2062 = vunpack.c.0.s8 %v2061
  %v2063 = vperm.slane %v2057, %v2062
  %v2065 = vunpack.c.l.s4 1983009808
  %v2066 = vunpack.c.0.s8 %v2065
  %v2067 = vperm.slane %v2059, %v2066
  %v2068 = vrot.slane %v326, 4
  %v2069 = vsel %vm464, %v2068, %v324
  %v2070 = vrot.slane %v324, 4
  %v2071 = vsel %vm464, %v326, %v2070
  %v2073 = vunpack.c.l.s4 1983009808
  %v2074 = vunpack.c.0.s8 %v2073
  %v2075 = vperm.slane %v2069, %v2074
  %v2077 = vunpack.c.l.s4 1983009808
  %v2078 = vunpack.c.0.s8 %v2077
  %v2079 = vperm.slane %v2071, %v2078
  %v2080 = vrot.slane %v2051, 4
  %v2081 = vsel %vm464, %v2080, %v2039
  %v2082 = vrot.slane %v2039, 4
  %v2083 = vsel %vm464, %v2051, %v2082
  %v2085 = vunpack.c.l.s4 1934713408
  %v2086 = vunpack.c.0.s8 %v2085
  %v2087 = vperm.slane %v2081, %v2086
  %v2089 = vunpack.c.l.s4 1934713408
  %v2090 = vunpack.c.0.s8 %v2089
  %v2091 = vperm.slane %v2083, %v2090
  %v2092 = vrot.slane %v2055, 4
  %v2093 = vsel %vm464, %v2092, %v2043
  %v2094 = vrot.slane %v2043, 4
  %v2095 = vsel %vm464, %v2055, %v2094
  %v2097 = vunpack.c.l.s4 1934713408
  %v2098 = vunpack.c.0.s8 %v2097
  %v2099 = vperm.slane %v2093, %v2098
  %v2101 = vunpack.c.l.s4 1934713408
  %v2102 = vunpack.c.0.s8 %v2101
  %v2103 = vperm.slane %v2095, %v2102
  %v2104 = vrot.slane %v2075, 4
  %v2105 = vsel %vm464, %v2104, %v2063
  %v2106 = vrot.slane %v2063, 4
  %v2107 = vsel %vm464, %v2075, %v2106
  %v2109 = vunpack.c.l.s4 1934713408
  %v2110 = vunpack.c.0.s8 %v2109
  %v2111 = vperm.slane %v2105, %v2110
  %v2113 = vunpack.c.l.s4 1934713408
  %v2114 = vunpack.c.0.s8 %v2113
  %v2115 = vperm.slane %v2107, %v2114
  %v2116 = vrot.slane %v2079, 4
  %v2117 = vsel %vm464, %v2116, %v2067
  %v2118 = vrot.slane %v2067, 4
  %v2119 = vsel %vm464, %v2079, %v2118
  %v2121 = vunpack.c.l.s4 1934713408
  %v2122 = vunpack.c.0.s8 %v2121
  %v2123 = vperm.slane %v2117, %v2122
  %v2125 = vunpack.c.l.s4 1934713408
  %v2126 = vunpack.c.0.s8 %v2125
  %v2127 = vperm.slane %v2119, %v2126
  %v2128 = vrot.slane %v2111, 4
  %v2129 = vsel %vm464, %v2128, %v2087
  %v2130 = vrot.slane %v2087, 4
  %v2131 = vsel %vm464, %v2111, %v2130
  %v2132 = vrot.slane %v2115, 4
  %v2133 = vsel %vm464, %v2132, %v2091
  %v2134 = vrot.slane %v2091, 4
  %v2135 = vsel %vm464, %v2115, %v2134
  %v2136 = vrot.slane %v2123, 4
  %v2137 = vsel %vm464, %v2136, %v2099
  %v2138 = vrot.slane %v2099, 4
  %v2139 = vsel %vm464, %v2123, %v2138
  %v2140 = vrot.slane %v2127, 4
  %v2141 = vsel %vm464, %v2140, %v2103
  %v2142 = vrot.slane %v2103, 4
  %v2143 = vsel %vm464, %v2127, %v2142
  %v2144 = vrot.slane %v329, 4
  %v2145 = vsel %vm464, %v2144, %v327
  %v2146 = vrot.slane %v327, 4
  %v2147 = vsel %vm464, %v329, %v2146
  %v2149 = vunpack.c.l.s4 1983009808
  %v2150 = vunpack.c.0.s8 %v2149
  %v2151 = vperm.slane %v2145, %v2150
  %v2153 = vunpack.c.l.s4 1983009808
  %v2154 = vunpack.c.0.s8 %v2153
  %v2155 = vperm.slane %v2147, %v2154
  %v2156 = vrot.slane %v330, 4
  %v2157 = vsel %vm464, %v2156, %v328
  %v2158 = vrot.slane %v328, 4
  %v2159 = vsel %vm464, %v330, %v2158
  %v2161 = vunpack.c.l.s4 1983009808
  %v2162 = vunpack.c.0.s8 %v2161
  %v2163 = vperm.slane %v2157, %v2162
  %v2165 = vunpack.c.l.s4 1983009808
  %v2166 = vunpack.c.0.s8 %v2165
  %v2167 = vperm.slane %v2159, %v2166
  %v2168 = vrot.slane %v333, 4
  %v2169 = vsel %vm464, %v2168, %v331
  %v2170 = vrot.slane %v331, 4
  %v2171 = vsel %vm464, %v333, %v2170
  %v2173 = vunpack.c.l.s4 1983009808
  %v2174 = vunpack.c.0.s8 %v2173
  %v2175 = vperm.slane %v2169, %v2174
  %v2177 = vunpack.c.l.s4 1983009808
  %v2178 = vunpack.c.0.s8 %v2177
  %v2179 = vperm.slane %v2171, %v2178
  %v2180 = vrot.slane %v334, 4
  %v2181 = vsel %vm464, %v2180, %v332
  %v2182 = vrot.slane %v332, 4
  %v2183 = vsel %vm464, %v334, %v2182
  %v2185 = vunpack.c.l.s4 1983009808
  %v2186 = vunpack.c.0.s8 %v2185
  %v2187 = vperm.slane %v2181, %v2186
  %v2189 = vunpack.c.l.s4 1983009808
  %v2190 = vunpack.c.0.s8 %v2189
  %v2191 = vperm.slane %v2183, %v2190
  %v2192 = vrot.slane %v2163, 4
  %v2193 = vsel %vm464, %v2192, %v2151
  %v2194 = vrot.slane %v2151, 4
  %v2195 = vsel %vm464, %v2163, %v2194
  %v2197 = vunpack.c.l.s4 1934713408
  %v2198 = vunpack.c.0.s8 %v2197
  %v2199 = vperm.slane %v2193, %v2198
  %v2201 = vunpack.c.l.s4 1934713408
  %v2202 = vunpack.c.0.s8 %v2201
  %v2203 = vperm.slane %v2195, %v2202
  %v2204 = vrot.slane %v2167, 4
  %v2205 = vsel %vm464, %v2204, %v2155
  %v2206 = vrot.slane %v2155, 4
  %v2207 = vsel %vm464, %v2167, %v2206
  %v2209 = vunpack.c.l.s4 1934713408
  %v2210 = vunpack.c.0.s8 %v2209
  %v2211 = vperm.slane %v2205, %v2210
  %v2213 = vunpack.c.l.s4 1934713408
  %v2214 = vunpack.c.0.s8 %v2213
  %v2215 = vperm.slane %v2207, %v2214
  %v2216 = vrot.slane %v2187, 4
  %v2217 = vsel %vm464, %v2216, %v2175
  %v2218 = vrot.slane %v2175, 4
  %v2219 = vsel %vm464, %v2187, %v2218
  %v2221 = vunpack.c.l.s4 1934713408
  %v2222 = vunpack.c.0.s8 %v2221
  %v2223 = vperm.slane %v2217, %v2222
  %v2225 = vunpack.c.l.s4 1934713408
  %v2226 = vunpack.c.0.s8 %v2225
  %v2227 = vperm.slane %v2219, %v2226
  %v2228 = vrot.slane %v2191, 4
  %v2229 = vsel %vm464, %v2228, %v2179
  %v2230 = vrot.slane %v2179, 4
  %v2231 = vsel %vm464, %v2191, %v2230
  %v2233 = vunpack.c.l.s4 1934713408
  %v2234 = vunpack.c.0.s8 %v2233
  %v2235 = vperm.slane %v2229, %v2234
  %v2237 = vunpack.c.l.s4 1934713408
  %v2238 = vunpack.c.0.s8 %v2237
  %v2239 = vperm.slane %v2231, %v2238
  %v2240 = vrot.slane %v2223, 4
  %v2241 = vsel %vm464, %v2240, %v2199
  %v2242 = vrot.slane %v2199, 4
  %v2243 = vsel %vm464, %v2223, %v2242
  %v2244 = vrot.slane %v2227, 4
  %v2245 = vsel %vm464, %v2244, %v2203
  %v2246 = vrot.slane %v2203, 4
  %v2247 = vsel %vm464, %v2227, %v2246
  %v2248 = vrot.slane %v2235, 4
  %v2249 = vsel %vm464, %v2248, %v2211
  %v2250 = vrot.slane %v2211, 4
  %v2251 = vsel %vm464, %v2235, %v2250
  %v2252 = vrot.slane %v2239, 4
  %v2253 = vsel %vm464, %v2252, %v2215
  %v2254 = vrot.slane %v2215, 4
  %v2255 = vsel %vm464, %v2239, %v2254
  %2272 = vrot.lane.b32.xlu0 %v563, 16
  %v2273 = vpop.permute.xlu0 %2272
  %2274 = vrot.lane.b32.xlu0 %v675, 16
  %v2275 = vpop.permute.xlu0 %2274
  %2276 = vrot.lane.b32.xlu0 %v787, 16
  %v2277 = vpop.permute.xlu0 %2276
  %2278 = vrot.lane.b32.xlu0 %v899, 16
  %v2279 = vpop.permute.xlu0 %2278
  %2280 = vrot.lane.b32.xlu0 %v1011, 16
  %v2281 = vpop.permute.xlu0 %2280
  %2282 = vrot.lane.b32.xlu0 %v1123, 16
  %v2283 = vpop.permute.xlu0 %2282
  %2284 = vrot.lane.b32.xlu0 %v1235, 16
  %v2285 = vpop.permute.xlu0 %2284
  %2286 = vrot.lane.b32.xlu0 %v1347, 16
  %v2287 = vpop.permute.xlu0 %2286
  %2288 = vrot.lane.b32.xlu0 %v1459, 16
  %v2289 = vpop.permute.xlu0 %2288
  %2290 = vrot.lane.b32.xlu0 %v1571, 16
  %v2291 = vpop.permute.xlu0 %2290
  %2292 = vrot.lane.b32.xlu0 %v1683, 16
  %v2293 = vpop.permute.xlu0 %2292
  %2294 = vrot.lane.b32.xlu0 %v1795, 16
  %v2295 = vpop.permute.xlu0 %2294
  %2296 = vrot.lane.b32.xlu0 %v1907, 16
  %v2297 = vpop.permute.xlu0 %2296
  %2298 = vrot.lane.b32.xlu0 %v2019, 16
  %v2299 = vpop.permute.xlu0 %2298
  %2300 = vrot.lane.b32.xlu0 %v2131, 16
  %v2301 = vpop.permute.xlu0 %2300
  %2302 = vrot.lane.b32.xlu0 %v2243, 16
  %v2303 = vpop.permute.xlu0 %2302
  %2336 = vrot.lane.b32.xlu0 %v565, 32
  %v2337 = vpop.permute.xlu0 %2336
  %2338 = vrot.lane.b32.xlu0 %v677, 32
  %v2339 = vpop.permute.xlu0 %2338
  %2340 = vrot.lane.b32.xlu0 %v789, 32
  %v2341 = vpop.permute.xlu0 %2340
  %2342 = vrot.lane.b32.xlu0 %v901, 32
  %v2343 = vpop.permute.xlu0 %2342
  %2344 = vrot.lane.b32.xlu0 %v1013, 32
  %v2345 = vpop.permute.xlu0 %2344
  %2346 = vrot.lane.b32.xlu0 %v1125, 32
  %v2347 = vpop.permute.xlu0 %2346
  %2348 = vrot.lane.b32.xlu0 %v1237, 32
  %v2349 = vpop.permute.xlu0 %2348
  %2350 = vrot.lane.b32.xlu0 %v1349, 32
  %v2351 = vpop.permute.xlu0 %2350
  %2352 = vrot.lane.b32.xlu0 %v1461, 32
  %v2353 = vpop.permute.xlu0 %2352
  %2354 = vrot.lane.b32.xlu0 %v1573, 32
  %v2355 = vpop.permute.xlu0 %2354
  %2356 = vrot.lane.b32.xlu0 %v1685, 32
  %v2357 = vpop.permute.xlu0 %2356
  %2358 = vrot.lane.b32.xlu0 %v1797, 32
  %v2359 = vpop.permute.xlu0 %2358
  %2360 = vrot.lane.b32.xlu0 %v1909, 32
  %v2361 = vpop.permute.xlu0 %2360
  %2362 = vrot.lane.b32.xlu0 %v2021, 32
  %v2363 = vpop.permute.xlu0 %2362
  %2364 = vrot.lane.b32.xlu0 %v2133, 32
  %v2365 = vpop.permute.xlu0 %2364
  %2366 = vrot.lane.b32.xlu0 %v2245, 32
  %v2367 = vpop.permute.xlu0 %2366
  %2400 = vrot.lane.b32.xlu0 %v567, 48
  %v2401 = vpop.permute.xlu0 %2400
  %2402 = vrot.lane.b32.xlu0 %v679, 48
  %v2403 = vpop.permute.xlu0 %2402
  %2404 = vrot.lane.b32.xlu0 %v791, 48
  %v2405 = vpop.permute.xlu0 %2404
  %2406 = vrot.lane.b32.xlu0 %v903, 48
  %v2407 = vpop.permute.xlu0 %2406
  %2408 = vrot.lane.b32.xlu0 %v1015, 48
  %v2409 = vpop.permute.xlu0 %2408
  %2410 = vrot.lane.b32.xlu0 %v1127, 48
  %v2411 = vpop.permute.xlu0 %2410
  %2412 = vrot.lane.b32.xlu0 %v1239, 48
  %v2413 = vpop.permute.xlu0 %2412
  %2414 = vrot.lane.b32.xlu0 %v1351, 48
  %v2415 = vpop.permute.xlu0 %2414
  %2416 = vrot.lane.b32.xlu0 %v1463, 48
  %v2417 = vpop.permute.xlu0 %2416
  %2418 = vrot.lane.b32.xlu0 %v1575, 48
  %v2419 = vpop.permute.xlu0 %2418
  %2420 = vrot.lane.b32.xlu0 %v1687, 48
  %v2421 = vpop.permute.xlu0 %2420
  %2422 = vrot.lane.b32.xlu0 %v1799, 48
  %v2423 = vpop.permute.xlu0 %2422
  %2424 = vrot.lane.b32.xlu0 %v1911, 48
  %v2425 = vpop.permute.xlu0 %2424
  %2426 = vrot.lane.b32.xlu0 %v2023, 48
  %v2427 = vpop.permute.xlu0 %2426
  %2428 = vrot.lane.b32.xlu0 %v2135, 48
  %v2429 = vpop.permute.xlu0 %2428
  %2430 = vrot.lane.b32.xlu0 %v2247, 48
  %v2431 = vpop.permute.xlu0 %2430
  %2464 = vrot.lane.b32.xlu0 %v569, 64
  %v2465 = vpop.permute.xlu0 %2464
  %2466 = vrot.lane.b32.xlu0 %v681, 64
  %v2467 = vpop.permute.xlu0 %2466
  %2468 = vrot.lane.b32.xlu0 %v793, 64
  %v2469 = vpop.permute.xlu0 %2468
  %2470 = vrot.lane.b32.xlu0 %v905, 64
  %v2471 = vpop.permute.xlu0 %2470
  %2472 = vrot.lane.b32.xlu0 %v1017, 64
  %v2473 = vpop.permute.xlu0 %2472
  %2474 = vrot.lane.b32.xlu0 %v1129, 64
  %v2475 = vpop.permute.xlu0 %2474
  %2476 = vrot.lane.b32.xlu0 %v1241, 64
  %v2477 = vpop.permute.xlu0 %2476
  %2478 = vrot.lane.b32.xlu0 %v1353, 64
  %v2479 = vpop.permute.xlu0 %2478
  %2480 = vrot.lane.b32.xlu0 %v1465, 64
  %v2481 = vpop.permute.xlu0 %2480
  %2482 = vrot.lane.b32.xlu0 %v1577, 64
  %v2483 = vpop.permute.xlu0 %2482
  %2484 = vrot.lane.b32.xlu0 %v1689, 64
  %v2485 = vpop.permute.xlu0 %2484
  %2486 = vrot.lane.b32.xlu0 %v1801, 64
  %v2487 = vpop.permute.xlu0 %2486
  %2488 = vrot.lane.b32.xlu0 %v1913, 64
  %v2489 = vpop.permute.xlu0 %2488
  %2490 = vrot.lane.b32.xlu0 %v2025, 64
  %v2491 = vpop.permute.xlu0 %2490
  %2492 = vrot.lane.b32.xlu0 %v2137, 64
  %v2493 = vpop.permute.xlu0 %2492
  %2494 = vrot.lane.b32.xlu0 %v2249, 64
  %v2495 = vpop.permute.xlu0 %2494
  %2528 = vrot.lane.b32.xlu0 %v571, 80
  %v2529 = vpop.permute.xlu0 %2528
  %2530 = vrot.lane.b32.xlu0 %v683, 80
  %v2531 = vpop.permute.xlu0 %2530
  %2532 = vrot.lane.b32.xlu0 %v795, 80
  %v2533 = vpop.permute.xlu0 %2532
  %2534 = vrot.lane.b32.xlu0 %v907, 80
  %v2535 = vpop.permute.xlu0 %2534
  %2536 = vrot.lane.b32.xlu0 %v1019, 80
  %v2537 = vpop.permute.xlu0 %2536
  %2538 = vrot.lane.b32.xlu0 %v1131, 80
  %v2539 = vpop.permute.xlu0 %2538
  %2540 = vrot.lane.b32.xlu0 %v1243, 80
  %v2541 = vpop.permute.xlu0 %2540
  %2542 = vrot.lane.b32.xlu0 %v1355, 80
  %v2543 = vpop.permute.xlu0 %2542
  %2544 = vrot.lane.b32.xlu0 %v1467, 80
  %v2545 = vpop.permute.xlu0 %2544
  %2546 = vrot.lane.b32.xlu0 %v1579, 80
  %v2547 = vpop.permute.xlu0 %2546
  %2548 = vrot.lane.b32.xlu0 %v1691, 80
  %v2549 = vpop.permute.xlu0 %2548
  %2550 = vrot.lane.b32.xlu0 %v1803, 80
  %v2551 = vpop.permute.xlu0 %2550
  %2552 = vrot.lane.b32.xlu0 %v1915, 80
  %v2553 = vpop.permute.xlu0 %2552
  %2554 = vrot.lane.b32.xlu0 %v2027, 80
  %v2555 = vpop.permute.xlu0 %2554
  %2556 = vrot.lane.b32.xlu0 %v2139, 80
  %v2557 = vpop.permute.xlu0 %2556
  %2558 = vrot.lane.b32.xlu0 %v2251, 80
  %v2559 = vpop.permute.xlu0 %2558
  %2592 = vrot.lane.b32.xlu0 %v573, 96
  %v2593 = vpop.permute.xlu0 %2592
  %2594 = vrot.lane.b32.xlu0 %v685, 96
  %v2595 = vpop.permute.xlu0 %2594
  %2596 = vrot.lane.b32.xlu0 %v797, 96
  %v2597 = vpop.permute.xlu0 %2596
  %2598 = vrot.lane.b32.xlu0 %v909, 96
  %v2599 = vpop.permute.xlu0 %2598
  %2600 = vrot.lane.b32.xlu0 %v1021, 96
  %v2601 = vpop.permute.xlu0 %2600
  %2602 = vrot.lane.b32.xlu0 %v1133, 96
  %v2603 = vpop.permute.xlu0 %2602
  %2604 = vrot.lane.b32.xlu0 %v1245, 96
  %v2605 = vpop.permute.xlu0 %2604
  %2606 = vrot.lane.b32.xlu0 %v1357, 96
  %v2607 = vpop.permute.xlu0 %2606
  %2608 = vrot.lane.b32.xlu0 %v1469, 96
  %v2609 = vpop.permute.xlu0 %2608
  %2610 = vrot.lane.b32.xlu0 %v1581, 96
  %v2611 = vpop.permute.xlu0 %2610
  %2612 = vrot.lane.b32.xlu0 %v1693, 96
  %v2613 = vpop.permute.xlu0 %2612
  %2614 = vrot.lane.b32.xlu0 %v1805, 96
  %v2615 = vpop.permute.xlu0 %2614
  %2616 = vrot.lane.b32.xlu0 %v1917, 96
  %v2617 = vpop.permute.xlu0 %2616
  %2618 = vrot.lane.b32.xlu0 %v2029, 96
  %v2619 = vpop.permute.xlu0 %2618
  %2620 = vrot.lane.b32.xlu0 %v2141, 96
  %v2621 = vpop.permute.xlu0 %2620
  %2622 = vrot.lane.b32.xlu0 %v2253, 96
  %v2623 = vpop.permute.xlu0 %2622
  %2656 = vrot.lane.b32.xlu0 %v575, 112
  %v2657 = vpop.permute.xlu0 %2656
  %2658 = vrot.lane.b32.xlu0 %v687, 112
  %v2659 = vpop.permute.xlu0 %2658
  %2660 = vrot.lane.b32.xlu0 %v799, 112
  %v2661 = vpop.permute.xlu0 %2660
  %2662 = vrot.lane.b32.xlu0 %v911, 112
  %v2663 = vpop.permute.xlu0 %2662
  %2664 = vrot.lane.b32.xlu0 %v1023, 112
  %v2665 = vpop.permute.xlu0 %2664
  %2666 = vrot.lane.b32.xlu0 %v1135, 112
  %v2667 = vpop.permute.xlu0 %2666
  %2668 = vrot.lane.b32.xlu0 %v1247, 112
  %v2669 = vpop.permute.xlu0 %2668
  %2670 = vrot.lane.b32.xlu0 %v1359, 112
  %v2671 = vpop.permute.xlu0 %2670
  %2672 = vrot.lane.b32.xlu0 %v1471, 112
  %v2673 = vpop.permute.xlu0 %2672
  %2674 = vrot.lane.b32.xlu0 %v1583, 112
  %v2675 = vpop.permute.xlu0 %2674
  %2676 = vrot.lane.b32.xlu0 %v1695, 112
  %v2677 = vpop.permute.xlu0 %2676
  %2678 = vrot.lane.b32.xlu0 %v1807, 112
  %v2679 = vpop.permute.xlu0 %2678
  %2680 = vrot.lane.b32.xlu0 %v1919, 112
  %v2681 = vpop.permute.xlu0 %2680
  %2682 = vrot.lane.b32.xlu0 %v2031, 112
  %v2683 = vpop.permute.xlu0 %2682
  %2684 = vrot.lane.b32.xlu0 %v2143, 112
  %v2685 = vpop.permute.xlu0 %2684
  %2686 = vrot.lane.b32.xlu0 %v2255, 112
  %v2687 = vpop.permute.xlu0 %2686
  %vm2704 = vcmask 130048
  %v2705 = vsel %vm2704, %v561, %v2273
  %v2706 = vsel %vm2704, %v673, %v2275
  %v2707 = vsel %vm2704, %v785, %v2277
  %v2708 = vsel %vm2704, %v897, %v2279
  %v2709 = vsel %vm2704, %v1009, %v2281
  %v2710 = vsel %vm2704, %v1121, %v2283
  %v2711 = vsel %vm2704, %v1233, %v2285
  %v2712 = vsel %vm2704, %v1345, %v2287
  %v2713 = vsel %vm2704, %v1457, %v2289
  %v2714 = vsel %vm2704, %v1569, %v2291
  %v2715 = vsel %vm2704, %v1681, %v2293
  %v2716 = vsel %vm2704, %v1793, %v2295
  %v2717 = vsel %vm2704, %v1905, %v2297
  %v2718 = vsel %vm2704, %v2017, %v2299
  %v2719 = vsel %vm2704, %v2129, %v2301
  %v2720 = vsel %vm2704, %v2241, %v2303
  %vm2721 = vcmask 261120
  %v2722 = vsel %vm2721, %v2705, %v2337
  %v2723 = vsel %vm2721, %v2706, %v2339
  %v2724 = vsel %vm2721, %v2707, %v2341
  %v2725 = vsel %vm2721, %v2708, %v2343
  %v2726 = vsel %vm2721, %v2709, %v2345
  %v2727 = vsel %vm2721, %v2710, %v2347
  %v2728 = vsel %vm2721, %v2711, %v2349
  %v2729 = vsel %vm2721, %v2712, %v2351
  %v2730 = vsel %vm2721, %v2713, %v2353
  %v2731 = vsel %vm2721, %v2714, %v2355
  %v2732 = vsel %vm2721, %v2715, %v2357
  %v2733 = vsel %vm2721, %v2716, %v2359
  %v2734 = vsel %vm2721, %v2717, %v2361
  %v2735 = vsel %vm2721, %v2718, %v2363
  %v2736 = vsel %vm2721, %v2719, %v2365
  %v2737 = vsel %vm2721, %v2720, %v2367
  %vm2738 = vcmask 392192
  %v2739 = vsel %vm2738, %v2722, %v2401
  %v2740 = vsel %vm2738, %v2723, %v2403
  %v2741 = vsel %vm2738, %v2724, %v2405
  %v2742 = vsel %vm2738, %v2725, %v2407
  %v2743 = vsel %vm2738, %v2726, %v2409
  %v2744 = vsel %vm2738, %v2727, %v2411
  %v2745 = vsel %vm2738, %v2728, %v2413
  %v2746 = vsel %vm2738, %v2729, %v2415
  %v2747 = vsel %vm2738, %v2730, %v2417
  %v2748 = vsel %vm2738, %v2731, %v2419
  %v2749 = vsel %vm2738, %v2732, %v2421
  %v2750 = vsel %vm2738, %v2733, %v2423
  %v2751 = vsel %vm2738, %v2734, %v2425
  %v2752 = vsel %vm2738, %v2735, %v2427
  %v2753 = vsel %vm2738, %v2736, %v2429
  %v2754 = vsel %vm2738, %v2737, %v2431
  %vm2755 = vcmask 523264
  %v2756 = vsel %vm2755, %v2739, %v2465
  %v2757 = vsel %vm2755, %v2740, %v2467
  %v2758 = vsel %vm2755, %v2741, %v2469
  %v2759 = vsel %vm2755, %v2742, %v2471
  %v2760 = vsel %vm2755, %v2743, %v2473
  %v2761 = vsel %vm2755, %v2744, %v2475
  %v2762 = vsel %vm2755, %v2745, %v2477
  %v2763 = vsel %vm2755, %v2746, %v2479
  %v2764 = vsel %vm2755, %v2747, %v2481
  %v2765 = vsel %vm2755, %v2748, %v2483
  %v2766 = vsel %vm2755, %v2749, %v2485
  %v2767 = vsel %vm2755, %v2750, %v2487
  %v2768 = vsel %vm2755, %v2751, %v2489
  %v2769 = vsel %vm2755, %v2752, %v2491
  %v2770 = vsel %vm2755, %v2753, %v2493
  %v2771 = vsel %vm2755, %v2754, %v2495
  %vm2772 = vcmask 654336
  %v2773 = vsel %vm2772, %v2756, %v2529
  %v2774 = vsel %vm2772, %v2757, %v2531
  %v2775 = vsel %vm2772, %v2758, %v2533
  %v2776 = vsel %vm2772, %v2759, %v2535
  %v2777 = vsel %vm2772, %v2760, %v2537
  %v2778 = vsel %vm2772, %v2761, %v2539
  %v2779 = vsel %vm2772, %v2762, %v2541
  %v2780 = vsel %vm2772, %v2763, %v2543
  %v2781 = vsel %vm2772, %v2764, %v2545
  %v2782 = vsel %vm2772, %v2765, %v2547
  %v2783 = vsel %vm2772, %v2766, %v2549
  %v2784 = vsel %vm2772, %v2767, %v2551
  %v2785 = vsel %vm2772, %v2768, %v2553
  %v2786 = vsel %vm2772, %v2769, %v2555
  %v2787 = vsel %vm2772, %v2770, %v2557
  %v2788 = vsel %vm2772, %v2771, %v2559
  %vm2789 = vcmask 785408
  %v2790 = vsel %vm2789, %v2773, %v2593
  %v2791 = vsel %vm2789, %v2774, %v2595
  %v2792 = vsel %vm2789, %v2775, %v2597
  %v2793 = vsel %vm2789, %v2776, %v2599
  %v2794 = vsel %vm2789, %v2777, %v2601
  %v2795 = vsel %vm2789, %v2778, %v2603
  %v2796 = vsel %vm2789, %v2779, %v2605
  %v2797 = vsel %vm2789, %v2780, %v2607
  %v2798 = vsel %vm2789, %v2781, %v2609
  %v2799 = vsel %vm2789, %v2782, %v2611
  %v2800 = vsel %vm2789, %v2783, %v2613
  %v2801 = vsel %vm2789, %v2784, %v2615
  %v2802 = vsel %vm2789, %v2785, %v2617
  %v2803 = vsel %vm2789, %v2786, %v2619
  %v2804 = vsel %vm2789, %v2787, %v2621
  %v2805 = vsel %vm2789, %v2788, %v2623
  %vm2806 = vcmask 916480
  %v2807 = vsel %vm2806, %v2790, %v2657
  %v2808 = vsel %vm2806, %v2791, %v2659
  %v2809 = vsel %vm2806, %v2792, %v2661
  %v2810 = vsel %vm2806, %v2793, %v2663
  %v2811 = vsel %vm2806, %v2794, %v2665
  %v2812 = vsel %vm2806, %v2795, %v2667
  %v2813 = vsel %vm2806, %v2796, %v2669
  %v2814 = vsel %vm2806, %v2797, %v2671
  %v2815 = vsel %vm2806, %v2798, %v2673
  %v2816 = vsel %vm2806, %v2799, %v2675
  %v2817 = vsel %vm2806, %v2800, %v2677
  %v2818 = vsel %vm2806, %v2801, %v2679
  %v2819 = vsel %vm2806, %v2802, %v2681
  %v2820 = vsel %vm2806, %v2803, %v2683
  %v2821 = vsel %vm2806, %v2804, %v2685
  %v2822 = vsel %vm2806, %v2805, %v2687
  %v2823 = vperm.slane %v63, 0
  %v2824 = vlaneseq
  %v2825 = vshrl.u32 %v2824, 7
  %2827 = vset.pattern.permute.xlu0 %v2825
  %2828 = vperm.xlu0 %2827, %v2823
  %v2829 = vpop.permute.xlu0 %2828
  %v2830 = vlaneseq
  %v2831 = vshrl.u32 %v2830, 7
  %v2832 = vadd.s32 %v2831, 8
  %2833 = vset.pattern.permute.xlu0 %v2832
  %2834 = vperm.xlu0 %2833, %v2823
  %v2835 = vpop.permute.xlu0 %2834
  %v2836 = vperm.slane %v63, 1
  %v2837 = vlaneseq
  %v2838 = vshrl.u32 %v2837, 7
  %2840 = vset.pattern.permute.xlu0 %v2838
  %2841 = vperm.xlu0 %2840, %v2836
  %v2842 = vpop.permute.xlu0 %2841
  %v2843 = vlaneseq
  %v2844 = vshrl.u32 %v2843, 7
  %v2845 = vadd.s32 %v2844, 8
  %2846 = vset.pattern.permute.xlu0 %v2845
  %2847 = vperm.xlu0 %2846, %v2836
  %v2848 = vpop.permute.xlu0 %2847
  %v2849 = vperm.slane %v63, 2
  %v2850 = vlaneseq
  %v2851 = vshrl.u32 %v2850, 7
  %2853 = vset.pattern.permute.xlu0 %v2851
  %2854 = vperm.xlu0 %2853, %v2849
  %v2855 = vpop.permute.xlu0 %2854
  %v2856 = vlaneseq
  %v2857 = vshrl.u32 %v2856, 7
  %v2858 = vadd.s32 %v2857, 8
  %2859 = vset.pattern.permute.xlu0 %v2858
  %2860 = vperm.xlu0 %2859, %v2849
  %v2861 = vpop.permute.xlu0 %2860
  %v2862 = vperm.slane %v63, 3
  %v2863 = vlaneseq
  %v2864 = vshrl.u32 %v2863, 7
  %2866 = vset.pattern.permute.xlu0 %v2864
  %2867 = vperm.xlu0 %2866, %v2862
  %v2868 = vpop.permute.xlu0 %2867
  %v2869 = vlaneseq
  %v2870 = vshrl.u32 %v2869, 7
  %v2871 = vadd.s32 %v2870, 8
  %2872 = vset.pattern.permute.xlu0 %v2871
  %2873 = vperm.xlu0 %2872, %v2862
  %v2874 = vpop.permute.xlu0 %2873
  %v2875 = vperm.slane %v63, 4
  %v2876 = vlaneseq
  %v2877 = vshrl.u32 %v2876, 7
  %2879 = vset.pattern.permute.xlu0 %v2877
  %2880 = vperm.xlu0 %2879, %v2875
  %v2881 = vpop.permute.xlu0 %2880
  %v2882 = vlaneseq
  %v2883 = vshrl.u32 %v2882, 7
  %v2884 = vadd.s32 %v2883, 8
  %2885 = vset.pattern.permute.xlu0 %v2884
  %2886 = vperm.xlu0 %2885, %v2875
  %v2887 = vpop.permute.xlu0 %2886
  %v2888 = vperm.slane %v63, 5
  %v2889 = vlaneseq
  %v2890 = vshrl.u32 %v2889, 7
  %2892 = vset.pattern.permute.xlu0 %v2890
  %2893 = vperm.xlu0 %2892, %v2888
  %v2894 = vpop.permute.xlu0 %2893
  %v2895 = vlaneseq
  %v2896 = vshrl.u32 %v2895, 7
  %v2897 = vadd.s32 %v2896, 8
  %2898 = vset.pattern.permute.xlu0 %v2897
  %2899 = vperm.xlu0 %2898, %v2888
  %v2900 = vpop.permute.xlu0 %2899
  %v2901 = vperm.slane %v63, 6
  %v2902 = vlaneseq
  %v2903 = vshrl.u32 %v2902, 7
  %2905 = vset.pattern.permute.xlu0 %v2903
  %2906 = vperm.xlu0 %2905, %v2901
  %v2907 = vpop.permute.xlu0 %2906
  %v2908 = vlaneseq
  %v2909 = vshrl.u32 %v2908, 7
  %v2910 = vadd.s32 %v2909, 8
  %2911 = vset.pattern.permute.xlu0 %v2910
  %2912 = vperm.xlu0 %2911, %v2901
  %v2913 = vpop.permute.xlu0 %2912
  %v2914 = vperm.slane %v63, 7
  %v2915 = vlaneseq
  %v2916 = vshrl.u32 %v2915, 7
  %2918 = vset.pattern.permute.xlu0 %v2916
  %2919 = vperm.xlu0 %2918, %v2914
  %v2920 = vpop.permute.xlu0 %2919
  %v2921 = vlaneseq
  %v2922 = vshrl.u32 %v2921, 7
  %v2923 = vadd.s32 %v2922, 8
  %2924 = vset.pattern.permute.xlu0 %v2923
  %2925 = vperm.xlu0 %2924, %v2914
  %v2926 = vpop.permute.xlu0 %2925
  %v2927 = vperm.slane %v64, 0
  %v2928 = vlaneseq
  %v2929 = vshrl.u32 %v2928, 7
  %2931 = vset.pattern.permute.xlu0 %v2929
  %2932 = vperm.xlu0 %2931, %v2927
  %v2933 = vpop.permute.xlu0 %2932
  %v2934 = vlaneseq
  %v2935 = vshrl.u32 %v2934, 7
  %v2936 = vadd.s32 %v2935, 8
  %2937 = vset.pattern.permute.xlu0 %v2936
  %2938 = vperm.xlu0 %2937, %v2927
  %v2939 = vpop.permute.xlu0 %2938
  %v2940 = vperm.slane %v64, 1
  %v2941 = vlaneseq
  %v2942 = vshrl.u32 %v2941, 7
  %2944 = vset.pattern.permute.xlu0 %v2942
  %2945 = vperm.xlu0 %2944, %v2940
  %v2946 = vpop.permute.xlu0 %2945
  %v2947 = vlaneseq
  %v2948 = vshrl.u32 %v2947, 7
  %v2949 = vadd.s32 %v2948, 8
  %2950 = vset.pattern.permute.xlu0 %v2949
  %2951 = vperm.xlu0 %2950, %v2940
  %v2952 = vpop.permute.xlu0 %2951
  %v2953 = vperm.slane %v64, 2
  %v2954 = vlaneseq
  %v2955 = vshrl.u32 %v2954, 7
  %2957 = vset.pattern.permute.xlu0 %v2955
  %2958 = vperm.xlu0 %2957, %v2953
  %v2959 = vpop.permute.xlu0 %2958
  %v2960 = vlaneseq
  %v2961 = vshrl.u32 %v2960, 7
  %v2962 = vadd.s32 %v2961, 8
  %2963 = vset.pattern.permute.xlu0 %v2962
  %2964 = vperm.xlu0 %2963, %v2953
  %v2965 = vpop.permute.xlu0 %2964
  %v2966 = vperm.slane %v64, 3
  %v2967 = vlaneseq
  %v2968 = vshrl.u32 %v2967, 7
  %2970 = vset.pattern.permute.xlu0 %v2968
  %2971 = vperm.xlu0 %2970, %v2966
  %v2972 = vpop.permute.xlu0 %2971
  %v2973 = vlaneseq
  %v2974 = vshrl.u32 %v2973, 7
  %v2975 = vadd.s32 %v2974, 8
  %2976 = vset.pattern.permute.xlu0 %v2975
  %2977 = vperm.xlu0 %2976, %v2966
  %v2978 = vpop.permute.xlu0 %2977
  %v2979 = vperm.slane %v64, 4
  %v2980 = vlaneseq
  %v2981 = vshrl.u32 %v2980, 7
  %2983 = vset.pattern.permute.xlu0 %v2981
  %2984 = vperm.xlu0 %2983, %v2979
  %v2985 = vpop.permute.xlu0 %2984
  %v2986 = vlaneseq
  %v2987 = vshrl.u32 %v2986, 7
  %v2988 = vadd.s32 %v2987, 8
  %2989 = vset.pattern.permute.xlu0 %v2988
  %2990 = vperm.xlu0 %2989, %v2979
  %v2991 = vpop.permute.xlu0 %2990
  %v2992 = vperm.slane %v64, 5
  %v2993 = vlaneseq
  %v2994 = vshrl.u32 %v2993, 7
  %2996 = vset.pattern.permute.xlu0 %v2994
  %2997 = vperm.xlu0 %2996, %v2992
  %v2998 = vpop.permute.xlu0 %2997
  %v2999 = vlaneseq
  %v3000 = vshrl.u32 %v2999, 7
  %v3001 = vadd.s32 %v3000, 8
  %3002 = vset.pattern.permute.xlu0 %v3001
  %3003 = vperm.xlu0 %3002, %v2992
  %v3004 = vpop.permute.xlu0 %3003
  %v3005 = vperm.slane %v64, 6
  %v3006 = vlaneseq
  %v3007 = vshrl.u32 %v3006, 7
  %3009 = vset.pattern.permute.xlu0 %v3007
  %3010 = vperm.xlu0 %3009, %v3005
  %v3011 = vpop.permute.xlu0 %3010
  %v3012 = vlaneseq
  %v3013 = vshrl.u32 %v3012, 7
  %v3014 = vadd.s32 %v3013, 8
  %3015 = vset.pattern.permute.xlu0 %v3014
  %3016 = vperm.xlu0 %3015, %v3005
  %v3017 = vpop.permute.xlu0 %3016
  %v3018 = vperm.slane %v64, 7
  %v3019 = vlaneseq
  %v3020 = vshrl.u32 %v3019, 7
  %3022 = vset.pattern.permute.xlu0 %v3020
  %3023 = vperm.xlu0 %3022, %v3018
  %v3024 = vpop.permute.xlu0 %3023
  %v3025 = vlaneseq
  %v3026 = vshrl.u32 %v3025, 7
  %v3027 = vadd.s32 %v3026, 8
  %3028 = vset.pattern.permute.xlu0 %v3027
  %3029 = vperm.xlu0 %3028, %v3018
  %v3030 = vpop.permute.xlu0 %3029
  %v3031 = vperm.slane %v65, 0
  %v3032 = vlaneseq
  %v3033 = vshrl.u32 %v3032, 7
  %3035 = vset.pattern.permute.xlu0 %v3033
  %3036 = vperm.xlu0 %3035, %v3031
  %v3037 = vpop.permute.xlu0 %3036
  %v3038 = vlaneseq
  %v3039 = vshrl.u32 %v3038, 7
  %v3040 = vadd.s32 %v3039, 8
  %3041 = vset.pattern.permute.xlu0 %v3040
  %3042 = vperm.xlu0 %3041, %v3031
  %v3043 = vpop.permute.xlu0 %3042
  %v3044 = vperm.slane %v65, 1
  %v3045 = vlaneseq
  %v3046 = vshrl.u32 %v3045, 7
  %3048 = vset.pattern.permute.xlu0 %v3046
  %3049 = vperm.xlu0 %3048, %v3044
  %v3050 = vpop.permute.xlu0 %3049
  %v3051 = vlaneseq
  %v3052 = vshrl.u32 %v3051, 7
  %v3053 = vadd.s32 %v3052, 8
  %3054 = vset.pattern.permute.xlu0 %v3053
  %3055 = vperm.xlu0 %3054, %v3044
  %v3056 = vpop.permute.xlu0 %3055
  %v3057 = vperm.slane %v65, 2
  %v3058 = vlaneseq
  %v3059 = vshrl.u32 %v3058, 7
  %3061 = vset.pattern.permute.xlu0 %v3059
  %3062 = vperm.xlu0 %3061, %v3057
  %v3063 = vpop.permute.xlu0 %3062
  %v3064 = vlaneseq
  %v3065 = vshrl.u32 %v3064, 7
  %v3066 = vadd.s32 %v3065, 8
  %3067 = vset.pattern.permute.xlu0 %v3066
  %3068 = vperm.xlu0 %3067, %v3057
  %v3069 = vpop.permute.xlu0 %3068
  %v3070 = vperm.slane %v65, 3
  %v3071 = vlaneseq
  %v3072 = vshrl.u32 %v3071, 7
  %3074 = vset.pattern.permute.xlu0 %v3072
  %3075 = vperm.xlu0 %3074, %v3070
  %v3076 = vpop.permute.xlu0 %3075
  %v3077 = vlaneseq
  %v3078 = vshrl.u32 %v3077, 7
  %v3079 = vadd.s32 %v3078, 8
  %3080 = vset.pattern.permute.xlu0 %v3079
  %3081 = vperm.xlu0 %3080, %v3070
  %v3082 = vpop.permute.xlu0 %3081
  %v3083 = vperm.slane %v65, 4
  %v3084 = vlaneseq
  %v3085 = vshrl.u32 %v3084, 7
  %3087 = vset.pattern.permute.xlu0 %v3085
  %3088 = vperm.xlu0 %3087, %v3083
  %v3089 = vpop.permute.xlu0 %3088
  %v3090 = vlaneseq
  %v3091 = vshrl.u32 %v3090, 7
  %v3092 = vadd.s32 %v3091, 8
  %3093 = vset.pattern.permute.xlu0 %v3092
  %3094 = vperm.xlu0 %3093, %v3083
  %v3095 = vpop.permute.xlu0 %3094
  %v3096 = vperm.slane %v65, 5
  %v3097 = vlaneseq
  %v3098 = vshrl.u32 %v3097, 7
  %3100 = vset.pattern.permute.xlu0 %v3098
  %3101 = vperm.xlu0 %3100, %v3096
  %v3102 = vpop.permute.xlu0 %3101
  %v3103 = vlaneseq
  %v3104 = vshrl.u32 %v3103, 7
  %v3105 = vadd.s32 %v3104, 8
  %3106 = vset.pattern.permute.xlu0 %v3105
  %3107 = vperm.xlu0 %3106, %v3096
  %v3108 = vpop.permute.xlu0 %3107
  %v3109 = vperm.slane %v65, 6
  %v3110 = vlaneseq
  %v3111 = vshrl.u32 %v3110, 7
  %3113 = vset.pattern.permute.xlu0 %v3111
  %3114 = vperm.xlu0 %3113, %v3109
  %v3115 = vpop.permute.xlu0 %3114
  %v3116 = vlaneseq
  %v3117 = vshrl.u32 %v3116, 7
  %v3118 = vadd.s32 %v3117, 8
  %3119 = vset.pattern.permute.xlu0 %v3118
  %3120 = vperm.xlu0 %3119, %v3109
  %v3121 = vpop.permute.xlu0 %3120
  %v3122 = vperm.slane %v65, 7
  %v3123 = vlaneseq
  %v3124 = vshrl.u32 %v3123, 7
  %3126 = vset.pattern.permute.xlu0 %v3124
  %3127 = vperm.xlu0 %3126, %v3122
  %v3128 = vpop.permute.xlu0 %3127
  %v3129 = vlaneseq
  %v3130 = vshrl.u32 %v3129, 7
  %v3131 = vadd.s32 %v3130, 8
  %3132 = vset.pattern.permute.xlu0 %v3131
  %3133 = vperm.xlu0 %3132, %v3122
  %v3134 = vpop.permute.xlu0 %3133
  %v3135 = vperm.slane %v66, 0
  %v3136 = vlaneseq
  %v3137 = vshrl.u32 %v3136, 7
  %3139 = vset.pattern.permute.xlu0 %v3137
  %3140 = vperm.xlu0 %3139, %v3135
  %v3141 = vpop.permute.xlu0 %3140
  %v3142 = vlaneseq
  %v3143 = vshrl.u32 %v3142, 7
  %v3144 = vadd.s32 %v3143, 8
  %3145 = vset.pattern.permute.xlu0 %v3144
  %3146 = vperm.xlu0 %3145, %v3135
  %v3147 = vpop.permute.xlu0 %3146
  %v3148 = vperm.slane %v66, 1
  %v3149 = vlaneseq
  %v3150 = vshrl.u32 %v3149, 7
  %3152 = vset.pattern.permute.xlu0 %v3150
  %3153 = vperm.xlu0 %3152, %v3148
  %v3154 = vpop.permute.xlu0 %3153
  %v3155 = vlaneseq
  %v3156 = vshrl.u32 %v3155, 7
  %v3157 = vadd.s32 %v3156, 8
  %3158 = vset.pattern.permute.xlu0 %v3157
  %3159 = vperm.xlu0 %3158, %v3148
  %v3160 = vpop.permute.xlu0 %3159
  %v3161 = vperm.slane %v66, 2
  %v3162 = vlaneseq
  %v3163 = vshrl.u32 %v3162, 7
  %3165 = vset.pattern.permute.xlu0 %v3163
  %3166 = vperm.xlu0 %3165, %v3161
  %v3167 = vpop.permute.xlu0 %3166
  %v3168 = vlaneseq
  %v3169 = vshrl.u32 %v3168, 7
  %v3170 = vadd.s32 %v3169, 8
  %3171 = vset.pattern.permute.xlu0 %v3170
  %3172 = vperm.xlu0 %3171, %v3161
  %v3173 = vpop.permute.xlu0 %3172
  %v3174 = vperm.slane %v66, 3
  %v3175 = vlaneseq
  %v3176 = vshrl.u32 %v3175, 7
  %3178 = vset.pattern.permute.xlu0 %v3176
  %3179 = vperm.xlu0 %3178, %v3174
  %v3180 = vpop.permute.xlu0 %3179
  %v3181 = vlaneseq
  %v3182 = vshrl.u32 %v3181, 7
  %v3183 = vadd.s32 %v3182, 8
  %3184 = vset.pattern.permute.xlu0 %v3183
  %3185 = vperm.xlu0 %3184, %v3174
  %v3186 = vpop.permute.xlu0 %3185
  %v3187 = vperm.slane %v66, 4
  %v3188 = vlaneseq
  %v3189 = vshrl.u32 %v3188, 7
  %3191 = vset.pattern.permute.xlu0 %v3189
  %3192 = vperm.xlu0 %3191, %v3187
  %v3193 = vpop.permute.xlu0 %3192
  %v3194 = vlaneseq
  %v3195 = vshrl.u32 %v3194, 7
  %v3196 = vadd.s32 %v3195, 8
  %3197 = vset.pattern.permute.xlu0 %v3196
  %3198 = vperm.xlu0 %3197, %v3187
  %v3199 = vpop.permute.xlu0 %3198
  %v3200 = vperm.slane %v66, 5
  %v3201 = vlaneseq
  %v3202 = vshrl.u32 %v3201, 7
  %3204 = vset.pattern.permute.xlu0 %v3202
  %3205 = vperm.xlu0 %3204, %v3200
  %v3206 = vpop.permute.xlu0 %3205
  %v3207 = vlaneseq
  %v3208 = vshrl.u32 %v3207, 7
  %v3209 = vadd.s32 %v3208, 8
  %3210 = vset.pattern.permute.xlu0 %v3209
  %3211 = vperm.xlu0 %3210, %v3200
  %v3212 = vpop.permute.xlu0 %3211
  %v3213 = vperm.slane %v66, 6
  %v3214 = vlaneseq
  %v3215 = vshrl.u32 %v3214, 7
  %3217 = vset.pattern.permute.xlu0 %v3215
  %3218 = vperm.xlu0 %3217, %v3213
  %v3219 = vpop.permute.xlu0 %3218
  %v3220 = vlaneseq
  %v3221 = vshrl.u32 %v3220, 7
  %v3222 = vadd.s32 %v3221, 8
  %3223 = vset.pattern.permute.xlu0 %v3222
  %3224 = vperm.xlu0 %3223, %v3213
  %v3225 = vpop.permute.xlu0 %3224
  %v3226 = vperm.slane %v66, 7
  %v3227 = vlaneseq
  %v3228 = vshrl.u32 %v3227, 7
  %3230 = vset.pattern.permute.xlu0 %v3228
  %3231 = vperm.xlu0 %3230, %v3226
  %v3232 = vpop.permute.xlu0 %3231
  %v3233 = vlaneseq
  %v3234 = vshrl.u32 %v3233, 7
  %v3235 = vadd.s32 %v3234, 8
  %3236 = vset.pattern.permute.xlu0 %v3235
  %3237 = vperm.xlu0 %3236, %v3226
  %v3238 = vpop.permute.xlu0 %3237
  %v3239 = vperm.slane %v67, 0
  %v3240 = vlaneseq
  %v3241 = vshrl.u32 %v3240, 7
  %3243 = vset.pattern.permute.xlu0 %v3241
  %3244 = vperm.xlu0 %3243, %v3239
  %v3245 = vpop.permute.xlu0 %3244
  %v3246 = vlaneseq
  %v3247 = vshrl.u32 %v3246, 7
  %v3248 = vadd.s32 %v3247, 8
  %3249 = vset.pattern.permute.xlu0 %v3248
  %3250 = vperm.xlu0 %3249, %v3239
  %v3251 = vpop.permute.xlu0 %3250
  %v3252 = vperm.slane %v67, 1
  %v3253 = vlaneseq
  %v3254 = vshrl.u32 %v3253, 7
  %3256 = vset.pattern.permute.xlu0 %v3254
  %3257 = vperm.xlu0 %3256, %v3252
  %v3258 = vpop.permute.xlu0 %3257
  %v3259 = vlaneseq
  %v3260 = vshrl.u32 %v3259, 7
  %v3261 = vadd.s32 %v3260, 8
  %3262 = vset.pattern.permute.xlu0 %v3261
  %3263 = vperm.xlu0 %3262, %v3252
  %v3264 = vpop.permute.xlu0 %3263
  %v3265 = vperm.slane %v67, 2
  %v3266 = vlaneseq
  %v3267 = vshrl.u32 %v3266, 7
  %3269 = vset.pattern.permute.xlu0 %v3267
  %3270 = vperm.xlu0 %3269, %v3265
  %v3271 = vpop.permute.xlu0 %3270
  %v3272 = vlaneseq
  %v3273 = vshrl.u32 %v3272, 7
  %v3274 = vadd.s32 %v3273, 8
  %3275 = vset.pattern.permute.xlu0 %v3274
  %3276 = vperm.xlu0 %3275, %v3265
  %v3277 = vpop.permute.xlu0 %3276
  %v3278 = vperm.slane %v67, 3
  %v3279 = vlaneseq
  %v3280 = vshrl.u32 %v3279, 7
  %3282 = vset.pattern.permute.xlu0 %v3280
  %3283 = vperm.xlu0 %3282, %v3278
  %v3284 = vpop.permute.xlu0 %3283
  %v3285 = vlaneseq
  %v3286 = vshrl.u32 %v3285, 7
  %v3287 = vadd.s32 %v3286, 8
  %3288 = vset.pattern.permute.xlu0 %v3287
  %3289 = vperm.xlu0 %3288, %v3278
  %v3290 = vpop.permute.xlu0 %3289
  %v3291 = vperm.slane %v67, 4
  %v3292 = vlaneseq
  %v3293 = vshrl.u32 %v3292, 7
  %3295 = vset.pattern.permute.xlu0 %v3293
  %3296 = vperm.xlu0 %3295, %v3291
  %v3297 = vpop.permute.xlu0 %3296
  %v3298 = vlaneseq
  %v3299 = vshrl.u32 %v3298, 7
  %v3300 = vadd.s32 %v3299, 8
  %3301 = vset.pattern.permute.xlu0 %v3300
  %3302 = vperm.xlu0 %3301, %v3291
  %v3303 = vpop.permute.xlu0 %3302
  %v3304 = vperm.slane %v67, 5
  %v3305 = vlaneseq
  %v3306 = vshrl.u32 %v3305, 7
  %3308 = vset.pattern.permute.xlu0 %v3306
  %3309 = vperm.xlu0 %3308, %v3304
  %v3310 = vpop.permute.xlu0 %3309
  %v3311 = vlaneseq
  %v3312 = vshrl.u32 %v3311, 7
  %v3313 = vadd.s32 %v3312, 8
  %3314 = vset.pattern.permute.xlu0 %v3313
  %3315 = vperm.xlu0 %3314, %v3304
  %v3316 = vpop.permute.xlu0 %3315
  %v3317 = vperm.slane %v67, 6
  %v3318 = vlaneseq
  %v3319 = vshrl.u32 %v3318, 7
  %3321 = vset.pattern.permute.xlu0 %v3319
  %3322 = vperm.xlu0 %3321, %v3317
  %v3323 = vpop.permute.xlu0 %3322
  %v3324 = vlaneseq
  %v3325 = vshrl.u32 %v3324, 7
  %v3326 = vadd.s32 %v3325, 8
  %3327 = vset.pattern.permute.xlu0 %v3326
  %3328 = vperm.xlu0 %3327, %v3317
  %v3329 = vpop.permute.xlu0 %3328
  %v3330 = vperm.slane %v67, 7
  %v3331 = vlaneseq
  %v3332 = vshrl.u32 %v3331, 7
  %3334 = vset.pattern.permute.xlu0 %v3332
  %3335 = vperm.xlu0 %3334, %v3330
  %v3336 = vpop.permute.xlu0 %3335
  %v3337 = vlaneseq
  %v3338 = vshrl.u32 %v3337, 7
  %v3339 = vadd.s32 %v3338, 8
  %3340 = vset.pattern.permute.xlu0 %v3339
  %3341 = vperm.xlu0 %3340, %v3330
  %v3342 = vpop.permute.xlu0 %3341
  %v3343 = vperm.slane %v68, 0
  %v3344 = vlaneseq
  %v3345 = vshrl.u32 %v3344, 7
  %3347 = vset.pattern.permute.xlu0 %v3345
  %3348 = vperm.xlu0 %3347, %v3343
  %v3349 = vpop.permute.xlu0 %3348
  %v3350 = vlaneseq
  %v3351 = vshrl.u32 %v3350, 7
  %v3352 = vadd.s32 %v3351, 8
  %3353 = vset.pattern.permute.xlu0 %v3352
  %3354 = vperm.xlu0 %3353, %v3343
  %v3355 = vpop.permute.xlu0 %3354
  %v3356 = vperm.slane %v68, 1
  %v3357 = vlaneseq
  %v3358 = vshrl.u32 %v3357, 7
  %3360 = vset.pattern.permute.xlu0 %v3358
  %3361 = vperm.xlu0 %3360, %v3356
  %v3362 = vpop.permute.xlu0 %3361
  %v3363 = vlaneseq
  %v3364 = vshrl.u32 %v3363, 7
  %v3365 = vadd.s32 %v3364, 8
  %3366 = vset.pattern.permute.xlu0 %v3365
  %3367 = vperm.xlu0 %3366, %v3356
  %v3368 = vpop.permute.xlu0 %3367
  %v3369 = vperm.slane %v68, 2
  %v3370 = vlaneseq
  %v3371 = vshrl.u32 %v3370, 7
  %3373 = vset.pattern.permute.xlu0 %v3371
  %3374 = vperm.xlu0 %3373, %v3369
  %v3375 = vpop.permute.xlu0 %3374
  %v3376 = vlaneseq
  %v3377 = vshrl.u32 %v3376, 7
  %v3378 = vadd.s32 %v3377, 8
  %3379 = vset.pattern.permute.xlu0 %v3378
  %3380 = vperm.xlu0 %3379, %v3369
  %v3381 = vpop.permute.xlu0 %3380
  %v3382 = vperm.slane %v68, 3
  %v3383 = vlaneseq
  %v3384 = vshrl.u32 %v3383, 7
  %3386 = vset.pattern.permute.xlu0 %v3384
  %3387 = vperm.xlu0 %3386, %v3382
  %v3388 = vpop.permute.xlu0 %3387
  %v3389 = vlaneseq
  %v3390 = vshrl.u32 %v3389, 7
  %v3391 = vadd.s32 %v3390, 8
  %3392 = vset.pattern.permute.xlu0 %v3391
  %3393 = vperm.xlu0 %3392, %v3382
  %v3394 = vpop.permute.xlu0 %3393
  %v3395 = vperm.slane %v68, 4
  %v3396 = vlaneseq
  %v3397 = vshrl.u32 %v3396, 7
  %3399 = vset.pattern.permute.xlu0 %v3397
  %3400 = vperm.xlu0 %3399, %v3395
  %v3401 = vpop.permute.xlu0 %3400
  %v3402 = vlaneseq
  %v3403 = vshrl.u32 %v3402, 7
  %v3404 = vadd.s32 %v3403, 8
  %3405 = vset.pattern.permute.xlu0 %v3404
  %3406 = vperm.xlu0 %3405, %v3395
  %v3407 = vpop.permute.xlu0 %3406
  %v3408 = vperm.slane %v68, 5
  %v3409 = vlaneseq
  %v3410 = vshrl.u32 %v3409, 7
  %3412 = vset.pattern.permute.xlu0 %v3410
  %3413 = vperm.xlu0 %3412, %v3408
  %v3414 = vpop.permute.xlu0 %3413
  %v3415 = vlaneseq
  %v3416 = vshrl.u32 %v3415, 7
  %v3417 = vadd.s32 %v3416, 8
  %3418 = vset.pattern.permute.xlu0 %v3417
  %3419 = vperm.xlu0 %3418, %v3408
  %v3420 = vpop.permute.xlu0 %3419
  %v3421 = vperm.slane %v68, 6
  %v3422 = vlaneseq
  %v3423 = vshrl.u32 %v3422, 7
  %3425 = vset.pattern.permute.xlu0 %v3423
  %3426 = vperm.xlu0 %3425, %v3421
  %v3427 = vpop.permute.xlu0 %3426
  %v3428 = vlaneseq
  %v3429 = vshrl.u32 %v3428, 7
  %v3430 = vadd.s32 %v3429, 8
  %3431 = vset.pattern.permute.xlu0 %v3430
  %3432 = vperm.xlu0 %3431, %v3421
  %v3433 = vpop.permute.xlu0 %3432
  %v3434 = vperm.slane %v68, 7
  %v3435 = vlaneseq
  %v3436 = vshrl.u32 %v3435, 7
  %3438 = vset.pattern.permute.xlu0 %v3436
  %3439 = vperm.xlu0 %3438, %v3434
  %v3440 = vpop.permute.xlu0 %3439
  %v3441 = vlaneseq
  %v3442 = vshrl.u32 %v3441, 7
  %v3443 = vadd.s32 %v3442, 8
  %3444 = vset.pattern.permute.xlu0 %v3443
  %3445 = vperm.xlu0 %3444, %v3434
  %v3446 = vpop.permute.xlu0 %3445
  %v3447 = vperm.slane %v69, 0
  %v3448 = vlaneseq
  %v3449 = vshrl.u32 %v3448, 7
  %3451 = vset.pattern.permute.xlu0 %v3449
  %3452 = vperm.xlu0 %3451, %v3447
  %v3453 = vpop.permute.xlu0 %3452
  %v3454 = vlaneseq
  %v3455 = vshrl.u32 %v3454, 7
  %v3456 = vadd.s32 %v3455, 8
  %3457 = vset.pattern.permute.xlu0 %v3456
  %3458 = vperm.xlu0 %3457, %v3447
  %v3459 = vpop.permute.xlu0 %3458
  %v3460 = vperm.slane %v69, 1
  %v3461 = vlaneseq
  %v3462 = vshrl.u32 %v3461, 7
  %3464 = vset.pattern.permute.xlu0 %v3462
  %3465 = vperm.xlu0 %3464, %v3460
  %v3466 = vpop.permute.xlu0 %3465
  %v3467 = vlaneseq
  %v3468 = vshrl.u32 %v3467, 7
  %v3469 = vadd.s32 %v3468, 8
  %3470 = vset.pattern.permute.xlu0 %v3469
  %3471 = vperm.xlu0 %3470, %v3460
  %v3472 = vpop.permute.xlu0 %3471
  %v3473 = vperm.slane %v69, 2
  %v3474 = vlaneseq
  %v3475 = vshrl.u32 %v3474, 7
  %3477 = vset.pattern.permute.xlu0 %v3475
  %3478 = vperm.xlu0 %3477, %v3473
  %v3479 = vpop.permute.xlu0 %3478
  %v3480 = vlaneseq
  %v3481 = vshrl.u32 %v3480, 7
  %v3482 = vadd.s32 %v3481, 8
  %3483 = vset.pattern.permute.xlu0 %v3482
  %3484 = vperm.xlu0 %3483, %v3473
  %v3485 = vpop.permute.xlu0 %3484
  %v3486 = vperm.slane %v69, 3
  %v3487 = vlaneseq
  %v3488 = vshrl.u32 %v3487, 7
  %3490 = vset.pattern.permute.xlu0 %v3488
  %3491 = vperm.xlu0 %3490, %v3486
  %v3492 = vpop.permute.xlu0 %3491
  %v3493 = vlaneseq
  %v3494 = vshrl.u32 %v3493, 7
  %v3495 = vadd.s32 %v3494, 8
  %3496 = vset.pattern.permute.xlu0 %v3495
  %3497 = vperm.xlu0 %3496, %v3486
  %v3498 = vpop.permute.xlu0 %3497
  %v3499 = vperm.slane %v69, 4
  %v3500 = vlaneseq
  %v3501 = vshrl.u32 %v3500, 7
  %3503 = vset.pattern.permute.xlu0 %v3501
  %3504 = vperm.xlu0 %3503, %v3499
  %v3505 = vpop.permute.xlu0 %3504
  %v3506 = vlaneseq
  %v3507 = vshrl.u32 %v3506, 7
  %v3508 = vadd.s32 %v3507, 8
  %3509 = vset.pattern.permute.xlu0 %v3508
  %3510 = vperm.xlu0 %3509, %v3499
  %v3511 = vpop.permute.xlu0 %3510
  %v3512 = vperm.slane %v69, 5
  %v3513 = vlaneseq
  %v3514 = vshrl.u32 %v3513, 7
  %3516 = vset.pattern.permute.xlu0 %v3514
  %3517 = vperm.xlu0 %3516, %v3512
  %v3518 = vpop.permute.xlu0 %3517
  %v3519 = vlaneseq
  %v3520 = vshrl.u32 %v3519, 7
  %v3521 = vadd.s32 %v3520, 8
  %3522 = vset.pattern.permute.xlu0 %v3521
  %3523 = vperm.xlu0 %3522, %v3512
  %v3524 = vpop.permute.xlu0 %3523
  %v3525 = vperm.slane %v69, 6
  %v3526 = vlaneseq
  %v3527 = vshrl.u32 %v3526, 7
  %3529 = vset.pattern.permute.xlu0 %v3527
  %3530 = vperm.xlu0 %3529, %v3525
  %v3531 = vpop.permute.xlu0 %3530
  %v3532 = vlaneseq
  %v3533 = vshrl.u32 %v3532, 7
  %v3534 = vadd.s32 %v3533, 8
  %3535 = vset.pattern.permute.xlu0 %v3534
  %3536 = vperm.xlu0 %3535, %v3525
  %v3537 = vpop.permute.xlu0 %3536
  %v3538 = vperm.slane %v69, 7
  %v3539 = vlaneseq
  %v3540 = vshrl.u32 %v3539, 7
  %3542 = vset.pattern.permute.xlu0 %v3540
  %3543 = vperm.xlu0 %3542, %v3538
  %v3544 = vpop.permute.xlu0 %3543
  %v3545 = vlaneseq
  %v3546 = vshrl.u32 %v3545, 7
  %v3547 = vadd.s32 %v3546, 8
  %3548 = vset.pattern.permute.xlu0 %v3547
  %3549 = vperm.xlu0 %3548, %v3538
  %v3550 = vpop.permute.xlu0 %3549
  %v3551 = vperm.slane %v70, 0
  %v3552 = vlaneseq
  %v3553 = vshrl.u32 %v3552, 7
  %3555 = vset.pattern.permute.xlu0 %v3553
  %3556 = vperm.xlu0 %3555, %v3551
  %v3557 = vpop.permute.xlu0 %3556
  %v3558 = vlaneseq
  %v3559 = vshrl.u32 %v3558, 7
  %v3560 = vadd.s32 %v3559, 8
  %3561 = vset.pattern.permute.xlu0 %v3560
  %3562 = vperm.xlu0 %3561, %v3551
  %v3563 = vpop.permute.xlu0 %3562
  %v3564 = vperm.slane %v70, 1
  %v3565 = vlaneseq
  %v3566 = vshrl.u32 %v3565, 7
  %3568 = vset.pattern.permute.xlu0 %v3566
  %3569 = vperm.xlu0 %3568, %v3564
  %v3570 = vpop.permute.xlu0 %3569
  %v3571 = vlaneseq
  %v3572 = vshrl.u32 %v3571, 7
  %v3573 = vadd.s32 %v3572, 8
  %3574 = vset.pattern.permute.xlu0 %v3573
  %3575 = vperm.xlu0 %3574, %v3564
  %v3576 = vpop.permute.xlu0 %3575
  %v3577 = vperm.slane %v70, 2
  %v3578 = vlaneseq
  %v3579 = vshrl.u32 %v3578, 7
  %3581 = vset.pattern.permute.xlu0 %v3579
  %3582 = vperm.xlu0 %3581, %v3577
  %v3583 = vpop.permute.xlu0 %3582
  %v3584 = vlaneseq
  %v3585 = vshrl.u32 %v3584, 7
  %v3586 = vadd.s32 %v3585, 8
  %3587 = vset.pattern.permute.xlu0 %v3586
  %3588 = vperm.xlu0 %3587, %v3577
  %v3589 = vpop.permute.xlu0 %3588
  %v3590 = vperm.slane %v70, 3
  %v3591 = vlaneseq
  %v3592 = vshrl.u32 %v3591, 7
  %3594 = vset.pattern.permute.xlu0 %v3592
  %3595 = vperm.xlu0 %3594, %v3590
  %v3596 = vpop.permute.xlu0 %3595
  %v3597 = vlaneseq
  %v3598 = vshrl.u32 %v3597, 7
  %v3599 = vadd.s32 %v3598, 8
  %3600 = vset.pattern.permute.xlu0 %v3599
  %3601 = vperm.xlu0 %3600, %v3590
  %v3602 = vpop.permute.xlu0 %3601
  %v3603 = vperm.slane %v70, 4
  %v3604 = vlaneseq
  %v3605 = vshrl.u32 %v3604, 7
  %3607 = vset.pattern.permute.xlu0 %v3605
  %3608 = vperm.xlu0 %3607, %v3603
  %v3609 = vpop.permute.xlu0 %3608
  %v3610 = vlaneseq
  %v3611 = vshrl.u32 %v3610, 7
  %v3612 = vadd.s32 %v3611, 8
  %3613 = vset.pattern.permute.xlu0 %v3612
  %3614 = vperm.xlu0 %3613, %v3603
  %v3615 = vpop.permute.xlu0 %3614
  %v3616 = vperm.slane %v70, 5
  %v3617 = vlaneseq
  %v3618 = vshrl.u32 %v3617, 7
  %3620 = vset.pattern.permute.xlu0 %v3618
  %3621 = vperm.xlu0 %3620, %v3616
  %v3622 = vpop.permute.xlu0 %3621
  %v3623 = vlaneseq
  %v3624 = vshrl.u32 %v3623, 7
  %v3625 = vadd.s32 %v3624, 8
  %3626 = vset.pattern.permute.xlu0 %v3625
  %3627 = vperm.xlu0 %3626, %v3616
  %v3628 = vpop.permute.xlu0 %3627
  %v3629 = vperm.slane %v70, 6
  %v3630 = vlaneseq
  %v3631 = vshrl.u32 %v3630, 7
  %3633 = vset.pattern.permute.xlu0 %v3631
  %3634 = vperm.xlu0 %3633, %v3629
  %v3635 = vpop.permute.xlu0 %3634
  %v3636 = vlaneseq
  %v3637 = vshrl.u32 %v3636, 7
  %v3638 = vadd.s32 %v3637, 8
  %3639 = vset.pattern.permute.xlu0 %v3638
  %3640 = vperm.xlu0 %3639, %v3629
  %v3641 = vpop.permute.xlu0 %3640
  %v3642 = vperm.slane %v70, 7
  %v3643 = vlaneseq
  %v3644 = vshrl.u32 %v3643, 7
  %3646 = vset.pattern.permute.xlu0 %v3644
  %3647 = vperm.xlu0 %3646, %v3642
  %v3648 = vpop.permute.xlu0 %3647
  %v3649 = vlaneseq
  %v3650 = vshrl.u32 %v3649, 7
  %v3651 = vadd.s32 %v3650, 8
  %3652 = vset.pattern.permute.xlu0 %v3651
  %3653 = vperm.xlu0 %3652, %v3642
  %v3654 = vpop.permute.xlu0 %3653
  %v3655 = vperm.slane %v71, 0
  %v3656 = vlaneseq
  %v3657 = vshrl.u32 %v3656, 7
  %3659 = vset.pattern.permute.xlu0 %v3657
  %3660 = vperm.xlu0 %3659, %v3655
  %v3661 = vpop.permute.xlu0 %3660
  %v3662 = vlaneseq
  %v3663 = vshrl.u32 %v3662, 7
  %v3664 = vadd.s32 %v3663, 8
  %3665 = vset.pattern.permute.xlu0 %v3664
  %3666 = vperm.xlu0 %3665, %v3655
  %v3667 = vpop.permute.xlu0 %3666
  %v3668 = vperm.slane %v71, 1
  %v3669 = vlaneseq
  %v3670 = vshrl.u32 %v3669, 7
  %3672 = vset.pattern.permute.xlu0 %v3670
  %3673 = vperm.xlu0 %3672, %v3668
  %v3674 = vpop.permute.xlu0 %3673
  %v3675 = vlaneseq
  %v3676 = vshrl.u32 %v3675, 7
  %v3677 = vadd.s32 %v3676, 8
  %3678 = vset.pattern.permute.xlu0 %v3677
  %3679 = vperm.xlu0 %3678, %v3668
  %v3680 = vpop.permute.xlu0 %3679
  %v3681 = vperm.slane %v71, 2
  %v3682 = vlaneseq
  %v3683 = vshrl.u32 %v3682, 7
  %3685 = vset.pattern.permute.xlu0 %v3683
  %3686 = vperm.xlu0 %3685, %v3681
  %v3687 = vpop.permute.xlu0 %3686
  %v3688 = vlaneseq
  %v3689 = vshrl.u32 %v3688, 7
  %v3690 = vadd.s32 %v3689, 8
  %3691 = vset.pattern.permute.xlu0 %v3690
  %3692 = vperm.xlu0 %3691, %v3681
  %v3693 = vpop.permute.xlu0 %3692
  %v3694 = vperm.slane %v71, 3
  %v3695 = vlaneseq
  %v3696 = vshrl.u32 %v3695, 7
  %3698 = vset.pattern.permute.xlu0 %v3696
  %3699 = vperm.xlu0 %3698, %v3694
  %v3700 = vpop.permute.xlu0 %3699
  %v3701 = vlaneseq
  %v3702 = vshrl.u32 %v3701, 7
  %v3703 = vadd.s32 %v3702, 8
  %3704 = vset.pattern.permute.xlu0 %v3703
  %3705 = vperm.xlu0 %3704, %v3694
  %v3706 = vpop.permute.xlu0 %3705
  %v3707 = vperm.slane %v71, 4
  %v3708 = vlaneseq
  %v3709 = vshrl.u32 %v3708, 7
  %3711 = vset.pattern.permute.xlu0 %v3709
  %3712 = vperm.xlu0 %3711, %v3707
  %v3713 = vpop.permute.xlu0 %3712
  %v3714 = vlaneseq
  %v3715 = vshrl.u32 %v3714, 7
  %v3716 = vadd.s32 %v3715, 8
  %3717 = vset.pattern.permute.xlu0 %v3716
  %3718 = vperm.xlu0 %3717, %v3707
  %v3719 = vpop.permute.xlu0 %3718
  %v3720 = vperm.slane %v71, 5
  %v3721 = vlaneseq
  %v3722 = vshrl.u32 %v3721, 7
  %3724 = vset.pattern.permute.xlu0 %v3722
  %3725 = vperm.xlu0 %3724, %v3720
  %v3726 = vpop.permute.xlu0 %3725
  %v3727 = vlaneseq
  %v3728 = vshrl.u32 %v3727, 7
  %v3729 = vadd.s32 %v3728, 8
  %3730 = vset.pattern.permute.xlu0 %v3729
  %3731 = vperm.xlu0 %3730, %v3720
  %v3732 = vpop.permute.xlu0 %3731
  %v3733 = vperm.slane %v71, 6
  %v3734 = vlaneseq
  %v3735 = vshrl.u32 %v3734, 7
  %3737 = vset.pattern.permute.xlu0 %v3735
  %3738 = vperm.xlu0 %3737, %v3733
  %v3739 = vpop.permute.xlu0 %3738
  %v3740 = vlaneseq
  %v3741 = vshrl.u32 %v3740, 7
  %v3742 = vadd.s32 %v3741, 8
  %3743 = vset.pattern.permute.xlu0 %v3742
  %3744 = vperm.xlu0 %3743, %v3733
  %v3745 = vpop.permute.xlu0 %3744
  %v3746 = vperm.slane %v71, 7
  %v3747 = vlaneseq
  %v3748 = vshrl.u32 %v3747, 7
  %3750 = vset.pattern.permute.xlu0 %v3748
  %3751 = vperm.xlu0 %3750, %v3746
  %v3752 = vpop.permute.xlu0 %3751
  %v3753 = vlaneseq
  %v3754 = vshrl.u32 %v3753, 7
  %v3755 = vadd.s32 %v3754, 8
  %3756 = vset.pattern.permute.xlu0 %v3755
  %3757 = vperm.xlu0 %3756, %v3746
  %v3758 = vpop.permute.xlu0 %3757
  %v3759 = vperm.slane %v72, 0
  %v3760 = vlaneseq
  %v3761 = vshrl.u32 %v3760, 7
  %3763 = vset.pattern.permute.xlu0 %v3761
  %3764 = vperm.xlu0 %3763, %v3759
  %v3765 = vpop.permute.xlu0 %3764
  %v3766 = vlaneseq
  %v3767 = vshrl.u32 %v3766, 7
  %v3768 = vadd.s32 %v3767, 8
  %3769 = vset.pattern.permute.xlu0 %v3768
  %3770 = vperm.xlu0 %3769, %v3759
  %v3771 = vpop.permute.xlu0 %3770
  %v3772 = vperm.slane %v72, 1
  %v3773 = vlaneseq
  %v3774 = vshrl.u32 %v3773, 7
  %3776 = vset.pattern.permute.xlu0 %v3774
  %3777 = vperm.xlu0 %3776, %v3772
  %v3778 = vpop.permute.xlu0 %3777
  %v3779 = vlaneseq
  %v3780 = vshrl.u32 %v3779, 7
  %v3781 = vadd.s32 %v3780, 8
  %3782 = vset.pattern.permute.xlu0 %v3781
  %3783 = vperm.xlu0 %3782, %v3772
  %v3784 = vpop.permute.xlu0 %3783
  %v3785 = vperm.slane %v72, 2
  %v3786 = vlaneseq
  %v3787 = vshrl.u32 %v3786, 7
  %3789 = vset.pattern.permute.xlu0 %v3787
  %3790 = vperm.xlu0 %3789, %v3785
  %v3791 = vpop.permute.xlu0 %3790
  %v3792 = vlaneseq
  %v3793 = vshrl.u32 %v3792, 7
  %v3794 = vadd.s32 %v3793, 8
  %3795 = vset.pattern.permute.xlu0 %v3794
  %3796 = vperm.xlu0 %3795, %v3785
  %v3797 = vpop.permute.xlu0 %3796
  %v3798 = vperm.slane %v72, 3
  %v3799 = vlaneseq
  %v3800 = vshrl.u32 %v3799, 7
  %3802 = vset.pattern.permute.xlu0 %v3800
  %3803 = vperm.xlu0 %3802, %v3798
  %v3804 = vpop.permute.xlu0 %3803
  %v3805 = vlaneseq
  %v3806 = vshrl.u32 %v3805, 7
  %v3807 = vadd.s32 %v3806, 8
  %3808 = vset.pattern.permute.xlu0 %v3807
  %3809 = vperm.xlu0 %3808, %v3798
  %v3810 = vpop.permute.xlu0 %3809
  %v3811 = vperm.slane %v72, 4
  %v3812 = vlaneseq
  %v3813 = vshrl.u32 %v3812, 7
  %3815 = vset.pattern.permute.xlu0 %v3813
  %3816 = vperm.xlu0 %3815, %v3811
  %v3817 = vpop.permute.xlu0 %3816
  %v3818 = vlaneseq
  %v3819 = vshrl.u32 %v3818, 7
  %v3820 = vadd.s32 %v3819, 8
  %3821 = vset.pattern.permute.xlu0 %v3820
  %3822 = vperm.xlu0 %3821, %v3811
  %v3823 = vpop.permute.xlu0 %3822
  %v3824 = vperm.slane %v72, 5
  %v3825 = vlaneseq
  %v3826 = vshrl.u32 %v3825, 7
  %3828 = vset.pattern.permute.xlu0 %v3826
  %3829 = vperm.xlu0 %3828, %v3824
  %v3830 = vpop.permute.xlu0 %3829
  %v3831 = vlaneseq
  %v3832 = vshrl.u32 %v3831, 7
  %v3833 = vadd.s32 %v3832, 8
  %3834 = vset.pattern.permute.xlu0 %v3833
  %3835 = vperm.xlu0 %3834, %v3824
  %v3836 = vpop.permute.xlu0 %3835
  %v3837 = vperm.slane %v72, 6
  %v3838 = vlaneseq
  %v3839 = vshrl.u32 %v3838, 7
  %3841 = vset.pattern.permute.xlu0 %v3839
  %3842 = vperm.xlu0 %3841, %v3837
  %v3843 = vpop.permute.xlu0 %3842
  %v3844 = vlaneseq
  %v3845 = vshrl.u32 %v3844, 7
  %v3846 = vadd.s32 %v3845, 8
  %3847 = vset.pattern.permute.xlu0 %v3846
  %3848 = vperm.xlu0 %3847, %v3837
  %v3849 = vpop.permute.xlu0 %3848
  %v3850 = vperm.slane %v72, 7
  %v3851 = vlaneseq
  %v3852 = vshrl.u32 %v3851, 7
  %3854 = vset.pattern.permute.xlu0 %v3852
  %3855 = vperm.xlu0 %3854, %v3850
  %v3856 = vpop.permute.xlu0 %3855
  %v3857 = vlaneseq
  %v3858 = vshrl.u32 %v3857, 7
  %v3859 = vadd.s32 %v3858, 8
  %3860 = vset.pattern.permute.xlu0 %v3859
  %3861 = vperm.xlu0 %3860, %v3850
  %v3862 = vpop.permute.xlu0 %3861
  %v3863 = vperm.slane %v73, 0
  %v3864 = vlaneseq
  %v3865 = vshrl.u32 %v3864, 7
  %3867 = vset.pattern.permute.xlu0 %v3865
  %3868 = vperm.xlu0 %3867, %v3863
  %v3869 = vpop.permute.xlu0 %3868
  %v3870 = vlaneseq
  %v3871 = vshrl.u32 %v3870, 7
  %v3872 = vadd.s32 %v3871, 8
  %3873 = vset.pattern.permute.xlu0 %v3872
  %3874 = vperm.xlu0 %3873, %v3863
  %v3875 = vpop.permute.xlu0 %3874
  %v3876 = vperm.slane %v73, 1
  %v3877 = vlaneseq
  %v3878 = vshrl.u32 %v3877, 7
  %3880 = vset.pattern.permute.xlu0 %v3878
  %3881 = vperm.xlu0 %3880, %v3876
  %v3882 = vpop.permute.xlu0 %3881
  %v3883 = vlaneseq
  %v3884 = vshrl.u32 %v3883, 7
  %v3885 = vadd.s32 %v3884, 8
  %3886 = vset.pattern.permute.xlu0 %v3885
  %3887 = vperm.xlu0 %3886, %v3876
  %v3888 = vpop.permute.xlu0 %3887
  %v3889 = vperm.slane %v73, 2
  %v3890 = vlaneseq
  %v3891 = vshrl.u32 %v3890, 7
  %3893 = vset.pattern.permute.xlu0 %v3891
  %3894 = vperm.xlu0 %3893, %v3889
  %v3895 = vpop.permute.xlu0 %3894
  %v3896 = vlaneseq
  %v3897 = vshrl.u32 %v3896, 7
  %v3898 = vadd.s32 %v3897, 8
  %3899 = vset.pattern.permute.xlu0 %v3898
  %3900 = vperm.xlu0 %3899, %v3889
  %v3901 = vpop.permute.xlu0 %3900
  %v3902 = vperm.slane %v73, 3
  %v3903 = vlaneseq
  %v3904 = vshrl.u32 %v3903, 7
  %3906 = vset.pattern.permute.xlu0 %v3904
  %3907 = vperm.xlu0 %3906, %v3902
  %v3908 = vpop.permute.xlu0 %3907
  %v3909 = vlaneseq
  %v3910 = vshrl.u32 %v3909, 7
  %v3911 = vadd.s32 %v3910, 8
  %3912 = vset.pattern.permute.xlu0 %v3911
  %3913 = vperm.xlu0 %3912, %v3902
  %v3914 = vpop.permute.xlu0 %3913
  %v3915 = vperm.slane %v73, 4
  %v3916 = vlaneseq
  %v3917 = vshrl.u32 %v3916, 7
  %3919 = vset.pattern.permute.xlu0 %v3917
  %3920 = vperm.xlu0 %3919, %v3915
  %v3921 = vpop.permute.xlu0 %3920
  %v3922 = vlaneseq
  %v3923 = vshrl.u32 %v3922, 7
  %v3924 = vadd.s32 %v3923, 8
  %3925 = vset.pattern.permute.xlu0 %v3924
  %3926 = vperm.xlu0 %3925, %v3915
  %v3927 = vpop.permute.xlu0 %3926
  %v3928 = vperm.slane %v73, 5
  %v3929 = vlaneseq
  %v3930 = vshrl.u32 %v3929, 7
  %3932 = vset.pattern.permute.xlu0 %v3930
  %3933 = vperm.xlu0 %3932, %v3928
  %v3934 = vpop.permute.xlu0 %3933
  %v3935 = vlaneseq
  %v3936 = vshrl.u32 %v3935, 7
  %v3937 = vadd.s32 %v3936, 8
  %3938 = vset.pattern.permute.xlu0 %v3937
  %3939 = vperm.xlu0 %3938, %v3928
  %v3940 = vpop.permute.xlu0 %3939
  %v3941 = vperm.slane %v73, 6
  %v3942 = vlaneseq
  %v3943 = vshrl.u32 %v3942, 7
  %3945 = vset.pattern.permute.xlu0 %v3943
  %3946 = vperm.xlu0 %3945, %v3941
  %v3947 = vpop.permute.xlu0 %3946
  %v3948 = vlaneseq
  %v3949 = vshrl.u32 %v3948, 7
  %v3950 = vadd.s32 %v3949, 8
  %3951 = vset.pattern.permute.xlu0 %v3950
  %3952 = vperm.xlu0 %3951, %v3941
  %v3953 = vpop.permute.xlu0 %3952
  %v3954 = vperm.slane %v73, 7
  %v3955 = vlaneseq
  %v3956 = vshrl.u32 %v3955, 7
  %3958 = vset.pattern.permute.xlu0 %v3956
  %3959 = vperm.xlu0 %3958, %v3954
  %v3960 = vpop.permute.xlu0 %3959
  %v3961 = vlaneseq
  %v3962 = vshrl.u32 %v3961, 7
  %v3963 = vadd.s32 %v3962, 8
  %3964 = vset.pattern.permute.xlu0 %v3963
  %3965 = vperm.xlu0 %3964, %v3954
  %v3966 = vpop.permute.xlu0 %3965
  %v3967 = vperm.slane %v74, 0
  %v3968 = vlaneseq
  %v3969 = vshrl.u32 %v3968, 7
  %3971 = vset.pattern.permute.xlu0 %v3969
  %3972 = vperm.xlu0 %3971, %v3967
  %v3973 = vpop.permute.xlu0 %3972
  %v3974 = vlaneseq
  %v3975 = vshrl.u32 %v3974, 7
  %v3976 = vadd.s32 %v3975, 8
  %3977 = vset.pattern.permute.xlu0 %v3976
  %3978 = vperm.xlu0 %3977, %v3967
  %v3979 = vpop.permute.xlu0 %3978
  %v3980 = vperm.slane %v74, 1
  %v3981 = vlaneseq
  %v3982 = vshrl.u32 %v3981, 7
  %3984 = vset.pattern.permute.xlu0 %v3982
  %3985 = vperm.xlu0 %3984, %v3980
  %v3986 = vpop.permute.xlu0 %3985
  %v3987 = vlaneseq
  %v3988 = vshrl.u32 %v3987, 7
  %v3989 = vadd.s32 %v3988, 8
  %3990 = vset.pattern.permute.xlu0 %v3989
  %3991 = vperm.xlu0 %3990, %v3980
  %v3992 = vpop.permute.xlu0 %3991
  %v3993 = vperm.slane %v74, 2
  %v3994 = vlaneseq
  %v3995 = vshrl.u32 %v3994, 7
  %3997 = vset.pattern.permute.xlu0 %v3995
  %3998 = vperm.xlu0 %3997, %v3993
  %v3999 = vpop.permute.xlu0 %3998
  %v4000 = vlaneseq
  %v4001 = vshrl.u32 %v4000, 7
  %v4002 = vadd.s32 %v4001, 8
  %4003 = vset.pattern.permute.xlu0 %v4002
  %4004 = vperm.xlu0 %4003, %v3993
  %v4005 = vpop.permute.xlu0 %4004
  %v4006 = vperm.slane %v74, 3
  %v4007 = vlaneseq
  %v4008 = vshrl.u32 %v4007, 7
  %4010 = vset.pattern.permute.xlu0 %v4008
  %4011 = vperm.xlu0 %4010, %v4006
  %v4012 = vpop.permute.xlu0 %4011
  %v4013 = vlaneseq
  %v4014 = vshrl.u32 %v4013, 7
  %v4015 = vadd.s32 %v4014, 8
  %4016 = vset.pattern.permute.xlu0 %v4015
  %4017 = vperm.xlu0 %4016, %v4006
  %v4018 = vpop.permute.xlu0 %4017
  %v4019 = vperm.slane %v74, 4
  %v4020 = vlaneseq
  %v4021 = vshrl.u32 %v4020, 7
  %4023 = vset.pattern.permute.xlu0 %v4021
  %4024 = vperm.xlu0 %4023, %v4019
  %v4025 = vpop.permute.xlu0 %4024
  %v4026 = vlaneseq
  %v4027 = vshrl.u32 %v4026, 7
  %v4028 = vadd.s32 %v4027, 8
  %4029 = vset.pattern.permute.xlu0 %v4028
  %4030 = vperm.xlu0 %4029, %v4019
  %v4031 = vpop.permute.xlu0 %4030
  %v4032 = vperm.slane %v74, 5
  %v4033 = vlaneseq
  %v4034 = vshrl.u32 %v4033, 7
  %4036 = vset.pattern.permute.xlu0 %v4034
  %4037 = vperm.xlu0 %4036, %v4032
  %v4038 = vpop.permute.xlu0 %4037
  %v4039 = vlaneseq
  %v4040 = vshrl.u32 %v4039, 7
  %v4041 = vadd.s32 %v4040, 8
  %4042 = vset.pattern.permute.xlu0 %v4041
  %4043 = vperm.xlu0 %4042, %v4032
  %v4044 = vpop.permute.xlu0 %4043
  %v4045 = vperm.slane %v74, 6
  %v4046 = vlaneseq
  %v4047 = vshrl.u32 %v4046, 7
  %4049 = vset.pattern.permute.xlu0 %v4047
  %4050 = vperm.xlu0 %4049, %v4045
  %v4051 = vpop.permute.xlu0 %4050
  %v4052 = vlaneseq
  %v4053 = vshrl.u32 %v4052, 7
  %v4054 = vadd.s32 %v4053, 8
  %4055 = vset.pattern.permute.xlu0 %v4054
  %4056 = vperm.xlu0 %4055, %v4045
  %v4057 = vpop.permute.xlu0 %4056
  %v4058 = vperm.slane %v74, 7
  %v4059 = vlaneseq
  %v4060 = vshrl.u32 %v4059, 7
  %4062 = vset.pattern.permute.xlu0 %v4060
  %4063 = vperm.xlu0 %4062, %v4058
  %v4064 = vpop.permute.xlu0 %4063
  %v4065 = vlaneseq
  %v4066 = vshrl.u32 %v4065, 7
  %v4067 = vadd.s32 %v4066, 8
  %4068 = vset.pattern.permute.xlu0 %v4067
  %4069 = vperm.xlu0 %4068, %v4058
  %v4070 = vpop.permute.xlu0 %4069
  %v4071 = vperm.slane %v75, 0
  %v4072 = vlaneseq
  %v4073 = vshrl.u32 %v4072, 7
  %4075 = vset.pattern.permute.xlu0 %v4073
  %4076 = vperm.xlu0 %4075, %v4071
  %v4077 = vpop.permute.xlu0 %4076
  %v4078 = vlaneseq
  %v4079 = vshrl.u32 %v4078, 7
  %v4080 = vadd.s32 %v4079, 8
  %4081 = vset.pattern.permute.xlu0 %v4080
  %4082 = vperm.xlu0 %4081, %v4071
  %v4083 = vpop.permute.xlu0 %4082
  %v4084 = vperm.slane %v75, 1
  %v4085 = vlaneseq
  %v4086 = vshrl.u32 %v4085, 7
  %4088 = vset.pattern.permute.xlu0 %v4086
  %4089 = vperm.xlu0 %4088, %v4084
  %v4090 = vpop.permute.xlu0 %4089
  %v4091 = vlaneseq
  %v4092 = vshrl.u32 %v4091, 7
  %v4093 = vadd.s32 %v4092, 8
  %4094 = vset.pattern.permute.xlu0 %v4093
  %4095 = vperm.xlu0 %4094, %v4084
  %v4096 = vpop.permute.xlu0 %4095
  %v4097 = vperm.slane %v75, 2
  %v4098 = vlaneseq
  %v4099 = vshrl.u32 %v4098, 7
  %4101 = vset.pattern.permute.xlu0 %v4099
  %4102 = vperm.xlu0 %4101, %v4097
  %v4103 = vpop.permute.xlu0 %4102
  %v4104 = vlaneseq
  %v4105 = vshrl.u32 %v4104, 7
  %v4106 = vadd.s32 %v4105, 8
  %4107 = vset.pattern.permute.xlu0 %v4106
  %4108 = vperm.xlu0 %4107, %v4097
  %v4109 = vpop.permute.xlu0 %4108
  %v4110 = vperm.slane %v75, 3
  %v4111 = vlaneseq
  %v4112 = vshrl.u32 %v4111, 7
  %4114 = vset.pattern.permute.xlu0 %v4112
  %4115 = vperm.xlu0 %4114, %v4110
  %v4116 = vpop.permute.xlu0 %4115
  %v4117 = vlaneseq
  %v4118 = vshrl.u32 %v4117, 7
  %v4119 = vadd.s32 %v4118, 8
  %4120 = vset.pattern.permute.xlu0 %v4119
  %4121 = vperm.xlu0 %4120, %v4110
  %v4122 = vpop.permute.xlu0 %4121
  %v4123 = vperm.slane %v75, 4
  %v4124 = vlaneseq
  %v4125 = vshrl.u32 %v4124, 7
  %4127 = vset.pattern.permute.xlu0 %v4125
  %4128 = vperm.xlu0 %4127, %v4123
  %v4129 = vpop.permute.xlu0 %4128
  %v4130 = vlaneseq
  %v4131 = vshrl.u32 %v4130, 7
  %v4132 = vadd.s32 %v4131, 8
  %4133 = vset.pattern.permute.xlu0 %v4132
  %4134 = vperm.xlu0 %4133, %v4123
  %v4135 = vpop.permute.xlu0 %4134
  %v4136 = vperm.slane %v75, 5
  %v4137 = vlaneseq
  %v4138 = vshrl.u32 %v4137, 7
  %4140 = vset.pattern.permute.xlu0 %v4138
  %4141 = vperm.xlu0 %4140, %v4136
  %v4142 = vpop.permute.xlu0 %4141
  %v4143 = vlaneseq
  %v4144 = vshrl.u32 %v4143, 7
  %v4145 = vadd.s32 %v4144, 8
  %4146 = vset.pattern.permute.xlu0 %v4145
  %4147 = vperm.xlu0 %4146, %v4136
  %v4148 = vpop.permute.xlu0 %4147
  %v4149 = vperm.slane %v75, 6
  %v4150 = vlaneseq
  %v4151 = vshrl.u32 %v4150, 7
  %4153 = vset.pattern.permute.xlu0 %v4151
  %4154 = vperm.xlu0 %4153, %v4149
  %v4155 = vpop.permute.xlu0 %4154
  %v4156 = vlaneseq
  %v4157 = vshrl.u32 %v4156, 7
  %v4158 = vadd.s32 %v4157, 8
  %4159 = vset.pattern.permute.xlu0 %v4158
  %4160 = vperm.xlu0 %4159, %v4149
  %v4161 = vpop.permute.xlu0 %4160
  %v4162 = vperm.slane %v75, 7
  %v4163 = vlaneseq
  %v4164 = vshrl.u32 %v4163, 7
  %4166 = vset.pattern.permute.xlu0 %v4164
  %4167 = vperm.xlu0 %4166, %v4162
  %v4168 = vpop.permute.xlu0 %4167
  %v4169 = vlaneseq
  %v4170 = vshrl.u32 %v4169, 7
  %v4171 = vadd.s32 %v4170, 8
  %4172 = vset.pattern.permute.xlu0 %v4171
  %4173 = vperm.xlu0 %4172, %v4162
  %v4174 = vpop.permute.xlu0 %4173
  %v4175 = vperm.slane %v76, 0
  %v4176 = vlaneseq
  %v4177 = vshrl.u32 %v4176, 7
  %4179 = vset.pattern.permute.xlu0 %v4177
  %4180 = vperm.xlu0 %4179, %v4175
  %v4181 = vpop.permute.xlu0 %4180
  %v4182 = vlaneseq
  %v4183 = vshrl.u32 %v4182, 7
  %v4184 = vadd.s32 %v4183, 8
  %4185 = vset.pattern.permute.xlu0 %v4184
  %4186 = vperm.xlu0 %4185, %v4175
  %v4187 = vpop.permute.xlu0 %4186
  %v4188 = vperm.slane %v76, 1
  %v4189 = vlaneseq
  %v4190 = vshrl.u32 %v4189, 7
  %4192 = vset.pattern.permute.xlu0 %v4190
  %4193 = vperm.xlu0 %4192, %v4188
  %v4194 = vpop.permute.xlu0 %4193
  %v4195 = vlaneseq
  %v4196 = vshrl.u32 %v4195, 7
  %v4197 = vadd.s32 %v4196, 8
  %4198 = vset.pattern.permute.xlu0 %v4197
  %4199 = vperm.xlu0 %4198, %v4188
  %v4200 = vpop.permute.xlu0 %4199
  %v4201 = vperm.slane %v76, 2
  %v4202 = vlaneseq
  %v4203 = vshrl.u32 %v4202, 7
  %4205 = vset.pattern.permute.xlu0 %v4203
  %4206 = vperm.xlu0 %4205, %v4201
  %v4207 = vpop.permute.xlu0 %4206
  %v4208 = vlaneseq
  %v4209 = vshrl.u32 %v4208, 7
  %v4210 = vadd.s32 %v4209, 8
  %4211 = vset.pattern.permute.xlu0 %v4210
  %4212 = vperm.xlu0 %4211, %v4201
  %v4213 = vpop.permute.xlu0 %4212
  %v4214 = vperm.slane %v76, 3
  %v4215 = vlaneseq
  %v4216 = vshrl.u32 %v4215, 7
  %4218 = vset.pattern.permute.xlu0 %v4216
  %4219 = vperm.xlu0 %4218, %v4214
  %v4220 = vpop.permute.xlu0 %4219
  %v4221 = vlaneseq
  %v4222 = vshrl.u32 %v4221, 7
  %v4223 = vadd.s32 %v4222, 8
  %4224 = vset.pattern.permute.xlu0 %v4223
  %4225 = vperm.xlu0 %4224, %v4214
  %v4226 = vpop.permute.xlu0 %4225
  %v4227 = vperm.slane %v76, 4
  %v4228 = vlaneseq
  %v4229 = vshrl.u32 %v4228, 7
  %4231 = vset.pattern.permute.xlu0 %v4229
  %4232 = vperm.xlu0 %4231, %v4227
  %v4233 = vpop.permute.xlu0 %4232
  %v4234 = vlaneseq
  %v4235 = vshrl.u32 %v4234, 7
  %v4236 = vadd.s32 %v4235, 8
  %4237 = vset.pattern.permute.xlu0 %v4236
  %4238 = vperm.xlu0 %4237, %v4227
  %v4239 = vpop.permute.xlu0 %4238
  %v4240 = vperm.slane %v76, 5
  %v4241 = vlaneseq
  %v4242 = vshrl.u32 %v4241, 7
  %4244 = vset.pattern.permute.xlu0 %v4242
  %4245 = vperm.xlu0 %4244, %v4240
  %v4246 = vpop.permute.xlu0 %4245
  %v4247 = vlaneseq
  %v4248 = vshrl.u32 %v4247, 7
  %v4249 = vadd.s32 %v4248, 8
  %4250 = vset.pattern.permute.xlu0 %v4249
  %4251 = vperm.xlu0 %4250, %v4240
  %v4252 = vpop.permute.xlu0 %4251
  %v4253 = vperm.slane %v76, 6
  %v4254 = vlaneseq
  %v4255 = vshrl.u32 %v4254, 7
  %4257 = vset.pattern.permute.xlu0 %v4255
  %4258 = vperm.xlu0 %4257, %v4253
  %v4259 = vpop.permute.xlu0 %4258
  %v4260 = vlaneseq
  %v4261 = vshrl.u32 %v4260, 7
  %v4262 = vadd.s32 %v4261, 8
  %4263 = vset.pattern.permute.xlu0 %v4262
  %4264 = vperm.xlu0 %4263, %v4253
  %v4265 = vpop.permute.xlu0 %4264
  %v4266 = vperm.slane %v76, 7
  %v4267 = vlaneseq
  %v4268 = vshrl.u32 %v4267, 7
  %4270 = vset.pattern.permute.xlu0 %v4268
  %4271 = vperm.xlu0 %4270, %v4266
  %v4272 = vpop.permute.xlu0 %4271
  %v4273 = vlaneseq
  %v4274 = vshrl.u32 %v4273, 7
  %v4275 = vadd.s32 %v4274, 8
  %4276 = vset.pattern.permute.xlu0 %v4275
  %4277 = vperm.xlu0 %4276, %v4266
  %v4278 = vpop.permute.xlu0 %4277
  %v4279 = vperm.slane %v77, 0
  %v4280 = vlaneseq
  %v4281 = vshrl.u32 %v4280, 7
  %4283 = vset.pattern.permute.xlu0 %v4281
  %4284 = vperm.xlu0 %4283, %v4279
  %v4285 = vpop.permute.xlu0 %4284
  %v4286 = vlaneseq
  %v4287 = vshrl.u32 %v4286, 7
  %v4288 = vadd.s32 %v4287, 8
  %4289 = vset.pattern.permute.xlu0 %v4288
  %4290 = vperm.xlu0 %4289, %v4279
  %v4291 = vpop.permute.xlu0 %4290
  %v4292 = vperm.slane %v77, 1
  %v4293 = vlaneseq
  %v4294 = vshrl.u32 %v4293, 7
  %4296 = vset.pattern.permute.xlu0 %v4294
  %4297 = vperm.xlu0 %4296, %v4292
  %v4298 = vpop.permute.xlu0 %4297
  %v4299 = vlaneseq
  %v4300 = vshrl.u32 %v4299, 7
  %v4301 = vadd.s32 %v4300, 8
  %4302 = vset.pattern.permute.xlu0 %v4301
  %4303 = vperm.xlu0 %4302, %v4292
  %v4304 = vpop.permute.xlu0 %4303
  %v4305 = vperm.slane %v77, 2
  %v4306 = vlaneseq
  %v4307 = vshrl.u32 %v4306, 7
  %4309 = vset.pattern.permute.xlu0 %v4307
  %4310 = vperm.xlu0 %4309, %v4305
  %v4311 = vpop.permute.xlu0 %4310
  %v4312 = vlaneseq
  %v4313 = vshrl.u32 %v4312, 7
  %v4314 = vadd.s32 %v4313, 8
  %4315 = vset.pattern.permute.xlu0 %v4314
  %4316 = vperm.xlu0 %4315, %v4305
  %v4317 = vpop.permute.xlu0 %4316
  %v4318 = vperm.slane %v77, 3
  %v4319 = vlaneseq
  %v4320 = vshrl.u32 %v4319, 7
  %4322 = vset.pattern.permute.xlu0 %v4320
  %4323 = vperm.xlu0 %4322, %v4318
  %v4324 = vpop.permute.xlu0 %4323
  %v4325 = vlaneseq
  %v4326 = vshrl.u32 %v4325, 7
  %v4327 = vadd.s32 %v4326, 8
  %4328 = vset.pattern.permute.xlu0 %v4327
  %4329 = vperm.xlu0 %4328, %v4318
  %v4330 = vpop.permute.xlu0 %4329
  %v4331 = vperm.slane %v77, 4
  %v4332 = vlaneseq
  %v4333 = vshrl.u32 %v4332, 7
  %4335 = vset.pattern.permute.xlu0 %v4333
  %4336 = vperm.xlu0 %4335, %v4331
  %v4337 = vpop.permute.xlu0 %4336
  %v4338 = vlaneseq
  %v4339 = vshrl.u32 %v4338, 7
  %v4340 = vadd.s32 %v4339, 8
  %4341 = vset.pattern.permute.xlu0 %v4340
  %4342 = vperm.xlu0 %4341, %v4331
  %v4343 = vpop.permute.xlu0 %4342
  %v4344 = vperm.slane %v77, 5
  %v4345 = vlaneseq
  %v4346 = vshrl.u32 %v4345, 7
  %4348 = vset.pattern.permute.xlu0 %v4346
  %4349 = vperm.xlu0 %4348, %v4344
  %v4350 = vpop.permute.xlu0 %4349
  %v4351 = vlaneseq
  %v4352 = vshrl.u32 %v4351, 7
  %v4353 = vadd.s32 %v4352, 8
  %4354 = vset.pattern.permute.xlu0 %v4353
  %4355 = vperm.xlu0 %4354, %v4344
  %v4356 = vpop.permute.xlu0 %4355
  %v4357 = vperm.slane %v77, 6
  %v4358 = vlaneseq
  %v4359 = vshrl.u32 %v4358, 7
  %4361 = vset.pattern.permute.xlu0 %v4359
  %4362 = vperm.xlu0 %4361, %v4357
  %v4363 = vpop.permute.xlu0 %4362
  %v4364 = vlaneseq
  %v4365 = vshrl.u32 %v4364, 7
  %v4366 = vadd.s32 %v4365, 8
  %4367 = vset.pattern.permute.xlu0 %v4366
  %4368 = vperm.xlu0 %4367, %v4357
  %v4369 = vpop.permute.xlu0 %4368
  %v4370 = vperm.slane %v77, 7
  %v4371 = vlaneseq
  %v4372 = vshrl.u32 %v4371, 7
  %4374 = vset.pattern.permute.xlu0 %v4372
  %4375 = vperm.xlu0 %4374, %v4370
  %v4376 = vpop.permute.xlu0 %4375
  %v4377 = vlaneseq
  %v4378 = vshrl.u32 %v4377, 7
  %v4379 = vadd.s32 %v4378, 8
  %4380 = vset.pattern.permute.xlu0 %v4379
  %4381 = vperm.xlu0 %4380, %v4370
  %v4382 = vpop.permute.xlu0 %4381
  %v4383 = vperm.slane %v78, 0
  %v4384 = vlaneseq
  %v4385 = vshrl.u32 %v4384, 7
  %4387 = vset.pattern.permute.xlu0 %v4385
  %4388 = vperm.xlu0 %4387, %v4383
  %v4389 = vpop.permute.xlu0 %4388
  %v4390 = vlaneseq
  %v4391 = vshrl.u32 %v4390, 7
  %v4392 = vadd.s32 %v4391, 8
  %4393 = vset.pattern.permute.xlu0 %v4392
  %4394 = vperm.xlu0 %4393, %v4383
  %v4395 = vpop.permute.xlu0 %4394
  %v4396 = vperm.slane %v78, 1
  %v4397 = vlaneseq
  %v4398 = vshrl.u32 %v4397, 7
  %4400 = vset.pattern.permute.xlu0 %v4398
  %4401 = vperm.xlu0 %4400, %v4396
  %v4402 = vpop.permute.xlu0 %4401
  %v4403 = vlaneseq
  %v4404 = vshrl.u32 %v4403, 7
  %v4405 = vadd.s32 %v4404, 8
  %4406 = vset.pattern.permute.xlu0 %v4405
  %4407 = vperm.xlu0 %4406, %v4396
  %v4408 = vpop.permute.xlu0 %4407
  %v4409 = vperm.slane %v78, 2
  %v4410 = vlaneseq
  %v4411 = vshrl.u32 %v4410, 7
  %4413 = vset.pattern.permute.xlu0 %v4411
  %4414 = vperm.xlu0 %4413, %v4409
  %v4415 = vpop.permute.xlu0 %4414
  %v4416 = vlaneseq
  %v4417 = vshrl.u32 %v4416, 7
  %v4418 = vadd.s32 %v4417, 8
  %4419 = vset.pattern.permute.xlu0 %v4418
  %4420 = vperm.xlu0 %4419, %v4409
  %v4421 = vpop.permute.xlu0 %4420
  %v4422 = vperm.slane %v78, 3
  %v4423 = vlaneseq
  %v4424 = vshrl.u32 %v4423, 7
  %4426 = vset.pattern.permute.xlu0 %v4424
  %4427 = vperm.xlu0 %4426, %v4422
  %v4428 = vpop.permute.xlu0 %4427
  %v4429 = vlaneseq
  %v4430 = vshrl.u32 %v4429, 7
  %v4431 = vadd.s32 %v4430, 8
  %4432 = vset.pattern.permute.xlu0 %v4431
  %4433 = vperm.xlu0 %4432, %v4422
  %v4434 = vpop.permute.xlu0 %4433
  %v4435 = vperm.slane %v78, 4
  %v4436 = vlaneseq
  %v4437 = vshrl.u32 %v4436, 7
  %4439 = vset.pattern.permute.xlu0 %v4437
  %4440 = vperm.xlu0 %4439, %v4435
  %v4441 = vpop.permute.xlu0 %4440
  %v4442 = vlaneseq
  %v4443 = vshrl.u32 %v4442, 7
  %v4444 = vadd.s32 %v4443, 8
  %4445 = vset.pattern.permute.xlu0 %v4444
  %4446 = vperm.xlu0 %4445, %v4435
  %v4447 = vpop.permute.xlu0 %4446
  %v4448 = vperm.slane %v78, 5
  %v4449 = vlaneseq
  %v4450 = vshrl.u32 %v4449, 7
  %4452 = vset.pattern.permute.xlu0 %v4450
  %4453 = vperm.xlu0 %4452, %v4448
  %v4454 = vpop.permute.xlu0 %4453
  %v4455 = vlaneseq
  %v4456 = vshrl.u32 %v4455, 7
  %v4457 = vadd.s32 %v4456, 8
  %4458 = vset.pattern.permute.xlu0 %v4457
  %4459 = vperm.xlu0 %4458, %v4448
  %v4460 = vpop.permute.xlu0 %4459
  %v4461 = vperm.slane %v78, 6
  %v4462 = vlaneseq
  %v4463 = vshrl.u32 %v4462, 7
  %4465 = vset.pattern.permute.xlu0 %v4463
  %4466 = vperm.xlu0 %4465, %v4461
  %v4467 = vpop.permute.xlu0 %4466
  %v4468 = vlaneseq
  %v4469 = vshrl.u32 %v4468, 7
  %v4470 = vadd.s32 %v4469, 8
  %4471 = vset.pattern.permute.xlu0 %v4470
  %4472 = vperm.xlu0 %4471, %v4461
  %v4473 = vpop.permute.xlu0 %4472
  %v4474 = vperm.slane %v78, 7
  %v4475 = vlaneseq
  %v4476 = vshrl.u32 %v4475, 7
  %4478 = vset.pattern.permute.xlu0 %v4476
  %4479 = vperm.xlu0 %4478, %v4474
  %v4480 = vpop.permute.xlu0 %4479
  %v4481 = vlaneseq
  %v4482 = vshrl.u32 %v4481, 7
  %v4483 = vadd.s32 %v4482, 8
  %4484 = vset.pattern.permute.xlu0 %v4483
  %4485 = vperm.xlu0 %4484, %v4474
  %v4486 = vpop.permute.xlu0 %4485
  %v4487 = vrot.slane %v2855, 4
  %v4488 = vsel %vm464, %v4487, %v2829
  %v4489 = vrot.slane %v2829, 4
  %v4490 = vsel %vm464, %v2855, %v4489
  %v4492 = vunpack.c.l.s4 1983009808
  %v4493 = vunpack.c.0.s8 %v4492
  %v4494 = vperm.slane %v4488, %v4493
  %v4496 = vunpack.c.l.s4 1983009808
  %v4497 = vunpack.c.0.s8 %v4496
  %v4498 = vperm.slane %v4490, %v4497
  %v4499 = vrot.slane %v2868, 4
  %v4500 = vsel %vm464, %v4499, %v2842
  %v4501 = vrot.slane %v2842, 4
  %v4502 = vsel %vm464, %v2868, %v4501
  %v4504 = vunpack.c.l.s4 1983009808
  %v4505 = vunpack.c.0.s8 %v4504
  %v4506 = vperm.slane %v4500, %v4505
  %v4508 = vunpack.c.l.s4 1983009808
  %v4509 = vunpack.c.0.s8 %v4508
  %v4510 = vperm.slane %v4502, %v4509
  %v4511 = vrot.slane %v2907, 4
  %v4512 = vsel %vm464, %v4511, %v2881
  %v4513 = vrot.slane %v2881, 4
  %v4514 = vsel %vm464, %v2907, %v4513
  %v4516 = vunpack.c.l.s4 1983009808
  %v4517 = vunpack.c.0.s8 %v4516
  %v4518 = vperm.slane %v4512, %v4517
  %v4520 = vunpack.c.l.s4 1983009808
  %v4521 = vunpack.c.0.s8 %v4520
  %v4522 = vperm.slane %v4514, %v4521
  %v4523 = vrot.slane %v2920, 4
  %v4524 = vsel %vm464, %v4523, %v2894
  %v4525 = vrot.slane %v2894, 4
  %v4526 = vsel %vm464, %v2920, %v4525
  %v4528 = vunpack.c.l.s4 1983009808
  %v4529 = vunpack.c.0.s8 %v4528
  %v4530 = vperm.slane %v4524, %v4529
  %v4532 = vunpack.c.l.s4 1983009808
  %v4533 = vunpack.c.0.s8 %v4532
  %v4534 = vperm.slane %v4526, %v4533
  %v4535 = vrot.slane %v4506, 4
  %v4536 = vsel %vm464, %v4535, %v4494
  %v4537 = vrot.slane %v4494, 4
  %v4538 = vsel %vm464, %v4506, %v4537
  %v4540 = vunpack.c.l.s4 1934713408
  %v4541 = vunpack.c.0.s8 %v4540
  %v4542 = vperm.slane %v4536, %v4541
  %v4544 = vunpack.c.l.s4 1934713408
  %v4545 = vunpack.c.0.s8 %v4544
  %v4546 = vperm.slane %v4538, %v4545
  %v4547 = vrot.slane %v4510, 4
  %v4548 = vsel %vm464, %v4547, %v4498
  %v4549 = vrot.slane %v4498, 4
  %v4550 = vsel %vm464, %v4510, %v4549
  %v4552 = vunpack.c.l.s4 1934713408
  %v4553 = vunpack.c.0.s8 %v4552
  %v4554 = vperm.slane %v4548, %v4553
  %v4556 = vunpack.c.l.s4 1934713408
  %v4557 = vunpack.c.0.s8 %v4556
  %v4558 = vperm.slane %v4550, %v4557
  %v4559 = vrot.slane %v4530, 4
  %v4560 = vsel %vm464, %v4559, %v4518
  %v4561 = vrot.slane %v4518, 4
  %v4562 = vsel %vm464, %v4530, %v4561
  %v4564 = vunpack.c.l.s4 1934713408
  %v4565 = vunpack.c.0.s8 %v4564
  %v4566 = vperm.slane %v4560, %v4565
  %v4568 = vunpack.c.l.s4 1934713408
  %v4569 = vunpack.c.0.s8 %v4568
  %v4570 = vperm.slane %v4562, %v4569
  %v4571 = vrot.slane %v4534, 4
  %v4572 = vsel %vm464, %v4571, %v4522
  %v4573 = vrot.slane %v4522, 4
  %v4574 = vsel %vm464, %v4534, %v4573
  %v4576 = vunpack.c.l.s4 1934713408
  %v4577 = vunpack.c.0.s8 %v4576
  %v4578 = vperm.slane %v4572, %v4577
  %v4580 = vunpack.c.l.s4 1934713408
  %v4581 = vunpack.c.0.s8 %v4580
  %v4582 = vperm.slane %v4574, %v4581
  %v4583 = vrot.slane %v4566, 4
  %v4584 = vsel %vm464, %v4583, %v4542
  %v4585 = vrot.slane %v4542, 4
  %v4586 = vsel %vm464, %v4566, %v4585
  %v4587 = vrot.slane %v4570, 4
  %v4588 = vsel %vm464, %v4587, %v4546
  %v4589 = vrot.slane %v4546, 4
  %v4590 = vsel %vm464, %v4570, %v4589
  %v4591 = vrot.slane %v4578, 4
  %v4592 = vsel %vm464, %v4591, %v4554
  %v4593 = vrot.slane %v4554, 4
  %v4594 = vsel %vm464, %v4578, %v4593
  %v4595 = vrot.slane %v4582, 4
  %v4596 = vsel %vm464, %v4595, %v4558
  %v4597 = vrot.slane %v4558, 4
  %v4598 = vsel %vm464, %v4582, %v4597
  %v4599 = vrot.slane %v2959, 4
  %v4600 = vsel %vm464, %v4599, %v2933
  %v4601 = vrot.slane %v2933, 4
  %v4602 = vsel %vm464, %v2959, %v4601
  %v4604 = vunpack.c.l.s4 1983009808
  %v4605 = vunpack.c.0.s8 %v4604
  %v4606 = vperm.slane %v4600, %v4605
  %v4608 = vunpack.c.l.s4 1983009808
  %v4609 = vunpack.c.0.s8 %v4608
  %v4610 = vperm.slane %v4602, %v4609
  %v4611 = vrot.slane %v2972, 4
  %v4612 = vsel %vm464, %v4611, %v2946
  %v4613 = vrot.slane %v2946, 4
  %v4614 = vsel %vm464, %v2972, %v4613
  %v4616 = vunpack.c.l.s4 1983009808
  %v4617 = vunpack.c.0.s8 %v4616
  %v4618 = vperm.slane %v4612, %v4617
  %v4620 = vunpack.c.l.s4 1983009808
  %v4621 = vunpack.c.0.s8 %v4620
  %v4622 = vperm.slane %v4614, %v4621
  %v4623 = vrot.slane %v3011, 4
  %v4624 = vsel %vm464, %v4623, %v2985
  %v4625 = vrot.slane %v2985, 4
  %v4626 = vsel %vm464, %v3011, %v4625
  %v4628 = vunpack.c.l.s4 1983009808
  %v4629 = vunpack.c.0.s8 %v4628
  %v4630 = vperm.slane %v4624, %v4629
  %v4632 = vunpack.c.l.s4 1983009808
  %v4633 = vunpack.c.0.s8 %v4632
  %v4634 = vperm.slane %v4626, %v4633
  %v4635 = vrot.slane %v3024, 4
  %v4636 = vsel %vm464, %v4635, %v2998
  %v4637 = vrot.slane %v2998, 4
  %v4638 = vsel %vm464, %v3024, %v4637
  %v4640 = vunpack.c.l.s4 1983009808
  %v4641 = vunpack.c.0.s8 %v4640
  %v4642 = vperm.slane %v4636, %v4641
  %v4644 = vunpack.c.l.s4 1983009808
  %v4645 = vunpack.c.0.s8 %v4644
  %v4646 = vperm.slane %v4638, %v4645
  %v4647 = vrot.slane %v4618, 4
  %v4648 = vsel %vm464, %v4647, %v4606
  %v4649 = vrot.slane %v4606, 4
  %v4650 = vsel %vm464, %v4618, %v4649
  %v4652 = vunpack.c.l.s4 1934713408
  %v4653 = vunpack.c.0.s8 %v4652
  %v4654 = vperm.slane %v4648, %v4653
  %v4656 = vunpack.c.l.s4 1934713408
  %v4657 = vunpack.c.0.s8 %v4656
  %v4658 = vperm.slane %v4650, %v4657
  %v4659 = vrot.slane %v4622, 4
  %v4660 = vsel %vm464, %v4659, %v4610
  %v4661 = vrot.slane %v4610, 4
  %v4662 = vsel %vm464, %v4622, %v4661
  %v4664 = vunpack.c.l.s4 1934713408
  %v4665 = vunpack.c.0.s8 %v4664
  %v4666 = vperm.slane %v4660, %v4665
  %v4668 = vunpack.c.l.s4 1934713408
  %v4669 = vunpack.c.0.s8 %v4668
  %v4670 = vperm.slane %v4662, %v4669
  %v4671 = vrot.slane %v4642, 4
  %v4672 = vsel %vm464, %v4671, %v4630
  %v4673 = vrot.slane %v4630, 4
  %v4674 = vsel %vm464, %v4642, %v4673
  %v4676 = vunpack.c.l.s4 1934713408
  %v4677 = vunpack.c.0.s8 %v4676
  %v4678 = vperm.slane %v4672, %v4677
  %v4680 = vunpack.c.l.s4 1934713408
  %v4681 = vunpack.c.0.s8 %v4680
  %v4682 = vperm.slane %v4674, %v4681
  %v4683 = vrot.slane %v4646, 4
  %v4684 = vsel %vm464, %v4683, %v4634
  %v4685 = vrot.slane %v4634, 4
  %v4686 = vsel %vm464, %v4646, %v4685
  %v4688 = vunpack.c.l.s4 1934713408
  %v4689 = vunpack.c.0.s8 %v4688
  %v4690 = vperm.slane %v4684, %v4689
  %v4692 = vunpack.c.l.s4 1934713408
  %v4693 = vunpack.c.0.s8 %v4692
  %v4694 = vperm.slane %v4686, %v4693
  %v4695 = vrot.slane %v4678, 4
  %v4696 = vsel %vm464, %v4695, %v4654
  %v4697 = vrot.slane %v4654, 4
  %v4698 = vsel %vm464, %v4678, %v4697
  %v4699 = vrot.slane %v4682, 4
  %v4700 = vsel %vm464, %v4699, %v4658
  %v4701 = vrot.slane %v4658, 4
  %v4702 = vsel %vm464, %v4682, %v4701
  %v4703 = vrot.slane %v4690, 4
  %v4704 = vsel %vm464, %v4703, %v4666
  %v4705 = vrot.slane %v4666, 4
  %v4706 = vsel %vm464, %v4690, %v4705
  %v4707 = vrot.slane %v4694, 4
  %v4708 = vsel %vm464, %v4707, %v4670
  %v4709 = vrot.slane %v4670, 4
  %v4710 = vsel %vm464, %v4694, %v4709
  %v4711 = vrot.slane %v3063, 4
  %v4712 = vsel %vm464, %v4711, %v3037
  %v4713 = vrot.slane %v3037, 4
  %v4714 = vsel %vm464, %v3063, %v4713
  %v4716 = vunpack.c.l.s4 1983009808
  %v4717 = vunpack.c.0.s8 %v4716
  %v4718 = vperm.slane %v4712, %v4717
  %v4720 = vunpack.c.l.s4 1983009808
  %v4721 = vunpack.c.0.s8 %v4720
  %v4722 = vperm.slane %v4714, %v4721
  %v4723 = vrot.slane %v3076, 4
  %v4724 = vsel %vm464, %v4723, %v3050
  %v4725 = vrot.slane %v3050, 4
  %v4726 = vsel %vm464, %v3076, %v4725
  %v4728 = vunpack.c.l.s4 1983009808
  %v4729 = vunpack.c.0.s8 %v4728
  %v4730 = vperm.slane %v4724, %v4729
  %v4732 = vunpack.c.l.s4 1983009808
  %v4733 = vunpack.c.0.s8 %v4732
  %v4734 = vperm.slane %v4726, %v4733
  %v4735 = vrot.slane %v3115, 4
  %v4736 = vsel %vm464, %v4735, %v3089
  %v4737 = vrot.slane %v3089, 4
  %v4738 = vsel %vm464, %v3115, %v4737
  %v4740 = vunpack.c.l.s4 1983009808
  %v4741 = vunpack.c.0.s8 %v4740
  %v4742 = vperm.slane %v4736, %v4741
  %v4744 = vunpack.c.l.s4 1983009808
  %v4745 = vunpack.c.0.s8 %v4744
  %v4746 = vperm.slane %v4738, %v4745
  %v4747 = vrot.slane %v3128, 4
  %v4748 = vsel %vm464, %v4747, %v3102
  %v4749 = vrot.slane %v3102, 4
  %v4750 = vsel %vm464, %v3128, %v4749
  %v4752 = vunpack.c.l.s4 1983009808
  %v4753 = vunpack.c.0.s8 %v4752
  %v4754 = vperm.slane %v4748, %v4753
  %v4756 = vunpack.c.l.s4 1983009808
  %v4757 = vunpack.c.0.s8 %v4756
  %v4758 = vperm.slane %v4750, %v4757
  %v4759 = vrot.slane %v4730, 4
  %v4760 = vsel %vm464, %v4759, %v4718
  %v4761 = vrot.slane %v4718, 4
  %v4762 = vsel %vm464, %v4730, %v4761
  %v4764 = vunpack.c.l.s4 1934713408
  %v4765 = vunpack.c.0.s8 %v4764
  %v4766 = vperm.slane %v4760, %v4765
  %v4768 = vunpack.c.l.s4 1934713408
  %v4769 = vunpack.c.0.s8 %v4768
  %v4770 = vperm.slane %v4762, %v4769
  %v4771 = vrot.slane %v4734, 4
  %v4772 = vsel %vm464, %v4771, %v4722
  %v4773 = vrot.slane %v4722, 4
  %v4774 = vsel %vm464, %v4734, %v4773
  %v4776 = vunpack.c.l.s4 1934713408
  %v4777 = vunpack.c.0.s8 %v4776
  %v4778 = vperm.slane %v4772, %v4777
  %v4780 = vunpack.c.l.s4 1934713408
  %v4781 = vunpack.c.0.s8 %v4780
  %v4782 = vperm.slane %v4774, %v4781
  %v4783 = vrot.slane %v4754, 4
  %v4784 = vsel %vm464, %v4783, %v4742
  %v4785 = vrot.slane %v4742, 4
  %v4786 = vsel %vm464, %v4754, %v4785
  %v4788 = vunpack.c.l.s4 1934713408
  %v4789 = vunpack.c.0.s8 %v4788
  %v4790 = vperm.slane %v4784, %v4789
  %v4792 = vunpack.c.l.s4 1934713408
  %v4793 = vunpack.c.0.s8 %v4792
  %v4794 = vperm.slane %v4786, %v4793
  %v4795 = vrot.slane %v4758, 4
  %v4796 = vsel %vm464, %v4795, %v4746
  %v4797 = vrot.slane %v4746, 4
  %v4798 = vsel %vm464, %v4758, %v4797
  %v4800 = vunpack.c.l.s4 1934713408
  %v4801 = vunpack.c.0.s8 %v4800
  %v4802 = vperm.slane %v4796, %v4801
  %v4804 = vunpack.c.l.s4 1934713408
  %v4805 = vunpack.c.0.s8 %v4804
  %v4806 = vperm.slane %v4798, %v4805
  %v4807 = vrot.slane %v4790, 4
  %v4808 = vsel %vm464, %v4807, %v4766
  %v4809 = vrot.slane %v4766, 4
  %v4810 = vsel %vm464, %v4790, %v4809
  %v4811 = vrot.slane %v4794, 4
  %v4812 = vsel %vm464, %v4811, %v4770
  %v4813 = vrot.slane %v4770, 4
  %v4814 = vsel %vm464, %v4794, %v4813
  %v4815 = vrot.slane %v4802, 4
  %v4816 = vsel %vm464, %v4815, %v4778
  %v4817 = vrot.slane %v4778, 4
  %v4818 = vsel %vm464, %v4802, %v4817
  %v4819 = vrot.slane %v4806, 4
  %v4820 = vsel %vm464, %v4819, %v4782
  %v4821 = vrot.slane %v4782, 4
  %v4822 = vsel %vm464, %v4806, %v4821
  %v4823 = vrot.slane %v3167, 4
  %v4824 = vsel %vm464, %v4823, %v3141
  %v4825 = vrot.slane %v3141, 4
  %v4826 = vsel %vm464, %v3167, %v4825
  %v4828 = vunpack.c.l.s4 1983009808
  %v4829 = vunpack.c.0.s8 %v4828
  %v4830 = vperm.slane %v4824, %v4829
  %v4832 = vunpack.c.l.s4 1983009808
  %v4833 = vunpack.c.0.s8 %v4832
  %v4834 = vperm.slane %v4826, %v4833
  %v4835 = vrot.slane %v3180, 4
  %v4836 = vsel %vm464, %v4835, %v3154
  %v4837 = vrot.slane %v3154, 4
  %v4838 = vsel %vm464, %v3180, %v4837
  %v4840 = vunpack.c.l.s4 1983009808
  %v4841 = vunpack.c.0.s8 %v4840
  %v4842 = vperm.slane %v4836, %v4841
  %v4844 = vunpack.c.l.s4 1983009808
  %v4845 = vunpack.c.0.s8 %v4844
  %v4846 = vperm.slane %v4838, %v4845
  %v4847 = vrot.slane %v3219, 4
  %v4848 = vsel %vm464, %v4847, %v3193
  %v4849 = vrot.slane %v3193, 4
  %v4850 = vsel %vm464, %v3219, %v4849
  %v4852 = vunpack.c.l.s4 1983009808
  %v4853 = vunpack.c.0.s8 %v4852
  %v4854 = vperm.slane %v4848, %v4853
  %v4856 = vunpack.c.l.s4 1983009808
  %v4857 = vunpack.c.0.s8 %v4856
  %v4858 = vperm.slane %v4850, %v4857
  %v4859 = vrot.slane %v3232, 4
  %v4860 = vsel %vm464, %v4859, %v3206
  %v4861 = vrot.slane %v3206, 4
  %v4862 = vsel %vm464, %v3232, %v4861
  %v4864 = vunpack.c.l.s4 1983009808
  %v4865 = vunpack.c.0.s8 %v4864
  %v4866 = vperm.slane %v4860, %v4865
  %v4868 = vunpack.c.l.s4 1983009808
  %v4869 = vunpack.c.0.s8 %v4868
  %v4870 = vperm.slane %v4862, %v4869
  %v4871 = vrot.slane %v4842, 4
  %v4872 = vsel %vm464, %v4871, %v4830
  %v4873 = vrot.slane %v4830, 4
  %v4874 = vsel %vm464, %v4842, %v4873
  %v4876 = vunpack.c.l.s4 1934713408
  %v4877 = vunpack.c.0.s8 %v4876
  %v4878 = vperm.slane %v4872, %v4877
  %v4880 = vunpack.c.l.s4 1934713408
  %v4881 = vunpack.c.0.s8 %v4880
  %v4882 = vperm.slane %v4874, %v4881
  %v4883 = vrot.slane %v4846, 4
  %v4884 = vsel %vm464, %v4883, %v4834
  %v4885 = vrot.slane %v4834, 4
  %v4886 = vsel %vm464, %v4846, %v4885
  %v4888 = vunpack.c.l.s4 1934713408
  %v4889 = vunpack.c.0.s8 %v4888
  %v4890 = vperm.slane %v4884, %v4889
  %v4892 = vunpack.c.l.s4 1934713408
  %v4893 = vunpack.c.0.s8 %v4892
  %v4894 = vperm.slane %v4886, %v4893
  %v4895 = vrot.slane %v4866, 4
  %v4896 = vsel %vm464, %v4895, %v4854
  %v4897 = vrot.slane %v4854, 4
  %v4898 = vsel %vm464, %v4866, %v4897
  %v4900 = vunpack.c.l.s4 1934713408
  %v4901 = vunpack.c.0.s8 %v4900
  %v4902 = vperm.slane %v4896, %v4901
  %v4904 = vunpack.c.l.s4 1934713408
  %v4905 = vunpack.c.0.s8 %v4904
  %v4906 = vperm.slane %v4898, %v4905
  %v4907 = vrot.slane %v4870, 4
  %v4908 = vsel %vm464, %v4907, %v4858
  %v4909 = vrot.slane %v4858, 4
  %v4910 = vsel %vm464, %v4870, %v4909
  %v4912 = vunpack.c.l.s4 1934713408
  %v4913 = vunpack.c.0.s8 %v4912
  %v4914 = vperm.slane %v4908, %v4913
  %v4916 = vunpack.c.l.s4 1934713408
  %v4917 = vunpack.c.0.s8 %v4916
  %v4918 = vperm.slane %v4910, %v4917
  %v4919 = vrot.slane %v4902, 4
  %v4920 = vsel %vm464, %v4919, %v4878
  %v4921 = vrot.slane %v4878, 4
  %v4922 = vsel %vm464, %v4902, %v4921
  %v4923 = vrot.slane %v4906, 4
  %v4924 = vsel %vm464, %v4923, %v4882
  %v4925 = vrot.slane %v4882, 4
  %v4926 = vsel %vm464, %v4906, %v4925
  %v4927 = vrot.slane %v4914, 4
  %v4928 = vsel %vm464, %v4927, %v4890
  %v4929 = vrot.slane %v4890, 4
  %v4930 = vsel %vm464, %v4914, %v4929
  %v4931 = vrot.slane %v4918, 4
  %v4932 = vsel %vm464, %v4931, %v4894
  %v4933 = vrot.slane %v4894, 4
  %v4934 = vsel %vm464, %v4918, %v4933
  %v4935 = vrot.slane %v3271, 4
  %v4936 = vsel %vm464, %v4935, %v3245
  %v4937 = vrot.slane %v3245, 4
  %v4938 = vsel %vm464, %v3271, %v4937
  %v4940 = vunpack.c.l.s4 1983009808
  %v4941 = vunpack.c.0.s8 %v4940
  %v4942 = vperm.slane %v4936, %v4941
  %v4944 = vunpack.c.l.s4 1983009808
  %v4945 = vunpack.c.0.s8 %v4944
  %v4946 = vperm.slane %v4938, %v4945
  %v4947 = vrot.slane %v3284, 4
  %v4948 = vsel %vm464, %v4947, %v3258
  %v4949 = vrot.slane %v3258, 4
  %v4950 = vsel %vm464, %v3284, %v4949
  %v4952 = vunpack.c.l.s4 1983009808
  %v4953 = vunpack.c.0.s8 %v4952
  %v4954 = vperm.slane %v4948, %v4953
  %v4956 = vunpack.c.l.s4 1983009808
  %v4957 = vunpack.c.0.s8 %v4956
  %v4958 = vperm.slane %v4950, %v4957
  %v4959 = vrot.slane %v3323, 4
  %v4960 = vsel %vm464, %v4959, %v3297
  %v4961 = vrot.slane %v3297, 4
  %v4962 = vsel %vm464, %v3323, %v4961
  %v4964 = vunpack.c.l.s4 1983009808
  %v4965 = vunpack.c.0.s8 %v4964
  %v4966 = vperm.slane %v4960, %v4965
  %v4968 = vunpack.c.l.s4 1983009808
  %v4969 = vunpack.c.0.s8 %v4968
  %v4970 = vperm.slane %v4962, %v4969
  %v4971 = vrot.slane %v3336, 4
  %v4972 = vsel %vm464, %v4971, %v3310
  %v4973 = vrot.slane %v3310, 4
  %v4974 = vsel %vm464, %v3336, %v4973
  %v4976 = vunpack.c.l.s4 1983009808
  %v4977 = vunpack.c.0.s8 %v4976
  %v4978 = vperm.slane %v4972, %v4977
  %v4980 = vunpack.c.l.s4 1983009808
  %v4981 = vunpack.c.0.s8 %v4980
  %v4982 = vperm.slane %v4974, %v4981
  %v4983 = vrot.slane %v4954, 4
  %v4984 = vsel %vm464, %v4983, %v4942
  %v4985 = vrot.slane %v4942, 4
  %v4986 = vsel %vm464, %v4954, %v4985
  %v4988 = vunpack.c.l.s4 1934713408
  %v4989 = vunpack.c.0.s8 %v4988
  %v4990 = vperm.slane %v4984, %v4989
  %v4992 = vunpack.c.l.s4 1934713408
  %v4993 = vunpack.c.0.s8 %v4992
  %v4994 = vperm.slane %v4986, %v4993
  %v4995 = vrot.slane %v4958, 4
  %v4996 = vsel %vm464, %v4995, %v4946
  %v4997 = vrot.slane %v4946, 4
  %v4998 = vsel %vm464, %v4958, %v4997
  %v5000 = vunpack.c.l.s4 1934713408
  %v5001 = vunpack.c.0.s8 %v5000
  %v5002 = vperm.slane %v4996, %v5001
  %v5004 = vunpack.c.l.s4 1934713408
  %v5005 = vunpack.c.0.s8 %v5004
  %v5006 = vperm.slane %v4998, %v5005
  %v5007 = vrot.slane %v4978, 4
  %v5008 = vsel %vm464, %v5007, %v4966
  %v5009 = vrot.slane %v4966, 4
  %v5010 = vsel %vm464, %v4978, %v5009
  %v5012 = vunpack.c.l.s4 1934713408
  %v5013 = vunpack.c.0.s8 %v5012
  %v5014 = vperm.slane %v5008, %v5013
  %v5016 = vunpack.c.l.s4 1934713408
  %v5017 = vunpack.c.0.s8 %v5016
  %v5018 = vperm.slane %v5010, %v5017
  %v5019 = vrot.slane %v4982, 4
  %v5020 = vsel %vm464, %v5019, %v4970
  %v5021 = vrot.slane %v4970, 4
  %v5022 = vsel %vm464, %v4982, %v5021
  %v5024 = vunpack.c.l.s4 1934713408
  %v5025 = vunpack.c.0.s8 %v5024
  %v5026 = vperm.slane %v5020, %v5025
  %v5028 = vunpack.c.l.s4 1934713408
  %v5029 = vunpack.c.0.s8 %v5028
  %v5030 = vperm.slane %v5022, %v5029
  %v5031 = vrot.slane %v5014, 4
  %v5032 = vsel %vm464, %v5031, %v4990
  %v5033 = vrot.slane %v4990, 4
  %v5034 = vsel %vm464, %v5014, %v5033
  %v5035 = vrot.slane %v5018, 4
  %v5036 = vsel %vm464, %v5035, %v4994
  %v5037 = vrot.slane %v4994, 4
  %v5038 = vsel %vm464, %v5018, %v5037
  %v5039 = vrot.slane %v5026, 4
  %v5040 = vsel %vm464, %v5039, %v5002
  %v5041 = vrot.slane %v5002, 4
  %v5042 = vsel %vm464, %v5026, %v5041
  %v5043 = vrot.slane %v5030, 4
  %v5044 = vsel %vm464, %v5043, %v5006
  %v5045 = vrot.slane %v5006, 4
  %v5046 = vsel %vm464, %v5030, %v5045
  %v5047 = vrot.slane %v3375, 4
  %v5048 = vsel %vm464, %v5047, %v3349
  %v5049 = vrot.slane %v3349, 4
  %v5050 = vsel %vm464, %v3375, %v5049
  %v5052 = vunpack.c.l.s4 1983009808
  %v5053 = vunpack.c.0.s8 %v5052
  %v5054 = vperm.slane %v5048, %v5053
  %v5056 = vunpack.c.l.s4 1983009808
  %v5057 = vunpack.c.0.s8 %v5056
  %v5058 = vperm.slane %v5050, %v5057
  %v5059 = vrot.slane %v3388, 4
  %v5060 = vsel %vm464, %v5059, %v3362
  %v5061 = vrot.slane %v3362, 4
  %v5062 = vsel %vm464, %v3388, %v5061
  %v5064 = vunpack.c.l.s4 1983009808
  %v5065 = vunpack.c.0.s8 %v5064
  %v5066 = vperm.slane %v5060, %v5065
  %v5068 = vunpack.c.l.s4 1983009808
  %v5069 = vunpack.c.0.s8 %v5068
  %v5070 = vperm.slane %v5062, %v5069
  %v5071 = vrot.slane %v3427, 4
  %v5072 = vsel %vm464, %v5071, %v3401
  %v5073 = vrot.slane %v3401, 4
  %v5074 = vsel %vm464, %v3427, %v5073
  %v5076 = vunpack.c.l.s4 1983009808
  %v5077 = vunpack.c.0.s8 %v5076
  %v5078 = vperm.slane %v5072, %v5077
  %v5080 = vunpack.c.l.s4 1983009808
  %v5081 = vunpack.c.0.s8 %v5080
  %v5082 = vperm.slane %v5074, %v5081
  %v5083 = vrot.slane %v3440, 4
  %v5084 = vsel %vm464, %v5083, %v3414
  %v5085 = vrot.slane %v3414, 4
  %v5086 = vsel %vm464, %v3440, %v5085
  %v5088 = vunpack.c.l.s4 1983009808
  %v5089 = vunpack.c.0.s8 %v5088
  %v5090 = vperm.slane %v5084, %v5089
  %v5092 = vunpack.c.l.s4 1983009808
  %v5093 = vunpack.c.0.s8 %v5092
  %v5094 = vperm.slane %v5086, %v5093
  %v5095 = vrot.slane %v5066, 4
  %v5096 = vsel %vm464, %v5095, %v5054
  %v5097 = vrot.slane %v5054, 4
  %v5098 = vsel %vm464, %v5066, %v5097
  %v5100 = vunpack.c.l.s4 1934713408
  %v5101 = vunpack.c.0.s8 %v5100
  %v5102 = vperm.slane %v5096, %v5101
  %v5104 = vunpack.c.l.s4 1934713408
  %v5105 = vunpack.c.0.s8 %v5104
  %v5106 = vperm.slane %v5098, %v5105
  %v5107 = vrot.slane %v5070, 4
  %v5108 = vsel %vm464, %v5107, %v5058
  %v5109 = vrot.slane %v5058, 4
  %v5110 = vsel %vm464, %v5070, %v5109
  %v5112 = vunpack.c.l.s4 1934713408
  %v5113 = vunpack.c.0.s8 %v5112
  %v5114 = vperm.slane %v5108, %v5113
  %v5116 = vunpack.c.l.s4 1934713408
  %v5117 = vunpack.c.0.s8 %v5116
  %v5118 = vperm.slane %v5110, %v5117
  %v5119 = vrot.slane %v5090, 4
  %v5120 = vsel %vm464, %v5119, %v5078
  %v5121 = vrot.slane %v5078, 4
  %v5122 = vsel %vm464, %v5090, %v5121
  %v5124 = vunpack.c.l.s4 1934713408
  %v5125 = vunpack.c.0.s8 %v5124
  %v5126 = vperm.slane %v5120, %v5125
  %v5128 = vunpack.c.l.s4 1934713408
  %v5129 = vunpack.c.0.s8 %v5128
  %v5130 = vperm.slane %v5122, %v5129
  %v5131 = vrot.slane %v5094, 4
  %v5132 = vsel %vm464, %v5131, %v5082
  %v5133 = vrot.slane %v5082, 4
  %v5134 = vsel %vm464, %v5094, %v5133
  %v5136 = vunpack.c.l.s4 1934713408
  %v5137 = vunpack.c.0.s8 %v5136
  %v5138 = vperm.slane %v5132, %v5137
  %v5140 = vunpack.c.l.s4 1934713408
  %v5141 = vunpack.c.0.s8 %v5140
  %v5142 = vperm.slane %v5134, %v5141
  %v5143 = vrot.slane %v5126, 4
  %v5144 = vsel %vm464, %v5143, %v5102
  %v5145 = vrot.slane %v5102, 4
  %v5146 = vsel %vm464, %v5126, %v5145
  %v5147 = vrot.slane %v5130, 4
  %v5148 = vsel %vm464, %v5147, %v5106
  %v5149 = vrot.slane %v5106, 4
  %v5150 = vsel %vm464, %v5130, %v5149
  %v5151 = vrot.slane %v5138, 4
  %v5152 = vsel %vm464, %v5151, %v5114
  %v5153 = vrot.slane %v5114, 4
  %v5154 = vsel %vm464, %v5138, %v5153
  %v5155 = vrot.slane %v5142, 4
  %v5156 = vsel %vm464, %v5155, %v5118
  %v5157 = vrot.slane %v5118, 4
  %v5158 = vsel %vm464, %v5142, %v5157
  %v5159 = vrot.slane %v3479, 4
  %v5160 = vsel %vm464, %v5159, %v3453
  %v5161 = vrot.slane %v3453, 4
  %v5162 = vsel %vm464, %v3479, %v5161
  %v5164 = vunpack.c.l.s4 1983009808
  %v5165 = vunpack.c.0.s8 %v5164
  %v5166 = vperm.slane %v5160, %v5165
  %v5168 = vunpack.c.l.s4 1983009808
  %v5169 = vunpack.c.0.s8 %v5168
  %v5170 = vperm.slane %v5162, %v5169
  %v5171 = vrot.slane %v3492, 4
  %v5172 = vsel %vm464, %v5171, %v3466
  %v5173 = vrot.slane %v3466, 4
  %v5174 = vsel %vm464, %v3492, %v5173
  %v5176 = vunpack.c.l.s4 1983009808
  %v5177 = vunpack.c.0.s8 %v5176
  %v5178 = vperm.slane %v5172, %v5177
  %v5180 = vunpack.c.l.s4 1983009808
  %v5181 = vunpack.c.0.s8 %v5180
  %v5182 = vperm.slane %v5174, %v5181
  %v5183 = vrot.slane %v3531, 4
  %v5184 = vsel %vm464, %v5183, %v3505
  %v5185 = vrot.slane %v3505, 4
  %v5186 = vsel %vm464, %v3531, %v5185
  %v5188 = vunpack.c.l.s4 1983009808
  %v5189 = vunpack.c.0.s8 %v5188
  %v5190 = vperm.slane %v5184, %v5189
  %v5192 = vunpack.c.l.s4 1983009808
  %v5193 = vunpack.c.0.s8 %v5192
  %v5194 = vperm.slane %v5186, %v5193
  %v5195 = vrot.slane %v3544, 4
  %v5196 = vsel %vm464, %v5195, %v3518
  %v5197 = vrot.slane %v3518, 4
  %v5198 = vsel %vm464, %v3544, %v5197
  %v5200 = vunpack.c.l.s4 1983009808
  %v5201 = vunpack.c.0.s8 %v5200
  %v5202 = vperm.slane %v5196, %v5201
  %v5204 = vunpack.c.l.s4 1983009808
  %v5205 = vunpack.c.0.s8 %v5204
  %v5206 = vperm.slane %v5198, %v5205
  %v5207 = vrot.slane %v5178, 4
  %v5208 = vsel %vm464, %v5207, %v5166
  %v5209 = vrot.slane %v5166, 4
  %v5210 = vsel %vm464, %v5178, %v5209
  %v5212 = vunpack.c.l.s4 1934713408
  %v5213 = vunpack.c.0.s8 %v5212
  %v5214 = vperm.slane %v5208, %v5213
  %v5216 = vunpack.c.l.s4 1934713408
  %v5217 = vunpack.c.0.s8 %v5216
  %v5218 = vperm.slane %v5210, %v5217
  %v5219 = vrot.slane %v5182, 4
  %v5220 = vsel %vm464, %v5219, %v5170
  %v5221 = vrot.slane %v5170, 4
  %v5222 = vsel %vm464, %v5182, %v5221
  %v5224 = vunpack.c.l.s4 1934713408
  %v5225 = vunpack.c.0.s8 %v5224
  %v5226 = vperm.slane %v5220, %v5225
  %v5228 = vunpack.c.l.s4 1934713408
  %v5229 = vunpack.c.0.s8 %v5228
  %v5230 = vperm.slane %v5222, %v5229
  %v5231 = vrot.slane %v5202, 4
  %v5232 = vsel %vm464, %v5231, %v5190
  %v5233 = vrot.slane %v5190, 4
  %v5234 = vsel %vm464, %v5202, %v5233
  %v5236 = vunpack.c.l.s4 1934713408
  %v5237 = vunpack.c.0.s8 %v5236
  %v5238 = vperm.slane %v5232, %v5237
  %v5240 = vunpack.c.l.s4 1934713408
  %v5241 = vunpack.c.0.s8 %v5240
  %v5242 = vperm.slane %v5234, %v5241
  %v5243 = vrot.slane %v5206, 4
  %v5244 = vsel %vm464, %v5243, %v5194
  %v5245 = vrot.slane %v5194, 4
  %v5246 = vsel %vm464, %v5206, %v5245
  %v5248 = vunpack.c.l.s4 1934713408
  %v5249 = vunpack.c.0.s8 %v5248
  %v5250 = vperm.slane %v5244, %v5249
  %v5252 = vunpack.c.l.s4 1934713408
  %v5253 = vunpack.c.0.s8 %v5252
  %v5254 = vperm.slane %v5246, %v5253
  %v5255 = vrot.slane %v5238, 4
  %v5256 = vsel %vm464, %v5255, %v5214
  %v5257 = vrot.slane %v5214, 4
  %v5258 = vsel %vm464, %v5238, %v5257
  %v5259 = vrot.slane %v5242, 4
  %v5260 = vsel %vm464, %v5259, %v5218
  %v5261 = vrot.slane %v5218, 4
  %v5262 = vsel %vm464, %v5242, %v5261
  %v5263 = vrot.slane %v5250, 4
  %v5264 = vsel %vm464, %v5263, %v5226
  %v5265 = vrot.slane %v5226, 4
  %v5266 = vsel %vm464, %v5250, %v5265
  %v5267 = vrot.slane %v5254, 4
  %v5268 = vsel %vm464, %v5267, %v5230
  %v5269 = vrot.slane %v5230, 4
  %v5270 = vsel %vm464, %v5254, %v5269
  %v5271 = vrot.slane %v3583, 4
  %v5272 = vsel %vm464, %v5271, %v3557
  %v5273 = vrot.slane %v3557, 4
  %v5274 = vsel %vm464, %v3583, %v5273
  %v5276 = vunpack.c.l.s4 1983009808
  %v5277 = vunpack.c.0.s8 %v5276
  %v5278 = vperm.slane %v5272, %v5277
  %v5280 = vunpack.c.l.s4 1983009808
  %v5281 = vunpack.c.0.s8 %v5280
  %v5282 = vperm.slane %v5274, %v5281
  %v5283 = vrot.slane %v3596, 4
  %v5284 = vsel %vm464, %v5283, %v3570
  %v5285 = vrot.slane %v3570, 4
  %v5286 = vsel %vm464, %v3596, %v5285
  %v5288 = vunpack.c.l.s4 1983009808
  %v5289 = vunpack.c.0.s8 %v5288
  %v5290 = vperm.slane %v5284, %v5289
  %v5292 = vunpack.c.l.s4 1983009808
  %v5293 = vunpack.c.0.s8 %v5292
  %v5294 = vperm.slane %v5286, %v5293
  %v5295 = vrot.slane %v3635, 4
  %v5296 = vsel %vm464, %v5295, %v3609
  %v5297 = vrot.slane %v3609, 4
  %v5298 = vsel %vm464, %v3635, %v5297
  %v5300 = vunpack.c.l.s4 1983009808
  %v5301 = vunpack.c.0.s8 %v5300
  %v5302 = vperm.slane %v5296, %v5301
  %v5304 = vunpack.c.l.s4 1983009808
  %v5305 = vunpack.c.0.s8 %v5304
  %v5306 = vperm.slane %v5298, %v5305
  %v5307 = vrot.slane %v3648, 4
  %v5308 = vsel %vm464, %v5307, %v3622
  %v5309 = vrot.slane %v3622, 4
  %v5310 = vsel %vm464, %v3648, %v5309
  %v5312 = vunpack.c.l.s4 1983009808
  %v5313 = vunpack.c.0.s8 %v5312
  %v5314 = vperm.slane %v5308, %v5313
  %v5316 = vunpack.c.l.s4 1983009808
  %v5317 = vunpack.c.0.s8 %v5316
  %v5318 = vperm.slane %v5310, %v5317
  %v5319 = vrot.slane %v5290, 4
  %v5320 = vsel %vm464, %v5319, %v5278
  %v5321 = vrot.slane %v5278, 4
  %v5322 = vsel %vm464, %v5290, %v5321
  %v5324 = vunpack.c.l.s4 1934713408
  %v5325 = vunpack.c.0.s8 %v5324
  %v5326 = vperm.slane %v5320, %v5325
  %v5328 = vunpack.c.l.s4 1934713408
  %v5329 = vunpack.c.0.s8 %v5328
  %v5330 = vperm.slane %v5322, %v5329
  %v5331 = vrot.slane %v5294, 4
  %v5332 = vsel %vm464, %v5331, %v5282
  %v5333 = vrot.slane %v5282, 4
  %v5334 = vsel %vm464, %v5294, %v5333
  %v5336 = vunpack.c.l.s4 1934713408
  %v5337 = vunpack.c.0.s8 %v5336
  %v5338 = vperm.slane %v5332, %v5337
  %v5340 = vunpack.c.l.s4 1934713408
  %v5341 = vunpack.c.0.s8 %v5340
  %v5342 = vperm.slane %v5334, %v5341
  %v5343 = vrot.slane %v5314, 4
  %v5344 = vsel %vm464, %v5343, %v5302
  %v5345 = vrot.slane %v5302, 4
  %v5346 = vsel %vm464, %v5314, %v5345
  %v5348 = vunpack.c.l.s4 1934713408
  %v5349 = vunpack.c.0.s8 %v5348
  %v5350 = vperm.slane %v5344, %v5349
  %v5352 = vunpack.c.l.s4 1934713408
  %v5353 = vunpack.c.0.s8 %v5352
  %v5354 = vperm.slane %v5346, %v5353
  %v5355 = vrot.slane %v5318, 4
  %v5356 = vsel %vm464, %v5355, %v5306
  %v5357 = vrot.slane %v5306, 4
  %v5358 = vsel %vm464, %v5318, %v5357
  %v5360 = vunpack.c.l.s4 1934713408
  %v5361 = vunpack.c.0.s8 %v5360
  %v5362 = vperm.slane %v5356, %v5361
  %v5364 = vunpack.c.l.s4 1934713408
  %v5365 = vunpack.c.0.s8 %v5364
  %v5366 = vperm.slane %v5358, %v5365
  %v5367 = vrot.slane %v5350, 4
  %v5368 = vsel %vm464, %v5367, %v5326
  %v5369 = vrot.slane %v5326, 4
  %v5370 = vsel %vm464, %v5350, %v5369
  %v5371 = vrot.slane %v5354, 4
  %v5372 = vsel %vm464, %v5371, %v5330
  %v5373 = vrot.slane %v5330, 4
  %v5374 = vsel %vm464, %v5354, %v5373
  %v5375 = vrot.slane %v5362, 4
  %v5376 = vsel %vm464, %v5375, %v5338
  %v5377 = vrot.slane %v5338, 4
  %v5378 = vsel %vm464, %v5362, %v5377
  %v5379 = vrot.slane %v5366, 4
  %v5380 = vsel %vm464, %v5379, %v5342
  %v5381 = vrot.slane %v5342, 4
  %v5382 = vsel %vm464, %v5366, %v5381
  %v5383 = vrot.slane %v3687, 4
  %v5384 = vsel %vm464, %v5383, %v3661
  %v5385 = vrot.slane %v3661, 4
  %v5386 = vsel %vm464, %v3687, %v5385
  %v5388 = vunpack.c.l.s4 1983009808
  %v5389 = vunpack.c.0.s8 %v5388
  %v5390 = vperm.slane %v5384, %v5389
  %v5392 = vunpack.c.l.s4 1983009808
  %v5393 = vunpack.c.0.s8 %v5392
  %v5394 = vperm.slane %v5386, %v5393
  %v5395 = vrot.slane %v3700, 4
  %v5396 = vsel %vm464, %v5395, %v3674
  %v5397 = vrot.slane %v3674, 4
  %v5398 = vsel %vm464, %v3700, %v5397
  %v5400 = vunpack.c.l.s4 1983009808
  %v5401 = vunpack.c.0.s8 %v5400
  %v5402 = vperm.slane %v5396, %v5401
  %v5404 = vunpack.c.l.s4 1983009808
  %v5405 = vunpack.c.0.s8 %v5404
  %v5406 = vperm.slane %v5398, %v5405
  %v5407 = vrot.slane %v3739, 4
  %v5408 = vsel %vm464, %v5407, %v3713
  %v5409 = vrot.slane %v3713, 4
  %v5410 = vsel %vm464, %v3739, %v5409
  %v5412 = vunpack.c.l.s4 1983009808
  %v5413 = vunpack.c.0.s8 %v5412
  %v5414 = vperm.slane %v5408, %v5413
  %v5416 = vunpack.c.l.s4 1983009808
  %v5417 = vunpack.c.0.s8 %v5416
  %v5418 = vperm.slane %v5410, %v5417
  %v5419 = vrot.slane %v3752, 4
  %v5420 = vsel %vm464, %v5419, %v3726
  %v5421 = vrot.slane %v3726, 4
  %v5422 = vsel %vm464, %v3752, %v5421
  %v5424 = vunpack.c.l.s4 1983009808
  %v5425 = vunpack.c.0.s8 %v5424
  %v5426 = vperm.slane %v5420, %v5425
  %v5428 = vunpack.c.l.s4 1983009808
  %v5429 = vunpack.c.0.s8 %v5428
  %v5430 = vperm.slane %v5422, %v5429
  %v5431 = vrot.slane %v5402, 4
  %v5432 = vsel %vm464, %v5431, %v5390
  %v5433 = vrot.slane %v5390, 4
  %v5434 = vsel %vm464, %v5402, %v5433
  %v5436 = vunpack.c.l.s4 1934713408
  %v5437 = vunpack.c.0.s8 %v5436
  %v5438 = vperm.slane %v5432, %v5437
  %v5440 = vunpack.c.l.s4 1934713408
  %v5441 = vunpack.c.0.s8 %v5440
  %v5442 = vperm.slane %v5434, %v5441
  %v5443 = vrot.slane %v5406, 4
  %v5444 = vsel %vm464, %v5443, %v5394
  %v5445 = vrot.slane %v5394, 4
  %v5446 = vsel %vm464, %v5406, %v5445
  %v5448 = vunpack.c.l.s4 1934713408
  %v5449 = vunpack.c.0.s8 %v5448
  %v5450 = vperm.slane %v5444, %v5449
  %v5452 = vunpack.c.l.s4 1934713408
  %v5453 = vunpack.c.0.s8 %v5452
  %v5454 = vperm.slane %v5446, %v5453
  %v5455 = vrot.slane %v5426, 4
  %v5456 = vsel %vm464, %v5455, %v5414
  %v5457 = vrot.slane %v5414, 4
  %v5458 = vsel %vm464, %v5426, %v5457
  %v5460 = vunpack.c.l.s4 1934713408
  %v5461 = vunpack.c.0.s8 %v5460
  %v5462 = vperm.slane %v5456, %v5461
  %v5464 = vunpack.c.l.s4 1934713408
  %v5465 = vunpack.c.0.s8 %v5464
  %v5466 = vperm.slane %v5458, %v5465
  %v5467 = vrot.slane %v5430, 4
  %v5468 = vsel %vm464, %v5467, %v5418
  %v5469 = vrot.slane %v5418, 4
  %v5470 = vsel %vm464, %v5430, %v5469
  %v5472 = vunpack.c.l.s4 1934713408
  %v5473 = vunpack.c.0.s8 %v5472
  %v5474 = vperm.slane %v5468, %v5473
  %v5476 = vunpack.c.l.s4 1934713408
  %v5477 = vunpack.c.0.s8 %v5476
  %v5478 = vperm.slane %v5470, %v5477
  %v5479 = vrot.slane %v5462, 4
  %v5480 = vsel %vm464, %v5479, %v5438
  %v5481 = vrot.slane %v5438, 4
  %v5482 = vsel %vm464, %v5462, %v5481
  %v5483 = vrot.slane %v5466, 4
  %v5484 = vsel %vm464, %v5483, %v5442
  %v5485 = vrot.slane %v5442, 4
  %v5486 = vsel %vm464, %v5466, %v5485
  %v5487 = vrot.slane %v5474, 4
  %v5488 = vsel %vm464, %v5487, %v5450
  %v5489 = vrot.slane %v5450, 4
  %v5490 = vsel %vm464, %v5474, %v5489
  %v5491 = vrot.slane %v5478, 4
  %v5492 = vsel %vm464, %v5491, %v5454
  %v5493 = vrot.slane %v5454, 4
  %v5494 = vsel %vm464, %v5478, %v5493
  %v5495 = vrot.slane %v3791, 4
  %v5496 = vsel %vm464, %v5495, %v3765
  %v5497 = vrot.slane %v3765, 4
  %v5498 = vsel %vm464, %v3791, %v5497
  %v5500 = vunpack.c.l.s4 1983009808
  %v5501 = vunpack.c.0.s8 %v5500
  %v5502 = vperm.slane %v5496, %v5501
  %v5504 = vunpack.c.l.s4 1983009808
  %v5505 = vunpack.c.0.s8 %v5504
  %v5506 = vperm.slane %v5498, %v5505
  %v5507 = vrot.slane %v3804, 4
  %v5508 = vsel %vm464, %v5507, %v3778
  %v5509 = vrot.slane %v3778, 4
  %v5510 = vsel %vm464, %v3804, %v5509
  %v5512 = vunpack.c.l.s4 1983009808
  %v5513 = vunpack.c.0.s8 %v5512
  %v5514 = vperm.slane %v5508, %v5513
  %v5516 = vunpack.c.l.s4 1983009808
  %v5517 = vunpack.c.0.s8 %v5516
  %v5518 = vperm.slane %v5510, %v5517
  %v5519 = vrot.slane %v3843, 4
  %v5520 = vsel %vm464, %v5519, %v3817
  %v5521 = vrot.slane %v3817, 4
  %v5522 = vsel %vm464, %v3843, %v5521
  %v5524 = vunpack.c.l.s4 1983009808
  %v5525 = vunpack.c.0.s8 %v5524
  %v5526 = vperm.slane %v5520, %v5525
  %v5528 = vunpack.c.l.s4 1983009808
  %v5529 = vunpack.c.0.s8 %v5528
  %v5530 = vperm.slane %v5522, %v5529
  %v5531 = vrot.slane %v3856, 4
  %v5532 = vsel %vm464, %v5531, %v3830
  %v5533 = vrot.slane %v3830, 4
  %v5534 = vsel %vm464, %v3856, %v5533
  %v5536 = vunpack.c.l.s4 1983009808
  %v5537 = vunpack.c.0.s8 %v5536
  %v5538 = vperm.slane %v5532, %v5537
  %v5540 = vunpack.c.l.s4 1983009808
  %v5541 = vunpack.c.0.s8 %v5540
  %v5542 = vperm.slane %v5534, %v5541
  %v5543 = vrot.slane %v5514, 4
  %v5544 = vsel %vm464, %v5543, %v5502
  %v5545 = vrot.slane %v5502, 4
  %v5546 = vsel %vm464, %v5514, %v5545
  %v5548 = vunpack.c.l.s4 1934713408
  %v5549 = vunpack.c.0.s8 %v5548
  %v5550 = vperm.slane %v5544, %v5549
  %v5552 = vunpack.c.l.s4 1934713408
  %v5553 = vunpack.c.0.s8 %v5552
  %v5554 = vperm.slane %v5546, %v5553
  %v5555 = vrot.slane %v5518, 4
  %v5556 = vsel %vm464, %v5555, %v5506
  %v5557 = vrot.slane %v5506, 4
  %v5558 = vsel %vm464, %v5518, %v5557
  %v5560 = vunpack.c.l.s4 1934713408
  %v5561 = vunpack.c.0.s8 %v5560
  %v5562 = vperm.slane %v5556, %v5561
  %v5564 = vunpack.c.l.s4 1934713408
  %v5565 = vunpack.c.0.s8 %v5564
  %v5566 = vperm.slane %v5558, %v5565
  %v5567 = vrot.slane %v5538, 4
  %v5568 = vsel %vm464, %v5567, %v5526
  %v5569 = vrot.slane %v5526, 4
  %v5570 = vsel %vm464, %v5538, %v5569
  %v5572 = vunpack.c.l.s4 1934713408
  %v5573 = vunpack.c.0.s8 %v5572
  %v5574 = vperm.slane %v5568, %v5573
  %v5576 = vunpack.c.l.s4 1934713408
  %v5577 = vunpack.c.0.s8 %v5576
  %v5578 = vperm.slane %v5570, %v5577
  %v5579 = vrot.slane %v5542, 4
  %v5580 = vsel %vm464, %v5579, %v5530
  %v5581 = vrot.slane %v5530, 4
  %v5582 = vsel %vm464, %v5542, %v5581
  %v5584 = vunpack.c.l.s4 1934713408
  %v5585 = vunpack.c.0.s8 %v5584
  %v5586 = vperm.slane %v5580, %v5585
  %v5588 = vunpack.c.l.s4 1934713408
  %v5589 = vunpack.c.0.s8 %v5588
  %v5590 = vperm.slane %v5582, %v5589
  %v5591 = vrot.slane %v5574, 4
  %v5592 = vsel %vm464, %v5591, %v5550
  %v5593 = vrot.slane %v5550, 4
  %v5594 = vsel %vm464, %v5574, %v5593
  %v5595 = vrot.slane %v5578, 4
  %v5596 = vsel %vm464, %v5595, %v5554
  %v5597 = vrot.slane %v5554, 4
  %v5598 = vsel %vm464, %v5578, %v5597
  %v5599 = vrot.slane %v5586, 4
  %v5600 = vsel %vm464, %v5599, %v5562
  %v5601 = vrot.slane %v5562, 4
  %v5602 = vsel %vm464, %v5586, %v5601
  %v5603 = vrot.slane %v5590, 4
  %v5604 = vsel %vm464, %v5603, %v5566
  %v5605 = vrot.slane %v5566, 4
  %v5606 = vsel %vm464, %v5590, %v5605
  %v5607 = vrot.slane %v3895, 4
  %v5608 = vsel %vm464, %v5607, %v3869
  %v5609 = vrot.slane %v3869, 4
  %v5610 = vsel %vm464, %v3895, %v5609
  %v5612 = vunpack.c.l.s4 1983009808
  %v5613 = vunpack.c.0.s8 %v5612
  %v5614 = vperm.slane %v5608, %v5613
  %v5616 = vunpack.c.l.s4 1983009808
  %v5617 = vunpack.c.0.s8 %v5616
  %v5618 = vperm.slane %v5610, %v5617
  %v5619 = vrot.slane %v3908, 4
  %v5620 = vsel %vm464, %v5619, %v3882
  %v5621 = vrot.slane %v3882, 4
  %v5622 = vsel %vm464, %v3908, %v5621
  %v5624 = vunpack.c.l.s4 1983009808
  %v5625 = vunpack.c.0.s8 %v5624
  %v5626 = vperm.slane %v5620, %v5625
  %v5628 = vunpack.c.l.s4 1983009808
  %v5629 = vunpack.c.0.s8 %v5628
  %v5630 = vperm.slane %v5622, %v5629
  %v5631 = vrot.slane %v3947, 4
  %v5632 = vsel %vm464, %v5631, %v3921
  %v5633 = vrot.slane %v3921, 4
  %v5634 = vsel %vm464, %v3947, %v5633
  %v5636 = vunpack.c.l.s4 1983009808
  %v5637 = vunpack.c.0.s8 %v5636
  %v5638 = vperm.slane %v5632, %v5637
  %v5640 = vunpack.c.l.s4 1983009808
  %v5641 = vunpack.c.0.s8 %v5640
  %v5642 = vperm.slane %v5634, %v5641
  %v5643 = vrot.slane %v3960, 4
  %v5644 = vsel %vm464, %v5643, %v3934
  %v5645 = vrot.slane %v3934, 4
  %v5646 = vsel %vm464, %v3960, %v5645
  %v5648 = vunpack.c.l.s4 1983009808
  %v5649 = vunpack.c.0.s8 %v5648
  %v5650 = vperm.slane %v5644, %v5649
  %v5652 = vunpack.c.l.s4 1983009808
  %v5653 = vunpack.c.0.s8 %v5652
  %v5654 = vperm.slane %v5646, %v5653
  %v5655 = vrot.slane %v5626, 4
  %v5656 = vsel %vm464, %v5655, %v5614
  %v5657 = vrot.slane %v5614, 4
  %v5658 = vsel %vm464, %v5626, %v5657
  %v5660 = vunpack.c.l.s4 1934713408
  %v5661 = vunpack.c.0.s8 %v5660
  %v5662 = vperm.slane %v5656, %v5661
  %v5664 = vunpack.c.l.s4 1934713408
  %v5665 = vunpack.c.0.s8 %v5664
  %v5666 = vperm.slane %v5658, %v5665
  %v5667 = vrot.slane %v5630, 4
  %v5668 = vsel %vm464, %v5667, %v5618
  %v5669 = vrot.slane %v5618, 4
  %v5670 = vsel %vm464, %v5630, %v5669
  %v5672 = vunpack.c.l.s4 1934713408
  %v5673 = vunpack.c.0.s8 %v5672
  %v5674 = vperm.slane %v5668, %v5673
  %v5676 = vunpack.c.l.s4 1934713408
  %v5677 = vunpack.c.0.s8 %v5676
  %v5678 = vperm.slane %v5670, %v5677
  %v5679 = vrot.slane %v5650, 4
  %v5680 = vsel %vm464, %v5679, %v5638
  %v5681 = vrot.slane %v5638, 4
  %v5682 = vsel %vm464, %v5650, %v5681
  %v5684 = vunpack.c.l.s4 1934713408
  %v5685 = vunpack.c.0.s8 %v5684
  %v5686 = vperm.slane %v5680, %v5685
  %v5688 = vunpack.c.l.s4 1934713408
  %v5689 = vunpack.c.0.s8 %v5688
  %v5690 = vperm.slane %v5682, %v5689
  %v5691 = vrot.slane %v5654, 4
  %v5692 = vsel %vm464, %v5691, %v5642
  %v5693 = vrot.slane %v5642, 4
  %v5694 = vsel %vm464, %v5654, %v5693
  %v5696 = vunpack.c.l.s4 1934713408
  %v5697 = vunpack.c.0.s8 %v5696
  %v5698 = vperm.slane %v5692, %v5697
  %v5700 = vunpack.c.l.s4 1934713408
  %v5701 = vunpack.c.0.s8 %v5700
  %v5702 = vperm.slane %v5694, %v5701
  %v5703 = vrot.slane %v5686, 4
  %v5704 = vsel %vm464, %v5703, %v5662
  %v5705 = vrot.slane %v5662, 4
  %v5706 = vsel %vm464, %v5686, %v5705
  %v5707 = vrot.slane %v5690, 4
  %v5708 = vsel %vm464, %v5707, %v5666
  %v5709 = vrot.slane %v5666, 4
  %v5710 = vsel %vm464, %v5690, %v5709
  %v5711 = vrot.slane %v5698, 4
  %v5712 = vsel %vm464, %v5711, %v5674
  %v5713 = vrot.slane %v5674, 4
  %v5714 = vsel %vm464, %v5698, %v5713
  %v5715 = vrot.slane %v5702, 4
  %v5716 = vsel %vm464, %v5715, %v5678
  %v5717 = vrot.slane %v5678, 4
  %v5718 = vsel %vm464, %v5702, %v5717
  %v5719 = vrot.slane %v3999, 4
  %v5720 = vsel %vm464, %v5719, %v3973
  %v5721 = vrot.slane %v3973, 4
  %v5722 = vsel %vm464, %v3999, %v5721
  %v5724 = vunpack.c.l.s4 1983009808
  %v5725 = vunpack.c.0.s8 %v5724
  %v5726 = vperm.slane %v5720, %v5725
  %v5728 = vunpack.c.l.s4 1983009808
  %v5729 = vunpack.c.0.s8 %v5728
  %v5730 = vperm.slane %v5722, %v5729
  %v5731 = vrot.slane %v4012, 4
  %v5732 = vsel %vm464, %v5731, %v3986
  %v5733 = vrot.slane %v3986, 4
  %v5734 = vsel %vm464, %v4012, %v5733
  %v5736 = vunpack.c.l.s4 1983009808
  %v5737 = vunpack.c.0.s8 %v5736
  %v5738 = vperm.slane %v5732, %v5737
  %v5740 = vunpack.c.l.s4 1983009808
  %v5741 = vunpack.c.0.s8 %v5740
  %v5742 = vperm.slane %v5734, %v5741
  %v5743 = vrot.slane %v4051, 4
  %v5744 = vsel %vm464, %v5743, %v4025
  %v5745 = vrot.slane %v4025, 4
  %v5746 = vsel %vm464, %v4051, %v5745
  %v5748 = vunpack.c.l.s4 1983009808
  %v5749 = vunpack.c.0.s8 %v5748
  %v5750 = vperm.slane %v5744, %v5749
  %v5752 = vunpack.c.l.s4 1983009808
  %v5753 = vunpack.c.0.s8 %v5752
  %v5754 = vperm.slane %v5746, %v5753
  %v5755 = vrot.slane %v4064, 4
  %v5756 = vsel %vm464, %v5755, %v4038
  %v5757 = vrot.slane %v4038, 4
  %v5758 = vsel %vm464, %v4064, %v5757
  %v5760 = vunpack.c.l.s4 1983009808
  %v5761 = vunpack.c.0.s8 %v5760
  %v5762 = vperm.slane %v5756, %v5761
  %v5764 = vunpack.c.l.s4 1983009808
  %v5765 = vunpack.c.0.s8 %v5764
  %v5766 = vperm.slane %v5758, %v5765
  %v5767 = vrot.slane %v5738, 4
  %v5768 = vsel %vm464, %v5767, %v5726
  %v5769 = vrot.slane %v5726, 4
  %v5770 = vsel %vm464, %v5738, %v5769
  %v5772 = vunpack.c.l.s4 1934713408
  %v5773 = vunpack.c.0.s8 %v5772
  %v5774 = vperm.slane %v5768, %v5773
  %v5776 = vunpack.c.l.s4 1934713408
  %v5777 = vunpack.c.0.s8 %v5776
  %v5778 = vperm.slane %v5770, %v5777
  %v5779 = vrot.slane %v5742, 4
  %v5780 = vsel %vm464, %v5779, %v5730
  %v5781 = vrot.slane %v5730, 4
  %v5782 = vsel %vm464, %v5742, %v5781
  %v5784 = vunpack.c.l.s4 1934713408
  %v5785 = vunpack.c.0.s8 %v5784
  %v5786 = vperm.slane %v5780, %v5785
  %v5788 = vunpack.c.l.s4 1934713408
  %v5789 = vunpack.c.0.s8 %v5788
  %v5790 = vperm.slane %v5782, %v5789
  %v5791 = vrot.slane %v5762, 4
  %v5792 = vsel %vm464, %v5791, %v5750
  %v5793 = vrot.slane %v5750, 4
  %v5794 = vsel %vm464, %v5762, %v5793
  %v5796 = vunpack.c.l.s4 1934713408
  %v5797 = vunpack.c.0.s8 %v5796
  %v5798 = vperm.slane %v5792, %v5797
  %v5800 = vunpack.c.l.s4 1934713408
  %v5801 = vunpack.c.0.s8 %v5800
  %v5802 = vperm.slane %v5794, %v5801
  %v5803 = vrot.slane %v5766, 4
  %v5804 = vsel %vm464, %v5803, %v5754
  %v5805 = vrot.slane %v5754, 4
  %v5806 = vsel %vm464, %v5766, %v5805
  %v5808 = vunpack.c.l.s4 1934713408
  %v5809 = vunpack.c.0.s8 %v5808
  %v5810 = vperm.slane %v5804, %v5809
  %v5812 = vunpack.c.l.s4 1934713408
  %v5813 = vunpack.c.0.s8 %v5812
  %v5814 = vperm.slane %v5806, %v5813
  %v5815 = vrot.slane %v5798, 4
  %v5816 = vsel %vm464, %v5815, %v5774
  %v5817 = vrot.slane %v5774, 4
  %v5818 = vsel %vm464, %v5798, %v5817
  %v5819 = vrot.slane %v5802, 4
  %v5820 = vsel %vm464, %v5819, %v5778
  %v5821 = vrot.slane %v5778, 4
  %v5822 = vsel %vm464, %v5802, %v5821
  %v5823 = vrot.slane %v5810, 4
  %v5824 = vsel %vm464, %v5823, %v5786
  %v5825 = vrot.slane %v5786, 4
  %v5826 = vsel %vm464, %v5810, %v5825
  %v5827 = vrot.slane %v5814, 4
  %v5828 = vsel %vm464, %v5827, %v5790
  %v5829 = vrot.slane %v5790, 4
  %v5830 = vsel %vm464, %v5814, %v5829
  %v5831 = vrot.slane %v4103, 4
  %v5832 = vsel %vm464, %v5831, %v4077
  %v5833 = vrot.slane %v4077, 4
  %v5834 = vsel %vm464, %v4103, %v5833
  %v5836 = vunpack.c.l.s4 1983009808
  %v5837 = vunpack.c.0.s8 %v5836
  %v5838 = vperm.slane %v5832, %v5837
  %v5840 = vunpack.c.l.s4 1983009808
  %v5841 = vunpack.c.0.s8 %v5840
  %v5842 = vperm.slane %v5834, %v5841
  %v5843 = vrot.slane %v4116, 4
  %v5844 = vsel %vm464, %v5843, %v4090
  %v5845 = vrot.slane %v4090, 4
  %v5846 = vsel %vm464, %v4116, %v5845
  %v5848 = vunpack.c.l.s4 1983009808
  %v5849 = vunpack.c.0.s8 %v5848
  %v5850 = vperm.slane %v5844, %v5849
  %v5852 = vunpack.c.l.s4 1983009808
  %v5853 = vunpack.c.0.s8 %v5852
  %v5854 = vperm.slane %v5846, %v5853
  %v5855 = vrot.slane %v4155, 4
  %v5856 = vsel %vm464, %v5855, %v4129
  %v5857 = vrot.slane %v4129, 4
  %v5858 = vsel %vm464, %v4155, %v5857
  %v5860 = vunpack.c.l.s4 1983009808
  %v5861 = vunpack.c.0.s8 %v5860
  %v5862 = vperm.slane %v5856, %v5861
  %v5864 = vunpack.c.l.s4 1983009808
  %v5865 = vunpack.c.0.s8 %v5864
  %v5866 = vperm.slane %v5858, %v5865
  %v5867 = vrot.slane %v4168, 4
  %v5868 = vsel %vm464, %v5867, %v4142
  %v5869 = vrot.slane %v4142, 4
  %v5870 = vsel %vm464, %v4168, %v5869
  %v5872 = vunpack.c.l.s4 1983009808
  %v5873 = vunpack.c.0.s8 %v5872
  %v5874 = vperm.slane %v5868, %v5873
  %v5876 = vunpack.c.l.s4 1983009808
  %v5877 = vunpack.c.0.s8 %v5876
  %v5878 = vperm.slane %v5870, %v5877
  %v5879 = vrot.slane %v5850, 4
  %v5880 = vsel %vm464, %v5879, %v5838
  %v5881 = vrot.slane %v5838, 4
  %v5882 = vsel %vm464, %v5850, %v5881
  %v5884 = vunpack.c.l.s4 1934713408
  %v5885 = vunpack.c.0.s8 %v5884
  %v5886 = vperm.slane %v5880, %v5885
  %v5888 = vunpack.c.l.s4 1934713408
  %v5889 = vunpack.c.0.s8 %v5888
  %v5890 = vperm.slane %v5882, %v5889
  %v5891 = vrot.slane %v5854, 4
  %v5892 = vsel %vm464, %v5891, %v5842
  %v5893 = vrot.slane %v5842, 4
  %v5894 = vsel %vm464, %v5854, %v5893
  %v5896 = vunpack.c.l.s4 1934713408
  %v5897 = vunpack.c.0.s8 %v5896
  %v5898 = vperm.slane %v5892, %v5897
  %v5900 = vunpack.c.l.s4 1934713408
  %v5901 = vunpack.c.0.s8 %v5900
  %v5902 = vperm.slane %v5894, %v5901
  %v5903 = vrot.slane %v5874, 4
  %v5904 = vsel %vm464, %v5903, %v5862
  %v5905 = vrot.slane %v5862, 4
  %v5906 = vsel %vm464, %v5874, %v5905
  %v5908 = vunpack.c.l.s4 1934713408
  %v5909 = vunpack.c.0.s8 %v5908
  %v5910 = vperm.slane %v5904, %v5909
  %v5912 = vunpack.c.l.s4 1934713408
  %v5913 = vunpack.c.0.s8 %v5912
  %v5914 = vperm.slane %v5906, %v5913
  %v5915 = vrot.slane %v5878, 4
  %v5916 = vsel %vm464, %v5915, %v5866
  %v5917 = vrot.slane %v5866, 4
  %v5918 = vsel %vm464, %v5878, %v5917
  %v5920 = vunpack.c.l.s4 1934713408
  %v5921 = vunpack.c.0.s8 %v5920
  %v5922 = vperm.slane %v5916, %v5921
  %v5924 = vunpack.c.l.s4 1934713408
  %v5925 = vunpack.c.0.s8 %v5924
  %v5926 = vperm.slane %v5918, %v5925
  %v5927 = vrot.slane %v5910, 4
  %v5928 = vsel %vm464, %v5927, %v5886
  %v5929 = vrot.slane %v5886, 4
  %v5930 = vsel %vm464, %v5910, %v5929
  %v5931 = vrot.slane %v5914, 4
  %v5932 = vsel %vm464, %v5931, %v5890
  %v5933 = vrot.slane %v5890, 4
  %v5934 = vsel %vm464, %v5914, %v5933
  %v5935 = vrot.slane %v5922, 4
  %v5936 = vsel %vm464, %v5935, %v5898
  %v5937 = vrot.slane %v5898, 4
  %v5938 = vsel %vm464, %v5922, %v5937
  %v5939 = vrot.slane %v5926, 4
  %v5940 = vsel %vm464, %v5939, %v5902
  %v5941 = vrot.slane %v5902, 4
  %v5942 = vsel %vm464, %v5926, %v5941
  %v5943 = vrot.slane %v4207, 4
  %v5944 = vsel %vm464, %v5943, %v4181
  %v5945 = vrot.slane %v4181, 4
  %v5946 = vsel %vm464, %v4207, %v5945
  %v5948 = vunpack.c.l.s4 1983009808
  %v5949 = vunpack.c.0.s8 %v5948
  %v5950 = vperm.slane %v5944, %v5949
  %v5952 = vunpack.c.l.s4 1983009808
  %v5953 = vunpack.c.0.s8 %v5952
  %v5954 = vperm.slane %v5946, %v5953
  %v5955 = vrot.slane %v4220, 4
  %v5956 = vsel %vm464, %v5955, %v4194
  %v5957 = vrot.slane %v4194, 4
  %v5958 = vsel %vm464, %v4220, %v5957
  %v5960 = vunpack.c.l.s4 1983009808
  %v5961 = vunpack.c.0.s8 %v5960
  %v5962 = vperm.slane %v5956, %v5961
  %v5964 = vunpack.c.l.s4 1983009808
  %v5965 = vunpack.c.0.s8 %v5964
  %v5966 = vperm.slane %v5958, %v5965
  %v5967 = vrot.slane %v4259, 4
  %v5968 = vsel %vm464, %v5967, %v4233
  %v5969 = vrot.slane %v4233, 4
  %v5970 = vsel %vm464, %v4259, %v5969
  %v5972 = vunpack.c.l.s4 1983009808
  %v5973 = vunpack.c.0.s8 %v5972
  %v5974 = vperm.slane %v5968, %v5973
  %v5976 = vunpack.c.l.s4 1983009808
  %v5977 = vunpack.c.0.s8 %v5976
  %v5978 = vperm.slane %v5970, %v5977
  %v5979 = vrot.slane %v4272, 4
  %v5980 = vsel %vm464, %v5979, %v4246
  %v5981 = vrot.slane %v4246, 4
  %v5982 = vsel %vm464, %v4272, %v5981
  %v5984 = vunpack.c.l.s4 1983009808
  %v5985 = vunpack.c.0.s8 %v5984
  %v5986 = vperm.slane %v5980, %v5985
  %v5988 = vunpack.c.l.s4 1983009808
  %v5989 = vunpack.c.0.s8 %v5988
  %v5990 = vperm.slane %v5982, %v5989
  %v5991 = vrot.slane %v5962, 4
  %v5992 = vsel %vm464, %v5991, %v5950
  %v5993 = vrot.slane %v5950, 4
  %v5994 = vsel %vm464, %v5962, %v5993
  %v5996 = vunpack.c.l.s4 1934713408
  %v5997 = vunpack.c.0.s8 %v5996
  %v5998 = vperm.slane %v5992, %v5997
  %v6000 = vunpack.c.l.s4 1934713408
  %v6001 = vunpack.c.0.s8 %v6000
  %v6002 = vperm.slane %v5994, %v6001
  %v6003 = vrot.slane %v5966, 4
  %v6004 = vsel %vm464, %v6003, %v5954
  %v6005 = vrot.slane %v5954, 4
  %v6006 = vsel %vm464, %v5966, %v6005
  %v6008 = vunpack.c.l.s4 1934713408
  %v6009 = vunpack.c.0.s8 %v6008
  %v6010 = vperm.slane %v6004, %v6009
  %v6012 = vunpack.c.l.s4 1934713408
  %v6013 = vunpack.c.0.s8 %v6012
  %v6014 = vperm.slane %v6006, %v6013
  %v6015 = vrot.slane %v5986, 4
  %v6016 = vsel %vm464, %v6015, %v5974
  %v6017 = vrot.slane %v5974, 4
  %v6018 = vsel %vm464, %v5986, %v6017
  %v6020 = vunpack.c.l.s4 1934713408
  %v6021 = vunpack.c.0.s8 %v6020
  %v6022 = vperm.slane %v6016, %v6021
  %v6024 = vunpack.c.l.s4 1934713408
  %v6025 = vunpack.c.0.s8 %v6024
  %v6026 = vperm.slane %v6018, %v6025
  %v6027 = vrot.slane %v5990, 4
  %v6028 = vsel %vm464, %v6027, %v5978
  %v6029 = vrot.slane %v5978, 4
  %v6030 = vsel %vm464, %v5990, %v6029
  %v6032 = vunpack.c.l.s4 1934713408
  %v6033 = vunpack.c.0.s8 %v6032
  %v6034 = vperm.slane %v6028, %v6033
  %v6036 = vunpack.c.l.s4 1934713408
  %v6037 = vunpack.c.0.s8 %v6036
  %v6038 = vperm.slane %v6030, %v6037
  %v6039 = vrot.slane %v6022, 4
  %v6040 = vsel %vm464, %v6039, %v5998
  %v6041 = vrot.slane %v5998, 4
  %v6042 = vsel %vm464, %v6022, %v6041
  %v6043 = vrot.slane %v6026, 4
  %v6044 = vsel %vm464, %v6043, %v6002
  %v6045 = vrot.slane %v6002, 4
  %v6046 = vsel %vm464, %v6026, %v6045
  %v6047 = vrot.slane %v6034, 4
  %v6048 = vsel %vm464, %v6047, %v6010
  %v6049 = vrot.slane %v6010, 4
  %v6050 = vsel %vm464, %v6034, %v6049
  %v6051 = vrot.slane %v6038, 4
  %v6052 = vsel %vm464, %v6051, %v6014
  %v6053 = vrot.slane %v6014, 4
  %v6054 = vsel %vm464, %v6038, %v6053
  %v6055 = vrot.slane %v4311, 4
  %v6056 = vsel %vm464, %v6055, %v4285
  %v6057 = vrot.slane %v4285, 4
  %v6058 = vsel %vm464, %v4311, %v6057
  %v6060 = vunpack.c.l.s4 1983009808
  %v6061 = vunpack.c.0.s8 %v6060
  %v6062 = vperm.slane %v6056, %v6061
  %v6064 = vunpack.c.l.s4 1983009808
  %v6065 = vunpack.c.0.s8 %v6064
  %v6066 = vperm.slane %v6058, %v6065
  %v6067 = vrot.slane %v4324, 4
  %v6068 = vsel %vm464, %v6067, %v4298
  %v6069 = vrot.slane %v4298, 4
  %v6070 = vsel %vm464, %v4324, %v6069
  %v6072 = vunpack.c.l.s4 1983009808
  %v6073 = vunpack.c.0.s8 %v6072
  %v6074 = vperm.slane %v6068, %v6073
  %v6076 = vunpack.c.l.s4 1983009808
  %v6077 = vunpack.c.0.s8 %v6076
  %v6078 = vperm.slane %v6070, %v6077
  %v6079 = vrot.slane %v4363, 4
  %v6080 = vsel %vm464, %v6079, %v4337
  %v6081 = vrot.slane %v4337, 4
  %v6082 = vsel %vm464, %v4363, %v6081
  %v6084 = vunpack.c.l.s4 1983009808
  %v6085 = vunpack.c.0.s8 %v6084
  %v6086 = vperm.slane %v6080, %v6085
  %v6088 = vunpack.c.l.s4 1983009808
  %v6089 = vunpack.c.0.s8 %v6088
  %v6090 = vperm.slane %v6082, %v6089
  %v6091 = vrot.slane %v4376, 4
  %v6092 = vsel %vm464, %v6091, %v4350
  %v6093 = vrot.slane %v4350, 4
  %v6094 = vsel %vm464, %v4376, %v6093
  %v6096 = vunpack.c.l.s4 1983009808
  %v6097 = vunpack.c.0.s8 %v6096
  %v6098 = vperm.slane %v6092, %v6097
  %v6100 = vunpack.c.l.s4 1983009808
  %v6101 = vunpack.c.0.s8 %v6100
  %v6102 = vperm.slane %v6094, %v6101
  %v6103 = vrot.slane %v6074, 4
  %v6104 = vsel %vm464, %v6103, %v6062
  %v6105 = vrot.slane %v6062, 4
  %v6106 = vsel %vm464, %v6074, %v6105
  %v6108 = vunpack.c.l.s4 1934713408
  %v6109 = vunpack.c.0.s8 %v6108
  %v6110 = vperm.slane %v6104, %v6109
  %v6112 = vunpack.c.l.s4 1934713408
  %v6113 = vunpack.c.0.s8 %v6112
  %v6114 = vperm.slane %v6106, %v6113
  %v6115 = vrot.slane %v6078, 4
  %v6116 = vsel %vm464, %v6115, %v6066
  %v6117 = vrot.slane %v6066, 4
  %v6118 = vsel %vm464, %v6078, %v6117
  %v6120 = vunpack.c.l.s4 1934713408
  %v6121 = vunpack.c.0.s8 %v6120
  %v6122 = vperm.slane %v6116, %v6121
  %v6124 = vunpack.c.l.s4 1934713408
  %v6125 = vunpack.c.0.s8 %v6124
  %v6126 = vperm.slane %v6118, %v6125
  %v6127 = vrot.slane %v6098, 4
  %v6128 = vsel %vm464, %v6127, %v6086
  %v6129 = vrot.slane %v6086, 4
  %v6130 = vsel %vm464, %v6098, %v6129
  %v6132 = vunpack.c.l.s4 1934713408
  %v6133 = vunpack.c.0.s8 %v6132
  %v6134 = vperm.slane %v6128, %v6133
  %v6136 = vunpack.c.l.s4 1934713408
  %v6137 = vunpack.c.0.s8 %v6136
  %v6138 = vperm.slane %v6130, %v6137
  %v6139 = vrot.slane %v6102, 4
  %v6140 = vsel %vm464, %v6139, %v6090
  %v6141 = vrot.slane %v6090, 4
  %v6142 = vsel %vm464, %v6102, %v6141
  %v6144 = vunpack.c.l.s4 1934713408
  %v6145 = vunpack.c.0.s8 %v6144
  %v6146 = vperm.slane %v6140, %v6145
  %v6148 = vunpack.c.l.s4 1934713408
  %v6149 = vunpack.c.0.s8 %v6148
  %v6150 = vperm.slane %v6142, %v6149
  %v6151 = vrot.slane %v6134, 4
  %v6152 = vsel %vm464, %v6151, %v6110
  %v6153 = vrot.slane %v6110, 4
  %v6154 = vsel %vm464, %v6134, %v6153
  %v6155 = vrot.slane %v6138, 4
  %v6156 = vsel %vm464, %v6155, %v6114
  %v6157 = vrot.slane %v6114, 4
  %v6158 = vsel %vm464, %v6138, %v6157
  %v6159 = vrot.slane %v6146, 4
  %v6160 = vsel %vm464, %v6159, %v6122
  %v6161 = vrot.slane %v6122, 4
  %v6162 = vsel %vm464, %v6146, %v6161
  %v6163 = vrot.slane %v6150, 4
  %v6164 = vsel %vm464, %v6163, %v6126
  %v6165 = vrot.slane %v6126, 4
  %v6166 = vsel %vm464, %v6150, %v6165
  %v6167 = vrot.slane %v4415, 4
  %v6168 = vsel %vm464, %v6167, %v4389
  %v6169 = vrot.slane %v4389, 4
  %v6170 = vsel %vm464, %v4415, %v6169
  %v6172 = vunpack.c.l.s4 1983009808
  %v6173 = vunpack.c.0.s8 %v6172
  %v6174 = vperm.slane %v6168, %v6173
  %v6176 = vunpack.c.l.s4 1983009808
  %v6177 = vunpack.c.0.s8 %v6176
  %v6178 = vperm.slane %v6170, %v6177
  %v6179 = vrot.slane %v4428, 4
  %v6180 = vsel %vm464, %v6179, %v4402
  %v6181 = vrot.slane %v4402, 4
  %v6182 = vsel %vm464, %v4428, %v6181
  %v6184 = vunpack.c.l.s4 1983009808
  %v6185 = vunpack.c.0.s8 %v6184
  %v6186 = vperm.slane %v6180, %v6185
  %v6188 = vunpack.c.l.s4 1983009808
  %v6189 = vunpack.c.0.s8 %v6188
  %v6190 = vperm.slane %v6182, %v6189
  %v6191 = vrot.slane %v4467, 4
  %v6192 = vsel %vm464, %v6191, %v4441
  %v6193 = vrot.slane %v4441, 4
  %v6194 = vsel %vm464, %v4467, %v6193
  %v6196 = vunpack.c.l.s4 1983009808
  %v6197 = vunpack.c.0.s8 %v6196
  %v6198 = vperm.slane %v6192, %v6197
  %v6200 = vunpack.c.l.s4 1983009808
  %v6201 = vunpack.c.0.s8 %v6200
  %v6202 = vperm.slane %v6194, %v6201
  %v6203 = vrot.slane %v4480, 4
  %v6204 = vsel %vm464, %v6203, %v4454
  %v6205 = vrot.slane %v4454, 4
  %v6206 = vsel %vm464, %v4480, %v6205
  %v6208 = vunpack.c.l.s4 1983009808
  %v6209 = vunpack.c.0.s8 %v6208
  %v6210 = vperm.slane %v6204, %v6209
  %v6212 = vunpack.c.l.s4 1983009808
  %v6213 = vunpack.c.0.s8 %v6212
  %v6214 = vperm.slane %v6206, %v6213
  %v6215 = vrot.slane %v6186, 4
  %v6216 = vsel %vm464, %v6215, %v6174
  %v6217 = vrot.slane %v6174, 4
  %v6218 = vsel %vm464, %v6186, %v6217
  %v6220 = vunpack.c.l.s4 1934713408
  %v6221 = vunpack.c.0.s8 %v6220
  %v6222 = vperm.slane %v6216, %v6221
  %v6224 = vunpack.c.l.s4 1934713408
  %v6225 = vunpack.c.0.s8 %v6224
  %v6226 = vperm.slane %v6218, %v6225
  %v6227 = vrot.slane %v6190, 4
  %v6228 = vsel %vm464, %v6227, %v6178
  %v6229 = vrot.slane %v6178, 4
  %v6230 = vsel %vm464, %v6190, %v6229
  %v6232 = vunpack.c.l.s4 1934713408
  %v6233 = vunpack.c.0.s8 %v6232
  %v6234 = vperm.slane %v6228, %v6233
  %v6236 = vunpack.c.l.s4 1934713408
  %v6237 = vunpack.c.0.s8 %v6236
  %v6238 = vperm.slane %v6230, %v6237
  %v6239 = vrot.slane %v6210, 4
  %v6240 = vsel %vm464, %v6239, %v6198
  %v6241 = vrot.slane %v6198, 4
  %v6242 = vsel %vm464, %v6210, %v6241
  %v6244 = vunpack.c.l.s4 1934713408
  %v6245 = vunpack.c.0.s8 %v6244
  %v6246 = vperm.slane %v6240, %v6245
  %v6248 = vunpack.c.l.s4 1934713408
  %v6249 = vunpack.c.0.s8 %v6248
  %v6250 = vperm.slane %v6242, %v6249
  %v6251 = vrot.slane %v6214, 4
  %v6252 = vsel %vm464, %v6251, %v6202
  %v6253 = vrot.slane %v6202, 4
  %v6254 = vsel %vm464, %v6214, %v6253
  %v6256 = vunpack.c.l.s4 1934713408
  %v6257 = vunpack.c.0.s8 %v6256
  %v6258 = vperm.slane %v6252, %v6257
  %v6260 = vunpack.c.l.s4 1934713408
  %v6261 = vunpack.c.0.s8 %v6260
  %v6262 = vperm.slane %v6254, %v6261
  %v6263 = vrot.slane %v6246, 4
  %v6264 = vsel %vm464, %v6263, %v6222
  %v6265 = vrot.slane %v6222, 4
  %v6266 = vsel %vm464, %v6246, %v6265
  %v6267 = vrot.slane %v6250, 4
  %v6268 = vsel %vm464, %v6267, %v6226
  %v6269 = vrot.slane %v6226, 4
  %v6270 = vsel %vm464, %v6250, %v6269
  %v6271 = vrot.slane %v6258, 4
  %v6272 = vsel %vm464, %v6271, %v6234
  %v6273 = vrot.slane %v6234, 4
  %v6274 = vsel %vm464, %v6258, %v6273
  %v6275 = vrot.slane %v6262, 4
  %v6276 = vsel %vm464, %v6275, %v6238
  %v6277 = vrot.slane %v6238, 4
  %v6278 = vsel %vm464, %v6262, %v6277
  %v6279 = vrot.slane %v2861, 4
  %v6280 = vsel %vm464, %v6279, %v2835
  %v6281 = vrot.slane %v2835, 4
  %v6282 = vsel %vm464, %v2861, %v6281
  %v6284 = vunpack.c.l.s4 1983009808
  %v6285 = vunpack.c.0.s8 %v6284
  %v6286 = vperm.slane %v6280, %v6285
  %v6288 = vunpack.c.l.s4 1983009808
  %v6289 = vunpack.c.0.s8 %v6288
  %v6290 = vperm.slane %v6282, %v6289
  %v6291 = vrot.slane %v2874, 4
  %v6292 = vsel %vm464, %v6291, %v2848
  %v6293 = vrot.slane %v2848, 4
  %v6294 = vsel %vm464, %v2874, %v6293
  %v6296 = vunpack.c.l.s4 1983009808
  %v6297 = vunpack.c.0.s8 %v6296
  %v6298 = vperm.slane %v6292, %v6297
  %v6300 = vunpack.c.l.s4 1983009808
  %v6301 = vunpack.c.0.s8 %v6300
  %v6302 = vperm.slane %v6294, %v6301
  %v6303 = vrot.slane %v2913, 4
  %v6304 = vsel %vm464, %v6303, %v2887
  %v6305 = vrot.slane %v2887, 4
  %v6306 = vsel %vm464, %v2913, %v6305
  %v6308 = vunpack.c.l.s4 1983009808
  %v6309 = vunpack.c.0.s8 %v6308
  %v6310 = vperm.slane %v6304, %v6309
  %v6312 = vunpack.c.l.s4 1983009808
  %v6313 = vunpack.c.0.s8 %v6312
  %v6314 = vperm.slane %v6306, %v6313
  %v6315 = vrot.slane %v2926, 4
  %v6316 = vsel %vm464, %v6315, %v2900
  %v6317 = vrot.slane %v2900, 4
  %v6318 = vsel %vm464, %v2926, %v6317
  %v6320 = vunpack.c.l.s4 1983009808
  %v6321 = vunpack.c.0.s8 %v6320
  %v6322 = vperm.slane %v6316, %v6321
  %v6324 = vunpack.c.l.s4 1983009808
  %v6325 = vunpack.c.0.s8 %v6324
  %v6326 = vperm.slane %v6318, %v6325
  %v6327 = vrot.slane %v6298, 4
  %v6328 = vsel %vm464, %v6327, %v6286
  %v6329 = vrot.slane %v6286, 4
  %v6330 = vsel %vm464, %v6298, %v6329
  %v6332 = vunpack.c.l.s4 1934713408
  %v6333 = vunpack.c.0.s8 %v6332
  %v6334 = vperm.slane %v6328, %v6333
  %v6336 = vunpack.c.l.s4 1934713408
  %v6337 = vunpack.c.0.s8 %v6336
  %v6338 = vperm.slane %v6330, %v6337
  %v6339 = vrot.slane %v6302, 4
  %v6340 = vsel %vm464, %v6339, %v6290
  %v6341 = vrot.slane %v6290, 4
  %v6342 = vsel %vm464, %v6302, %v6341
  %v6344 = vunpack.c.l.s4 1934713408
  %v6345 = vunpack.c.0.s8 %v6344
  %v6346 = vperm.slane %v6340, %v6345
  %v6348 = vunpack.c.l.s4 1934713408
  %v6349 = vunpack.c.0.s8 %v6348
  %v6350 = vperm.slane %v6342, %v6349
  %v6351 = vrot.slane %v6322, 4
  %v6352 = vsel %vm464, %v6351, %v6310
  %v6353 = vrot.slane %v6310, 4
  %v6354 = vsel %vm464, %v6322, %v6353
  %v6356 = vunpack.c.l.s4 1934713408
  %v6357 = vunpack.c.0.s8 %v6356
  %v6358 = vperm.slane %v6352, %v6357
  %v6360 = vunpack.c.l.s4 1934713408
  %v6361 = vunpack.c.0.s8 %v6360
  %v6362 = vperm.slane %v6354, %v6361
  %v6363 = vrot.slane %v6326, 4
  %v6364 = vsel %vm464, %v6363, %v6314
  %v6365 = vrot.slane %v6314, 4
  %v6366 = vsel %vm464, %v6326, %v6365
  %v6368 = vunpack.c.l.s4 1934713408
  %v6369 = vunpack.c.0.s8 %v6368
  %v6370 = vperm.slane %v6364, %v6369
  %v6372 = vunpack.c.l.s4 1934713408
  %v6373 = vunpack.c.0.s8 %v6372
  %v6374 = vperm.slane %v6366, %v6373
  %v6375 = vrot.slane %v6358, 4
  %v6376 = vsel %vm464, %v6375, %v6334
  %v6377 = vrot.slane %v6334, 4
  %v6378 = vsel %vm464, %v6358, %v6377
  %v6379 = vrot.slane %v6362, 4
  %v6380 = vsel %vm464, %v6379, %v6338
  %v6381 = vrot.slane %v6338, 4
  %v6382 = vsel %vm464, %v6362, %v6381
  %v6383 = vrot.slane %v6370, 4
  %v6384 = vsel %vm464, %v6383, %v6346
  %v6385 = vrot.slane %v6346, 4
  %v6386 = vsel %vm464, %v6370, %v6385
  %v6387 = vrot.slane %v6374, 4
  %v6388 = vsel %vm464, %v6387, %v6350
  %v6389 = vrot.slane %v6350, 4
  %v6390 = vsel %vm464, %v6374, %v6389
  %v6391 = vrot.slane %v2965, 4
  %v6392 = vsel %vm464, %v6391, %v2939
  %v6393 = vrot.slane %v2939, 4
  %v6394 = vsel %vm464, %v2965, %v6393
  %v6396 = vunpack.c.l.s4 1983009808
  %v6397 = vunpack.c.0.s8 %v6396
  %v6398 = vperm.slane %v6392, %v6397
  %v6400 = vunpack.c.l.s4 1983009808
  %v6401 = vunpack.c.0.s8 %v6400
  %v6402 = vperm.slane %v6394, %v6401
  %v6403 = vrot.slane %v2978, 4
  %v6404 = vsel %vm464, %v6403, %v2952
  %v6405 = vrot.slane %v2952, 4
  %v6406 = vsel %vm464, %v2978, %v6405
  %v6408 = vunpack.c.l.s4 1983009808
  %v6409 = vunpack.c.0.s8 %v6408
  %v6410 = vperm.slane %v6404, %v6409
  %v6412 = vunpack.c.l.s4 1983009808
  %v6413 = vunpack.c.0.s8 %v6412
  %v6414 = vperm.slane %v6406, %v6413
  %v6415 = vrot.slane %v3017, 4
  %v6416 = vsel %vm464, %v6415, %v2991
  %v6417 = vrot.slane %v2991, 4
  %v6418 = vsel %vm464, %v3017, %v6417
  %v6420 = vunpack.c.l.s4 1983009808
  %v6421 = vunpack.c.0.s8 %v6420
  %v6422 = vperm.slane %v6416, %v6421
  %v6424 = vunpack.c.l.s4 1983009808
  %v6425 = vunpack.c.0.s8 %v6424
  %v6426 = vperm.slane %v6418, %v6425
  %v6427 = vrot.slane %v3030, 4
  %v6428 = vsel %vm464, %v6427, %v3004
  %v6429 = vrot.slane %v3004, 4
  %v6430 = vsel %vm464, %v3030, %v6429
  %v6432 = vunpack.c.l.s4 1983009808
  %v6433 = vunpack.c.0.s8 %v6432
  %v6434 = vperm.slane %v6428, %v6433
  %v6436 = vunpack.c.l.s4 1983009808
  %v6437 = vunpack.c.0.s8 %v6436
  %v6438 = vperm.slane %v6430, %v6437
  %v6439 = vrot.slane %v6410, 4
  %v6440 = vsel %vm464, %v6439, %v6398
  %v6441 = vrot.slane %v6398, 4
  %v6442 = vsel %vm464, %v6410, %v6441
  %v6444 = vunpack.c.l.s4 1934713408
  %v6445 = vunpack.c.0.s8 %v6444
  %v6446 = vperm.slane %v6440, %v6445
  %v6448 = vunpack.c.l.s4 1934713408
  %v6449 = vunpack.c.0.s8 %v6448
  %v6450 = vperm.slane %v6442, %v6449
  %v6451 = vrot.slane %v6414, 4
  %v6452 = vsel %vm464, %v6451, %v6402
  %v6453 = vrot.slane %v6402, 4
  %v6454 = vsel %vm464, %v6414, %v6453
  %v6456 = vunpack.c.l.s4 1934713408
  %v6457 = vunpack.c.0.s8 %v6456
  %v6458 = vperm.slane %v6452, %v6457
  %v6460 = vunpack.c.l.s4 1934713408
  %v6461 = vunpack.c.0.s8 %v6460
  %v6462 = vperm.slane %v6454, %v6461
  %v6463 = vrot.slane %v6434, 4
  %v6464 = vsel %vm464, %v6463, %v6422
  %v6465 = vrot.slane %v6422, 4
  %v6466 = vsel %vm464, %v6434, %v6465
  %v6468 = vunpack.c.l.s4 1934713408
  %v6469 = vunpack.c.0.s8 %v6468
  %v6470 = vperm.slane %v6464, %v6469
  %v6472 = vunpack.c.l.s4 1934713408
  %v6473 = vunpack.c.0.s8 %v6472
  %v6474 = vperm.slane %v6466, %v6473
  %v6475 = vrot.slane %v6438, 4
  %v6476 = vsel %vm464, %v6475, %v6426
  %v6477 = vrot.slane %v6426, 4
  %v6478 = vsel %vm464, %v6438, %v6477
  %v6480 = vunpack.c.l.s4 1934713408
  %v6481 = vunpack.c.0.s8 %v6480
  %v6482 = vperm.slane %v6476, %v6481
  %v6484 = vunpack.c.l.s4 1934713408
  %v6485 = vunpack.c.0.s8 %v6484
  %v6486 = vperm.slane %v6478, %v6485
  %v6487 = vrot.slane %v6470, 4
  %v6488 = vsel %vm464, %v6487, %v6446
  %v6489 = vrot.slane %v6446, 4
  %v6490 = vsel %vm464, %v6470, %v6489
  %v6491 = vrot.slane %v6474, 4
  %v6492 = vsel %vm464, %v6491, %v6450
  %v6493 = vrot.slane %v6450, 4
  %v6494 = vsel %vm464, %v6474, %v6493
  %v6495 = vrot.slane %v6482, 4
  %v6496 = vsel %vm464, %v6495, %v6458
  %v6497 = vrot.slane %v6458, 4
  %v6498 = vsel %vm464, %v6482, %v6497
  %v6499 = vrot.slane %v6486, 4
  %v6500 = vsel %vm464, %v6499, %v6462
  %v6501 = vrot.slane %v6462, 4
  %v6502 = vsel %vm464, %v6486, %v6501
  %v6503 = vrot.slane %v3069, 4
  %v6504 = vsel %vm464, %v6503, %v3043
  %v6505 = vrot.slane %v3043, 4
  %v6506 = vsel %vm464, %v3069, %v6505
  %v6508 = vunpack.c.l.s4 1983009808
  %v6509 = vunpack.c.0.s8 %v6508
  %v6510 = vperm.slane %v6504, %v6509
  %v6512 = vunpack.c.l.s4 1983009808
  %v6513 = vunpack.c.0.s8 %v6512
  %v6514 = vperm.slane %v6506, %v6513
  %v6515 = vrot.slane %v3082, 4
  %v6516 = vsel %vm464, %v6515, %v3056
  %v6517 = vrot.slane %v3056, 4
  %v6518 = vsel %vm464, %v3082, %v6517
  %v6520 = vunpack.c.l.s4 1983009808
  %v6521 = vunpack.c.0.s8 %v6520
  %v6522 = vperm.slane %v6516, %v6521
  %v6524 = vunpack.c.l.s4 1983009808
  %v6525 = vunpack.c.0.s8 %v6524
  %v6526 = vperm.slane %v6518, %v6525
  %v6527 = vrot.slane %v3121, 4
  %v6528 = vsel %vm464, %v6527, %v3095
  %v6529 = vrot.slane %v3095, 4
  %v6530 = vsel %vm464, %v3121, %v6529
  %v6532 = vunpack.c.l.s4 1983009808
  %v6533 = vunpack.c.0.s8 %v6532
  %v6534 = vperm.slane %v6528, %v6533
  %v6536 = vunpack.c.l.s4 1983009808
  %v6537 = vunpack.c.0.s8 %v6536
  %v6538 = vperm.slane %v6530, %v6537
  %v6539 = vrot.slane %v3134, 4
  %v6540 = vsel %vm464, %v6539, %v3108
  %v6541 = vrot.slane %v3108, 4
  %v6542 = vsel %vm464, %v3134, %v6541
  %v6544 = vunpack.c.l.s4 1983009808
  %v6545 = vunpack.c.0.s8 %v6544
  %v6546 = vperm.slane %v6540, %v6545
  %v6548 = vunpack.c.l.s4 1983009808
  %v6549 = vunpack.c.0.s8 %v6548
  %v6550 = vperm.slane %v6542, %v6549
  %v6551 = vrot.slane %v6522, 4
  %v6552 = vsel %vm464, %v6551, %v6510
  %v6553 = vrot.slane %v6510, 4
  %v6554 = vsel %vm464, %v6522, %v6553
  %v6556 = vunpack.c.l.s4 1934713408
  %v6557 = vunpack.c.0.s8 %v6556
  %v6558 = vperm.slane %v6552, %v6557
  %v6560 = vunpack.c.l.s4 1934713408
  %v6561 = vunpack.c.0.s8 %v6560
  %v6562 = vperm.slane %v6554, %v6561
  %v6563 = vrot.slane %v6526, 4
  %v6564 = vsel %vm464, %v6563, %v6514
  %v6565 = vrot.slane %v6514, 4
  %v6566 = vsel %vm464, %v6526, %v6565
  %v6568 = vunpack.c.l.s4 1934713408
  %v6569 = vunpack.c.0.s8 %v6568
  %v6570 = vperm.slane %v6564, %v6569
  %v6572 = vunpack.c.l.s4 1934713408
  %v6573 = vunpack.c.0.s8 %v6572
  %v6574 = vperm.slane %v6566, %v6573
  %v6575 = vrot.slane %v6546, 4
  %v6576 = vsel %vm464, %v6575, %v6534
  %v6577 = vrot.slane %v6534, 4
  %v6578 = vsel %vm464, %v6546, %v6577
  %v6580 = vunpack.c.l.s4 1934713408
  %v6581 = vunpack.c.0.s8 %v6580
  %v6582 = vperm.slane %v6576, %v6581
  %v6584 = vunpack.c.l.s4 1934713408
  %v6585 = vunpack.c.0.s8 %v6584
  %v6586 = vperm.slane %v6578, %v6585
  %v6587 = vrot.slane %v6550, 4
  %v6588 = vsel %vm464, %v6587, %v6538
  %v6589 = vrot.slane %v6538, 4
  %v6590 = vsel %vm464, %v6550, %v6589
  %v6592 = vunpack.c.l.s4 1934713408
  %v6593 = vunpack.c.0.s8 %v6592
  %v6594 = vperm.slane %v6588, %v6593
  %v6596 = vunpack.c.l.s4 1934713408
  %v6597 = vunpack.c.0.s8 %v6596
  %v6598 = vperm.slane %v6590, %v6597
  %v6599 = vrot.slane %v6582, 4
  %v6600 = vsel %vm464, %v6599, %v6558
  %v6601 = vrot.slane %v6558, 4
  %v6602 = vsel %vm464, %v6582, %v6601
  %v6603 = vrot.slane %v6586, 4
  %v6604 = vsel %vm464, %v6603, %v6562
  %v6605 = vrot.slane %v6562, 4
  %v6606 = vsel %vm464, %v6586, %v6605
  %v6607 = vrot.slane %v6594, 4
  %v6608 = vsel %vm464, %v6607, %v6570
  %v6609 = vrot.slane %v6570, 4
  %v6610 = vsel %vm464, %v6594, %v6609
  %v6611 = vrot.slane %v6598, 4
  %v6612 = vsel %vm464, %v6611, %v6574
  %v6613 = vrot.slane %v6574, 4
  %v6614 = vsel %vm464, %v6598, %v6613
  %v6615 = vrot.slane %v3173, 4
  %v6616 = vsel %vm464, %v6615, %v3147
  %v6617 = vrot.slane %v3147, 4
  %v6618 = vsel %vm464, %v3173, %v6617
  %v6620 = vunpack.c.l.s4 1983009808
  %v6621 = vunpack.c.0.s8 %v6620
  %v6622 = vperm.slane %v6616, %v6621
  %v6624 = vunpack.c.l.s4 1983009808
  %v6625 = vunpack.c.0.s8 %v6624
  %v6626 = vperm.slane %v6618, %v6625
  %v6627 = vrot.slane %v3186, 4
  %v6628 = vsel %vm464, %v6627, %v3160
  %v6629 = vrot.slane %v3160, 4
  %v6630 = vsel %vm464, %v3186, %v6629
  %v6632 = vunpack.c.l.s4 1983009808
  %v6633 = vunpack.c.0.s8 %v6632
  %v6634 = vperm.slane %v6628, %v6633
  %v6636 = vunpack.c.l.s4 1983009808
  %v6637 = vunpack.c.0.s8 %v6636
  %v6638 = vperm.slane %v6630, %v6637
  %v6639 = vrot.slane %v3225, 4
  %v6640 = vsel %vm464, %v6639, %v3199
  %v6641 = vrot.slane %v3199, 4
  %v6642 = vsel %vm464, %v3225, %v6641
  %v6644 = vunpack.c.l.s4 1983009808
  %v6645 = vunpack.c.0.s8 %v6644
  %v6646 = vperm.slane %v6640, %v6645
  %v6648 = vunpack.c.l.s4 1983009808
  %v6649 = vunpack.c.0.s8 %v6648
  %v6650 = vperm.slane %v6642, %v6649
  %v6651 = vrot.slane %v3238, 4
  %v6652 = vsel %vm464, %v6651, %v3212
  %v6653 = vrot.slane %v3212, 4
  %v6654 = vsel %vm464, %v3238, %v6653
  %v6656 = vunpack.c.l.s4 1983009808
  %v6657 = vunpack.c.0.s8 %v6656
  %v6658 = vperm.slane %v6652, %v6657
  %v6660 = vunpack.c.l.s4 1983009808
  %v6661 = vunpack.c.0.s8 %v6660
  %v6662 = vperm.slane %v6654, %v6661
  %v6663 = vrot.slane %v6634, 4
  %v6664 = vsel %vm464, %v6663, %v6622
  %v6665 = vrot.slane %v6622, 4
  %v6666 = vsel %vm464, %v6634, %v6665
  %v6668 = vunpack.c.l.s4 1934713408
  %v6669 = vunpack.c.0.s8 %v6668
  %v6670 = vperm.slane %v6664, %v6669
  %v6672 = vunpack.c.l.s4 1934713408
  %v6673 = vunpack.c.0.s8 %v6672
  %v6674 = vperm.slane %v6666, %v6673
  %v6675 = vrot.slane %v6638, 4
  %v6676 = vsel %vm464, %v6675, %v6626
  %v6677 = vrot.slane %v6626, 4
  %v6678 = vsel %vm464, %v6638, %v6677
  %v6680 = vunpack.c.l.s4 1934713408
  %v6681 = vunpack.c.0.s8 %v6680
  %v6682 = vperm.slane %v6676, %v6681
  %v6684 = vunpack.c.l.s4 1934713408
  %v6685 = vunpack.c.0.s8 %v6684
  %v6686 = vperm.slane %v6678, %v6685
  %v6687 = vrot.slane %v6658, 4
  %v6688 = vsel %vm464, %v6687, %v6646
  %v6689 = vrot.slane %v6646, 4
  %v6690 = vsel %vm464, %v6658, %v6689
  %v6692 = vunpack.c.l.s4 1934713408
  %v6693 = vunpack.c.0.s8 %v6692
  %v6694 = vperm.slane %v6688, %v6693
  %v6696 = vunpack.c.l.s4 1934713408
  %v6697 = vunpack.c.0.s8 %v6696
  %v6698 = vperm.slane %v6690, %v6697
  %v6699 = vrot.slane %v6662, 4
  %v6700 = vsel %vm464, %v6699, %v6650
  %v6701 = vrot.slane %v6650, 4
  %v6702 = vsel %vm464, %v6662, %v6701
  %v6704 = vunpack.c.l.s4 1934713408
  %v6705 = vunpack.c.0.s8 %v6704
  %v6706 = vperm.slane %v6700, %v6705
  %v6708 = vunpack.c.l.s4 1934713408
  %v6709 = vunpack.c.0.s8 %v6708
  %v6710 = vperm.slane %v6702, %v6709
  %v6711 = vrot.slane %v6694, 4
  %v6712 = vsel %vm464, %v6711, %v6670
  %v6713 = vrot.slane %v6670, 4
  %v6714 = vsel %vm464, %v6694, %v6713
  %v6715 = vrot.slane %v6698, 4
  %v6716 = vsel %vm464, %v6715, %v6674
  %v6717 = vrot.slane %v6674, 4
  %v6718 = vsel %vm464, %v6698, %v6717
  %v6719 = vrot.slane %v6706, 4
  %v6720 = vsel %vm464, %v6719, %v6682
  %v6721 = vrot.slane %v6682, 4
  %v6722 = vsel %vm464, %v6706, %v6721
  %v6723 = vrot.slane %v6710, 4
  %v6724 = vsel %vm464, %v6723, %v6686
  %v6725 = vrot.slane %v6686, 4
  %v6726 = vsel %vm464, %v6710, %v6725
  %v6727 = vrot.slane %v3277, 4
  %v6728 = vsel %vm464, %v6727, %v3251
  %v6729 = vrot.slane %v3251, 4
  %v6730 = vsel %vm464, %v3277, %v6729
  %v6732 = vunpack.c.l.s4 1983009808
  %v6733 = vunpack.c.0.s8 %v6732
  %v6734 = vperm.slane %v6728, %v6733
  %v6736 = vunpack.c.l.s4 1983009808
  %v6737 = vunpack.c.0.s8 %v6736
  %v6738 = vperm.slane %v6730, %v6737
  %v6739 = vrot.slane %v3290, 4
  %v6740 = vsel %vm464, %v6739, %v3264
  %v6741 = vrot.slane %v3264, 4
  %v6742 = vsel %vm464, %v3290, %v6741
  %v6744 = vunpack.c.l.s4 1983009808
  %v6745 = vunpack.c.0.s8 %v6744
  %v6746 = vperm.slane %v6740, %v6745
  %v6748 = vunpack.c.l.s4 1983009808
  %v6749 = vunpack.c.0.s8 %v6748
  %v6750 = vperm.slane %v6742, %v6749
  %v6751 = vrot.slane %v3329, 4
  %v6752 = vsel %vm464, %v6751, %v3303
  %v6753 = vrot.slane %v3303, 4
  %v6754 = vsel %vm464, %v3329, %v6753
  %v6756 = vunpack.c.l.s4 1983009808
  %v6757 = vunpack.c.0.s8 %v6756
  %v6758 = vperm.slane %v6752, %v6757
  %v6760 = vunpack.c.l.s4 1983009808
  %v6761 = vunpack.c.0.s8 %v6760
  %v6762 = vperm.slane %v6754, %v6761
  %v6763 = vrot.slane %v3342, 4
  %v6764 = vsel %vm464, %v6763, %v3316
  %v6765 = vrot.slane %v3316, 4
  %v6766 = vsel %vm464, %v3342, %v6765
  %v6768 = vunpack.c.l.s4 1983009808
  %v6769 = vunpack.c.0.s8 %v6768
  %v6770 = vperm.slane %v6764, %v6769
  %v6772 = vunpack.c.l.s4 1983009808
  %v6773 = vunpack.c.0.s8 %v6772
  %v6774 = vperm.slane %v6766, %v6773
  %v6775 = vrot.slane %v6746, 4
  %v6776 = vsel %vm464, %v6775, %v6734
  %v6777 = vrot.slane %v6734, 4
  %v6778 = vsel %vm464, %v6746, %v6777
  %v6780 = vunpack.c.l.s4 1934713408
  %v6781 = vunpack.c.0.s8 %v6780
  %v6782 = vperm.slane %v6776, %v6781
  %v6784 = vunpack.c.l.s4 1934713408
  %v6785 = vunpack.c.0.s8 %v6784
  %v6786 = vperm.slane %v6778, %v6785
  %v6787 = vrot.slane %v6750, 4
  %v6788 = vsel %vm464, %v6787, %v6738
  %v6789 = vrot.slane %v6738, 4
  %v6790 = vsel %vm464, %v6750, %v6789
  %v6792 = vunpack.c.l.s4 1934713408
  %v6793 = vunpack.c.0.s8 %v6792
  %v6794 = vperm.slane %v6788, %v6793
  %v6796 = vunpack.c.l.s4 1934713408
  %v6797 = vunpack.c.0.s8 %v6796
  %v6798 = vperm.slane %v6790, %v6797
  %v6799 = vrot.slane %v6770, 4
  %v6800 = vsel %vm464, %v6799, %v6758
  %v6801 = vrot.slane %v6758, 4
  %v6802 = vsel %vm464, %v6770, %v6801
  %v6804 = vunpack.c.l.s4 1934713408
  %v6805 = vunpack.c.0.s8 %v6804
  %v6806 = vperm.slane %v6800, %v6805
  %v6808 = vunpack.c.l.s4 1934713408
  %v6809 = vunpack.c.0.s8 %v6808
  %v6810 = vperm.slane %v6802, %v6809
  %v6811 = vrot.slane %v6774, 4
  %v6812 = vsel %vm464, %v6811, %v6762
  %v6813 = vrot.slane %v6762, 4
  %v6814 = vsel %vm464, %v6774, %v6813
  %v6816 = vunpack.c.l.s4 1934713408
  %v6817 = vunpack.c.0.s8 %v6816
  %v6818 = vperm.slane %v6812, %v6817
  %v6820 = vunpack.c.l.s4 1934713408
  %v6821 = vunpack.c.0.s8 %v6820
  %v6822 = vperm.slane %v6814, %v6821
  %v6823 = vrot.slane %v6806, 4
  %v6824 = vsel %vm464, %v6823, %v6782
  %v6825 = vrot.slane %v6782, 4
  %v6826 = vsel %vm464, %v6806, %v6825
  %v6827 = vrot.slane %v6810, 4
  %v6828 = vsel %vm464, %v6827, %v6786
  %v6829 = vrot.slane %v6786, 4
  %v6830 = vsel %vm464, %v6810, %v6829
  %v6831 = vrot.slane %v6818, 4
  %v6832 = vsel %vm464, %v6831, %v6794
  %v6833 = vrot.slane %v6794, 4
  %v6834 = vsel %vm464, %v6818, %v6833
  %v6835 = vrot.slane %v6822, 4
  %v6836 = vsel %vm464, %v6835, %v6798
  %v6837 = vrot.slane %v6798, 4
  %v6838 = vsel %vm464, %v6822, %v6837
  %v6839 = vrot.slane %v3381, 4
  %v6840 = vsel %vm464, %v6839, %v3355
  %v6841 = vrot.slane %v3355, 4
  %v6842 = vsel %vm464, %v3381, %v6841
  %v6844 = vunpack.c.l.s4 1983009808
  %v6845 = vunpack.c.0.s8 %v6844
  %v6846 = vperm.slane %v6840, %v6845
  %v6848 = vunpack.c.l.s4 1983009808
  %v6849 = vunpack.c.0.s8 %v6848
  %v6850 = vperm.slane %v6842, %v6849
  %v6851 = vrot.slane %v3394, 4
  %v6852 = vsel %vm464, %v6851, %v3368
  %v6853 = vrot.slane %v3368, 4
  %v6854 = vsel %vm464, %v3394, %v6853
  %v6856 = vunpack.c.l.s4 1983009808
  %v6857 = vunpack.c.0.s8 %v6856
  %v6858 = vperm.slane %v6852, %v6857
  %v6860 = vunpack.c.l.s4 1983009808
  %v6861 = vunpack.c.0.s8 %v6860
  %v6862 = vperm.slane %v6854, %v6861
  %v6863 = vrot.slane %v3433, 4
  %v6864 = vsel %vm464, %v6863, %v3407
  %v6865 = vrot.slane %v3407, 4
  %v6866 = vsel %vm464, %v3433, %v6865
  %v6868 = vunpack.c.l.s4 1983009808
  %v6869 = vunpack.c.0.s8 %v6868
  %v6870 = vperm.slane %v6864, %v6869
  %v6872 = vunpack.c.l.s4 1983009808
  %v6873 = vunpack.c.0.s8 %v6872
  %v6874 = vperm.slane %v6866, %v6873
  %v6875 = vrot.slane %v3446, 4
  %v6876 = vsel %vm464, %v6875, %v3420
  %v6877 = vrot.slane %v3420, 4
  %v6878 = vsel %vm464, %v3446, %v6877
  %v6880 = vunpack.c.l.s4 1983009808
  %v6881 = vunpack.c.0.s8 %v6880
  %v6882 = vperm.slane %v6876, %v6881
  %v6884 = vunpack.c.l.s4 1983009808
  %v6885 = vunpack.c.0.s8 %v6884
  %v6886 = vperm.slane %v6878, %v6885
  %v6887 = vrot.slane %v6858, 4
  %v6888 = vsel %vm464, %v6887, %v6846
  %v6889 = vrot.slane %v6846, 4
  %v6890 = vsel %vm464, %v6858, %v6889
  %v6892 = vunpack.c.l.s4 1934713408
  %v6893 = vunpack.c.0.s8 %v6892
  %v6894 = vperm.slane %v6888, %v6893
  %v6896 = vunpack.c.l.s4 1934713408
  %v6897 = vunpack.c.0.s8 %v6896
  %v6898 = vperm.slane %v6890, %v6897
  %v6899 = vrot.slane %v6862, 4
  %v6900 = vsel %vm464, %v6899, %v6850
  %v6901 = vrot.slane %v6850, 4
  %v6902 = vsel %vm464, %v6862, %v6901
  %v6904 = vunpack.c.l.s4 1934713408
  %v6905 = vunpack.c.0.s8 %v6904
  %v6906 = vperm.slane %v6900, %v6905
  %v6908 = vunpack.c.l.s4 1934713408
  %v6909 = vunpack.c.0.s8 %v6908
  %v6910 = vperm.slane %v6902, %v6909
  %v6911 = vrot.slane %v6882, 4
  %v6912 = vsel %vm464, %v6911, %v6870
  %v6913 = vrot.slane %v6870, 4
  %v6914 = vsel %vm464, %v6882, %v6913
  %v6916 = vunpack.c.l.s4 1934713408
  %v6917 = vunpack.c.0.s8 %v6916
  %v6918 = vperm.slane %v6912, %v6917
  %v6920 = vunpack.c.l.s4 1934713408
  %v6921 = vunpack.c.0.s8 %v6920
  %v6922 = vperm.slane %v6914, %v6921
  %v6923 = vrot.slane %v6886, 4
  %v6924 = vsel %vm464, %v6923, %v6874
  %v6925 = vrot.slane %v6874, 4
  %v6926 = vsel %vm464, %v6886, %v6925
  %v6928 = vunpack.c.l.s4 1934713408
  %v6929 = vunpack.c.0.s8 %v6928
  %v6930 = vperm.slane %v6924, %v6929
  %v6932 = vunpack.c.l.s4 1934713408
  %v6933 = vunpack.c.0.s8 %v6932
  %v6934 = vperm.slane %v6926, %v6933
  %v6935 = vrot.slane %v6918, 4
  %v6936 = vsel %vm464, %v6935, %v6894
  %v6937 = vrot.slane %v6894, 4
  %v6938 = vsel %vm464, %v6918, %v6937
  %v6939 = vrot.slane %v6922, 4
  %v6940 = vsel %vm464, %v6939, %v6898
  %v6941 = vrot.slane %v6898, 4
  %v6942 = vsel %vm464, %v6922, %v6941
  %v6943 = vrot.slane %v6930, 4
  %v6944 = vsel %vm464, %v6943, %v6906
  %v6945 = vrot.slane %v6906, 4
  %v6946 = vsel %vm464, %v6930, %v6945
  %v6947 = vrot.slane %v6934, 4
  %v6948 = vsel %vm464, %v6947, %v6910
  %v6949 = vrot.slane %v6910, 4
  %v6950 = vsel %vm464, %v6934, %v6949
  %v6951 = vrot.slane %v3485, 4
  %v6952 = vsel %vm464, %v6951, %v3459
  %v6953 = vrot.slane %v3459, 4
  %v6954 = vsel %vm464, %v3485, %v6953
  %v6956 = vunpack.c.l.s4 1983009808
  %v6957 = vunpack.c.0.s8 %v6956
  %v6958 = vperm.slane %v6952, %v6957
  %v6960 = vunpack.c.l.s4 1983009808
  %v6961 = vunpack.c.0.s8 %v6960
  %v6962 = vperm.slane %v6954, %v6961
  %v6963 = vrot.slane %v3498, 4
  %v6964 = vsel %vm464, %v6963, %v3472
  %v6965 = vrot.slane %v3472, 4
  %v6966 = vsel %vm464, %v3498, %v6965
  %v6968 = vunpack.c.l.s4 1983009808
  %v6969 = vunpack.c.0.s8 %v6968
  %v6970 = vperm.slane %v6964, %v6969
  %v6972 = vunpack.c.l.s4 1983009808
  %v6973 = vunpack.c.0.s8 %v6972
  %v6974 = vperm.slane %v6966, %v6973
  %v6975 = vrot.slane %v3537, 4
  %v6976 = vsel %vm464, %v6975, %v3511
  %v6977 = vrot.slane %v3511, 4
  %v6978 = vsel %vm464, %v3537, %v6977
  %v6980 = vunpack.c.l.s4 1983009808
  %v6981 = vunpack.c.0.s8 %v6980
  %v6982 = vperm.slane %v6976, %v6981
  %v6984 = vunpack.c.l.s4 1983009808
  %v6985 = vunpack.c.0.s8 %v6984
  %v6986 = vperm.slane %v6978, %v6985
  %v6987 = vrot.slane %v3550, 4
  %v6988 = vsel %vm464, %v6987, %v3524
  %v6989 = vrot.slane %v3524, 4
  %v6990 = vsel %vm464, %v3550, %v6989
  %v6992 = vunpack.c.l.s4 1983009808
  %v6993 = vunpack.c.0.s8 %v6992
  %v6994 = vperm.slane %v6988, %v6993
  %v6996 = vunpack.c.l.s4 1983009808
  %v6997 = vunpack.c.0.s8 %v6996
  %v6998 = vperm.slane %v6990, %v6997
  %v6999 = vrot.slane %v6970, 4
  %v7000 = vsel %vm464, %v6999, %v6958
  %v7001 = vrot.slane %v6958, 4
  %v7002 = vsel %vm464, %v6970, %v7001
  %v7004 = vunpack.c.l.s4 1934713408
  %v7005 = vunpack.c.0.s8 %v7004
  %v7006 = vperm.slane %v7000, %v7005
  %v7008 = vunpack.c.l.s4 1934713408
  %v7009 = vunpack.c.0.s8 %v7008
  %v7010 = vperm.slane %v7002, %v7009
  %v7011 = vrot.slane %v6974, 4
  %v7012 = vsel %vm464, %v7011, %v6962
  %v7013 = vrot.slane %v6962, 4
  %v7014 = vsel %vm464, %v6974, %v7013
  %v7016 = vunpack.c.l.s4 1934713408
  %v7017 = vunpack.c.0.s8 %v7016
  %v7018 = vperm.slane %v7012, %v7017
  %v7020 = vunpack.c.l.s4 1934713408
  %v7021 = vunpack.c.0.s8 %v7020
  %v7022 = vperm.slane %v7014, %v7021
  %v7023 = vrot.slane %v6994, 4
  %v7024 = vsel %vm464, %v7023, %v6982
  %v7025 = vrot.slane %v6982, 4
  %v7026 = vsel %vm464, %v6994, %v7025
  %v7028 = vunpack.c.l.s4 1934713408
  %v7029 = vunpack.c.0.s8 %v7028
  %v7030 = vperm.slane %v7024, %v7029
  %v7032 = vunpack.c.l.s4 1934713408
  %v7033 = vunpack.c.0.s8 %v7032
  %v7034 = vperm.slane %v7026, %v7033
  %v7035 = vrot.slane %v6998, 4
  %v7036 = vsel %vm464, %v7035, %v6986
  %v7037 = vrot.slane %v6986, 4
  %v7038 = vsel %vm464, %v6998, %v7037
  %v7040 = vunpack.c.l.s4 1934713408
  %v7041 = vunpack.c.0.s8 %v7040
  %v7042 = vperm.slane %v7036, %v7041
  %v7044 = vunpack.c.l.s4 1934713408
  %v7045 = vunpack.c.0.s8 %v7044
  %v7046 = vperm.slane %v7038, %v7045
  %v7047 = vrot.slane %v7030, 4
  %v7048 = vsel %vm464, %v7047, %v7006
  %v7049 = vrot.slane %v7006, 4
  %v7050 = vsel %vm464, %v7030, %v7049
  %v7051 = vrot.slane %v7034, 4
  %v7052 = vsel %vm464, %v7051, %v7010
  %v7053 = vrot.slane %v7010, 4
  %v7054 = vsel %vm464, %v7034, %v7053
  %v7055 = vrot.slane %v7042, 4
  %v7056 = vsel %vm464, %v7055, %v7018
  %v7057 = vrot.slane %v7018, 4
  %v7058 = vsel %vm464, %v7042, %v7057
  %v7059 = vrot.slane %v7046, 4
  %v7060 = vsel %vm464, %v7059, %v7022
  %v7061 = vrot.slane %v7022, 4
  %v7062 = vsel %vm464, %v7046, %v7061
  %v7063 = vrot.slane %v3589, 4
  %v7064 = vsel %vm464, %v7063, %v3563
  %v7065 = vrot.slane %v3563, 4
  %v7066 = vsel %vm464, %v3589, %v7065
  %v7068 = vunpack.c.l.s4 1983009808
  %v7069 = vunpack.c.0.s8 %v7068
  %v7070 = vperm.slane %v7064, %v7069
  %v7072 = vunpack.c.l.s4 1983009808
  %v7073 = vunpack.c.0.s8 %v7072
  %v7074 = vperm.slane %v7066, %v7073
  %v7075 = vrot.slane %v3602, 4
  %v7076 = vsel %vm464, %v7075, %v3576
  %v7077 = vrot.slane %v3576, 4
  %v7078 = vsel %vm464, %v3602, %v7077
  %v7080 = vunpack.c.l.s4 1983009808
  %v7081 = vunpack.c.0.s8 %v7080
  %v7082 = vperm.slane %v7076, %v7081
  %v7084 = vunpack.c.l.s4 1983009808
  %v7085 = vunpack.c.0.s8 %v7084
  %v7086 = vperm.slane %v7078, %v7085
  %v7087 = vrot.slane %v3641, 4
  %v7088 = vsel %vm464, %v7087, %v3615
  %v7089 = vrot.slane %v3615, 4
  %v7090 = vsel %vm464, %v3641, %v7089
  %v7092 = vunpack.c.l.s4 1983009808
  %v7093 = vunpack.c.0.s8 %v7092
  %v7094 = vperm.slane %v7088, %v7093
  %v7096 = vunpack.c.l.s4 1983009808
  %v7097 = vunpack.c.0.s8 %v7096
  %v7098 = vperm.slane %v7090, %v7097
  %v7099 = vrot.slane %v3654, 4
  %v7100 = vsel %vm464, %v7099, %v3628
  %v7101 = vrot.slane %v3628, 4
  %v7102 = vsel %vm464, %v3654, %v7101
  %v7104 = vunpack.c.l.s4 1983009808
  %v7105 = vunpack.c.0.s8 %v7104
  %v7106 = vperm.slane %v7100, %v7105
  %v7108 = vunpack.c.l.s4 1983009808
  %v7109 = vunpack.c.0.s8 %v7108
  %v7110 = vperm.slane %v7102, %v7109
  %v7111 = vrot.slane %v7082, 4
  %v7112 = vsel %vm464, %v7111, %v7070
  %v7113 = vrot.slane %v7070, 4
  %v7114 = vsel %vm464, %v7082, %v7113
  %v7116 = vunpack.c.l.s4 1934713408
  %v7117 = vunpack.c.0.s8 %v7116
  %v7118 = vperm.slane %v7112, %v7117
  %v7120 = vunpack.c.l.s4 1934713408
  %v7121 = vunpack.c.0.s8 %v7120
  %v7122 = vperm.slane %v7114, %v7121
  %v7123 = vrot.slane %v7086, 4
  %v7124 = vsel %vm464, %v7123, %v7074
  %v7125 = vrot.slane %v7074, 4
  %v7126 = vsel %vm464, %v7086, %v7125
  %v7128 = vunpack.c.l.s4 1934713408
  %v7129 = vunpack.c.0.s8 %v7128
  %v7130 = vperm.slane %v7124, %v7129
  %v7132 = vunpack.c.l.s4 1934713408
  %v7133 = vunpack.c.0.s8 %v7132
  %v7134 = vperm.slane %v7126, %v7133
  %v7135 = vrot.slane %v7106, 4
  %v7136 = vsel %vm464, %v7135, %v7094
  %v7137 = vrot.slane %v7094, 4
  %v7138 = vsel %vm464, %v7106, %v7137
  %v7140 = vunpack.c.l.s4 1934713408
  %v7141 = vunpack.c.0.s8 %v7140
  %v7142 = vperm.slane %v7136, %v7141
  %v7144 = vunpack.c.l.s4 1934713408
  %v7145 = vunpack.c.0.s8 %v7144
  %v7146 = vperm.slane %v7138, %v7145
  %v7147 = vrot.slane %v7110, 4
  %v7148 = vsel %vm464, %v7147, %v7098
  %v7149 = vrot.slane %v7098, 4
  %v7150 = vsel %vm464, %v7110, %v7149
  %v7152 = vunpack.c.l.s4 1934713408
  %v7153 = vunpack.c.0.s8 %v7152
  %v7154 = vperm.slane %v7148, %v7153
  %v7156 = vunpack.c.l.s4 1934713408
  %v7157 = vunpack.c.0.s8 %v7156
  %v7158 = vperm.slane %v7150, %v7157
  %v7159 = vrot.slane %v7142, 4
  %v7160 = vsel %vm464, %v7159, %v7118
  %v7161 = vrot.slane %v7118, 4
  %v7162 = vsel %vm464, %v7142, %v7161
  %v7163 = vrot.slane %v7146, 4
  %v7164 = vsel %vm464, %v7163, %v7122
  %v7165 = vrot.slane %v7122, 4
  %v7166 = vsel %vm464, %v7146, %v7165
  %v7167 = vrot.slane %v7154, 4
  %v7168 = vsel %vm464, %v7167, %v7130
  %v7169 = vrot.slane %v7130, 4
  %v7170 = vsel %vm464, %v7154, %v7169
  %v7171 = vrot.slane %v7158, 4
  %v7172 = vsel %vm464, %v7171, %v7134
  %v7173 = vrot.slane %v7134, 4
  %v7174 = vsel %vm464, %v7158, %v7173
  %v7175 = vrot.slane %v3693, 4
  %v7176 = vsel %vm464, %v7175, %v3667
  %v7177 = vrot.slane %v3667, 4
  %v7178 = vsel %vm464, %v3693, %v7177
  %v7180 = vunpack.c.l.s4 1983009808
  %v7181 = vunpack.c.0.s8 %v7180
  %v7182 = vperm.slane %v7176, %v7181
  %v7184 = vunpack.c.l.s4 1983009808
  %v7185 = vunpack.c.0.s8 %v7184
  %v7186 = vperm.slane %v7178, %v7185
  %v7187 = vrot.slane %v3706, 4
  %v7188 = vsel %vm464, %v7187, %v3680
  %v7189 = vrot.slane %v3680, 4
  %v7190 = vsel %vm464, %v3706, %v7189
  %v7192 = vunpack.c.l.s4 1983009808
  %v7193 = vunpack.c.0.s8 %v7192
  %v7194 = vperm.slane %v7188, %v7193
  %v7196 = vunpack.c.l.s4 1983009808
  %v7197 = vunpack.c.0.s8 %v7196
  %v7198 = vperm.slane %v7190, %v7197
  %v7199 = vrot.slane %v3745, 4
  %v7200 = vsel %vm464, %v7199, %v3719
  %v7201 = vrot.slane %v3719, 4
  %v7202 = vsel %vm464, %v3745, %v7201
  %v7204 = vunpack.c.l.s4 1983009808
  %v7205 = vunpack.c.0.s8 %v7204
  %v7206 = vperm.slane %v7200, %v7205
  %v7208 = vunpack.c.l.s4 1983009808
  %v7209 = vunpack.c.0.s8 %v7208
  %v7210 = vperm.slane %v7202, %v7209
  %v7211 = vrot.slane %v3758, 4
  %v7212 = vsel %vm464, %v7211, %v3732
  %v7213 = vrot.slane %v3732, 4
  %v7214 = vsel %vm464, %v3758, %v7213
  %v7216 = vunpack.c.l.s4 1983009808
  %v7217 = vunpack.c.0.s8 %v7216
  %v7218 = vperm.slane %v7212, %v7217
  %v7220 = vunpack.c.l.s4 1983009808
  %v7221 = vunpack.c.0.s8 %v7220
  %v7222 = vperm.slane %v7214, %v7221
  %v7223 = vrot.slane %v7194, 4
  %v7224 = vsel %vm464, %v7223, %v7182
  %v7225 = vrot.slane %v7182, 4
  %v7226 = vsel %vm464, %v7194, %v7225
  %v7228 = vunpack.c.l.s4 1934713408
  %v7229 = vunpack.c.0.s8 %v7228
  %v7230 = vperm.slane %v7224, %v7229
  %v7232 = vunpack.c.l.s4 1934713408
  %v7233 = vunpack.c.0.s8 %v7232
  %v7234 = vperm.slane %v7226, %v7233
  %v7235 = vrot.slane %v7198, 4
  %v7236 = vsel %vm464, %v7235, %v7186
  %v7237 = vrot.slane %v7186, 4
  %v7238 = vsel %vm464, %v7198, %v7237
  %v7240 = vunpack.c.l.s4 1934713408
  %v7241 = vunpack.c.0.s8 %v7240
  %v7242 = vperm.slane %v7236, %v7241
  %v7244 = vunpack.c.l.s4 1934713408
  %v7245 = vunpack.c.0.s8 %v7244
  %v7246 = vperm.slane %v7238, %v7245
  %v7247 = vrot.slane %v7218, 4
  %v7248 = vsel %vm464, %v7247, %v7206
  %v7249 = vrot.slane %v7206, 4
  %v7250 = vsel %vm464, %v7218, %v7249
  %v7252 = vunpack.c.l.s4 1934713408
  %v7253 = vunpack.c.0.s8 %v7252
  %v7254 = vperm.slane %v7248, %v7253
  %v7256 = vunpack.c.l.s4 1934713408
  %v7257 = vunpack.c.0.s8 %v7256
  %v7258 = vperm.slane %v7250, %v7257
  %v7259 = vrot.slane %v7222, 4
  %v7260 = vsel %vm464, %v7259, %v7210
  %v7261 = vrot.slane %v7210, 4
  %v7262 = vsel %vm464, %v7222, %v7261
  %v7264 = vunpack.c.l.s4 1934713408
  %v7265 = vunpack.c.0.s8 %v7264
  %v7266 = vperm.slane %v7260, %v7265
  %v7268 = vunpack.c.l.s4 1934713408
  %v7269 = vunpack.c.0.s8 %v7268
  %v7270 = vperm.slane %v7262, %v7269
  %v7271 = vrot.slane %v7254, 4
  %v7272 = vsel %vm464, %v7271, %v7230
  %v7273 = vrot.slane %v7230, 4
  %v7274 = vsel %vm464, %v7254, %v7273
  %v7275 = vrot.slane %v7258, 4
  %v7276 = vsel %vm464, %v7275, %v7234
  %v7277 = vrot.slane %v7234, 4
  %v7278 = vsel %vm464, %v7258, %v7277
  %v7279 = vrot.slane %v7266, 4
  %v7280 = vsel %vm464, %v7279, %v7242
  %v7281 = vrot.slane %v7242, 4
  %v7282 = vsel %vm464, %v7266, %v7281
  %v7283 = vrot.slane %v7270, 4
  %v7284 = vsel %vm464, %v7283, %v7246
  %v7285 = vrot.slane %v7246, 4
  %v7286 = vsel %vm464, %v7270, %v7285
  %v7287 = vrot.slane %v3797, 4
  %v7288 = vsel %vm464, %v7287, %v3771
  %v7289 = vrot.slane %v3771, 4
  %v7290 = vsel %vm464, %v3797, %v7289
  %v7292 = vunpack.c.l.s4 1983009808
  %v7293 = vunpack.c.0.s8 %v7292
  %v7294 = vperm.slane %v7288, %v7293
  %v7296 = vunpack.c.l.s4 1983009808
  %v7297 = vunpack.c.0.s8 %v7296
  %v7298 = vperm.slane %v7290, %v7297
  %v7299 = vrot.slane %v3810, 4
  %v7300 = vsel %vm464, %v7299, %v3784
  %v7301 = vrot.slane %v3784, 4
  %v7302 = vsel %vm464, %v3810, %v7301
  %v7304 = vunpack.c.l.s4 1983009808
  %v7305 = vunpack.c.0.s8 %v7304
  %v7306 = vperm.slane %v7300, %v7305
  %v7308 = vunpack.c.l.s4 1983009808
  %v7309 = vunpack.c.0.s8 %v7308
  %v7310 = vperm.slane %v7302, %v7309
  %v7311 = vrot.slane %v3849, 4
  %v7312 = vsel %vm464, %v7311, %v3823
  %v7313 = vrot.slane %v3823, 4
  %v7314 = vsel %vm464, %v3849, %v7313
  %v7316 = vunpack.c.l.s4 1983009808
  %v7317 = vunpack.c.0.s8 %v7316
  %v7318 = vperm.slane %v7312, %v7317
  %v7320 = vunpack.c.l.s4 1983009808
  %v7321 = vunpack.c.0.s8 %v7320
  %v7322 = vperm.slane %v7314, %v7321
  %v7323 = vrot.slane %v3862, 4
  %v7324 = vsel %vm464, %v7323, %v3836
  %v7325 = vrot.slane %v3836, 4
  %v7326 = vsel %vm464, %v3862, %v7325
  %v7328 = vunpack.c.l.s4 1983009808
  %v7329 = vunpack.c.0.s8 %v7328
  %v7330 = vperm.slane %v7324, %v7329
  %v7332 = vunpack.c.l.s4 1983009808
  %v7333 = vunpack.c.0.s8 %v7332
  %v7334 = vperm.slane %v7326, %v7333
  %v7335 = vrot.slane %v7306, 4
  %v7336 = vsel %vm464, %v7335, %v7294
  %v7337 = vrot.slane %v7294, 4
  %v7338 = vsel %vm464, %v7306, %v7337
  %v7340 = vunpack.c.l.s4 1934713408
  %v7341 = vunpack.c.0.s8 %v7340
  %v7342 = vperm.slane %v7336, %v7341
  %v7344 = vunpack.c.l.s4 1934713408
  %v7345 = vunpack.c.0.s8 %v7344
  %v7346 = vperm.slane %v7338, %v7345
  %v7347 = vrot.slane %v7310, 4
  %v7348 = vsel %vm464, %v7347, %v7298
  %v7349 = vrot.slane %v7298, 4
  %v7350 = vsel %vm464, %v7310, %v7349
  %v7352 = vunpack.c.l.s4 1934713408
  %v7353 = vunpack.c.0.s8 %v7352
  %v7354 = vperm.slane %v7348, %v7353
  %v7356 = vunpack.c.l.s4 1934713408
  %v7357 = vunpack.c.0.s8 %v7356
  %v7358 = vperm.slane %v7350, %v7357
  %v7359 = vrot.slane %v7330, 4
  %v7360 = vsel %vm464, %v7359, %v7318
  %v7361 = vrot.slane %v7318, 4
  %v7362 = vsel %vm464, %v7330, %v7361
  %v7364 = vunpack.c.l.s4 1934713408
  %v7365 = vunpack.c.0.s8 %v7364
  %v7366 = vperm.slane %v7360, %v7365
  %v7368 = vunpack.c.l.s4 1934713408
  %v7369 = vunpack.c.0.s8 %v7368
  %v7370 = vperm.slane %v7362, %v7369
  %v7371 = vrot.slane %v7334, 4
  %v7372 = vsel %vm464, %v7371, %v7322
  %v7373 = vrot.slane %v7322, 4
  %v7374 = vsel %vm464, %v7334, %v7373
  %v7376 = vunpack.c.l.s4 1934713408
  %v7377 = vunpack.c.0.s8 %v7376
  %v7378 = vperm.slane %v7372, %v7377
  %v7380 = vunpack.c.l.s4 1934713408
  %v7381 = vunpack.c.0.s8 %v7380
  %v7382 = vperm.slane %v7374, %v7381
  %v7383 = vrot.slane %v7366, 4
  %v7384 = vsel %vm464, %v7383, %v7342
  %v7385 = vrot.slane %v7342, 4
  %v7386 = vsel %vm464, %v7366, %v7385
  %v7387 = vrot.slane %v7370, 4
  %v7388 = vsel %vm464, %v7387, %v7346
  %v7389 = vrot.slane %v7346, 4
  %v7390 = vsel %vm464, %v7370, %v7389
  %v7391 = vrot.slane %v7378, 4
  %v7392 = vsel %vm464, %v7391, %v7354
  %v7393 = vrot.slane %v7354, 4
  %v7394 = vsel %vm464, %v7378, %v7393
  %v7395 = vrot.slane %v7382, 4
  %v7396 = vsel %vm464, %v7395, %v7358
  %v7397 = vrot.slane %v7358, 4
  %v7398 = vsel %vm464, %v7382, %v7397
  %v7399 = vrot.slane %v3901, 4
  %v7400 = vsel %vm464, %v7399, %v3875
  %v7401 = vrot.slane %v3875, 4
  %v7402 = vsel %vm464, %v3901, %v7401
  %v7404 = vunpack.c.l.s4 1983009808
  %v7405 = vunpack.c.0.s8 %v7404
  %v7406 = vperm.slane %v7400, %v7405
  %v7408 = vunpack.c.l.s4 1983009808
  %v7409 = vunpack.c.0.s8 %v7408
  %v7410 = vperm.slane %v7402, %v7409
  %v7411 = vrot.slane %v3914, 4
  %v7412 = vsel %vm464, %v7411, %v3888
  %v7413 = vrot.slane %v3888, 4
  %v7414 = vsel %vm464, %v3914, %v7413
  %v7416 = vunpack.c.l.s4 1983009808
  %v7417 = vunpack.c.0.s8 %v7416
  %v7418 = vperm.slane %v7412, %v7417
  %v7420 = vunpack.c.l.s4 1983009808
  %v7421 = vunpack.c.0.s8 %v7420
  %v7422 = vperm.slane %v7414, %v7421
  %v7423 = vrot.slane %v3953, 4
  %v7424 = vsel %vm464, %v7423, %v3927
  %v7425 = vrot.slane %v3927, 4
  %v7426 = vsel %vm464, %v3953, %v7425
  %v7428 = vunpack.c.l.s4 1983009808
  %v7429 = vunpack.c.0.s8 %v7428
  %v7430 = vperm.slane %v7424, %v7429
  %v7432 = vunpack.c.l.s4 1983009808
  %v7433 = vunpack.c.0.s8 %v7432
  %v7434 = vperm.slane %v7426, %v7433
  %v7435 = vrot.slane %v3966, 4
  %v7436 = vsel %vm464, %v7435, %v3940
  %v7437 = vrot.slane %v3940, 4
  %v7438 = vsel %vm464, %v3966, %v7437
  %v7440 = vunpack.c.l.s4 1983009808
  %v7441 = vunpack.c.0.s8 %v7440
  %v7442 = vperm.slane %v7436, %v7441
  %v7444 = vunpack.c.l.s4 1983009808
  %v7445 = vunpack.c.0.s8 %v7444
  %v7446 = vperm.slane %v7438, %v7445
  %v7447 = vrot.slane %v7418, 4
  %v7448 = vsel %vm464, %v7447, %v7406
  %v7449 = vrot.slane %v7406, 4
  %v7450 = vsel %vm464, %v7418, %v7449
  %v7452 = vunpack.c.l.s4 1934713408
  %v7453 = vunpack.c.0.s8 %v7452
  %v7454 = vperm.slane %v7448, %v7453
  %v7456 = vunpack.c.l.s4 1934713408
  %v7457 = vunpack.c.0.s8 %v7456
  %v7458 = vperm.slane %v7450, %v7457
  %v7459 = vrot.slane %v7422, 4
  %v7460 = vsel %vm464, %v7459, %v7410
  %v7461 = vrot.slane %v7410, 4
  %v7462 = vsel %vm464, %v7422, %v7461
  %v7464 = vunpack.c.l.s4 1934713408
  %v7465 = vunpack.c.0.s8 %v7464
  %v7466 = vperm.slane %v7460, %v7465
  %v7468 = vunpack.c.l.s4 1934713408
  %v7469 = vunpack.c.0.s8 %v7468
  %v7470 = vperm.slane %v7462, %v7469
  %v7471 = vrot.slane %v7442, 4
  %v7472 = vsel %vm464, %v7471, %v7430
  %v7473 = vrot.slane %v7430, 4
  %v7474 = vsel %vm464, %v7442, %v7473
  %v7476 = vunpack.c.l.s4 1934713408
  %v7477 = vunpack.c.0.s8 %v7476
  %v7478 = vperm.slane %v7472, %v7477
  %v7480 = vunpack.c.l.s4 1934713408
  %v7481 = vunpack.c.0.s8 %v7480
  %v7482 = vperm.slane %v7474, %v7481
  %v7483 = vrot.slane %v7446, 4
  %v7484 = vsel %vm464, %v7483, %v7434
  %v7485 = vrot.slane %v7434, 4
  %v7486 = vsel %vm464, %v7446, %v7485
  %v7488 = vunpack.c.l.s4 1934713408
  %v7489 = vunpack.c.0.s8 %v7488
  %v7490 = vperm.slane %v7484, %v7489
  %v7492 = vunpack.c.l.s4 1934713408
  %v7493 = vunpack.c.0.s8 %v7492
  %v7494 = vperm.slane %v7486, %v7493
  %v7495 = vrot.slane %v7478, 4
  %v7496 = vsel %vm464, %v7495, %v7454
  %v7497 = vrot.slane %v7454, 4
  %v7498 = vsel %vm464, %v7478, %v7497
  %v7499 = vrot.slane %v7482, 4
  %v7500 = vsel %vm464, %v7499, %v7458
  %v7501 = vrot.slane %v7458, 4
  %v7502 = vsel %vm464, %v7482, %v7501
  %v7503 = vrot.slane %v7490, 4
  %v7504 = vsel %vm464, %v7503, %v7466
  %v7505 = vrot.slane %v7466, 4
  %v7506 = vsel %vm464, %v7490, %v7505
  %v7507 = vrot.slane %v7494, 4
  %v7508 = vsel %vm464, %v7507, %v7470
  %v7509 = vrot.slane %v7470, 4
  %v7510 = vsel %vm464, %v7494, %v7509
  %v7511 = vrot.slane %v4005, 4
  %v7512 = vsel %vm464, %v7511, %v3979
  %v7513 = vrot.slane %v3979, 4
  %v7514 = vsel %vm464, %v4005, %v7513
  %v7516 = vunpack.c.l.s4 1983009808
  %v7517 = vunpack.c.0.s8 %v7516
  %v7518 = vperm.slane %v7512, %v7517
  %v7520 = vunpack.c.l.s4 1983009808
  %v7521 = vunpack.c.0.s8 %v7520
  %v7522 = vperm.slane %v7514, %v7521
  %v7523 = vrot.slane %v4018, 4
  %v7524 = vsel %vm464, %v7523, %v3992
  %v7525 = vrot.slane %v3992, 4
  %v7526 = vsel %vm464, %v4018, %v7525
  %v7528 = vunpack.c.l.s4 1983009808
  %v7529 = vunpack.c.0.s8 %v7528
  %v7530 = vperm.slane %v7524, %v7529
  %v7532 = vunpack.c.l.s4 1983009808
  %v7533 = vunpack.c.0.s8 %v7532
  %v7534 = vperm.slane %v7526, %v7533
  %v7535 = vrot.slane %v4057, 4
  %v7536 = vsel %vm464, %v7535, %v4031
  %v7537 = vrot.slane %v4031, 4
  %v7538 = vsel %vm464, %v4057, %v7537
  %v7540 = vunpack.c.l.s4 1983009808
  %v7541 = vunpack.c.0.s8 %v7540
  %v7542 = vperm.slane %v7536, %v7541
  %v7544 = vunpack.c.l.s4 1983009808
  %v7545 = vunpack.c.0.s8 %v7544
  %v7546 = vperm.slane %v7538, %v7545
  %v7547 = vrot.slane %v4070, 4
  %v7548 = vsel %vm464, %v7547, %v4044
  %v7549 = vrot.slane %v4044, 4
  %v7550 = vsel %vm464, %v4070, %v7549
  %v7552 = vunpack.c.l.s4 1983009808
  %v7553 = vunpack.c.0.s8 %v7552
  %v7554 = vperm.slane %v7548, %v7553
  %v7556 = vunpack.c.l.s4 1983009808
  %v7557 = vunpack.c.0.s8 %v7556
  %v7558 = vperm.slane %v7550, %v7557
  %v7559 = vrot.slane %v7530, 4
  %v7560 = vsel %vm464, %v7559, %v7518
  %v7561 = vrot.slane %v7518, 4
  %v7562 = vsel %vm464, %v7530, %v7561
  %v7564 = vunpack.c.l.s4 1934713408
  %v7565 = vunpack.c.0.s8 %v7564
  %v7566 = vperm.slane %v7560, %v7565
  %v7568 = vunpack.c.l.s4 1934713408
  %v7569 = vunpack.c.0.s8 %v7568
  %v7570 = vperm.slane %v7562, %v7569
  %v7571 = vrot.slane %v7534, 4
  %v7572 = vsel %vm464, %v7571, %v7522
  %v7573 = vrot.slane %v7522, 4
  %v7574 = vsel %vm464, %v7534, %v7573
  %v7576 = vunpack.c.l.s4 1934713408
  %v7577 = vunpack.c.0.s8 %v7576
  %v7578 = vperm.slane %v7572, %v7577
  %v7580 = vunpack.c.l.s4 1934713408
  %v7581 = vunpack.c.0.s8 %v7580
  %v7582 = vperm.slane %v7574, %v7581
  %v7583 = vrot.slane %v7554, 4
  %v7584 = vsel %vm464, %v7583, %v7542
  %v7585 = vrot.slane %v7542, 4
  %v7586 = vsel %vm464, %v7554, %v7585
  %v7588 = vunpack.c.l.s4 1934713408
  %v7589 = vunpack.c.0.s8 %v7588
  %v7590 = vperm.slane %v7584, %v7589
  %v7592 = vunpack.c.l.s4 1934713408
  %v7593 = vunpack.c.0.s8 %v7592
  %v7594 = vperm.slane %v7586, %v7593
  %v7595 = vrot.slane %v7558, 4
  %v7596 = vsel %vm464, %v7595, %v7546
  %v7597 = vrot.slane %v7546, 4
  %v7598 = vsel %vm464, %v7558, %v7597
  %v7600 = vunpack.c.l.s4 1934713408
  %v7601 = vunpack.c.0.s8 %v7600
  %v7602 = vperm.slane %v7596, %v7601
  %v7604 = vunpack.c.l.s4 1934713408
  %v7605 = vunpack.c.0.s8 %v7604
  %v7606 = vperm.slane %v7598, %v7605
  %v7607 = vrot.slane %v7590, 4
  %v7608 = vsel %vm464, %v7607, %v7566
  %v7609 = vrot.slane %v7566, 4
  %v7610 = vsel %vm464, %v7590, %v7609
  %v7611 = vrot.slane %v7594, 4
  %v7612 = vsel %vm464, %v7611, %v7570
  %v7613 = vrot.slane %v7570, 4
  %v7614 = vsel %vm464, %v7594, %v7613
  %v7615 = vrot.slane %v7602, 4
  %v7616 = vsel %vm464, %v7615, %v7578
  %v7617 = vrot.slane %v7578, 4
  %v7618 = vsel %vm464, %v7602, %v7617
  %v7619 = vrot.slane %v7606, 4
  %v7620 = vsel %vm464, %v7619, %v7582
  %v7621 = vrot.slane %v7582, 4
  %v7622 = vsel %vm464, %v7606, %v7621
  %v7623 = vrot.slane %v4109, 4
  %v7624 = vsel %vm464, %v7623, %v4083
  %v7625 = vrot.slane %v4083, 4
  %v7626 = vsel %vm464, %v4109, %v7625
  %v7628 = vunpack.c.l.s4 1983009808
  %v7629 = vunpack.c.0.s8 %v7628
  %v7630 = vperm.slane %v7624, %v7629
  %v7632 = vunpack.c.l.s4 1983009808
  %v7633 = vunpack.c.0.s8 %v7632
  %v7634 = vperm.slane %v7626, %v7633
  %v7635 = vrot.slane %v4122, 4
  %v7636 = vsel %vm464, %v7635, %v4096
  %v7637 = vrot.slane %v4096, 4
  %v7638 = vsel %vm464, %v4122, %v7637
  %v7640 = vunpack.c.l.s4 1983009808
  %v7641 = vunpack.c.0.s8 %v7640
  %v7642 = vperm.slane %v7636, %v7641
  %v7644 = vunpack.c.l.s4 1983009808
  %v7645 = vunpack.c.0.s8 %v7644
  %v7646 = vperm.slane %v7638, %v7645
  %v7647 = vrot.slane %v4161, 4
  %v7648 = vsel %vm464, %v7647, %v4135
  %v7649 = vrot.slane %v4135, 4
  %v7650 = vsel %vm464, %v4161, %v7649
  %v7652 = vunpack.c.l.s4 1983009808
  %v7653 = vunpack.c.0.s8 %v7652
  %v7654 = vperm.slane %v7648, %v7653
  %v7656 = vunpack.c.l.s4 1983009808
  %v7657 = vunpack.c.0.s8 %v7656
  %v7658 = vperm.slane %v7650, %v7657
  %v7659 = vrot.slane %v4174, 4
  %v7660 = vsel %vm464, %v7659, %v4148
  %v7661 = vrot.slane %v4148, 4
  %v7662 = vsel %vm464, %v4174, %v7661
  %v7664 = vunpack.c.l.s4 1983009808
  %v7665 = vunpack.c.0.s8 %v7664
  %v7666 = vperm.slane %v7660, %v7665
  %v7668 = vunpack.c.l.s4 1983009808
  %v7669 = vunpack.c.0.s8 %v7668
  %v7670 = vperm.slane %v7662, %v7669
  %v7671 = vrot.slane %v7642, 4
  %v7672 = vsel %vm464, %v7671, %v7630
  %v7673 = vrot.slane %v7630, 4
  %v7674 = vsel %vm464, %v7642, %v7673
  %v7676 = vunpack.c.l.s4 1934713408
  %v7677 = vunpack.c.0.s8 %v7676
  %v7678 = vperm.slane %v7672, %v7677
  %v7680 = vunpack.c.l.s4 1934713408
  %v7681 = vunpack.c.0.s8 %v7680
  %v7682 = vperm.slane %v7674, %v7681
  %v7683 = vrot.slane %v7646, 4
  %v7684 = vsel %vm464, %v7683, %v7634
  %v7685 = vrot.slane %v7634, 4
  %v7686 = vsel %vm464, %v7646, %v7685
  %v7688 = vunpack.c.l.s4 1934713408
  %v7689 = vunpack.c.0.s8 %v7688
  %v7690 = vperm.slane %v7684, %v7689
  %v7692 = vunpack.c.l.s4 1934713408
  %v7693 = vunpack.c.0.s8 %v7692
  %v7694 = vperm.slane %v7686, %v7693
  %v7695 = vrot.slane %v7666, 4
  %v7696 = vsel %vm464, %v7695, %v7654
  %v7697 = vrot.slane %v7654, 4
  %v7698 = vsel %vm464, %v7666, %v7697
  %v7700 = vunpack.c.l.s4 1934713408
  %v7701 = vunpack.c.0.s8 %v7700
  %v7702 = vperm.slane %v7696, %v7701
  %v7704 = vunpack.c.l.s4 1934713408
  %v7705 = vunpack.c.0.s8 %v7704
  %v7706 = vperm.slane %v7698, %v7705
  %v7707 = vrot.slane %v7670, 4
  %v7708 = vsel %vm464, %v7707, %v7658
  %v7709 = vrot.slane %v7658, 4
  %v7710 = vsel %vm464, %v7670, %v7709
  %v7712 = vunpack.c.l.s4 1934713408
  %v7713 = vunpack.c.0.s8 %v7712
  %v7714 = vperm.slane %v7708, %v7713
  %v7716 = vunpack.c.l.s4 1934713408
  %v7717 = vunpack.c.0.s8 %v7716
  %v7718 = vperm.slane %v7710, %v7717
  %v7719 = vrot.slane %v7702, 4
  %v7720 = vsel %vm464, %v7719, %v7678
  %v7721 = vrot.slane %v7678, 4
  %v7722 = vsel %vm464, %v7702, %v7721
  %v7723 = vrot.slane %v7706, 4
  %v7724 = vsel %vm464, %v7723, %v7682
  %v7725 = vrot.slane %v7682, 4
  %v7726 = vsel %vm464, %v7706, %v7725
  %v7727 = vrot.slane %v7714, 4
  %v7728 = vsel %vm464, %v7727, %v7690
  %v7729 = vrot.slane %v7690, 4
  %v7730 = vsel %vm464, %v7714, %v7729
  %v7731 = vrot.slane %v7718, 4
  %v7732 = vsel %vm464, %v7731, %v7694
  %v7733 = vrot.slane %v7694, 4
  %v7734 = vsel %vm464, %v7718, %v7733
  %v7735 = vrot.slane %v4213, 4
  %v7736 = vsel %vm464, %v7735, %v4187
  %v7737 = vrot.slane %v4187, 4
  %v7738 = vsel %vm464, %v4213, %v7737
  %v7740 = vunpack.c.l.s4 1983009808
  %v7741 = vunpack.c.0.s8 %v7740
  %v7742 = vperm.slane %v7736, %v7741
  %v7744 = vunpack.c.l.s4 1983009808
  %v7745 = vunpack.c.0.s8 %v7744
  %v7746 = vperm.slane %v7738, %v7745
  %v7747 = vrot.slane %v4226, 4
  %v7748 = vsel %vm464, %v7747, %v4200
  %v7749 = vrot.slane %v4200, 4
  %v7750 = vsel %vm464, %v4226, %v7749
  %v7752 = vunpack.c.l.s4 1983009808
  %v7753 = vunpack.c.0.s8 %v7752
  %v7754 = vperm.slane %v7748, %v7753
  %v7756 = vunpack.c.l.s4 1983009808
  %v7757 = vunpack.c.0.s8 %v7756
  %v7758 = vperm.slane %v7750, %v7757
  %v7759 = vrot.slane %v4265, 4
  %v7760 = vsel %vm464, %v7759, %v4239
  %v7761 = vrot.slane %v4239, 4
  %v7762 = vsel %vm464, %v4265, %v7761
  %v7764 = vunpack.c.l.s4 1983009808
  %v7765 = vunpack.c.0.s8 %v7764
  %v7766 = vperm.slane %v7760, %v7765
  %v7768 = vunpack.c.l.s4 1983009808
  %v7769 = vunpack.c.0.s8 %v7768
  %v7770 = vperm.slane %v7762, %v7769
  %v7771 = vrot.slane %v4278, 4
  %v7772 = vsel %vm464, %v7771, %v4252
  %v7773 = vrot.slane %v4252, 4
  %v7774 = vsel %vm464, %v4278, %v7773
  %v7776 = vunpack.c.l.s4 1983009808
  %v7777 = vunpack.c.0.s8 %v7776
  %v7778 = vperm.slane %v7772, %v7777
  %v7780 = vunpack.c.l.s4 1983009808
  %v7781 = vunpack.c.0.s8 %v7780
  %v7782 = vperm.slane %v7774, %v7781
  %v7783 = vrot.slane %v7754, 4
  %v7784 = vsel %vm464, %v7783, %v7742
  %v7785 = vrot.slane %v7742, 4
  %v7786 = vsel %vm464, %v7754, %v7785
  %v7788 = vunpack.c.l.s4 1934713408
  %v7789 = vunpack.c.0.s8 %v7788
  %v7790 = vperm.slane %v7784, %v7789
  %v7792 = vunpack.c.l.s4 1934713408
  %v7793 = vunpack.c.0.s8 %v7792
  %v7794 = vperm.slane %v7786, %v7793
  %v7795 = vrot.slane %v7758, 4
  %v7796 = vsel %vm464, %v7795, %v7746
  %v7797 = vrot.slane %v7746, 4
  %v7798 = vsel %vm464, %v7758, %v7797
  %v7800 = vunpack.c.l.s4 1934713408
  %v7801 = vunpack.c.0.s8 %v7800
  %v7802 = vperm.slane %v7796, %v7801
  %v7804 = vunpack.c.l.s4 1934713408
  %v7805 = vunpack.c.0.s8 %v7804
  %v7806 = vperm.slane %v7798, %v7805
  %v7807 = vrot.slane %v7778, 4
  %v7808 = vsel %vm464, %v7807, %v7766
  %v7809 = vrot.slane %v7766, 4
  %v7810 = vsel %vm464, %v7778, %v7809
  %v7812 = vunpack.c.l.s4 1934713408
  %v7813 = vunpack.c.0.s8 %v7812
  %v7814 = vperm.slane %v7808, %v7813
  %v7816 = vunpack.c.l.s4 1934713408
  %v7817 = vunpack.c.0.s8 %v7816
  %v7818 = vperm.slane %v7810, %v7817
  %v7819 = vrot.slane %v7782, 4
  %v7820 = vsel %vm464, %v7819, %v7770
  %v7821 = vrot.slane %v7770, 4
  %v7822 = vsel %vm464, %v7782, %v7821
  %v7824 = vunpack.c.l.s4 1934713408
  %v7825 = vunpack.c.0.s8 %v7824
  %v7826 = vperm.slane %v7820, %v7825
  %v7828 = vunpack.c.l.s4 1934713408
  %v7829 = vunpack.c.0.s8 %v7828
  %v7830 = vperm.slane %v7822, %v7829
  %v7831 = vrot.slane %v7814, 4
  %v7832 = vsel %vm464, %v7831, %v7790
  %v7833 = vrot.slane %v7790, 4
  %v7834 = vsel %vm464, %v7814, %v7833
  %v7835 = vrot.slane %v7818, 4
  %v7836 = vsel %vm464, %v7835, %v7794
  %v7837 = vrot.slane %v7794, 4
  %v7838 = vsel %vm464, %v7818, %v7837
  %v7839 = vrot.slane %v7826, 4
  %v7840 = vsel %vm464, %v7839, %v7802
  %v7841 = vrot.slane %v7802, 4
  %v7842 = vsel %vm464, %v7826, %v7841
  %v7843 = vrot.slane %v7830, 4
  %v7844 = vsel %vm464, %v7843, %v7806
  %v7845 = vrot.slane %v7806, 4
  %v7846 = vsel %vm464, %v7830, %v7845
  %v7847 = vrot.slane %v4317, 4
  %v7848 = vsel %vm464, %v7847, %v4291
  %v7849 = vrot.slane %v4291, 4
  %v7850 = vsel %vm464, %v4317, %v7849
  %v7852 = vunpack.c.l.s4 1983009808
  %v7853 = vunpack.c.0.s8 %v7852
  %v7854 = vperm.slane %v7848, %v7853
  %v7856 = vunpack.c.l.s4 1983009808
  %v7857 = vunpack.c.0.s8 %v7856
  %v7858 = vperm.slane %v7850, %v7857
  %v7859 = vrot.slane %v4330, 4
  %v7860 = vsel %vm464, %v7859, %v4304
  %v7861 = vrot.slane %v4304, 4
  %v7862 = vsel %vm464, %v4330, %v7861
  %v7864 = vunpack.c.l.s4 1983009808
  %v7865 = vunpack.c.0.s8 %v7864
  %v7866 = vperm.slane %v7860, %v7865
  %v7868 = vunpack.c.l.s4 1983009808
  %v7869 = vunpack.c.0.s8 %v7868
  %v7870 = vperm.slane %v7862, %v7869
  %v7871 = vrot.slane %v4369, 4
  %v7872 = vsel %vm464, %v7871, %v4343
  %v7873 = vrot.slane %v4343, 4
  %v7874 = vsel %vm464, %v4369, %v7873
  %v7876 = vunpack.c.l.s4 1983009808
  %v7877 = vunpack.c.0.s8 %v7876
  %v7878 = vperm.slane %v7872, %v7877
  %v7880 = vunpack.c.l.s4 1983009808
  %v7881 = vunpack.c.0.s8 %v7880
  %v7882 = vperm.slane %v7874, %v7881
  %v7883 = vrot.slane %v4382, 4
  %v7884 = vsel %vm464, %v7883, %v4356
  %v7885 = vrot.slane %v4356, 4
  %v7886 = vsel %vm464, %v4382, %v7885
  %v7888 = vunpack.c.l.s4 1983009808
  %v7889 = vunpack.c.0.s8 %v7888
  %v7890 = vperm.slane %v7884, %v7889
  %v7892 = vunpack.c.l.s4 1983009808
  %v7893 = vunpack.c.0.s8 %v7892
  %v7894 = vperm.slane %v7886, %v7893
  %v7895 = vrot.slane %v7866, 4
  %v7896 = vsel %vm464, %v7895, %v7854
  %v7897 = vrot.slane %v7854, 4
  %v7898 = vsel %vm464, %v7866, %v7897
  %v7900 = vunpack.c.l.s4 1934713408
  %v7901 = vunpack.c.0.s8 %v7900
  %v7902 = vperm.slane %v7896, %v7901
  %v7904 = vunpack.c.l.s4 1934713408
  %v7905 = vunpack.c.0.s8 %v7904
  %v7906 = vperm.slane %v7898, %v7905
  %v7907 = vrot.slane %v7870, 4
  %v7908 = vsel %vm464, %v7907, %v7858
  %v7909 = vrot.slane %v7858, 4
  %v7910 = vsel %vm464, %v7870, %v7909
  %v7912 = vunpack.c.l.s4 1934713408
  %v7913 = vunpack.c.0.s8 %v7912
  %v7914 = vperm.slane %v7908, %v7913
  %v7916 = vunpack.c.l.s4 1934713408
  %v7917 = vunpack.c.0.s8 %v7916
  %v7918 = vperm.slane %v7910, %v7917
  %v7919 = vrot.slane %v7890, 4
  %v7920 = vsel %vm464, %v7919, %v7878
  %v7921 = vrot.slane %v7878, 4
  %v7922 = vsel %vm464, %v7890, %v7921
  %v7924 = vunpack.c.l.s4 1934713408
  %v7925 = vunpack.c.0.s8 %v7924
  %v7926 = vperm.slane %v7920, %v7925
  %v7928 = vunpack.c.l.s4 1934713408
  %v7929 = vunpack.c.0.s8 %v7928
  %v7930 = vperm.slane %v7922, %v7929
  %v7931 = vrot.slane %v7894, 4
  %v7932 = vsel %vm464, %v7931, %v7882
  %v7933 = vrot.slane %v7882, 4
  %v7934 = vsel %vm464, %v7894, %v7933
  %v7936 = vunpack.c.l.s4 1934713408
  %v7937 = vunpack.c.0.s8 %v7936
  %v7938 = vperm.slane %v7932, %v7937
  %v7940 = vunpack.c.l.s4 1934713408
  %v7941 = vunpack.c.0.s8 %v7940
  %v7942 = vperm.slane %v7934, %v7941
  %v7943 = vrot.slane %v7926, 4
  %v7944 = vsel %vm464, %v7943, %v7902
  %v7945 = vrot.slane %v7902, 4
  %v7946 = vsel %vm464, %v7926, %v7945
  %v7947 = vrot.slane %v7930, 4
  %v7948 = vsel %vm464, %v7947, %v7906
  %v7949 = vrot.slane %v7906, 4
  %v7950 = vsel %vm464, %v7930, %v7949
  %v7951 = vrot.slane %v7938, 4
  %v7952 = vsel %vm464, %v7951, %v7914
  %v7953 = vrot.slane %v7914, 4
  %v7954 = vsel %vm464, %v7938, %v7953
  %v7955 = vrot.slane %v7942, 4
  %v7956 = vsel %vm464, %v7955, %v7918
  %v7957 = vrot.slane %v7918, 4
  %v7958 = vsel %vm464, %v7942, %v7957
  %v7959 = vrot.slane %v4421, 4
  %v7960 = vsel %vm464, %v7959, %v4395
  %v7961 = vrot.slane %v4395, 4
  %v7962 = vsel %vm464, %v4421, %v7961
  %v7964 = vunpack.c.l.s4 1983009808
  %v7965 = vunpack.c.0.s8 %v7964
  %v7966 = vperm.slane %v7960, %v7965
  %v7968 = vunpack.c.l.s4 1983009808
  %v7969 = vunpack.c.0.s8 %v7968
  %v7970 = vperm.slane %v7962, %v7969
  %v7971 = vrot.slane %v4434, 4
  %v7972 = vsel %vm464, %v7971, %v4408
  %v7973 = vrot.slane %v4408, 4
  %v7974 = vsel %vm464, %v4434, %v7973
  %v7976 = vunpack.c.l.s4 1983009808
  %v7977 = vunpack.c.0.s8 %v7976
  %v7978 = vperm.slane %v7972, %v7977
  %v7980 = vunpack.c.l.s4 1983009808
  %v7981 = vunpack.c.0.s8 %v7980
  %v7982 = vperm.slane %v7974, %v7981
  %v7983 = vrot.slane %v4473, 4
  %v7984 = vsel %vm464, %v7983, %v4447
  %v7985 = vrot.slane %v4447, 4
  %v7986 = vsel %vm464, %v4473, %v7985
  %v7988 = vunpack.c.l.s4 1983009808
  %v7989 = vunpack.c.0.s8 %v7988
  %v7990 = vperm.slane %v7984, %v7989
  %v7992 = vunpack.c.l.s4 1983009808
  %v7993 = vunpack.c.0.s8 %v7992
  %v7994 = vperm.slane %v7986, %v7993
  %v7995 = vrot.slane %v4486, 4
  %v7996 = vsel %vm464, %v7995, %v4460
  %v7997 = vrot.slane %v4460, 4
  %v7998 = vsel %vm464, %v4486, %v7997
  %v8000 = vunpack.c.l.s4 1983009808
  %v8001 = vunpack.c.0.s8 %v8000
  %v8002 = vperm.slane %v7996, %v8001
  %v8004 = vunpack.c.l.s4 1983009808
  %v8005 = vunpack.c.0.s8 %v8004
  %v8006 = vperm.slane %v7998, %v8005
  %v8007 = vrot.slane %v7978, 4
  %v8008 = vsel %vm464, %v8007, %v7966
  %v8009 = vrot.slane %v7966, 4
  %v8010 = vsel %vm464, %v7978, %v8009
  %v8012 = vunpack.c.l.s4 1934713408
  %v8013 = vunpack.c.0.s8 %v8012
  %v8014 = vperm.slane %v8008, %v8013
  %v8016 = vunpack.c.l.s4 1934713408
  %v8017 = vunpack.c.0.s8 %v8016
  %v8018 = vperm.slane %v8010, %v8017
  %v8019 = vrot.slane %v7982, 4
  %v8020 = vsel %vm464, %v8019, %v7970
  %v8021 = vrot.slane %v7970, 4
  %v8022 = vsel %vm464, %v7982, %v8021
  %v8024 = vunpack.c.l.s4 1934713408
  %v8025 = vunpack.c.0.s8 %v8024
  %v8026 = vperm.slane %v8020, %v8025
  %v8028 = vunpack.c.l.s4 1934713408
  %v8029 = vunpack.c.0.s8 %v8028
  %v8030 = vperm.slane %v8022, %v8029
  %v8031 = vrot.slane %v8002, 4
  %v8032 = vsel %vm464, %v8031, %v7990
  %v8033 = vrot.slane %v7990, 4
  %v8034 = vsel %vm464, %v8002, %v8033
  %v8036 = vunpack.c.l.s4 1934713408
  %v8037 = vunpack.c.0.s8 %v8036
  %v8038 = vperm.slane %v8032, %v8037
  %v8040 = vunpack.c.l.s4 1934713408
  %v8041 = vunpack.c.0.s8 %v8040
  %v8042 = vperm.slane %v8034, %v8041
  %v8043 = vrot.slane %v8006, 4
  %v8044 = vsel %vm464, %v8043, %v7994
  %v8045 = vrot.slane %v7994, 4
  %v8046 = vsel %vm464, %v8006, %v8045
  %v8048 = vunpack.c.l.s4 1934713408
  %v8049 = vunpack.c.0.s8 %v8048
  %v8050 = vperm.slane %v8044, %v8049
  %v8052 = vunpack.c.l.s4 1934713408
  %v8053 = vunpack.c.0.s8 %v8052
  %v8054 = vperm.slane %v8046, %v8053
  %v8055 = vrot.slane %v8038, 4
  %v8056 = vsel %vm464, %v8055, %v8014
  %v8057 = vrot.slane %v8014, 4
  %v8058 = vsel %vm464, %v8038, %v8057
  %v8059 = vrot.slane %v8042, 4
  %v8060 = vsel %vm464, %v8059, %v8018
  %v8061 = vrot.slane %v8018, 4
  %v8062 = vsel %vm464, %v8042, %v8061
  %v8063 = vrot.slane %v8050, 4
  %v8064 = vsel %vm464, %v8063, %v8026
  %v8065 = vrot.slane %v8026, 4
  %v8066 = vsel %vm464, %v8050, %v8065
  %v8067 = vrot.slane %v8054, 4
  %v8068 = vsel %vm464, %v8067, %v8030
  %v8069 = vrot.slane %v8030, 4
  %v8070 = vsel %vm464, %v8054, %v8069
  %8087 = vrot.lane.b32.xlu0 %v4586, 16
  %v8088 = vpop.permute.xlu0 %8087
  %8089 = vrot.lane.b32.xlu0 %v4698, 16
  %v8090 = vpop.permute.xlu0 %8089
  %8091 = vrot.lane.b32.xlu0 %v4810, 16
  %v8092 = vpop.permute.xlu0 %8091
  %8093 = vrot.lane.b32.xlu0 %v4922, 16
  %v8094 = vpop.permute.xlu0 %8093
  %8095 = vrot.lane.b32.xlu0 %v5034, 16
  %v8096 = vpop.permute.xlu0 %8095
  %8097 = vrot.lane.b32.xlu0 %v5146, 16
  %v8098 = vpop.permute.xlu0 %8097
  %8099 = vrot.lane.b32.xlu0 %v5258, 16
  %v8100 = vpop.permute.xlu0 %8099
  %8101 = vrot.lane.b32.xlu0 %v5370, 16
  %v8102 = vpop.permute.xlu0 %8101
  %8103 = vrot.lane.b32.xlu0 %v5482, 16
  %v8104 = vpop.permute.xlu0 %8103
  %8105 = vrot.lane.b32.xlu0 %v5594, 16
  %v8106 = vpop.permute.xlu0 %8105
  %8107 = vrot.lane.b32.xlu0 %v5706, 16
  %v8108 = vpop.permute.xlu0 %8107
  %8109 = vrot.lane.b32.xlu0 %v5818, 16
  %v8110 = vpop.permute.xlu0 %8109
  %8111 = vrot.lane.b32.xlu0 %v5930, 16
  %v8112 = vpop.permute.xlu0 %8111
  %8113 = vrot.lane.b32.xlu0 %v6042, 16
  %v8114 = vpop.permute.xlu0 %8113
  %8115 = vrot.lane.b32.xlu0 %v6154, 16
  %v8116 = vpop.permute.xlu0 %8115
  %8117 = vrot.lane.b32.xlu0 %v6266, 16
  %v8118 = vpop.permute.xlu0 %8117
  %8151 = vrot.lane.b32.xlu0 %v4588, 32
  %v8152 = vpop.permute.xlu0 %8151
  %8153 = vrot.lane.b32.xlu0 %v4700, 32
  %v8154 = vpop.permute.xlu0 %8153
  %8155 = vrot.lane.b32.xlu0 %v4812, 32
  %v8156 = vpop.permute.xlu0 %8155
  %8157 = vrot.lane.b32.xlu0 %v4924, 32
  %v8158 = vpop.permute.xlu0 %8157
  %8159 = vrot.lane.b32.xlu0 %v5036, 32
  %v8160 = vpop.permute.xlu0 %8159
  %8161 = vrot.lane.b32.xlu0 %v5148, 32
  %v8162 = vpop.permute.xlu0 %8161
  %8163 = vrot.lane.b32.xlu0 %v5260, 32
  %v8164 = vpop.permute.xlu0 %8163
  %8165 = vrot.lane.b32.xlu0 %v5372, 32
  %v8166 = vpop.permute.xlu0 %8165
  %8167 = vrot.lane.b32.xlu0 %v5484, 32
  %v8168 = vpop.permute.xlu0 %8167
  %8169 = vrot.lane.b32.xlu0 %v5596, 32
  %v8170 = vpop.permute.xlu0 %8169
  %8171 = vrot.lane.b32.xlu0 %v5708, 32
  %v8172 = vpop.permute.xlu0 %8171
  %8173 = vrot.lane.b32.xlu0 %v5820, 32
  %v8174 = vpop.permute.xlu0 %8173
  %8175 = vrot.lane.b32.xlu0 %v5932, 32
  %v8176 = vpop.permute.xlu0 %8175
  %8177 = vrot.lane.b32.xlu0 %v6044, 32
  %v8178 = vpop.permute.xlu0 %8177
  %8179 = vrot.lane.b32.xlu0 %v6156, 32
  %v8180 = vpop.permute.xlu0 %8179
  %8181 = vrot.lane.b32.xlu0 %v6268, 32
  %v8182 = vpop.permute.xlu0 %8181
  %8215 = vrot.lane.b32.xlu0 %v4590, 48
  %v8216 = vpop.permute.xlu0 %8215
  %8217 = vrot.lane.b32.xlu0 %v4702, 48
  %v8218 = vpop.permute.xlu0 %8217
  %8219 = vrot.lane.b32.xlu0 %v4814, 48
  %v8220 = vpop.permute.xlu0 %8219
  %8221 = vrot.lane.b32.xlu0 %v4926, 48
  %v8222 = vpop.permute.xlu0 %8221
  %8223 = vrot.lane.b32.xlu0 %v5038, 48
  %v8224 = vpop.permute.xlu0 %8223
  %8225 = vrot.lane.b32.xlu0 %v5150, 48
  %v8226 = vpop.permute.xlu0 %8225
  %8227 = vrot.lane.b32.xlu0 %v5262, 48
  %v8228 = vpop.permute.xlu0 %8227
  %8229 = vrot.lane.b32.xlu0 %v5374, 48
  %v8230 = vpop.permute.xlu0 %8229
  %8231 = vrot.lane.b32.xlu0 %v5486, 48
  %v8232 = vpop.permute.xlu0 %8231
  %8233 = vrot.lane.b32.xlu0 %v5598, 48
  %v8234 = vpop.permute.xlu0 %8233
  %8235 = vrot.lane.b32.xlu0 %v5710, 48
  %v8236 = vpop.permute.xlu0 %8235
  %8237 = vrot.lane.b32.xlu0 %v5822, 48
  %v8238 = vpop.permute.xlu0 %8237
  %8239 = vrot.lane.b32.xlu0 %v5934, 48
  %v8240 = vpop.permute.xlu0 %8239
  %8241 = vrot.lane.b32.xlu0 %v6046, 48
  %v8242 = vpop.permute.xlu0 %8241
  %8243 = vrot.lane.b32.xlu0 %v6158, 48
  %v8244 = vpop.permute.xlu0 %8243
  %8245 = vrot.lane.b32.xlu0 %v6270, 48
  %v8246 = vpop.permute.xlu0 %8245
  %8279 = vrot.lane.b32.xlu0 %v4592, 64
  %v8280 = vpop.permute.xlu0 %8279
  %8281 = vrot.lane.b32.xlu0 %v4704, 64
  %v8282 = vpop.permute.xlu0 %8281
  %8283 = vrot.lane.b32.xlu0 %v4816, 64
  %v8284 = vpop.permute.xlu0 %8283
  %8285 = vrot.lane.b32.xlu0 %v4928, 64
  %v8286 = vpop.permute.xlu0 %8285
  %8287 = vrot.lane.b32.xlu0 %v5040, 64
  %v8288 = vpop.permute.xlu0 %8287
  %8289 = vrot.lane.b32.xlu0 %v5152, 64
  %v8290 = vpop.permute.xlu0 %8289
  %8291 = vrot.lane.b32.xlu0 %v5264, 64
  %v8292 = vpop.permute.xlu0 %8291
  %8293 = vrot.lane.b32.xlu0 %v5376, 64
  %v8294 = vpop.permute.xlu0 %8293
  %8295 = vrot.lane.b32.xlu0 %v5488, 64
  %v8296 = vpop.permute.xlu0 %8295
  %8297 = vrot.lane.b32.xlu0 %v5600, 64
  %v8298 = vpop.permute.xlu0 %8297
  %8299 = vrot.lane.b32.xlu0 %v5712, 64
  %v8300 = vpop.permute.xlu0 %8299
  %8301 = vrot.lane.b32.xlu0 %v5824, 64
  %v8302 = vpop.permute.xlu0 %8301
  %8303 = vrot.lane.b32.xlu0 %v5936, 64
  %v8304 = vpop.permute.xlu0 %8303
  %8305 = vrot.lane.b32.xlu0 %v6048, 64
  %v8306 = vpop.permute.xlu0 %8305
  %8307 = vrot.lane.b32.xlu0 %v6160, 64
  %v8308 = vpop.permute.xlu0 %8307
  %8309 = vrot.lane.b32.xlu0 %v6272, 64
  %v8310 = vpop.permute.xlu0 %8309
  %8343 = vrot.lane.b32.xlu0 %v4594, 80
  %v8344 = vpop.permute.xlu0 %8343
  %8345 = vrot.lane.b32.xlu0 %v4706, 80
  %v8346 = vpop.permute.xlu0 %8345
  %8347 = vrot.lane.b32.xlu0 %v4818, 80
  %v8348 = vpop.permute.xlu0 %8347
  %8349 = vrot.lane.b32.xlu0 %v4930, 80
  %v8350 = vpop.permute.xlu0 %8349
  %8351 = vrot.lane.b32.xlu0 %v5042, 80
  %v8352 = vpop.permute.xlu0 %8351
  %8353 = vrot.lane.b32.xlu0 %v5154, 80
  %v8354 = vpop.permute.xlu0 %8353
  %8355 = vrot.lane.b32.xlu0 %v5266, 80
  %v8356 = vpop.permute.xlu0 %8355
  %8357 = vrot.lane.b32.xlu0 %v5378, 80
  %v8358 = vpop.permute.xlu0 %8357
  %8359 = vrot.lane.b32.xlu0 %v5490, 80
  %v8360 = vpop.permute.xlu0 %8359
  %8361 = vrot.lane.b32.xlu0 %v5602, 80
  %v8362 = vpop.permute.xlu0 %8361
  %8363 = vrot.lane.b32.xlu0 %v5714, 80
  %v8364 = vpop.permute.xlu0 %8363
  %8365 = vrot.lane.b32.xlu0 %v5826, 80
  %v8366 = vpop.permute.xlu0 %8365
  %8367 = vrot.lane.b32.xlu0 %v5938, 80
  %v8368 = vpop.permute.xlu0 %8367
  %8369 = vrot.lane.b32.xlu0 %v6050, 80
  %v8370 = vpop.permute.xlu0 %8369
  %8371 = vrot.lane.b32.xlu0 %v6162, 80
  %v8372 = vpop.permute.xlu0 %8371
  %8373 = vrot.lane.b32.xlu0 %v6274, 80
  %v8374 = vpop.permute.xlu0 %8373
  %8407 = vrot.lane.b32.xlu0 %v4596, 96
  %v8408 = vpop.permute.xlu0 %8407
  %8409 = vrot.lane.b32.xlu0 %v4708, 96
  %v8410 = vpop.permute.xlu0 %8409
  %8411 = vrot.lane.b32.xlu0 %v4820, 96
  %v8412 = vpop.permute.xlu0 %8411
  %8413 = vrot.lane.b32.xlu0 %v4932, 96
  %v8414 = vpop.permute.xlu0 %8413
  %8415 = vrot.lane.b32.xlu0 %v5044, 96
  %v8416 = vpop.permute.xlu0 %8415
  %8417 = vrot.lane.b32.xlu0 %v5156, 96
  %v8418 = vpop.permute.xlu0 %8417
  %8419 = vrot.lane.b32.xlu0 %v5268, 96
  %v8420 = vpop.permute.xlu0 %8419
  %8421 = vrot.lane.b32.xlu0 %v5380, 96
  %v8422 = vpop.permute.xlu0 %8421
  %8423 = vrot.lane.b32.xlu0 %v5492, 96
  %v8424 = vpop.permute.xlu0 %8423
  %8425 = vrot.lane.b32.xlu0 %v5604, 96
  %v8426 = vpop.permute.xlu0 %8425
  %8427 = vrot.lane.b32.xlu0 %v5716, 96
  %v8428 = vpop.permute.xlu0 %8427
  %8429 = vrot.lane.b32.xlu0 %v5828, 96
  %v8430 = vpop.permute.xlu0 %8429
  %8431 = vrot.lane.b32.xlu0 %v5940, 96
  %v8432 = vpop.permute.xlu0 %8431
  %8433 = vrot.lane.b32.xlu0 %v6052, 96
  %v8434 = vpop.permute.xlu0 %8433
  %8435 = vrot.lane.b32.xlu0 %v6164, 96
  %v8436 = vpop.permute.xlu0 %8435
  %8437 = vrot.lane.b32.xlu0 %v6276, 96
  %v8438 = vpop.permute.xlu0 %8437
  %8471 = vrot.lane.b32.xlu0 %v4598, 112
  %v8472 = vpop.permute.xlu0 %8471
  %8473 = vrot.lane.b32.xlu0 %v4710, 112
  %v8474 = vpop.permute.xlu0 %8473
  %8475 = vrot.lane.b32.xlu0 %v4822, 112
  %v8476 = vpop.permute.xlu0 %8475
  %8477 = vrot.lane.b32.xlu0 %v4934, 112
  %v8478 = vpop.permute.xlu0 %8477
  %8479 = vrot.lane.b32.xlu0 %v5046, 112
  %v8480 = vpop.permute.xlu0 %8479
  %8481 = vrot.lane.b32.xlu0 %v5158, 112
  %v8482 = vpop.permute.xlu0 %8481
  %8483 = vrot.lane.b32.xlu0 %v5270, 112
  %v8484 = vpop.permute.xlu0 %8483
  %8485 = vrot.lane.b32.xlu0 %v5382, 112
  %v8486 = vpop.permute.xlu0 %8485
  %8487 = vrot.lane.b32.xlu0 %v5494, 112
  %v8488 = vpop.permute.xlu0 %8487
  %8489 = vrot.lane.b32.xlu0 %v5606, 112
  %v8490 = vpop.permute.xlu0 %8489
  %8491 = vrot.lane.b32.xlu0 %v5718, 112
  %v8492 = vpop.permute.xlu0 %8491
  %8493 = vrot.lane.b32.xlu0 %v5830, 112
  %v8494 = vpop.permute.xlu0 %8493
  %8495 = vrot.lane.b32.xlu0 %v5942, 112
  %v8496 = vpop.permute.xlu0 %8495
  %8497 = vrot.lane.b32.xlu0 %v6054, 112
  %v8498 = vpop.permute.xlu0 %8497
  %8499 = vrot.lane.b32.xlu0 %v6166, 112
  %v8500 = vpop.permute.xlu0 %8499
  %8501 = vrot.lane.b32.xlu0 %v6278, 112
  %v8502 = vpop.permute.xlu0 %8501
  %8535 = vrot.lane.b32.xlu0 %v6378, 16
  %v8536 = vpop.permute.xlu0 %8535
  %8537 = vrot.lane.b32.xlu0 %v6490, 16
  %v8538 = vpop.permute.xlu0 %8537
  %8539 = vrot.lane.b32.xlu0 %v6602, 16
  %v8540 = vpop.permute.xlu0 %8539
  %8541 = vrot.lane.b32.xlu0 %v6714, 16
  %v8542 = vpop.permute.xlu0 %8541
  %8543 = vrot.lane.b32.xlu0 %v6826, 16
  %v8544 = vpop.permute.xlu0 %8543
  %8545 = vrot.lane.b32.xlu0 %v6938, 16
  %v8546 = vpop.permute.xlu0 %8545
  %8547 = vrot.lane.b32.xlu0 %v7050, 16
  %v8548 = vpop.permute.xlu0 %8547
  %8549 = vrot.lane.b32.xlu0 %v7162, 16
  %v8550 = vpop.permute.xlu0 %8549
  %8551 = vrot.lane.b32.xlu0 %v7274, 16
  %v8552 = vpop.permute.xlu0 %8551
  %8553 = vrot.lane.b32.xlu0 %v7386, 16
  %v8554 = vpop.permute.xlu0 %8553
  %8555 = vrot.lane.b32.xlu0 %v7498, 16
  %v8556 = vpop.permute.xlu0 %8555
  %8557 = vrot.lane.b32.xlu0 %v7610, 16
  %v8558 = vpop.permute.xlu0 %8557
  %8559 = vrot.lane.b32.xlu0 %v7722, 16
  %v8560 = vpop.permute.xlu0 %8559
  %8561 = vrot.lane.b32.xlu0 %v7834, 16
  %v8562 = vpop.permute.xlu0 %8561
  %8563 = vrot.lane.b32.xlu0 %v7946, 16
  %v8564 = vpop.permute.xlu0 %8563
  %8565 = vrot.lane.b32.xlu0 %v8058, 16
  %v8566 = vpop.permute.xlu0 %8565
  %8599 = vrot.lane.b32.xlu0 %v6380, 32
  %v8600 = vpop.permute.xlu0 %8599
  %8601 = vrot.lane.b32.xlu0 %v6492, 32
  %v8602 = vpop.permute.xlu0 %8601
  %8603 = vrot.lane.b32.xlu0 %v6604, 32
  %v8604 = vpop.permute.xlu0 %8603
  %8605 = vrot.lane.b32.xlu0 %v6716, 32
  %v8606 = vpop.permute.xlu0 %8605
  %8607 = vrot.lane.b32.xlu0 %v6828, 32
  %v8608 = vpop.permute.xlu0 %8607
  %8609 = vrot.lane.b32.xlu0 %v6940, 32
  %v8610 = vpop.permute.xlu0 %8609
  %8611 = vrot.lane.b32.xlu0 %v7052, 32
  %v8612 = vpop.permute.xlu0 %8611
  %8613 = vrot.lane.b32.xlu0 %v7164, 32
  %v8614 = vpop.permute.xlu0 %8613
  %8615 = vrot.lane.b32.xlu0 %v7276, 32
  %v8616 = vpop.permute.xlu0 %8615
  %8617 = vrot.lane.b32.xlu0 %v7388, 32
  %v8618 = vpop.permute.xlu0 %8617
  %8619 = vrot.lane.b32.xlu0 %v7500, 32
  %v8620 = vpop.permute.xlu0 %8619
  %8621 = vrot.lane.b32.xlu0 %v7612, 32
  %v8622 = vpop.permute.xlu0 %8621
  %8623 = vrot.lane.b32.xlu0 %v7724, 32
  %v8624 = vpop.permute.xlu0 %8623
  %8625 = vrot.lane.b32.xlu0 %v7836, 32
  %v8626 = vpop.permute.xlu0 %8625
  %8627 = vrot.lane.b32.xlu0 %v7948, 32
  %v8628 = vpop.permute.xlu0 %8627
  %8629 = vrot.lane.b32.xlu0 %v8060, 32
  %v8630 = vpop.permute.xlu0 %8629
  %8663 = vrot.lane.b32.xlu0 %v6382, 48
  %v8664 = vpop.permute.xlu0 %8663
  %8665 = vrot.lane.b32.xlu0 %v6494, 48
  %v8666 = vpop.permute.xlu0 %8665
  %8667 = vrot.lane.b32.xlu0 %v6606, 48
  %v8668 = vpop.permute.xlu0 %8667
  %8669 = vrot.lane.b32.xlu0 %v6718, 48
  %v8670 = vpop.permute.xlu0 %8669
  %8671 = vrot.lane.b32.xlu0 %v6830, 48
  %v8672 = vpop.permute.xlu0 %8671
  %8673 = vrot.lane.b32.xlu0 %v6942, 48
  %v8674 = vpop.permute.xlu0 %8673
  %8675 = vrot.lane.b32.xlu0 %v7054, 48
  %v8676 = vpop.permute.xlu0 %8675
  %8677 = vrot.lane.b32.xlu0 %v7166, 48
  %v8678 = vpop.permute.xlu0 %8677
  %8679 = vrot.lane.b32.xlu0 %v7278, 48
  %v8680 = vpop.permute.xlu0 %8679
  %8681 = vrot.lane.b32.xlu0 %v7390, 48
  %v8682 = vpop.permute.xlu0 %8681
  %8683 = vrot.lane.b32.xlu0 %v7502, 48
  %v8684 = vpop.permute.xlu0 %8683
  %8685 = vrot.lane.b32.xlu0 %v7614, 48
  %v8686 = vpop.permute.xlu0 %8685
  %8687 = vrot.lane.b32.xlu0 %v7726, 48
  %v8688 = vpop.permute.xlu0 %8687
  %8689 = vrot.lane.b32.xlu0 %v7838, 48
  %v8690 = vpop.permute.xlu0 %8689
  %8691 = vrot.lane.b32.xlu0 %v7950, 48
  %v8692 = vpop.permute.xlu0 %8691
  %8693 = vrot.lane.b32.xlu0 %v8062, 48
  %v8694 = vpop.permute.xlu0 %8693
  %8727 = vrot.lane.b32.xlu0 %v6384, 64
  %v8728 = vpop.permute.xlu0 %8727
  %8729 = vrot.lane.b32.xlu0 %v6496, 64
  %v8730 = vpop.permute.xlu0 %8729
  %8731 = vrot.lane.b32.xlu0 %v6608, 64
  %v8732 = vpop.permute.xlu0 %8731
  %8733 = vrot.lane.b32.xlu0 %v6720, 64
  %v8734 = vpop.permute.xlu0 %8733
  %8735 = vrot.lane.b32.xlu0 %v6832, 64
  %v8736 = vpop.permute.xlu0 %8735
  %8737 = vrot.lane.b32.xlu0 %v6944, 64
  %v8738 = vpop.permute.xlu0 %8737
  %8739 = vrot.lane.b32.xlu0 %v7056, 64
  %v8740 = vpop.permute.xlu0 %8739
  %8741 = vrot.lane.b32.xlu0 %v7168, 64
  %v8742 = vpop.permute.xlu0 %8741
  %8743 = vrot.lane.b32.xlu0 %v7280, 64
  %v8744 = vpop.permute.xlu0 %8743
  %8745 = vrot.lane.b32.xlu0 %v7392, 64
  %v8746 = vpop.permute.xlu0 %8745
  %8747 = vrot.lane.b32.xlu0 %v7504, 64
  %v8748 = vpop.permute.xlu0 %8747
  %8749 = vrot.lane.b32.xlu0 %v7616, 64
  %v8750 = vpop.permute.xlu0 %8749
  %8751 = vrot.lane.b32.xlu0 %v7728, 64
  %v8752 = vpop.permute.xlu0 %8751
  %8753 = vrot.lane.b32.xlu0 %v7840, 64
  %v8754 = vpop.permute.xlu0 %8753
  %8755 = vrot.lane.b32.xlu0 %v7952, 64
  %v8756 = vpop.permute.xlu0 %8755
  %8757 = vrot.lane.b32.xlu0 %v8064, 64
  %v8758 = vpop.permute.xlu0 %8757
  %8791 = vrot.lane.b32.xlu0 %v6386, 80
  %v8792 = vpop.permute.xlu0 %8791
  %8793 = vrot.lane.b32.xlu0 %v6498, 80
  %v8794 = vpop.permute.xlu0 %8793
  %8795 = vrot.lane.b32.xlu0 %v6610, 80
  %v8796 = vpop.permute.xlu0 %8795
  %8797 = vrot.lane.b32.xlu0 %v6722, 80
  %v8798 = vpop.permute.xlu0 %8797
  %8799 = vrot.lane.b32.xlu0 %v6834, 80
  %v8800 = vpop.permute.xlu0 %8799
  %8801 = vrot.lane.b32.xlu0 %v6946, 80
  %v8802 = vpop.permute.xlu0 %8801
  %8803 = vrot.lane.b32.xlu0 %v7058, 80
  %v8804 = vpop.permute.xlu0 %8803
  %8805 = vrot.lane.b32.xlu0 %v7170, 80
  %v8806 = vpop.permute.xlu0 %8805
  %8807 = vrot.lane.b32.xlu0 %v7282, 80
  %v8808 = vpop.permute.xlu0 %8807
  %8809 = vrot.lane.b32.xlu0 %v7394, 80
  %v8810 = vpop.permute.xlu0 %8809
  %8811 = vrot.lane.b32.xlu0 %v7506, 80
  %v8812 = vpop.permute.xlu0 %8811
  %8813 = vrot.lane.b32.xlu0 %v7618, 80
  %v8814 = vpop.permute.xlu0 %8813
  %8815 = vrot.lane.b32.xlu0 %v7730, 80
  %v8816 = vpop.permute.xlu0 %8815
  %8817 = vrot.lane.b32.xlu0 %v7842, 80
  %v8818 = vpop.permute.xlu0 %8817
  %8819 = vrot.lane.b32.xlu0 %v7954, 80
  %v8820 = vpop.permute.xlu0 %8819
  %8821 = vrot.lane.b32.xlu0 %v8066, 80
  %v8822 = vpop.permute.xlu0 %8821
  %8855 = vrot.lane.b32.xlu0 %v6388, 96
  %v8856 = vpop.permute.xlu0 %8855
  %8857 = vrot.lane.b32.xlu0 %v6500, 96
  %v8858 = vpop.permute.xlu0 %8857
  %8859 = vrot.lane.b32.xlu0 %v6612, 96
  %v8860 = vpop.permute.xlu0 %8859
  %8861 = vrot.lane.b32.xlu0 %v6724, 96
  %v8862 = vpop.permute.xlu0 %8861
  %8863 = vrot.lane.b32.xlu0 %v6836, 96
  %v8864 = vpop.permute.xlu0 %8863
  %8865 = vrot.lane.b32.xlu0 %v6948, 96
  %v8866 = vpop.permute.xlu0 %8865
  %8867 = vrot.lane.b32.xlu0 %v7060, 96
  %v8868 = vpop.permute.xlu0 %8867
  %8869 = vrot.lane.b32.xlu0 %v7172, 96
  %v8870 = vpop.permute.xlu0 %8869
  %8871 = vrot.lane.b32.xlu0 %v7284, 96
  %v8872 = vpop.permute.xlu0 %8871
  %8873 = vrot.lane.b32.xlu0 %v7396, 96
  %v8874 = vpop.permute.xlu0 %8873
  %8875 = vrot.lane.b32.xlu0 %v7508, 96
  %v8876 = vpop.permute.xlu0 %8875
  %8877 = vrot.lane.b32.xlu0 %v7620, 96
  %v8878 = vpop.permute.xlu0 %8877
  %8879 = vrot.lane.b32.xlu0 %v7732, 96
  %v8880 = vpop.permute.xlu0 %8879
  %8881 = vrot.lane.b32.xlu0 %v7844, 96
  %v8882 = vpop.permute.xlu0 %8881
  %8883 = vrot.lane.b32.xlu0 %v7956, 96
  %v8884 = vpop.permute.xlu0 %8883
  %8885 = vrot.lane.b32.xlu0 %v8068, 96
  %v8886 = vpop.permute.xlu0 %8885
  %8919 = vrot.lane.b32.xlu0 %v6390, 112
  %v8920 = vpop.permute.xlu0 %8919
  %8921 = vrot.lane.b32.xlu0 %v6502, 112
  %v8922 = vpop.permute.xlu0 %8921
  %8923 = vrot.lane.b32.xlu0 %v6614, 112
  %v8924 = vpop.permute.xlu0 %8923
  %8925 = vrot.lane.b32.xlu0 %v6726, 112
  %v8926 = vpop.permute.xlu0 %8925
  %8927 = vrot.lane.b32.xlu0 %v6838, 112
  %v8928 = vpop.permute.xlu0 %8927
  %8929 = vrot.lane.b32.xlu0 %v6950, 112
  %v8930 = vpop.permute.xlu0 %8929
  %8931 = vrot.lane.b32.xlu0 %v7062, 112
  %v8932 = vpop.permute.xlu0 %8931
  %8933 = vrot.lane.b32.xlu0 %v7174, 112
  %v8934 = vpop.permute.xlu0 %8933
  %8935 = vrot.lane.b32.xlu0 %v7286, 112
  %v8936 = vpop.permute.xlu0 %8935
  %8937 = vrot.lane.b32.xlu0 %v7398, 112
  %v8938 = vpop.permute.xlu0 %8937
  %8939 = vrot.lane.b32.xlu0 %v7510, 112
  %v8940 = vpop.permute.xlu0 %8939
  %8941 = vrot.lane.b32.xlu0 %v7622, 112
  %v8942 = vpop.permute.xlu0 %8941
  %8943 = vrot.lane.b32.xlu0 %v7734, 112
  %v8944 = vpop.permute.xlu0 %8943
  %8945 = vrot.lane.b32.xlu0 %v7846, 112
  %v8946 = vpop.permute.xlu0 %8945
  %8947 = vrot.lane.b32.xlu0 %v7958, 112
  %v8948 = vpop.permute.xlu0 %8947
  %8949 = vrot.lane.b32.xlu0 %v8070, 112
  %v8950 = vpop.permute.xlu0 %8949
  %v8967 = vsel %vm2704, %v4584, %v8088
  %v8968 = vsel %vm2704, %v4696, %v8090
  %v8969 = vsel %vm2704, %v4808, %v8092
  %v8970 = vsel %vm2704, %v4920, %v8094
  %v8971 = vsel %vm2704, %v5032, %v8096
  %v8972 = vsel %vm2704, %v5144, %v8098
  %v8973 = vsel %vm2704, %v5256, %v8100
  %v8974 = vsel %vm2704, %v5368, %v8102
  %v8975 = vsel %vm2704, %v5480, %v8104
  %v8976 = vsel %vm2704, %v5592, %v8106
  %v8977 = vsel %vm2704, %v5704, %v8108
  %v8978 = vsel %vm2704, %v5816, %v8110
  %v8979 = vsel %vm2704, %v5928, %v8112
  %v8980 = vsel %vm2704, %v6040, %v8114
  %v8981 = vsel %vm2704, %v6152, %v8116
  %v8982 = vsel %vm2704, %v6264, %v8118
  %v8983 = vsel %vm2721, %v8967, %v8152
  %v8984 = vsel %vm2721, %v8968, %v8154
  %v8985 = vsel %vm2721, %v8969, %v8156
  %v8986 = vsel %vm2721, %v8970, %v8158
  %v8987 = vsel %vm2721, %v8971, %v8160
  %v8988 = vsel %vm2721, %v8972, %v8162
  %v8989 = vsel %vm2721, %v8973, %v8164
  %v8990 = vsel %vm2721, %v8974, %v8166
  %v8991 = vsel %vm2721, %v8975, %v8168
  %v8992 = vsel %vm2721, %v8976, %v8170
  %v8993 = vsel %vm2721, %v8977, %v8172
  %v8994 = vsel %vm2721, %v8978, %v8174
  %v8995 = vsel %vm2721, %v8979, %v8176
  %v8996 = vsel %vm2721, %v8980, %v8178
  %v8997 = vsel %vm2721, %v8981, %v8180
  %v8998 = vsel %vm2721, %v8982, %v8182
  %v8999 = vsel %vm2738, %v8983, %v8216
  %v9000 = vsel %vm2738, %v8984, %v8218
  %v9001 = vsel %vm2738, %v8985, %v8220
  %v9002 = vsel %vm2738, %v8986, %v8222
  %v9003 = vsel %vm2738, %v8987, %v8224
  %v9004 = vsel %vm2738, %v8988, %v8226
  %v9005 = vsel %vm2738, %v8989, %v8228
  %v9006 = vsel %vm2738, %v8990, %v8230
  %v9007 = vsel %vm2738, %v8991, %v8232
  %v9008 = vsel %vm2738, %v8992, %v8234
  %v9009 = vsel %vm2738, %v8993, %v8236
  %v9010 = vsel %vm2738, %v8994, %v8238
  %v9011 = vsel %vm2738, %v8995, %v8240
  %v9012 = vsel %vm2738, %v8996, %v8242
  %v9013 = vsel %vm2738, %v8997, %v8244
  %v9014 = vsel %vm2738, %v8998, %v8246
  %v9015 = vsel %vm2755, %v8999, %v8280
  %v9016 = vsel %vm2755, %v9000, %v8282
  %v9017 = vsel %vm2755, %v9001, %v8284
  %v9018 = vsel %vm2755, %v9002, %v8286
  %v9019 = vsel %vm2755, %v9003, %v8288
  %v9020 = vsel %vm2755, %v9004, %v8290
  %v9021 = vsel %vm2755, %v9005, %v8292
  %v9022 = vsel %vm2755, %v9006, %v8294
  %v9023 = vsel %vm2755, %v9007, %v8296
  %v9024 = vsel %vm2755, %v9008, %v8298
  %v9025 = vsel %vm2755, %v9009, %v8300
  %v9026 = vsel %vm2755, %v9010, %v8302
  %v9027 = vsel %vm2755, %v9011, %v8304
  %v9028 = vsel %vm2755, %v9012, %v8306
  %v9029 = vsel %vm2755, %v9013, %v8308
  %v9030 = vsel %vm2755, %v9014, %v8310
  %v9031 = vsel %vm2772, %v9015, %v8344
  %v9032 = vsel %vm2772, %v9016, %v8346
  %v9033 = vsel %vm2772, %v9017, %v8348
  %v9034 = vsel %vm2772, %v9018, %v8350
  %v9035 = vsel %vm2772, %v9019, %v8352
  %v9036 = vsel %vm2772, %v9020, %v8354
  %v9037 = vsel %vm2772, %v9021, %v8356
  %v9038 = vsel %vm2772, %v9022, %v8358
  %v9039 = vsel %vm2772, %v9023, %v8360
  %v9040 = vsel %vm2772, %v9024, %v8362
  %v9041 = vsel %vm2772, %v9025, %v8364
  %v9042 = vsel %vm2772, %v9026, %v8366
  %v9043 = vsel %vm2772, %v9027, %v8368
  %v9044 = vsel %vm2772, %v9028, %v8370
  %v9045 = vsel %vm2772, %v9029, %v8372
  %v9046 = vsel %vm2772, %v9030, %v8374
  %v9047 = vsel %vm2789, %v9031, %v8408
  %v9048 = vsel %vm2789, %v9032, %v8410
  %v9049 = vsel %vm2789, %v9033, %v8412
  %v9050 = vsel %vm2789, %v9034, %v8414
  %v9051 = vsel %vm2789, %v9035, %v8416
  %v9052 = vsel %vm2789, %v9036, %v8418
  %v9053 = vsel %vm2789, %v9037, %v8420
  %v9054 = vsel %vm2789, %v9038, %v8422
  %v9055 = vsel %vm2789, %v9039, %v8424
  %v9056 = vsel %vm2789, %v9040, %v8426
  %v9057 = vsel %vm2789, %v9041, %v8428
  %v9058 = vsel %vm2789, %v9042, %v8430
  %v9059 = vsel %vm2789, %v9043, %v8432
  %v9060 = vsel %vm2789, %v9044, %v8434
  %v9061 = vsel %vm2789, %v9045, %v8436
  %v9062 = vsel %vm2789, %v9046, %v8438
  %v9063 = vsel %vm2806, %v9047, %v8472
  %v9064 = vsel %vm2806, %v9048, %v8474
  %v9065 = vsel %vm2806, %v9049, %v8476
  %v9066 = vsel %vm2806, %v9050, %v8478
  %v9067 = vsel %vm2806, %v9051, %v8480
  %v9068 = vsel %vm2806, %v9052, %v8482
  %v9069 = vsel %vm2806, %v9053, %v8484
  %v9070 = vsel %vm2806, %v9054, %v8486
  %v9071 = vsel %vm2806, %v9055, %v8488
  %v9072 = vsel %vm2806, %v9056, %v8490
  %v9073 = vsel %vm2806, %v9057, %v8492
  %v9074 = vsel %vm2806, %v9058, %v8494
  %v9075 = vsel %vm2806, %v9059, %v8496
  %v9076 = vsel %vm2806, %v9060, %v8498
  %v9077 = vsel %vm2806, %v9061, %v8500
  %v9078 = vsel %vm2806, %v9062, %v8502
  %v9079 = vsel %vm2704, %v6376, %v8536
  %v9080 = vsel %vm2704, %v6488, %v8538
  %v9081 = vsel %vm2704, %v6600, %v8540
  %v9082 = vsel %vm2704, %v6712, %v8542
  %v9083 = vsel %vm2704, %v6824, %v8544
  %v9084 = vsel %vm2704, %v6936, %v8546
  %v9085 = vsel %vm2704, %v7048, %v8548
  %v9086 = vsel %vm2704, %v7160, %v8550
  %v9087 = vsel %vm2704, %v7272, %v8552
  %v9088 = vsel %vm2704, %v7384, %v8554
  %v9089 = vsel %vm2704, %v7496, %v8556
  %v9090 = vsel %vm2704, %v7608, %v8558
  %v9091 = vsel %vm2704, %v7720, %v8560
  %v9092 = vsel %vm2704, %v7832, %v8562
  %v9093 = vsel %vm2704, %v7944, %v8564
  %v9094 = vsel %vm2704, %v8056, %v8566
  %v9095 = vsel %vm2721, %v9079, %v8600
  %v9096 = vsel %vm2721, %v9080, %v8602
  %v9097 = vsel %vm2721, %v9081, %v8604
  %v9098 = vsel %vm2721, %v9082, %v8606
  %v9099 = vsel %vm2721, %v9083, %v8608
  %v9100 = vsel %vm2721, %v9084, %v8610
  %v9101 = vsel %vm2721, %v9085, %v8612
  %v9102 = vsel %vm2721, %v9086, %v8614
  %v9103 = vsel %vm2721, %v9087, %v8616
  %v9104 = vsel %vm2721, %v9088, %v8618
  %v9105 = vsel %vm2721, %v9089, %v8620
  %v9106 = vsel %vm2721, %v9090, %v8622
  %v9107 = vsel %vm2721, %v9091, %v8624
  %v9108 = vsel %vm2721, %v9092, %v8626
  %v9109 = vsel %vm2721, %v9093, %v8628
  %v9110 = vsel %vm2721, %v9094, %v8630
  %v9111 = vsel %vm2738, %v9095, %v8664
  %v9112 = vsel %vm2738, %v9096, %v8666
  %v9113 = vsel %vm2738, %v9097, %v8668
  %v9114 = vsel %vm2738, %v9098, %v8670
  %v9115 = vsel %vm2738, %v9099, %v8672
  %v9116 = vsel %vm2738, %v9100, %v8674
  %v9117 = vsel %vm2738, %v9101, %v8676
  %v9118 = vsel %vm2738, %v9102, %v8678
  %v9119 = vsel %vm2738, %v9103, %v8680
  %v9120 = vsel %vm2738, %v9104, %v8682
  %v9121 = vsel %vm2738, %v9105, %v8684
  %v9122 = vsel %vm2738, %v9106, %v8686
  %v9123 = vsel %vm2738, %v9107, %v8688
  %v9124 = vsel %vm2738, %v9108, %v8690
  %v9125 = vsel %vm2738, %v9109, %v8692
  %v9126 = vsel %vm2738, %v9110, %v8694
  %v9127 = vsel %vm2755, %v9111, %v8728
  %v9128 = vsel %vm2755, %v9112, %v8730
  %v9129 = vsel %vm2755, %v9113, %v8732
  %v9130 = vsel %vm2755, %v9114, %v8734
  %v9131 = vsel %vm2755, %v9115, %v8736
  %v9132 = vsel %vm2755, %v9116, %v8738
  %v9133 = vsel %vm2755, %v9117, %v8740
  %v9134 = vsel %vm2755, %v9118, %v8742
  %v9135 = vsel %vm2755, %v9119, %v8744
  %v9136 = vsel %vm2755, %v9120, %v8746
  %v9137 = vsel %vm2755, %v9121, %v8748
  %v9138 = vsel %vm2755, %v9122, %v8750
  %v9139 = vsel %vm2755, %v9123, %v8752
  %v9140 = vsel %vm2755, %v9124, %v8754
  %v9141 = vsel %vm2755, %v9125, %v8756
  %v9142 = vsel %vm2755, %v9126, %v8758
  %v9143 = vsel %vm2772, %v9127, %v8792
  %v9144 = vsel %vm2772, %v9128, %v8794
  %v9145 = vsel %vm2772, %v9129, %v8796
  %v9146 = vsel %vm2772, %v9130, %v8798
  %v9147 = vsel %vm2772, %v9131, %v8800
  %v9148 = vsel %vm2772, %v9132, %v8802
  %v9149 = vsel %vm2772, %v9133, %v8804
  %v9150 = vsel %vm2772, %v9134, %v8806
  %v9151 = vsel %vm2772, %v9135, %v8808
  %v9152 = vsel %vm2772, %v9136, %v8810
  %v9153 = vsel %vm2772, %v9137, %v8812
  %v9154 = vsel %vm2772, %v9138, %v8814
  %v9155 = vsel %vm2772, %v9139, %v8816
  %v9156 = vsel %vm2772, %v9140, %v8818
  %v9157 = vsel %vm2772, %v9141, %v8820
  %v9158 = vsel %vm2772, %v9142, %v8822
  %v9159 = vsel %vm2789, %v9143, %v8856
  %v9160 = vsel %vm2789, %v9144, %v8858
  %v9161 = vsel %vm2789, %v9145, %v8860
  %v9162 = vsel %vm2789, %v9146, %v8862
  %v9163 = vsel %vm2789, %v9147, %v8864
  %v9164 = vsel %vm2789, %v9148, %v8866
  %v9165 = vsel %vm2789, %v9149, %v8868
  %v9166 = vsel %vm2789, %v9150, %v8870
  %v9167 = vsel %vm2789, %v9151, %v8872
  %v9168 = vsel %vm2789, %v9152, %v8874
  %v9169 = vsel %vm2789, %v9153, %v8876
  %v9170 = vsel %vm2789, %v9154, %v8878
  %v9171 = vsel %vm2789, %v9155, %v8880
  %v9172 = vsel %vm2789, %v9156, %v8882
  %v9173 = vsel %vm2789, %v9157, %v8884
  %v9174 = vsel %vm2789, %v9158, %v8886
  %v9175 = vsel %vm2806, %v9159, %v8920
  %v9176 = vsel %vm2806, %v9160, %v8922
  %v9177 = vsel %vm2806, %v9161, %v8924
  %v9178 = vsel %vm2806, %v9162, %v8926
  %v9179 = vsel %vm2806, %v9163, %v8928
  %v9180 = vsel %vm2806, %v9164, %v8930
  %v9181 = vsel %vm2806, %v9165, %v8932
  %v9182 = vsel %vm2806, %v9166, %v8934
  %v9183 = vsel %vm2806, %v9167, %v8936
  %v9184 = vsel %vm2806, %v9168, %v8938
  %v9185 = vsel %vm2806, %v9169, %v8940
  %v9186 = vsel %vm2806, %v9170, %v8942
  %v9187 = vsel %vm2806, %v9171, %v8944
  %v9188 = vsel %vm2806, %v9172, %v8946
  %v9189 = vsel %vm2806, %v9173, %v8948
  %v9190 = vsel %vm2806, %v9174, %v8950
  %9191 = vst [vmem:[%s2] sm:$0xff] %v2807
  %9192 = vst [vmem:[%s2 + $0x8] sm:$0xff] %v2807
  %9193 = vst [vmem:[%s2 + $0x10] sm:$0xff] %v2808
  %9194 = vst [vmem:[%s2 + $0x18] sm:$0xff] %v2808
  %9195 = vst [vmem:[%s2 + $0x20] sm:$0xff] %v2809
  %9196 = vst [vmem:[%s2 + $0x28] sm:$0xff] %v2809
  %9197 = vst [vmem:[%s2 + $0x30] sm:$0xff] %v2810
  %9198 = vst [vmem:[%s2 + $0x38] sm:$0xff] %v2810
  %9199 = vst [vmem:[%s2 + $0x40] sm:$0xff] %v2811
  %9200 = vst [vmem:[%s2 + $0x48] sm:$0xff] %v2811
  %9201 = vst [vmem:[%s2 + $0x50] sm:$0xff] %v2812
  %9202 = vst [vmem:[%s2 + $0x58] sm:$0xff] %v2812
  %9203 = vst [vmem:[%s2 + $0x60] sm:$0xff] %v2813
  %9204 = vst [vmem:[%s2 + $0x68] sm:$0xff] %v2813
  %9205 = vst [vmem:[%s2 + $0x70] sm:$0xff] %v2814
  %9206 = vst [vmem:[%s2 + $0x78] sm:$0xff] %v2814
  %9207 = vst [vmem:[%s2 + $0x80] sm:$0xff] %v2815
  %9208 = vst [vmem:[%s2 + $0x88] sm:$0xff] %v2815
  %9209 = vst [vmem:[%s2 + $0x90] sm:$0xff] %v2816
  %9210 = vst [vmem:[%s2 + $0x98] sm:$0xff] %v2816
  %9211 = vst [vmem:[%s2 + $0xa0] sm:$0xff] %v2817
  %9212 = vst [vmem:[%s2 + $0xa8] sm:$0xff] %v2817
  %9213 = vst [vmem:[%s2 + $0xb0] sm:$0xff] %v2818
  %9214 = vst [vmem:[%s2 + $0xb8] sm:$0xff] %v2818
  %9215 = vst [vmem:[%s2 + $0xc0] sm:$0xff] %v2819
  %9216 = vst [vmem:[%s2 + $0xc8] sm:$0xff] %v2819
  %9217 = vst [vmem:[%s2 + $0xd0] sm:$0xff] %v2820
  %9218 = vst [vmem:[%s2 + $0xd8] sm:$0xff] %v2820
  %9219 = vst [vmem:[%s2 + $0xe0] sm:$0xff] %v2821
  %9220 = vst [vmem:[%s2 + $0xe8] sm:$0xff] %v2821
  %9221 = vst [vmem:[%s2 + $0xf0] sm:$0xff] %v2822
  %9222 = vst [vmem:[%s2 + $0xf8] sm:$0xff] %v2822
  %9223 = vst [vmem:[%s2 + $0x100] sm:$0xff] %v9063
  %9224 = vst [vmem:[%s2 + $0x108] sm:$0xff] %v9175
  %9225 = vst [vmem:[%s2 + $0x110] sm:$0xff] %v9064
  %9226 = vst [vmem:[%s2 + $0x118] sm:$0xff] %v9176
  %9227 = vst [vmem:[%s2 + $0x120] sm:$0xff] %v9065
  %9228 = vst [vmem:[%s2 + $0x128] sm:$0xff] %v9177
  %9229 = vst [vmem:[%s2 + $0x130] sm:$0xff] %v9066
  %9230 = vst [vmem:[%s2 + $0x138] sm:$0xff] %v9178
  %9231 = vst [vmem:[%s2 + $0x140] sm:$0xff] %v9067
  %9232 = vst [vmem:[%s2 + $0x148] sm:$0xff] %v9179
  %9233 = vst [vmem:[%s2 + $0x150] sm:$0xff] %v9068
  %9234 = vst [vmem:[%s2 + $0x158] sm:$0xff] %v9180
  %9235 = vst [vmem:[%s2 + $0x160] sm:$0xff] %v9069
  %9236 = vst [vmem:[%s2 + $0x168] sm:$0xff] %v9181
  %9237 = vst [vmem:[%s2 + $0x170] sm:$0xff] %v9070
  %9238 = vst [vmem:[%s2 + $0x178] sm:$0xff] %v9182
  %9239 = vst [vmem:[%s2 + $0x180] sm:$0xff] %v9071
  %9240 = vst [vmem:[%s2 + $0x188] sm:$0xff] %v9183
  %9241 = vst [vmem:[%s2 + $0x190] sm:$0xff] %v9072
  %9242 = vst [vmem:[%s2 + $0x198] sm:$0xff] %v9184
  %9243 = vst [vmem:[%s2 + $0x1a0] sm:$0xff] %v9073
  %9244 = vst [vmem:[%s2 + $0x1a8] sm:$0xff] %v9185
  %9245 = vst [vmem:[%s2 + $0x1b0] sm:$0xff] %v9074
  %9246 = vst [vmem:[%s2 + $0x1b8] sm:$0xff] %v9186
  %9247 = vst [vmem:[%s2 + $0x1c0] sm:$0xff] %v9075
  %9248 = vst [vmem:[%s2 + $0x1c8] sm:$0xff] %v9187
  %9249 = vst [vmem:[%s2 + $0x1d0] sm:$0xff] %v9076
  %9250 = vst [vmem:[%s2 + $0x1d8] sm:$0xff] %v9188
  %9251 = vst [vmem:[%s2 + $0x1e0] sm:$0xff] %v9077
  %9252 = vst [vmem:[%s2 + $0x1e8] sm:$0xff] %v9189
  %9253 = vst [vmem:[%s2 + $0x1f0] sm:$0xff] %v9078
  %9254 = vst [vmem:[%s2 + $0x1f8] sm:$0xff] %v9190
  // Predicated region
  $region10: #{position_embedding_2d_learned.1} parent=0 // pred_check
    _
  $region11: #{position_embedding_2d_learned.1} parent=0 // pred_check_branch
    %9256 = sbr.rel (0) target = $region13
  $region12: #{position_embedding_2d_learned.1} parent=0 // pred_region
    _
  $region13: #{position_embedding_2d_learned.1} parent=0 // pred_fallthru
    _
  // Predicated region
  $region14: #{position_embedding_2d_learned.1} parent=0 // pred_check
    _
  $region15: #{position_embedding_2d_learned.1} parent=0 // pred_check_branch
    %9258 = sbr.rel (0) target = $region17
  $region16: #{position_embedding_2d_learned.1} parent=0 // pred_region
    _
  $region17: #{position_embedding_2d_learned.1} parent=0 // pred_fallthru
    _

</llo_original>
